<compile_context>
chip_gen: v7x
topology: tpu7x:2x2x1
jax: 0.10.0
libtpu: 0.0.40
codegen_flags: <defaults>
</compile_context>

<pallas_src>
import functools

import jax
import jax.numpy as jnp
import numpy as np
from jax import lax
from jax.experimental import pallas as pl
from jax.experimental.pallas import tpu as pltpu

HIDDEN_SIZE = 80      # H, model hidden size (matches PyTorch module)
HP = 128              # lane-padded hidden size used inside the kernel


# ----------------------------------------------------------------------------
# Pallas kernel: the whole recurrence runs in one kernel invocation; the h/c
# states and the fed-back output live in the fori_loop carry (vregs).
# ----------------------------------------------------------------------------
def seq_kernel(x_ref,
               w1i_ref, w1h_ref, b1_ref,
               w2i_ref, w2h_ref, b2_ref,
               wl_ref, bl_ref,
               out_ref,
               *, seq_len, future, batch, unroll_seq, unroll_fut):
    B = batch
    G = 4 * HP

    # --- hoist loop-invariant small operands (JAX does not CSE broadcasts) ---
    w1i = w1i_ref[...]                                   # (1, 4*HP)
    b1 = jnp.broadcast_to(b1_ref[...], (B, G))           # (B, 4*HP)
    b2 = jnp.broadcast_to(b2_ref[...], (B, G))           # (B, 4*HP)
    wl = wl_ref[...]                                     # (1, HP)
    bl = jnp.broadcast_to(bl_ref[...], (B, 1))           # (B, 1)

    def gates(z, c):
        # PyTorch gate order i, f, g, o; each gate block is 128-lane aligned.
        i = jax.nn.sigmoid(z[:, 0 * HP:1 * HP])
        f = jax.nn.sigmoid(z[:, 1 * HP:2 * HP])
        g = jnp.tanh(z[:, 2 * HP:3 * HP])
        o = jax.nn.sigmoid(z[:, 3 * HP:4 * HP])
        c_new = f * c + i * g
        h_new = o * jnp.tanh(c_new)
        return h_new, c_new

    def step(x_t, h1, c1, h2, c2):
        # lstm1: K=1 input matmul replaced by a VPU broadcast-multiply.
        z1 = (x_t * w1i
              + jnp.dot(h1, w1h_ref[...], preferred_element_type=jnp.float32)
              + b1)
        h1n, c1n = gates(z1, c1)
        # lstm2: two K=128 MXU dots; the h2 (previous-state) dot is independent
        # of this step's lstm1 result, so the scheduler can start it early.
        z2 = (jnp.dot(h1n, w2i_ref[...], preferred_element_type=jnp.float32)
              + jnp.dot(h2, w2h_ref[...], preferred_element_type=jnp.float32)
              + b2)
        h2n, c2n = gates(z2, c2)
        # linear head (N=1): elementwise multiply + lane reduction (XLU).
        out = jnp.sum(h2n * wl, axis=-1, keepdims=True) + bl   # (B, 1)
        return out, h1n, c1n, h2n, c2n

    zeros = jnp.zeros((B, HP), jnp.float32)
    init = (zeros, zeros, zeros, zeros, jnp.zeros((B, 1), jnp.float32))

    def body(t, carry):
        h1, c1, h2, c2, _ = carry
        out, h1, c1, h2, c2 = step(x_ref[t], h1, c1, h2, c2)
        out_ref[t] = out
        return (h1, c1, h2, c2, out)

    carry = lax.fori_loop(0, seq_len, body, init, unroll=unroll_seq)

    if future > 0:
        def fbody(k, carry):
            h1, c1, h2, c2, prev = carry
            out, h1, c1, h2, c2 = step(prev, h1, c1, h2, c2)
            out_ref[seq_len + k] = out
            return (h1, c1, h2, c2, out)

        lax.fori_loop(0, future, fbody, carry, unroll=unroll_fut)


# ----------------------------------------------------------------------------
# Wrapper: gate-aligned weight packing + pallas_call
# ----------------------------------------------------------------------------
def _pad_gates(w_t):
    """(in_dim, 4*H) -> (in_dim, 4*HP): zero-pad each 80-wide gate block to 128."""
    in_dim = w_t.shape[0]
    w4 = w_t.reshape(in_dim, 4, HIDDEN_SIZE)
    w4 = jnp.pad(w4, ((0, 0), (0, 0), (0, HP - HIDDEN_SIZE)))
    return w4.reshape(in_dim, 4 * HP)


def _pad_rows(w):
    """Zero-pad the contraction (row) dim 80 -> 128."""
    return jnp.pad(w, ((0, HP - HIDDEN_SIZE), (0, 0)))


def sequence_pallas(x, params, future=0):
    """x: [B, T] float32  ->  [B, T + future] float32."""
    B, T = x.shape
    H = HIDDEN_SIZE
    x3 = jnp.transpose(x)[:, :, None].astype(jnp.float32)  # (T, B, 1)

    f32 = lambda a: jnp.asarray(a, jnp.float32)

    # lstm1
    w1i = _pad_gates(f32(params["w_ih1"]).T)                                 # (1, 4*HP)
    w1h = _pad_rows(_pad_gates(f32(params["w_hh1"]).T))                      # (HP, 4*HP)
    b1 = _pad_gates((f32(params["b_ih1"]) + f32(params["b_hh1"]))[None, :])  # (1, 4*HP)
    # lstm2 (ih and hh kept separate: the hh dot is scheduled off the critical chain)
    w2i = _pad_rows(_pad_gates(f32(params["w_ih2"]).T))                      # (HP, 4*HP)
    w2h = _pad_rows(_pad_gates(f32(params["w_hh2"]).T))                      # (HP, 4*HP)
    b2 = _pad_gates((f32(params["b_ih2"]) + f32(params["b_hh2"]))[None, :])  # (1, 4*HP)
    # linear head
    wl = jnp.pad(f32(params["w_lin"]), ((0, 0), (0, HP - H)))                # (1, HP)
    bl = f32(params["b_lin"])[None, :]                                       # (1, 1)
    # NOTE: lstm3/lstm4 weights are intentionally unused (dead compute, see header).

    inputs = [x3, w1i, w1h, b1, w2i, w2h, b2, wl, bl]

    kern = functools.partial(
        seq_kernel, seq_len=T, future=future, batch=B,
        unroll_seq=(True if T <= 16 else 8),
        unroll_fut=(True if future <= 16 else 8))

    out = pl.pallas_call(
        kern,
        out_shape=jax.ShapeDtypeStruct((T + future, B, 1), jnp.float32),
        in_specs=[pl.BlockSpec(memory_space=pltpu.MemorySpace.VMEM)] * len(inputs),
        out_specs=pl.BlockSpec(memory_space=pltpu.MemorySpace.VMEM),
    )(*inputs)
    return jnp.transpose(out[:, :, 0])  # (B, T + future)


# ----------------------------------------------------------------------------
# Deterministic parameter construction (PyTorch-style uniform(-1/sqrt(H), 1/sqrt(H)))
# ----------------------------------------------------------------------------
def make_params(key):
    H = HIDDEN_SIZE
    bound = 1.0 / np.sqrt(H)
    keys = iter(jax.random.split(key, 32))

    def u(shape):
        return jax.random.uniform(next(keys), shape, jnp.float32, -bound, bound)

    p = {}
    in_sizes = {1: 1, 2: H, 3: H, 4: H}
    for i in (1, 2, 3, 4):
        p[f"w_ih{i}"] = u((4 * H, in_sizes[i]))
        p[f"w_hh{i}"] = u((4 * H, H))
        p[f"b_ih{i}"] = u((4 * H,))
        p[f"b_hh{i}"] = u((4 * H,))
    p["w_lin"] = u((1, H))
    p["b_lin"] = u((1,))
    return p


# ----------------------------------------------------------------------------
# Pure-JAX reference mirroring the PyTorch forward *with all four cells*,
# so it also validates that dropping lstm3/lstm4 in the kernel is side-effect free.
# ----------------------------------------------------------------------------
def sequence_ref(x, params, future=0):
    H = HIDDEN_SIZE
    B, T = x.shape

    def cell(xin, h, c, wih, whh, bih, bhh):
        z = xin @ wih.T + h @ whh.T + bih + bhh
        i = jax.nn.sigmoid(z[:, 0 * H:1 * H])
        f = jax.nn.sigmoid(z[:, 1 * H:2 * H])
        g = jnp.tanh(z[:, 2 * H:3 * H])
        o = jax.nn.sigmoid(z[:, 3 * H:4 * H])
        c_new = f * c + i * g
        h_new = o * jnp.tanh(c_new)
        return h_new, c_new

    zeros = jnp.zeros((B, H), jnp.float32)
    h1 = c1 = h2 = c2 = h3 = c3 = h4 = c4 = zeros
    outputs = []
    output = jnp.zeros((B, 1), jnp.float32)
    for t in range(T):
        x_t = x[:, t:t + 1]
        h1, c1 = cell(x_t, h1, c1, params["w_ih1"], params["w_hh1"], params["b_ih1"], params["b_hh1"])
        h2, c2 = cell(h1, h2, c2, params["w_ih2"], params["w_hh2"], params["b_ih2"], params["b_hh2"])
        h3, c3 = cell(h2, h3, c3, params["w_ih3"], params["w_hh3"], params["b_ih3"], params["b_hh3"])
        h4, c4 = cell(h3, h4, c4, params["w_ih4"], params["w_hh4"], params["b_ih4"], params["b_hh4"])
        output = h2 @ params["w_lin"].T + params["b_lin"]
        outputs.append(output)
    for _ in range(future):
        h1, c1 = cell(output, h1, c1, params["w_ih1"], params["w_hh1"], params["b_ih1"], params["b_hh1"])
        h2, c2 = cell(h1, h2, c2, params["w_ih2"], params["w_hh2"], params["b_ih2"], params["b_hh2"])
        h3, c3 = cell(h2, h3, c3, params["w_ih3"], params["w_hh3"], params["b_ih3"], params["b_hh3"])
        h4, c4 = cell(h3, h4, c4, params["w_ih4"], params["w_hh4"], params["b_ih4"], params["b_hh4"])
        output = h2 @ params["w_lin"].T + params["b_lin"]
        outputs.append(output)
    return jnp.concatenate(outputs, axis=1)


if __name__ == "__main__":
    B, T = 2, 8

    key = jax.random.PRNGKey(0)
    k_x, k_p = jax.random.split(key)
    x = jax.random.normal(k_x, (B, T), jnp.float32)
    params = make_params(k_p)

    for fut in (0, 4):  # exercise both the teacher-forced and autoregressive paths
        out = jax.block_until_ready(sequence_pallas(x, params, future=fut))
        ref = sequence_ref(x, params, future=fut)
        assert out.shape == (B, T + fut), out.shape
        np.testing.assert_allclose(np.asarray(out), np.asarray(ref), atol=5e-5, rtol=5e-5)

    print("KERNEL_OK")
</pallas_src>

<mosaic_0001>
module attributes {stable_mosaic.version = 11 : i64} {
  func.func @seq_kernel(%arg0: memref<8x2x1xf32, #tpu.memory_space<vmem>>, %arg1: memref<1x512xf32, #tpu.memory_space<vmem>>, %arg2: memref<128x512xf32, #tpu.memory_space<vmem>>, %arg3: memref<1x512xf32, #tpu.memory_space<vmem>>, %arg4: memref<128x512xf32, #tpu.memory_space<vmem>>, %arg5: memref<128x512xf32, #tpu.memory_space<vmem>>, %arg6: memref<1x512xf32, #tpu.memory_space<vmem>>, %arg7: memref<1x128xf32, #tpu.memory_space<vmem>>, %arg8: memref<1x1xf32, #tpu.memory_space<vmem>>, %arg9: memref<8x2x1xf32, #tpu.memory_space<vmem>>) attributes {dimension_semantics = [], scalar_prefetch = 0 : i64, scratch_operands = 0 : i64, tpu.core_type = #tpu.core_type<tc>} {
    %c0 = arith.constant 0 : index
    %c0_0 = arith.constant 0 : index
    %0 = vector.load %arg1[%c0, %c0_0] : memref<1x512xf32, #tpu.memory_space<vmem>>, vector<1x512xf32>
    %c0_1 = arith.constant 0 : index
    %c0_2 = arith.constant 0 : index
    %1 = vector.load %arg3[%c0_1, %c0_2] : memref<1x512xf32, #tpu.memory_space<vmem>>, vector<1x512xf32>
    %2 = vector.shape_cast %1 : vector<1x512xf32> to vector<1x512xf32>
    %3 = vector.broadcast %2 : vector<1x512xf32> to vector<2x512xf32>
    %c0_3 = arith.constant 0 : index
    %c0_4 = arith.constant 0 : index
    %4 = vector.load %arg6[%c0_3, %c0_4] : memref<1x512xf32, #tpu.memory_space<vmem>>, vector<1x512xf32>
    %5 = vector.shape_cast %4 : vector<1x512xf32> to vector<1x512xf32>
    %6 = vector.broadcast %5 : vector<1x512xf32> to vector<2x512xf32>
    %c0_5 = arith.constant 0 : index
    %c0_6 = arith.constant 0 : index
    %7 = vector.load %arg7[%c0_5, %c0_6] : memref<1x128xf32, #tpu.memory_space<vmem>>, vector<1x128xf32>
    %c0_7 = arith.constant 0 : index
    %c0_8 = arith.constant 0 : index
    %8 = vector.load %arg8[%c0_7, %c0_8] : memref<1x1xf32, #tpu.memory_space<vmem>>, vector<1x1xf32>
    %9 = vector.shape_cast %8 : vector<1x1xf32> to vector<1x1xf32>
    %10 = vector.broadcast %9 : vector<1x1xf32> to vector<2x1xf32>
    %cst = arith.constant 0.000000e+00 : f32
    %11 = vector.broadcast %cst : f32 to vector<2x128xf32>
    %c0_i32 = arith.constant 0 : i32
    %12 = arith.index_cast %c0_i32 : i32 to index
    %c0_9 = arith.constant 0 : index
    %c0_10 = arith.constant 0 : index
    %13 = vector.load %arg0[%12, %c0_9, %c0_10] : memref<8x2x1xf32, #tpu.memory_space<vmem>>, vector<1x2x1xf32>
    %14 = vector.shape_cast %13 : vector<1x2x1xf32> to vector<2x1xf32>
    %15 = vector.broadcast %14 : vector<2x1xf32> to vector<2x512xf32>
    %16 = vector.broadcast %0 : vector<1x512xf32> to vector<2x512xf32>
    %17 = arith.mulf %15, %16 : vector<2x512xf32>
    %c0_11 = arith.constant 0 : index
    %c0_12 = arith.constant 0 : index
    %18 = vector.load %arg2[%c0_11, %c0_12] : memref<128x512xf32, #tpu.memory_space<vmem>>, vector<128x512xf32>
    %cst_13 = arith.constant dense<0.000000e+00> : vector<2x512xf32>
    %19 = tpu.matmul %11, %18, %cst_13 {dimension_numbers = #tpu.dot_dimension_numbers<[1], [0], [0], [1], [0, 0, 1, 1], [], []>} : vector<2x128xf32>, vector<128x512xf32>, vector<2x512xf32> -> vector<2x512xf32>
    %20 = arith.addf %17, %19 : vector<2x512xf32>
    %21 = arith.addf %20, %3 : vector<2x512xf32>
    %22 = vector.extract_strided_slice %21 {offsets = [0, 0], sizes = [2, 128], strides = [1, 1]} : vector<2x512xf32> to vector<2x128xf32>
    %23 = arith.negf %22 : vector<2x128xf32>
    %24 = math.exp %23 : vector<2x128xf32>
    %cst_14 = arith.constant 1.000000e+00 : f32
    %25 = vector.broadcast %cst_14 : f32 to vector<2x128xf32>
    %26 = arith.addf %25, %24 : vector<2x128xf32>
    %27 = arith.divf %25, %26 : vector<2x128xf32>
    %28 = vector.extract_strided_slice %21 {offsets = [0, 128], sizes = [2, 128], strides = [1, 1]} : vector<2x512xf32> to vector<2x128xf32>
    %29 = arith.negf %28 : vector<2x128xf32>
    %30 = math.exp %29 : vector<2x128xf32>
    %cst_15 = arith.constant 1.000000e+00 : f32
    %31 = vector.broadcast %cst_15 : f32 to vector<2x128xf32>
    %32 = arith.addf %31, %30 : vector<2x128xf32>
    %33 = arith.divf %31, %32 : vector<2x128xf32>
    %34 = vector.extract_strided_slice %21 {offsets = [0, 256], sizes = [2, 128], strides = [1, 1]} : vector<2x512xf32> to vector<2x128xf32>
    %35 = math.tanh %34 : vector<2x128xf32>
    %36 = vector.extract_strided_slice %21 {offsets = [0, 384], sizes = [2, 128], strides = [1, 1]} : vector<2x512xf32> to vector<2x128xf32>
    %37 = arith.negf %36 : vector<2x128xf32>
    %38 = math.exp %37 : vector<2x128xf32>
    %cst_16 = arith.constant 1.000000e+00 : f32
    %39 = vector.broadcast %cst_16 : f32 to vector<2x128xf32>
    %40 = arith.addf %39, %38 : vector<2x128xf32>
    %41 = arith.divf %39, %40 : vector<2x128xf32>
    %42 = arith.mulf %33, %11 : vector<2x128xf32>
    %43 = arith.mulf %27, %35 : vector<2x128xf32>
    %44 = arith.addf %42, %43 : vector<2x128xf32>
    %45 = math.tanh %44 : vector<2x128xf32>
    %46 = arith.mulf %41, %45 : vector<2x128xf32>
    %c0_17 = arith.constant 0 : index
    %c0_18 = arith.constant 0 : index
    %47 = vector.load %arg4[%c0_17, %c0_18] : memref<128x512xf32, #tpu.memory_space<vmem>>, vector<128x512xf32>
    %cst_19 = arith.constant dense<0.000000e+00> : vector<2x512xf32>
    %48 = tpu.matmul %46, %47, %cst_19 {dimension_numbers = #tpu.dot_dimension_numbers<[1], [0], [0], [1], [0, 0, 1, 1], [], []>} : vector<2x128xf32>, vector<128x512xf32>, vector<2x512xf32> -> vector<2x512xf32>
    %c0_20 = arith.constant 0 : index
    %c0_21 = arith.constant 0 : index
    %49 = vector.load %arg5[%c0_20, %c0_21] : memref<128x512xf32, #tpu.memory_space<vmem>>, vector<128x512xf32>
    %cst_22 = arith.constant dense<0.000000e+00> : vector<2x512xf32>
    %50 = tpu.matmul %11, %49, %cst_22 {dimension_numbers = #tpu.dot_dimension_numbers<[1], [0], [0], [1], [0, 0, 1, 1], [], []>} : vector<2x128xf32>, vector<128x512xf32>, vector<2x512xf32> -> vector<2x512xf32>
    %51 = arith.addf %48, %50 : vector<2x512xf32>
    %52 = arith.addf %51, %6 : vector<2x512xf32>
    %53 = vector.extract_strided_slice %52 {offsets = [0, 0], sizes = [2, 128], strides = [1, 1]} : vector<2x512xf32> to vector<2x128xf32>
    %54 = arith.negf %53 : vector<2x128xf32>
    %55 = math.exp %54 : vector<2x128xf32>
    %cst_23 = arith.constant 1.000000e+00 : f32
    %56 = vector.broadcast %cst_23 : f32 to vector<2x128xf32>
    %57 = arith.addf %56, %55 : vector<2x128xf32>
    %58 = arith.divf %56, %57 : vector<2x128xf32>
    %59 = vector.extract_strided_slice %52 {offsets = [0, 128], sizes = [2, 128], strides = [1, 1]} : vector<2x512xf32> to vector<2x128xf32>
    %60 = arith.negf %59 : vector<2x128xf32>
    %61 = math.exp %60 : vector<2x128xf32>
    %cst_24 = arith.constant 1.000000e+00 : f32
    %62 = vector.broadcast %cst_24 : f32 to vector<2x128xf32>
    %63 = arith.addf %62, %61 : vector<2x128xf32>
    %64 = arith.divf %62, %63 : vector<2x128xf32>
    %65 = vector.extract_strided_slice %52 {offsets = [0, 256], sizes = [2, 128], strides = [1, 1]} : vector<2x512xf32> to vector<2x128xf32>
    %66 = math.tanh %65 : vector<2x128xf32>
    %67 = vector.extract_strided_slice %52 {offsets = [0, 384], sizes = [2, 128], strides = [1, 1]} : vector<2x512xf32> to vector<2x128xf32>
    %68 = arith.negf %67 : vector<2x128xf32>
    %69 = math.exp %68 : vector<2x128xf32>
    %cst_25 = arith.constant 1.000000e+00 : f32
    %70 = vector.broadcast %cst_25 : f32 to vector<2x128xf32>
    %71 = arith.addf %70, %69 : vector<2x128xf32>
    %72 = arith.divf %70, %71 : vector<2x128xf32>
    %73 = arith.mulf %64, %11 : vector<2x128xf32>
    %74 = arith.mulf %58, %66 : vector<2x128xf32>
    %75 = arith.addf %73, %74 : vector<2x128xf32>
    %76 = math.tanh %75 : vector<2x128xf32>
    %77 = arith.mulf %72, %76 : vector<2x128xf32>
    %78 = vector.broadcast %7 : vector<1x128xf32> to vector<2x128xf32>
    %79 = arith.mulf %77, %78 : vector<2x128xf32>
    %cst_26 = arith.constant dense<0.000000e+00> : vector<2xf32>
    %80 = vector.multi_reduction <add>, %79, %cst_26 [1] : vector<2x128xf32> to vector<2xf32>
    %81 = vector.shape_cast %80 : vector<2xf32> to vector<2x1xf32>
    %82 = arith.addf %81, %10 : vector<2x1xf32>
    %83 = arith.index_cast %c0_i32 : i32 to index
    %c0_27 = arith.constant 0 : index
    %c0_28 = arith.constant 0 : index
    %84 = vector.load %arg9[%83, %c0_27, %c0_28] : memref<8x2x1xf32, #tpu.memory_space<vmem>>, vector<1x2x1xf32>
    %85 = vector.shape_cast %84 : vector<1x2x1xf32> to vector<2x1xf32>
    %86 = vector.shape_cast %82 : vector<2x1xf32> to vector<1x2x1xf32>
    tpu.vector_store %arg9[%83, %c0_27, %c0_28], %86 {strides = array<i32>} : memref<8x2x1xf32, #tpu.memory_space<vmem>>, vector<1x2x1xf32>,
    %c1_i32 = arith.constant 1 : i32
    %87 = arith.index_cast %c1_i32 : i32 to index
    %c0_29 = arith.constant 0 : index
    %c0_30 = arith.constant 0 : index
    %88 = vector.load %arg0[%87, %c0_29, %c0_30] : memref<8x2x1xf32, #tpu.memory_space<vmem>>, vector<1x2x1xf32>
    %89 = vector.shape_cast %88 : vector<1x2x1xf32> to vector<2x1xf32>
    %90 = vector.broadcast %89 : vector<2x1xf32> to vector<2x512xf32>
    %91 = vector.broadcast %0 : vector<1x512xf32> to vector<2x512xf32>
    %92 = arith.mulf %90, %91 : vector<2x512xf32>
    %c0_31 = arith.constant 0 : index
    %c0_32 = arith.constant 0 : index
    %93 = vector.load %arg2[%c0_31, %c0_32] : memref<128x512xf32, #tpu.memory_space<vmem>>, vector<128x512xf32>
    %cst_33 = arith.constant dense<0.000000e+00> : vector<2x512xf32>
    %94 = tpu.matmul %46, %93, %cst_33 {dimension_numbers = #tpu.dot_dimension_numbers<[1], [0], [0], [1], [0, 0, 1, 1], [], []>} : vector<2x128xf32>, vector<128x512xf32>, vector<2x512xf32> -> vector<2x512xf32>
    %95 = arith.addf %92, %94 : vector<2x512xf32>
    %96 = arith.addf %95, %3 : vector<2x512xf32>
    %97 = vector.extract_strided_slice %96 {offsets = [0, 0], sizes = [2, 128], strides = [1, 1]} : vector<2x512xf32> to vector<2x128xf32>
    %98 = arith.negf %97 : vector<2x128xf32>
    %99 = math.exp %98 : vector<2x128xf32>
    %cst_34 = arith.constant 1.000000e+00 : f32
    %100 = vector.broadcast %cst_34 : f32 to vector<2x128xf32>
    %101 = arith.addf %100, %99 : vector<2x128xf32>
    %102 = arith.divf %100, %101 : vector<2x128xf32>
    %103 = vector.extract_strided_slice %96 {offsets = [0, 128], sizes = [2, 128], strides = [1, 1]} : vector<2x512xf32> to vector<2x128xf32>
    %104 = arith.negf %103 : vector<2x128xf32>
    %105 = math.exp %104 : vector<2x128xf32>
    %cst_35 = arith.constant 1.000000e+00 : f32
    %106 = vector.broadcast %cst_35 : f32 to vector<2x128xf32>
    %107 = arith.addf %106, %105 : vector<2x128xf32>
    %108 = arith.divf %106, %107 : vector<2x128xf32>
    %109 = vector.extract_strided_slice %96 {offsets = [0, 256], sizes = [2, 128], strides = [1, 1]} : vector<2x512xf32> to vector<2x128xf32>
    %110 = math.tanh %109 : vector<2x128xf32>
    %111 = vector.extract_strided_slice %96 {offsets = [0, 384], sizes = [2, 128], strides = [1, 1]} : vector<2x512xf32> to vector<2x128xf32>
    %112 = arith.negf %111 : vector<2x128xf32>
    %113 = math.exp %112 : vector<2x128xf32>
    %cst_36 = arith.constant 1.000000e+00 : f32
    %114 = vector.broadcast %cst_36 : f32 to vector<2x128xf32>
    %115 = arith.addf %114, %113 : vector<2x128xf32>
    %116 = arith.divf %114, %115 : vector<2x128xf32>
    %117 = arith.mulf %108, %44 : vector<2x128xf32>
    %118 = arith.mulf %102, %110 : vector<2x128xf32>
    %119 = arith.addf %117, %118 : vector<2x128xf32>
    %120 = math.tanh %119 : vector<2x128xf32>
    %121 = arith.mulf %116, %120 : vector<2x128xf32>
    %c0_37 = arith.constant 0 : index
    %c0_38 = arith.constant 0 : index
    %122 = vector.load %arg4[%c0_37, %c0_38] : memref<128x512xf32, #tpu.memory_space<vmem>>, vector<128x512xf32>
    %cst_39 = arith.constant dense<0.000000e+00> : vector<2x512xf32>
    %123 = tpu.matmul %121, %122, %cst_39 {dimension_numbers = #tpu.dot_dimension_numbers<[1], [0], [0], [1], [0, 0, 1, 1], [], []>} : vector<2x128xf32>, vector<128x512xf32>, vector<2x512xf32> -> vector<2x512xf32>
    %c0_40 = arith.constant 0 : index
    %c0_41 = arith.constant 0 : index
    %124 = vector.load %arg5[%c0_40, %c0_41] : memref<128x512xf32, #tpu.memory_space<vmem>>, vector<128x512xf32>
    %cst_42 = arith.constant dense<0.000000e+00> : vector<2x512xf32>
    %125 = tpu.matmul %77, %124, %cst_42 {dimension_numbers = #tpu.dot_dimension_numbers<[1], [0], [0], [1], [0, 0, 1, 1], [], []>} : vector<2x128xf32>, vector<128x512xf32>, vector<2x512xf32> -> vector<2x512xf32>
    %126 = arith.addf %123, %125 : vector<2x512xf32>
    %127 = arith.addf %126, %6 : vector<2x512xf32>
    %128 = vector.extract_strided_slice %127 {offsets = [0, 0], sizes = [2, 128], strides = [1, 1]} : vector<2x512xf32> to vector<2x128xf32>
    %129 = arith.negf %128 : vector<2x128xf32>
    %130 = math.exp %129 : vector<2x128xf32>
    %cst_43 = arith.constant 1.000000e+00 : f32
    %131 = vector.broadcast %cst_43 : f32 to vector<2x128xf32>
    %132 = arith.addf %131, %130 : vector<2x128xf32>
    %133 = arith.divf %131, %132 : vector<2x128xf32>
    %134 = vector.extract_strided_slice %127 {offsets = [0, 128], sizes = [2, 128], strides = [1, 1]} : vector<2x512xf32> to vector<2x128xf32>
    %135 = arith.negf %134 : vector<2x128xf32>
    %136 = math.exp %135 : vector<2x128xf32>
    %cst_44 = arith.constant 1.000000e+00 : f32
    %137 = vector.broadcast %cst_44 : f32 to vector<2x128xf32>
    %138 = arith.addf %137, %136 : vector<2x128xf32>
    %139 = arith.divf %137, %138 : vector<2x128xf32>
    %140 = vector.extract_strided_slice %127 {offsets = [0, 256], sizes = [2, 128], strides = [1, 1]} : vector<2x512xf32> to vector<2x128xf32>
    %141 = math.tanh %140 : vector<2x128xf32>
    %142 = vector.extract_strided_slice %127 {offsets = [0, 384], sizes = [2, 128], strides = [1, 1]} : vector<2x512xf32> to vector<2x128xf32>
    %143 = arith.negf %142 : vector<2x128xf32>
    %144 = math.exp %143 : vector<2x128xf32>
    %cst_45 = arith.constant 1.000000e+00 : f32
    %145 = vector.broadcast %cst_45 : f32 to vector<2x128xf32>
    %146 = arith.addf %145, %144 : vector<2x128xf32>
    %147 = arith.divf %145, %146 : vector<2x128xf32>
    %148 = arith.mulf %139, %75 : vector<2x128xf32>
    %149 = arith.mulf %133, %141 : vector<2x128xf32>
    %150 = arith.addf %148, %149 : vector<2x128xf32>
    %151 = math.tanh %150 : vector<2x128xf32>
    %152 = arith.mulf %147, %151 : vector<2x128xf32>
    %153 = vector.broadcast %7 : vector<1x128xf32> to vector<2x128xf32>
    %154 = arith.mulf %152, %153 : vector<2x128xf32>
    %cst_46 = arith.constant dense<0.000000e+00> : vector<2xf32>
    %155 = vector.multi_reduction <add>, %154, %cst_46 [1] : vector<2x128xf32> to vector<2xf32>
    %156 = vector.shape_cast %155 : vector<2xf32> to vector<2x1xf32>
    %157 = arith.addf %156, %10 : vector<2x1xf32>
    %158 = arith.index_cast %c1_i32 : i32 to index
    %c0_47 = arith.constant 0 : index
    %c0_48 = arith.constant 0 : index
    %159 = vector.load %arg9[%158, %c0_47, %c0_48] : memref<8x2x1xf32, #tpu.memory_space<vmem>>, vector<1x2x1xf32>
    %160 = vector.shape_cast %159 : vector<1x2x1xf32> to vector<2x1xf32>
    %161 = vector.shape_cast %157 : vector<2x1xf32> to vector<1x2x1xf32>
    tpu.vector_store %arg9[%158, %c0_47, %c0_48], %161 {strides = array<i32>} : memref<8x2x1xf32, #tpu.memory_space<vmem>>, vector<1x2x1xf32>,
    %c2_i32 = arith.constant 2 : i32
    %162 = arith.index_cast %c2_i32 : i32 to index
    %c0_49 = arith.constant 0 : index
    %c0_50 = arith.constant 0 : index
    %163 = vector.load %arg0[%162, %c0_49, %c0_50] : memref<8x2x1xf32, #tpu.memory_space<vmem>>, vector<1x2x1xf32>
    %164 = vector.shape_cast %163 : vector<1x2x1xf32> to vector<2x1xf32>
    %165 = vector.broadcast %164 : vector<2x1xf32> to vector<2x512xf32>
    %166 = vector.broadcast %0 : vector<1x512xf32> to vector<2x512xf32>
    %167 = arith.mulf %165, %166 : vector<2x512xf32>
    %c0_51 = arith.constant 0 : index
    %c0_52 = arith.constant 0 : index
    %168 = vector.load %arg2[%c0_51, %c0_52] : memref<128x512xf32, #tpu.memory_space<vmem>>, vector<128x512xf32>
    %cst_53 = arith.constant dense<0.000000e+00> : vector<2x512xf32>
    %169 = tpu.matmul %121, %168, %cst_53 {dimension_numbers = #tpu.dot_dimension_numbers<[1], [0], [0], [1], [0, 0, 1, 1], [], []>} : vector<2x128xf32>, vector<128x512xf32>, vector<2x512xf32> -> vector<2x512xf32>
    %170 = arith.addf %167, %169 : vector<2x512xf32>
    %171 = arith.addf %170, %3 : vector<2x512xf32>
    %172 = vector.extract_strided_slice %171 {offsets = [0, 0], sizes = [2, 128], strides = [1, 1]} : vector<2x512xf32> to vector<2x128xf32>
    %173 = arith.negf %172 : vector<2x128xf32>
    %174 = math.exp %173 : vector<2x128xf32>
    %cst_54 = arith.constant 1.000000e+00 : f32
    %175 = vector.broadcast %cst_54 : f32 to vector<2x128xf32>
    %176 = arith.addf %175, %174 : vector<2x128xf32>
    %177 = arith.divf %175, %176 : vector<2x128xf32>
    %178 = vector.extract_strided_slice %171 {offsets = [0, 128], sizes = [2, 128], strides = [1, 1]} : vector<2x512xf32> to vector<2x128xf32>
    %179 = arith.negf %178 : vector<2x128xf32>
    %180 = math.exp %179 : vector<2x128xf32>
    %cst_55 = arith.constant 1.000000e+00 : f32
    %181 = vector.broadcast %cst_55 : f32 to vector<2x128xf32>
    %182 = arith.addf %181, %180 : vector<2x128xf32>
    %183 = arith.divf %181, %182 : vector<2x128xf32>
    %184 = vector.extract_strided_slice %171 {offsets = [0, 256], sizes = [2, 128], strides = [1, 1]} : vector<2x512xf32> to vector<2x128xf32>
    %185 = math.tanh %184 : vector<2x128xf32>
    %186 = vector.extract_strided_slice %171 {offsets = [0, 384], sizes = [2, 128], strides = [1, 1]} : vector<2x512xf32> to vector<2x128xf32>
    %187 = arith.negf %186 : vector<2x128xf32>
    %188 = math.exp %187 : vector<2x128xf32>
    %cst_56 = arith.constant 1.000000e+00 : f32
    %189 = vector.broadcast %cst_56 : f32 to vector<2x128xf32>
    %190 = arith.addf %189, %188 : vector<2x128xf32>
    %191 = arith.divf %189, %190 : vector<2x128xf32>
    %192 = arith.mulf %183, %119 : vector<2x128xf32>
    %193 = arith.mulf %177, %185 : vector<2x128xf32>
    %194 = arith.addf %192, %193 : vector<2x128xf32>
    %195 = math.tanh %194 : vector<2x128xf32>
    %196 = arith.mulf %191, %195 : vector<2x128xf32>
    %c0_57 = arith.constant 0 : index
    %c0_58 = arith.constant 0 : index
    %197 = vector.load %arg4[%c0_57, %c0_58] : memref<128x512xf32, #tpu.memory_space<vmem>>, vector<128x512xf32>
    %cst_59 = arith.constant dense<0.000000e+00> : vector<2x512xf32>
    %198 = tpu.matmul %196, %197, %cst_59 {dimension_numbers = #tpu.dot_dimension_numbers<[1], [0], [0], [1], [0, 0, 1, 1], [], []>} : vector<2x128xf32>, vector<128x512xf32>, vector<2x512xf32> -> vector<2x512xf32>
    %c0_60 = arith.constant 0 : index
    %c0_61 = arith.constant 0 : index
    %199 = vector.load %arg5[%c0_60, %c0_61] : memref<128x512xf32, #tpu.memory_space<vmem>>, vector<128x512xf32>
    %cst_62 = arith.constant dense<0.000000e+00> : vector<2x512xf32>
    %200 = tpu.matmul %152, %199, %cst_62 {dimension_numbers = #tpu.dot_dimension_numbers<[1], [0], [0], [1], [0, 0, 1, 1], [], []>} : vector<2x128xf32>, vector<128x512xf32>, vector<2x512xf32> -> vector<2x512xf32>
    %201 = arith.addf %198, %200 : vector<2x512xf32>
    %202 = arith.addf %201, %6 : vector<2x512xf32>
    %203 = vector.extract_strided_slice %202 {offsets = [0, 0], sizes = [2, 128], strides = [1, 1]} : vector<2x512xf32> to vector<2x128xf32>
    %204 = arith.negf %203 : vector<2x128xf32>
    %205 = math.exp %204 : vector<2x128xf32>
    %cst_63 = arith.constant 1.000000e+00 : f32
    %206 = vector.broadcast %cst_63 : f32 to vector<2x128xf32>
    %207 = arith.addf %206, %205 : vector<2x128xf32>
    %208 = arith.divf %206, %207 : vector<2x128xf32>
    %209 = vector.extract_strided_slice %202 {offsets = [0, 128], sizes = [2, 128], strides = [1, 1]} : vector<2x512xf32> to vector<2x128xf32>
    %210 = arith.negf %209 : vector<2x128xf32>
    %211 = math.exp %210 : vector<2x128xf32>
    %cst_64 = arith.constant 1.000000e+00 : f32
    %212 = vector.broadcast %cst_64 : f32 to vector<2x128xf32>
    %213 = arith.addf %212, %211 : vector<2x128xf32>
    %214 = arith.divf %212, %213 : vector<2x128xf32>
    %215 = vector.extract_strided_slice %202 {offsets = [0, 256], sizes = [2, 128], strides = [1, 1]} : vector<2x512xf32> to vector<2x128xf32>
    %216 = math.tanh %215 : vector<2x128xf32>
    %217 = vector.extract_strided_slice %202 {offsets = [0, 384], sizes = [2, 128], strides = [1, 1]} : vector<2x512xf32> to vector<2x128xf32>
    %218 = arith.negf %217 : vector<2x128xf32>
    %219 = math.exp %218 : vector<2x128xf32>
    %cst_65 = arith.constant 1.000000e+00 : f32
    %220 = vector.broadcast %cst_65 : f32 to vector<2x128xf32>
    %221 = arith.addf %220, %219 : vector<2x128xf32>
    %222 = arith.divf %220, %221 : vector<2x128xf32>
    %223 = arith.mulf %214, %150 : vector<2x128xf32>
    %224 = arith.mulf %208, %216 : vector<2x128xf32>
    %225 = arith.addf %223, %224 : vector<2x128xf32>
    %226 = math.tanh %225 : vector<2x128xf32>
    %227 = arith.mulf %222, %226 : vector<2x128xf32>
    %228 = vector.broadcast %7 : vector<1x128xf32> to vector<2x128xf32>
    %229 = arith.mulf %227, %228 : vector<2x128xf32>
    %cst_66 = arith.constant dense<0.000000e+00> : vector<2xf32>
    %230 = vector.multi_reduction <add>, %229, %cst_66 [1] : vector<2x128xf32> to vector<2xf32>
    %231 = vector.shape_cast %230 : vector<2xf32> to vector<2x1xf32>
    %232 = arith.addf %231, %10 : vector<2x1xf32>
    %233 = arith.index_cast %c2_i32 : i32 to index
    %c0_67 = arith.constant 0 : index
    %c0_68 = arith.constant 0 : index
    %234 = vector.load %arg9[%233, %c0_67, %c0_68] : memref<8x2x1xf32, #tpu.memory_space<vmem>>, vector<1x2x1xf32>
    %235 = vector.shape_cast %234 : vector<1x2x1xf32> to vector<2x1xf32>
    %236 = vector.shape_cast %232 : vector<2x1xf32> to vector<1x2x1xf32>
    tpu.vector_store %arg9[%233, %c0_67, %c0_68], %236 {strides = array<i32>} : memref<8x2x1xf32, #tpu.memory_space<vmem>>, vector<1x2x1xf32>,
    %c3_i32 = arith.constant 3 : i32
    %237 = arith.index_cast %c3_i32 : i32 to index
    %c0_69 = arith.constant 0 : index
    %c0_70 = arith.constant 0 : index
    %238 = vector.load %arg0[%237, %c0_69, %c0_70] : memref<8x2x1xf32, #tpu.memory_space<vmem>>, vector<1x2x1xf32>
    %239 = vector.shape_cast %238 : vector<1x2x1xf32> to vector<2x1xf32>
    %240 = vector.broadcast %239 : vector<2x1xf32> to vector<2x512xf32>
    %241 = vector.broadcast %0 : vector<1x512xf32> to vector<2x512xf32>
    %242 = arith.mulf %240, %241 : vector<2x512xf32>
    %c0_71 = arith.constant 0 : index
    %c0_72 = arith.constant 0 : index
    %243 = vector.load %arg2[%c0_71, %c0_72] : memref<128x512xf32, #tpu.memory_space<vmem>>, vector<128x512xf32>
    %cst_73 = arith.constant dense<0.000000e+00> : vector<2x512xf32>
    %244 = tpu.matmul %196, %243, %cst_73 {dimension_numbers = #tpu.dot_dimension_numbers<[1], [0], [0], [1], [0, 0, 1, 1], [], []>} : vector<2x128xf32>, vector<128x512xf32>, vector<2x512xf32> -> vector<2x512xf32>
    %245 = arith.addf %242, %244 : vector<2x512xf32>
    %246 = arith.addf %245, %3 : vector<2x512xf32>
    %247 = vector.extract_strided_slice %246 {offsets = [0, 0], sizes = [2, 128], strides = [1, 1]} : vector<2x512xf32> to vector<2x128xf32>
    %248 = arith.negf %247 : vector<2x128xf32>
    %249 = math.exp %248 : vector<2x128xf32>
    %cst_74 = arith.constant 1.000000e+00 : f32
    %250 = vector.broadcast %cst_74 : f32 to vector<2x128xf32>
    %251 = arith.addf %250, %249 : vector<2x128xf32>
    %252 = arith.divf %250, %251 : vector<2x128xf32>
    %253 = vector.extract_strided_slice %246 {offsets = [0, 128], sizes = [2, 128], strides = [1, 1]} : vector<2x512xf32> to vector<2x128xf32>
    %254 = arith.negf %253 : vector<2x128xf32>
    %255 = math.exp %254 : vector<2x128xf32>
    %cst_75 = arith.constant 1.000000e+00 : f32
    %256 = vector.broadcast %cst_75 : f32 to vector<2x128xf32>
    %257 = arith.addf %256, %255 : vector<2x128xf32>
    %258 = arith.divf %256, %257 : vector<2x128xf32>
    %259 = vector.extract_strided_slice %246 {offsets = [0, 256], sizes = [2, 128], strides = [1, 1]} : vector<2x512xf32> to vector<2x128xf32>
    %260 = math.tanh %259 : vector<2x128xf32>
    %261 = vector.extract_strided_slice %246 {offsets = [0, 384], sizes = [2, 128], strides = [1, 1]} : vector<2x512xf32> to vector<2x128xf32>
    %262 = arith.negf %261 : vector<2x128xf32>
    %263 = math.exp %262 : vector<2x128xf32>
    %cst_76 = arith.constant 1.000000e+00 : f32
    %264 = vector.broadcast %cst_76 : f32 to vector<2x128xf32>
    %265 = arith.addf %264, %263 : vector<2x128xf32>
    %266 = arith.divf %264, %265 : vector<2x128xf32>
    %267 = arith.mulf %258, %194 : vector<2x128xf32>
    %268 = arith.mulf %252, %260 : vector<2x128xf32>
    %269 = arith.addf %267, %268 : vector<2x128xf32>
    %270 = math.tanh %269 : vector<2x128xf32>
    %271 = arith.mulf %266, %270 : vector<2x128xf32>
    %c0_77 = arith.constant 0 : index
    %c0_78 = arith.constant 0 : index
    %272 = vector.load %arg4[%c0_77, %c0_78] : memref<128x512xf32, #tpu.memory_space<vmem>>, vector<128x512xf32>
    %cst_79 = arith.constant dense<0.000000e+00> : vector<2x512xf32>
    %273 = tpu.matmul %271, %272, %cst_79 {dimension_numbers = #tpu.dot_dimension_numbers<[1], [0], [0], [1], [0, 0, 1, 1], [], []>} : vector<2x128xf32>, vector<128x512xf32>, vector<2x512xf32> -> vector<2x512xf32>
    %c0_80 = arith.constant 0 : index
    %c0_81 = arith.constant 0 : index
    %274 = vector.load %arg5[%c0_80, %c0_81] : memref<128x512xf32, #tpu.memory_space<vmem>>, vector<128x512xf32>
    %cst_82 = arith.constant dense<0.000000e+00> : vector<2x512xf32>
    %275 = tpu.matmul %227, %274, %cst_82 {dimension_numbers = #tpu.dot_dimension_numbers<[1], [0], [0], [1], [0, 0, 1, 1], [], []>} : vector<2x128xf32>, vector<128x512xf32>, vector<2x512xf32> -> vector<2x512xf32>
    %276 = arith.addf %273, %275 : vector<2x512xf32>
    %277 = arith.addf %276, %6 : vector<2x512xf32>
    %278 = vector.extract_strided_slice %277 {offsets = [0, 0], sizes = [2, 128], strides = [1, 1]} : vector<2x512xf32> to vector<2x128xf32>
    %279 = arith.negf %278 : vector<2x128xf32>
    %280 = math.exp %279 : vector<2x128xf32>
    %cst_83 = arith.constant 1.000000e+00 : f32
    %281 = vector.broadcast %cst_83 : f32 to vector<2x128xf32>
    %282 = arith.addf %281, %280 : vector<2x128xf32>
    %283 = arith.divf %281, %282 : vector<2x128xf32>
    %284 = vector.extract_strided_slice %277 {offsets = [0, 128], sizes = [2, 128], strides = [1, 1]} : vector<2x512xf32> to vector<2x128xf32>
    %285 = arith.negf %284 : vector<2x128xf32>
    %286 = math.exp %285 : vector<2x128xf32>
    %cst_84 = arith.constant 1.000000e+00 : f32
    %287 = vector.broadcast %cst_84 : f32 to vector<2x128xf32>
    %288 = arith.addf %287, %286 : vector<2x128xf32>
    %289 = arith.divf %287, %288 : vector<2x128xf32>
    %290 = vector.extract_strided_slice %277 {offsets = [0, 256], sizes = [2, 128], strides = [1, 1]} : vector<2x512xf32> to vector<2x128xf32>
    %291 = math.tanh %290 : vector<2x128xf32>
    %292 = vector.extract_strided_slice %277 {offsets = [0, 384], sizes = [2, 128], strides = [1, 1]} : vector<2x512xf32> to vector<2x128xf32>
    %293 = arith.negf %292 : vector<2x128xf32>
    %294 = math.exp %293 : vector<2x128xf32>
    %cst_85 = arith.constant 1.000000e+00 : f32
    %295 = vector.broadcast %cst_85 : f32 to vector<2x128xf32>
    %296 = arith.addf %295, %294 : vector<2x128xf32>
    %297 = arith.divf %295, %296 : vector<2x128xf32>
    %298 = arith.mulf %289, %225 : vector<2x128xf32>
    %299 = arith.mulf %283, %291 : vector<2x128xf32>
    %300 = arith.addf %298, %299 : vector<2x128xf32>
    %301 = math.tanh %300 : vector<2x128xf32>
    %302 = arith.mulf %297, %301 : vector<2x128xf32>
    %303 = vector.broadcast %7 : vector<1x128xf32> to vector<2x128xf32>
    %304 = arith.mulf %302, %303 : vector<2x128xf32>
    %cst_86 = arith.constant dense<0.000000e+00> : vector<2xf32>
    %305 = vector.multi_reduction <add>, %304, %cst_86 [1] : vector<2x128xf32> to vector<2xf32>
    %306 = vector.shape_cast %305 : vector<2xf32> to vector<2x1xf32>
    %307 = arith.addf %306, %10 : vector<2x1xf32>
    %308 = arith.index_cast %c3_i32 : i32 to index
    %c0_87 = arith.constant 0 : index
    %c0_88 = arith.constant 0 : index
    %309 = vector.load %arg9[%308, %c0_87, %c0_88] : memref<8x2x1xf32, #tpu.memory_space<vmem>>, vector<1x2x1xf32>
    %310 = vector.shape_cast %309 : vector<1x2x1xf32> to vector<2x1xf32>
    %311 = vector.shape_cast %307 : vector<2x1xf32> to vector<1x2x1xf32>
    tpu.vector_store %arg9[%308, %c0_87, %c0_88], %311 {strides = array<i32>} : memref<8x2x1xf32, #tpu.memory_space<vmem>>, vector<1x2x1xf32>,
    %c4_i32 = arith.constant 4 : i32
    %312 = arith.index_cast %c4_i32 : i32 to index
    %c0_89 = arith.constant 0 : index
    %c0_90 = arith.constant 0 : index
    %313 = vector.load %arg0[%312, %c0_89, %c0_90] : memref<8x2x1xf32, #tpu.memory_space<vmem>>, vector<1x2x1xf32>
    %314 = vector.shape_cast %313 : vector<1x2x1xf32> to vector<2x1xf32>
    %315 = vector.broadcast %314 : vector<2x1xf32> to vector<2x512xf32>
    %316 = vector.broadcast %0 : vector<1x512xf32> to vector<2x512xf32>
    %317 = arith.mulf %315, %316 : vector<2x512xf32>
    %c0_91 = arith.constant 0 : index
    %c0_92 = arith.constant 0 : index
    %318 = vector.load %arg2[%c0_91, %c0_92] : memref<128x512xf32, #tpu.memory_space<vmem>>, vector<128x512xf32>
    %cst_93 = arith.constant dense<0.000000e+00> : vector<2x512xf32>
    %319 = tpu.matmul %271, %318, %cst_93 {dimension_numbers = #tpu.dot_dimension_numbers<[1], [0], [0], [1], [0, 0, 1, 1], [], []>} : vector<2x128xf32>, vector<128x512xf32>, vector<2x512xf32> -> vector<2x512xf32>
    %320 = arith.addf %317, %319 : vector<2x512xf32>
    %321 = arith.addf %320, %3 : vector<2x512xf32>
    %322 = vector.extract_strided_slice %321 {offsets = [0, 0], sizes = [2, 128], strides = [1, 1]} : vector<2x512xf32> to vector<2x128xf32>
    %323 = arith.negf %322 : vector<2x128xf32>
    %324 = math.exp %323 : vector<2x128xf32>
    %cst_94 = arith.constant 1.000000e+00 : f32
    %325 = vector.broadcast %cst_94 : f32 to vector<2x128xf32>
    %326 = arith.addf %325, %324 : vector<2x128xf32>
    %327 = arith.divf %325, %326 : vector<2x128xf32>
    %328 = vector.extract_strided_slice %321 {offsets = [0, 128], sizes = [2, 128], strides = [1, 1]} : vector<2x512xf32> to vector<2x128xf32>
    %329 = arith.negf %328 : vector<2x128xf32>
    %330 = math.exp %329 : vector<2x128xf32>
    %cst_95 = arith.constant 1.000000e+00 : f32
    %331 = vector.broadcast %cst_95 : f32 to vector<2x128xf32>
    %332 = arith.addf %331, %330 : vector<2x128xf32>
    %333 = arith.divf %331, %332 : vector<2x128xf32>
    %334 = vector.extract_strided_slice %321 {offsets = [0, 256], sizes = [2, 128], strides = [1, 1]} : vector<2x512xf32> to vector<2x128xf32>
    %335 = math.tanh %334 : vector<2x128xf32>
    %336 = vector.extract_strided_slice %321 {offsets = [0, 384], sizes = [2, 128], strides = [1, 1]} : vector<2x512xf32> to vector<2x128xf32>
    %337 = arith.negf %336 : vector<2x128xf32>
    %338 = math.exp %337 : vector<2x128xf32>
    %cst_96 = arith.constant 1.000000e+00 : f32
    %339 = vector.broadcast %cst_96 : f32 to vector<2x128xf32>
    %340 = arith.addf %339, %338 : vector<2x128xf32>
    %341 = arith.divf %339, %340 : vector<2x128xf32>
    %342 = arith.mulf %333, %269 : vector<2x128xf32>
    %343 = arith.mulf %327, %335 : vector<2x128xf32>
    %344 = arith.addf %342, %343 : vector<2x128xf32>
    %345 = math.tanh %344 : vector<2x128xf32>
    %346 = arith.mulf %341, %345 : vector<2x128xf32>
    %c0_97 = arith.constant 0 : index
    %c0_98 = arith.constant 0 : index
    %347 = vector.load %arg4[%c0_97, %c0_98] : memref<128x512xf32, #tpu.memory_space<vmem>>, vector<128x512xf32>
    %cst_99 = arith.constant dense<0.000000e+00> : vector<2x512xf32>
    %348 = tpu.matmul %346, %347, %cst_99 {dimension_numbers = #tpu.dot_dimension_numbers<[1], [0], [0], [1], [0, 0, 1, 1], [], []>} : vector<2x128xf32>, vector<128x512xf32>, vector<2x512xf32> -> vector<2x512xf32>
    %c0_100 = arith.constant 0 : index
    %c0_101 = arith.constant 0 : index
    %349 = vector.load %arg5[%c0_100, %c0_101] : memref<128x512xf32, #tpu.memory_space<vmem>>, vector<128x512xf32>
    %cst_102 = arith.constant dense<0.000000e+00> : vector<2x512xf32>
    %350 = tpu.matmul %302, %349, %cst_102 {dimension_numbers = #tpu.dot_dimension_numbers<[1], [0], [0], [1], [0, 0, 1, 1], [], []>} : vector<2x128xf32>, vector<128x512xf32>, vector<2x512xf32> -> vector<2x512xf32>
    %351 = arith.addf %348, %350 : vector<2x512xf32>
    %352 = arith.addf %351, %6 : vector<2x512xf32>
    %353 = vector.extract_strided_slice %352 {offsets = [0, 0], sizes = [2, 128], strides = [1, 1]} : vector<2x512xf32> to vector<2x128xf32>
    %354 = arith.negf %353 : vector<2x128xf32>
    %355 = math.exp %354 : vector<2x128xf32>
    %cst_103 = arith.constant 1.000000e+00 : f32
    %356 = vector.broadcast %cst_103 : f32 to vector<2x128xf32>
    %357 = arith.addf %356, %355 : vector<2x128xf32>
    %358 = arith.divf %356, %357 : vector<2x128xf32>
    %359 = vector.extract_strided_slice %352 {offsets = [0, 128], sizes = [2, 128], strides = [1, 1]} : vector<2x512xf32> to vector<2x128xf32>
    %360 = arith.negf %359 : vector<2x128xf32>
    %361 = math.exp %360 : vector<2x128xf32>
    %cst_104 = arith.constant 1.000000e+00 : f32
    %362 = vector.broadcast %cst_104 : f32 to vector<2x128xf32>
    %363 = arith.addf %362, %361 : vector<2x128xf32>
    %364 = arith.divf %362, %363 : vector<2x128xf32>
    %365 = vector.extract_strided_slice %352 {offsets = [0, 256], sizes = [2, 128], strides = [1, 1]} : vector<2x512xf32> to vector<2x128xf32>
    %366 = math.tanh %365 : vector<2x128xf32>
    %367 = vector.extract_strided_slice %352 {offsets = [0, 384], sizes = [2, 128], strides = [1, 1]} : vector<2x512xf32> to vector<2x128xf32>
    %368 = arith.negf %367 : vector<2x128xf32>
    %369 = math.exp %368 : vector<2x128xf32>
    %cst_105 = arith.constant 1.000000e+00 : f32
    %370 = vector.broadcast %cst_105 : f32 to vector<2x128xf32>
    %371 = arith.addf %370, %369 : vector<2x128xf32>
    %372 = arith.divf %370, %371 : vector<2x128xf32>
    %373 = arith.mulf %364, %300 : vector<2x128xf32>
    %374 = arith.mulf %358, %366 : vector<2x128xf32>
    %375 = arith.addf %373, %374 : vector<2x128xf32>
    %376 = math.tanh %375 : vector<2x128xf32>
    %377 = arith.mulf %372, %376 : vector<2x128xf32>
    %378 = vector.broadcast %7 : vector<1x128xf32> to vector<2x128xf32>
    %379 = arith.mulf %377, %378 : vector<2x128xf32>
    %cst_106 = arith.constant dense<0.000000e+00> : vector<2xf32>
    %380 = vector.multi_reduction <add>, %379, %cst_106 [1] : vector<2x128xf32> to vector<2xf32>
    %381 = vector.shape_cast %380 : vector<2xf32> to vector<2x1xf32>
    %382 = arith.addf %381, %10 : vector<2x1xf32>
    %383 = arith.index_cast %c4_i32 : i32 to index
    %c0_107 = arith.constant 0 : index
    %c0_108 = arith.constant 0 : index
    %384 = vector.load %arg9[%383, %c0_107, %c0_108] : memref<8x2x1xf32, #tpu.memory_space<vmem>>, vector<1x2x1xf32>
    %385 = vector.shape_cast %384 : vector<1x2x1xf32> to vector<2x1xf32>
    %386 = vector.shape_cast %382 : vector<2x1xf32> to vector<1x2x1xf32>
    tpu.vector_store %arg9[%383, %c0_107, %c0_108], %386 {strides = array<i32>} : memref<8x2x1xf32, #tpu.memory_space<vmem>>, vector<1x2x1xf32>,
    %c5_i32 = arith.constant 5 : i32
    %387 = arith.index_cast %c5_i32 : i32 to index
    %c0_109 = arith.constant 0 : index
    %c0_110 = arith.constant 0 : index
    %388 = vector.load %arg0[%387, %c0_109, %c0_110] : memref<8x2x1xf32, #tpu.memory_space<vmem>>, vector<1x2x1xf32>
    %389 = vector.shape_cast %388 : vector<1x2x1xf32> to vector<2x1xf32>
    %390 = vector.broadcast %389 : vector<2x1xf32> to vector<2x512xf32>
    %391 = vector.broadcast %0 : vector<1x512xf32> to vector<2x512xf32>
    %392 = arith.mulf %390, %391 : vector<2x512xf32>
    %c0_111 = arith.constant 0 : index
    %c0_112 = arith.constant 0 : index
    %393 = vector.load %arg2[%c0_111, %c0_112] : memref<128x512xf32, #tpu.memory_space<vmem>>, vector<128x512xf32>
    %cst_113 = arith.constant dense<0.000000e+00> : vector<2x512xf32>
    %394 = tpu.matmul %346, %393, %cst_113 {dimension_numbers = #tpu.dot_dimension_numbers<[1], [0], [0], [1], [0, 0, 1, 1], [], []>} : vector<2x128xf32>, vector<128x512xf32>, vector<2x512xf32> -> vector<2x512xf32>
    %395 = arith.addf %392, %394 : vector<2x512xf32>
    %396 = arith.addf %395, %3 : vector<2x512xf32>
    %397 = vector.extract_strided_slice %396 {offsets = [0, 0], sizes = [2, 128], strides = [1, 1]} : vector<2x512xf32> to vector<2x128xf32>
    %398 = arith.negf %397 : vector<2x128xf32>
    %399 = math.exp %398 : vector<2x128xf32>
    %cst_114 = arith.constant 1.000000e+00 : f32
    %400 = vector.broadcast %cst_114 : f32 to vector<2x128xf32>
    %401 = arith.addf %400, %399 : vector<2x128xf32>
    %402 = arith.divf %400, %401 : vector<2x128xf32>
    %403 = vector.extract_strided_slice %396 {offsets = [0, 128], sizes = [2, 128], strides = [1, 1]} : vector<2x512xf32> to vector<2x128xf32>
    %404 = arith.negf %403 : vector<2x128xf32>
    %405 = math.exp %404 : vector<2x128xf32>
    %cst_115 = arith.constant 1.000000e+00 : f32
    %406 = vector.broadcast %cst_115 : f32 to vector<2x128xf32>
    %407 = arith.addf %406, %405 : vector<2x128xf32>
    %408 = arith.divf %406, %407 : vector<2x128xf32>
    %409 = vector.extract_strided_slice %396 {offsets = [0, 256], sizes = [2, 128], strides = [1, 1]} : vector<2x512xf32> to vector<2x128xf32>
    %410 = math.tanh %409 : vector<2x128xf32>
    %411 = vector.extract_strided_slice %396 {offsets = [0, 384], sizes = [2, 128], strides = [1, 1]} : vector<2x512xf32> to vector<2x128xf32>
    %412 = arith.negf %411 : vector<2x128xf32>
    %413 = math.exp %412 : vector<2x128xf32>
    %cst_116 = arith.constant 1.000000e+00 : f32
    %414 = vector.broadcast %cst_116 : f32 to vector<2x128xf32>
    %415 = arith.addf %414, %413 : vector<2x128xf32>
    %416 = arith.divf %414, %415 : vector<2x128xf32>
    %417 = arith.mulf %408, %344 : vector<2x128xf32>
    %418 = arith.mulf %402, %410 : vector<2x128xf32>
    %419 = arith.addf %417, %418 : vector<2x128xf32>
    %420 = math.tanh %419 : vector<2x128xf32>
    %421 = arith.mulf %416, %420 : vector<2x128xf32>
    %c0_117 = arith.constant 0 : index
    %c0_118 = arith.constant 0 : index
    %422 = vector.load %arg4[%c0_117, %c0_118] : memref<128x512xf32, #tpu.memory_space<vmem>>, vector<128x512xf32>
    %cst_119 = arith.constant dense<0.000000e+00> : vector<2x512xf32>
    %423 = tpu.matmul %421, %422, %cst_119 {dimension_numbers = #tpu.dot_dimension_numbers<[1], [0], [0], [1], [0, 0, 1, 1], [], []>} : vector<2x128xf32>, vector<128x512xf32>, vector<2x512xf32> -> vector<2x512xf32>
    %c0_120 = arith.constant 0 : index
    %c0_121 = arith.constant 0 : index
    %424 = vector.load %arg5[%c0_120, %c0_121] : memref<128x512xf32, #tpu.memory_space<vmem>>, vector<128x512xf32>
    %cst_122 = arith.constant dense<0.000000e+00> : vector<2x512xf32>
    %425 = tpu.matmul %377, %424, %cst_122 {dimension_numbers = #tpu.dot_dimension_numbers<[1], [0], [0], [1], [0, 0, 1, 1], [], []>} : vector<2x128xf32>, vector<128x512xf32>, vector<2x512xf32> -> vector<2x512xf32>
    %426 = arith.addf %423, %425 : vector<2x512xf32>
    %427 = arith.addf %426, %6 : vector<2x512xf32>
    %428 = vector.extract_strided_slice %427 {offsets = [0, 0], sizes = [2, 128], strides = [1, 1]} : vector<2x512xf32> to vector<2x128xf32>
    %429 = arith.negf %428 : vector<2x128xf32>
    %430 = math.exp %429 : vector<2x128xf32>
    %cst_123 = arith.constant 1.000000e+00 : f32
    %431 = vector.broadcast %cst_123 : f32 to vector<2x128xf32>
    %432 = arith.addf %431, %430 : vector<2x128xf32>
    %433 = arith.divf %431, %432 : vector<2x128xf32>
    %434 = vector.extract_strided_slice %427 {offsets = [0, 128], sizes = [2, 128], strides = [1, 1]} : vector<2x512xf32> to vector<2x128xf32>
    %435 = arith.negf %434 : vector<2x128xf32>
    %436 = math.exp %435 : vector<2x128xf32>
    %cst_124 = arith.constant 1.000000e+00 : f32
    %437 = vector.broadcast %cst_124 : f32 to vector<2x128xf32>
    %438 = arith.addf %437, %436 : vector<2x128xf32>
    %439 = arith.divf %437, %438 : vector<2x128xf32>
    %440 = vector.extract_strided_slice %427 {offsets = [0, 256], sizes = [2, 128], strides = [1, 1]} : vector<2x512xf32> to vector<2x128xf32>
    %441 = math.tanh %440 : vector<2x128xf32>
    %442 = vector.extract_strided_slice %427 {offsets = [0, 384], sizes = [2, 128], strides = [1, 1]} : vector<2x512xf32> to vector<2x128xf32>
    %443 = arith.negf %442 : vector<2x128xf32>
    %444 = math.exp %443 : vector<2x128xf32>
    %cst_125 = arith.constant 1.000000e+00 : f32
    %445 = vector.broadcast %cst_125 : f32 to vector<2x128xf32>
    %446 = arith.addf %445, %444 : vector<2x128xf32>
    %447 = arith.divf %445, %446 : vector<2x128xf32>
    %448 = arith.mulf %439, %375 : vector<2x128xf32>
    %449 = arith.mulf %433, %441 : vector<2x128xf32>
    %450 = arith.addf %448, %449 : vector<2x128xf32>
    %451 = math.tanh %450 : vector<2x128xf32>
    %452 = arith.mulf %447, %451 : vector<2x128xf32>
    %453 = vector.broadcast %7 : vector<1x128xf32> to vector<2x128xf32>
    %454 = arith.mulf %452, %453 : vector<2x128xf32>
    %cst_126 = arith.constant dense<0.000000e+00> : vector<2xf32>
    %455 = vector.multi_reduction <add>, %454, %cst_126 [1] : vector<2x128xf32> to vector<2xf32>
    %456 = vector.shape_cast %455 : vector<2xf32> to vector<2x1xf32>
    %457 = arith.addf %456, %10 : vector<2x1xf32>
    %458 = arith.index_cast %c5_i32 : i32 to index
    %c0_127 = arith.constant 0 : index
    %c0_128 = arith.constant 0 : index
    %459 = vector.load %arg9[%458, %c0_127, %c0_128] : memref<8x2x1xf32, #tpu.memory_space<vmem>>, vector<1x2x1xf32>
    %460 = vector.shape_cast %459 : vector<1x2x1xf32> to vector<2x1xf32>
    %461 = vector.shape_cast %457 : vector<2x1xf32> to vector<1x2x1xf32>
    tpu.vector_store %arg9[%458, %c0_127, %c0_128], %461 {strides = array<i32>} : memref<8x2x1xf32, #tpu.memory_space<vmem>>, vector<1x2x1xf32>,
    %c6_i32 = arith.constant 6 : i32
    %462 = arith.index_cast %c6_i32 : i32 to index
    %c0_129 = arith.constant 0 : index
    %c0_130 = arith.constant 0 : index
    %463 = vector.load %arg0[%462, %c0_129, %c0_130] : memref<8x2x1xf32, #tpu.memory_space<vmem>>, vector<1x2x1xf32>
    %464 = vector.shape_cast %463 : vector<1x2x1xf32> to vector<2x1xf32>
    %465 = vector.broadcast %464 : vector<2x1xf32> to vector<2x512xf32>
    %466 = vector.broadcast %0 : vector<1x512xf32> to vector<2x512xf32>
    %467 = arith.mulf %465, %466 : vector<2x512xf32>
    %c0_131 = arith.constant 0 : index
    %c0_132 = arith.constant 0 : index
    %468 = vector.load %arg2[%c0_131, %c0_132] : memref<128x512xf32, #tpu.memory_space<vmem>>, vector<128x512xf32>
    %cst_133 = arith.constant dense<0.000000e+00> : vector<2x512xf32>
    %469 = tpu.matmul %421, %468, %cst_133 {dimension_numbers = #tpu.dot_dimension_numbers<[1], [0], [0], [1], [0, 0, 1, 1], [], []>} : vector<2x128xf32>, vector<128x512xf32>, vector<2x512xf32> -> vector<2x512xf32>
    %470 = arith.addf %467, %469 : vector<2x512xf32>
    %471 = arith.addf %470, %3 : vector<2x512xf32>
    %472 = vector.extract_strided_slice %471 {offsets = [0, 0], sizes = [2, 128], strides = [1, 1]} : vector<2x512xf32> to vector<2x128xf32>
    %473 = arith.negf %472 : vector<2x128xf32>
    %474 = math.exp %473 : vector<2x128xf32>
    %cst_134 = arith.constant 1.000000e+00 : f32
    %475 = vector.broadcast %cst_134 : f32 to vector<2x128xf32>
    %476 = arith.addf %475, %474 : vector<2x128xf32>
    %477 = arith.divf %475, %476 : vector<2x128xf32>
    %478 = vector.extract_strided_slice %471 {offsets = [0, 128], sizes = [2, 128], strides = [1, 1]} : vector<2x512xf32> to vector<2x128xf32>
    %479 = arith.negf %478 : vector<2x128xf32>
    %480 = math.exp %479 : vector<2x128xf32>
    %cst_135 = arith.constant 1.000000e+00 : f32
    %481 = vector.broadcast %cst_135 : f32 to vector<2x128xf32>
    %482 = arith.addf %481, %480 : vector<2x128xf32>
    %483 = arith.divf %481, %482 : vector<2x128xf32>
    %484 = vector.extract_strided_slice %471 {offsets = [0, 256], sizes = [2, 128], strides = [1, 1]} : vector<2x512xf32> to vector<2x128xf32>
    %485 = math.tanh %484 : vector<2x128xf32>
    %486 = vector.extract_strided_slice %471 {offsets = [0, 384], sizes = [2, 128], strides = [1, 1]} : vector<2x512xf32> to vector<2x128xf32>
    %487 = arith.negf %486 : vector<2x128xf32>
    %488 = math.exp %487 : vector<2x128xf32>
    %cst_136 = arith.constant 1.000000e+00 : f32
    %489 = vector.broadcast %cst_136 : f32 to vector<2x128xf32>
    %490 = arith.addf %489, %488 : vector<2x128xf32>
    %491 = arith.divf %489, %490 : vector<2x128xf32>
    %492 = arith.mulf %483, %419 : vector<2x128xf32>
    %493 = arith.mulf %477, %485 : vector<2x128xf32>
    %494 = arith.addf %492, %493 : vector<2x128xf32>
    %495 = math.tanh %494 : vector<2x128xf32>
    %496 = arith.mulf %491, %495 : vector<2x128xf32>
    %c0_137 = arith.constant 0 : index
    %c0_138 = arith.constant 0 : index
    %497 = vector.load %arg4[%c0_137, %c0_138] : memref<128x512xf32, #tpu.memory_space<vmem>>, vector<128x512xf32>
    %cst_139 = arith.constant dense<0.000000e+00> : vector<2x512xf32>
    %498 = tpu.matmul %496, %497, %cst_139 {dimension_numbers = #tpu.dot_dimension_numbers<[1], [0], [0], [1], [0, 0, 1, 1], [], []>} : vector<2x128xf32>, vector<128x512xf32>, vector<2x512xf32> -> vector<2x512xf32>
    %c0_140 = arith.constant 0 : index
    %c0_141 = arith.constant 0 : index
    %499 = vector.load %arg5[%c0_140, %c0_141] : memref<128x512xf32, #tpu.memory_space<vmem>>, vector<128x512xf32>
    %cst_142 = arith.constant dense<0.000000e+00> : vector<2x512xf32>
    %500 = tpu.matmul %452, %499, %cst_142 {dimension_numbers = #tpu.dot_dimension_numbers<[1], [0], [0], [1], [0, 0, 1, 1], [], []>} : vector<2x128xf32>, vector<128x512xf32>, vector<2x512xf32> -> vector<2x512xf32>
    %501 = arith.addf %498, %500 : vector<2x512xf32>
    %502 = arith.addf %501, %6 : vector<2x512xf32>
    %503 = vector.extract_strided_slice %502 {offsets = [0, 0], sizes = [2, 128], strides = [1, 1]} : vector<2x512xf32> to vector<2x128xf32>
    %504 = arith.negf %503 : vector<2x128xf32>
    %505 = math.exp %504 : vector<2x128xf32>
    %cst_143 = arith.constant 1.000000e+00 : f32
    %506 = vector.broadcast %cst_143 : f32 to vector<2x128xf32>
    %507 = arith.addf %506, %505 : vector<2x128xf32>
    %508 = arith.divf %506, %507 : vector<2x128xf32>
    %509 = vector.extract_strided_slice %502 {offsets = [0, 128], sizes = [2, 128], strides = [1, 1]} : vector<2x512xf32> to vector<2x128xf32>
    %510 = arith.negf %509 : vector<2x128xf32>
    %511 = math.exp %510 : vector<2x128xf32>
    %cst_144 = arith.constant 1.000000e+00 : f32
    %512 = vector.broadcast %cst_144 : f32 to vector<2x128xf32>
    %513 = arith.addf %512, %511 : vector<2x128xf32>
    %514 = arith.divf %512, %513 : vector<2x128xf32>
    %515 = vector.extract_strided_slice %502 {offsets = [0, 256], sizes = [2, 128], strides = [1, 1]} : vector<2x512xf32> to vector<2x128xf32>
    %516 = math.tanh %515 : vector<2x128xf32>
    %517 = vector.extract_strided_slice %502 {offsets = [0, 384], sizes = [2, 128], strides = [1, 1]} : vector<2x512xf32> to vector<2x128xf32>
    %518 = arith.negf %517 : vector<2x128xf32>
    %519 = math.exp %518 : vector<2x128xf32>
    %cst_145 = arith.constant 1.000000e+00 : f32
    %520 = vector.broadcast %cst_145 : f32 to vector<2x128xf32>
    %521 = arith.addf %520, %519 : vector<2x128xf32>
    %522 = arith.divf %520, %521 : vector<2x128xf32>
    %523 = arith.mulf %514, %450 : vector<2x128xf32>
    %524 = arith.mulf %508, %516 : vector<2x128xf32>
    %525 = arith.addf %523, %524 : vector<2x128xf32>
    %526 = math.tanh %525 : vector<2x128xf32>
    %527 = arith.mulf %522, %526 : vector<2x128xf32>
    %528 = vector.broadcast %7 : vector<1x128xf32> to vector<2x128xf32>
    %529 = arith.mulf %527, %528 : vector<2x128xf32>
    %cst_146 = arith.constant dense<0.000000e+00> : vector<2xf32>
    %530 = vector.multi_reduction <add>, %529, %cst_146 [1] : vector<2x128xf32> to vector<2xf32>
    %531 = vector.shape_cast %530 : vector<2xf32> to vector<2x1xf32>
    %532 = arith.addf %531, %10 : vector<2x1xf32>
    %533 = arith.index_cast %c6_i32 : i32 to index
    %c0_147 = arith.constant 0 : index
    %c0_148 = arith.constant 0 : index
    %534 = vector.load %arg9[%533, %c0_147, %c0_148] : memref<8x2x1xf32, #tpu.memory_space<vmem>>, vector<1x2x1xf32>
    %535 = vector.shape_cast %534 : vector<1x2x1xf32> to vector<2x1xf32>
    %536 = vector.shape_cast %532 : vector<2x1xf32> to vector<1x2x1xf32>
    tpu.vector_store %arg9[%533, %c0_147, %c0_148], %536 {strides = array<i32>} : memref<8x2x1xf32, #tpu.memory_space<vmem>>, vector<1x2x1xf32>,
    %c7_i32 = arith.constant 7 : i32
    %537 = arith.index_cast %c7_i32 : i32 to index
    %c0_149 = arith.constant 0 : index
    %c0_150 = arith.constant 0 : index
    %538 = vector.load %arg0[%537, %c0_149, %c0_150] : memref<8x2x1xf32, #tpu.memory_space<vmem>>, vector<1x2x1xf32>
    %539 = vector.shape_cast %538 : vector<1x2x1xf32> to vector<2x1xf32>
    %540 = vector.broadcast %539 : vector<2x1xf32> to vector<2x512xf32>
    %541 = vector.broadcast %0 : vector<1x512xf32> to vector<2x512xf32>
    %542 = arith.mulf %540, %541 : vector<2x512xf32>
    %c0_151 = arith.constant 0 : index
    %c0_152 = arith.constant 0 : index
    %543 = vector.load %arg2[%c0_151, %c0_152] : memref<128x512xf32, #tpu.memory_space<vmem>>, vector<128x512xf32>
    %cst_153 = arith.constant dense<0.000000e+00> : vector<2x512xf32>
    %544 = tpu.matmul %496, %543, %cst_153 {dimension_numbers = #tpu.dot_dimension_numbers<[1], [0], [0], [1], [0, 0, 1, 1], [], []>} : vector<2x128xf32>, vector<128x512xf32>, vector<2x512xf32> -> vector<2x512xf32>
    %545 = arith.addf %542, %544 : vector<2x512xf32>
    %546 = arith.addf %545, %3 : vector<2x512xf32>
    %547 = vector.extract_strided_slice %546 {offsets = [0, 0], sizes = [2, 128], strides = [1, 1]} : vector<2x512xf32> to vector<2x128xf32>
    %548 = arith.negf %547 : vector<2x128xf32>
    %549 = math.exp %548 : vector<2x128xf32>
    %cst_154 = arith.constant 1.000000e+00 : f32
    %550 = vector.broadcast %cst_154 : f32 to vector<2x128xf32>
    %551 = arith.addf %550, %549 : vector<2x128xf32>
    %552 = arith.divf %550, %551 : vector<2x128xf32>
    %553 = vector.extract_strided_slice %546 {offsets = [0, 128], sizes = [2, 128], strides = [1, 1]} : vector<2x512xf32> to vector<2x128xf32>
    %554 = arith.negf %553 : vector<2x128xf32>
    %555 = math.exp %554 : vector<2x128xf32>
    %cst_155 = arith.constant 1.000000e+00 : f32
    %556 = vector.broadcast %cst_155 : f32 to vector<2x128xf32>
    %557 = arith.addf %556, %555 : vector<2x128xf32>
    %558 = arith.divf %556, %557 : vector<2x128xf32>
    %559 = vector.extract_strided_slice %546 {offsets = [0, 256], sizes = [2, 128], strides = [1, 1]} : vector<2x512xf32> to vector<2x128xf32>
    %560 = math.tanh %559 : vector<2x128xf32>
    %561 = vector.extract_strided_slice %546 {offsets = [0, 384], sizes = [2, 128], strides = [1, 1]} : vector<2x512xf32> to vector<2x128xf32>
    %562 = arith.negf %561 : vector<2x128xf32>
    %563 = math.exp %562 : vector<2x128xf32>
    %cst_156 = arith.constant 1.000000e+00 : f32
    %564 = vector.broadcast %cst_156 : f32 to vector<2x128xf32>
    %565 = arith.addf %564, %563 : vector<2x128xf32>
    %566 = arith.divf %564, %565 : vector<2x128xf32>
    %567 = arith.mulf %558, %494 : vector<2x128xf32>
    %568 = arith.mulf %552, %560 : vector<2x128xf32>
    %569 = arith.addf %567, %568 : vector<2x128xf32>
    %570 = math.tanh %569 : vector<2x128xf32>
    %571 = arith.mulf %566, %570 : vector<2x128xf32>
    %c0_157 = arith.constant 0 : index
    %c0_158 = arith.constant 0 : index
    %572 = vector.load %arg4[%c0_157, %c0_158] : memref<128x512xf32, #tpu.memory_space<vmem>>, vector<128x512xf32>
    %cst_159 = arith.constant dense<0.000000e+00> : vector<2x512xf32>
    %573 = tpu.matmul %571, %572, %cst_159 {dimension_numbers = #tpu.dot_dimension_numbers<[1], [0], [0], [1], [0, 0, 1, 1], [], []>} : vector<2x128xf32>, vector<128x512xf32>, vector<2x512xf32> -> vector<2x512xf32>
    %c0_160 = arith.constant 0 : index
    %c0_161 = arith.constant 0 : index
    %574 = vector.load %arg5[%c0_160, %c0_161] : memref<128x512xf32, #tpu.memory_space<vmem>>, vector<128x512xf32>
    %cst_162 = arith.constant dense<0.000000e+00> : vector<2x512xf32>
    %575 = tpu.matmul %527, %574, %cst_162 {dimension_numbers = #tpu.dot_dimension_numbers<[1], [0], [0], [1], [0, 0, 1, 1], [], []>} : vector<2x128xf32>, vector<128x512xf32>, vector<2x512xf32> -> vector<2x512xf32>
    %576 = arith.addf %573, %575 : vector<2x512xf32>
    %577 = arith.addf %576, %6 : vector<2x512xf32>
    %578 = vector.extract_strided_slice %577 {offsets = [0, 0], sizes = [2, 128], strides = [1, 1]} : vector<2x512xf32> to vector<2x128xf32>
    %579 = arith.negf %578 : vector<2x128xf32>
    %580 = math.exp %579 : vector<2x128xf32>
    %cst_163 = arith.constant 1.000000e+00 : f32
    %581 = vector.broadcast %cst_163 : f32 to vector<2x128xf32>
    %582 = arith.addf %581, %580 : vector<2x128xf32>
    %583 = arith.divf %581, %582 : vector<2x128xf32>
    %584 = vector.extract_strided_slice %577 {offsets = [0, 128], sizes = [2, 128], strides = [1, 1]} : vector<2x512xf32> to vector<2x128xf32>
    %585 = arith.negf %584 : vector<2x128xf32>
    %586 = math.exp %585 : vector<2x128xf32>
    %cst_164 = arith.constant 1.000000e+00 : f32
    %587 = vector.broadcast %cst_164 : f32 to vector<2x128xf32>
    %588 = arith.addf %587, %586 : vector<2x128xf32>
    %589 = arith.divf %587, %588 : vector<2x128xf32>
    %590 = vector.extract_strided_slice %577 {offsets = [0, 256], sizes = [2, 128], strides = [1, 1]} : vector<2x512xf32> to vector<2x128xf32>
    %591 = math.tanh %590 : vector<2x128xf32>
    %592 = vector.extract_strided_slice %577 {offsets = [0, 384], sizes = [2, 128], strides = [1, 1]} : vector<2x512xf32> to vector<2x128xf32>
    %593 = arith.negf %592 : vector<2x128xf32>
    %594 = math.exp %593 : vector<2x128xf32>
    %cst_165 = arith.constant 1.000000e+00 : f32
    %595 = vector.broadcast %cst_165 : f32 to vector<2x128xf32>
    %596 = arith.addf %595, %594 : vector<2x128xf32>
    %597 = arith.divf %595, %596 : vector<2x128xf32>
    %598 = arith.mulf %589, %525 : vector<2x128xf32>
    %599 = arith.mulf %583, %591 : vector<2x128xf32>
    %600 = arith.addf %598, %599 : vector<2x128xf32>
    %601 = math.tanh %600 : vector<2x128xf32>
    %602 = arith.mulf %597, %601 : vector<2x128xf32>
    %603 = vector.broadcast %7 : vector<1x128xf32> to vector<2x128xf32>
    %604 = arith.mulf %602, %603 : vector<2x128xf32>
    %cst_166 = arith.constant dense<0.000000e+00> : vector<2xf32>
    %605 = vector.multi_reduction <add>, %604, %cst_166 [1] : vector<2x128xf32> to vector<2xf32>
    %606 = vector.shape_cast %605 : vector<2xf32> to vector<2x1xf32>
    %607 = arith.addf %606, %10 : vector<2x1xf32>
    %608 = arith.index_cast %c7_i32 : i32 to index
    %c0_167 = arith.constant 0 : index
    %c0_168 = arith.constant 0 : index
    %609 = vector.load %arg9[%608, %c0_167, %c0_168] : memref<8x2x1xf32, #tpu.memory_space<vmem>>, vector<1x2x1xf32>
    %610 = vector.shape_cast %609 : vector<1x2x1xf32> to vector<2x1xf32>
    %611 = vector.shape_cast %607 : vector<2x1xf32> to vector<1x2x1xf32>
    tpu.vector_store %arg9[%608, %c0_167, %c0_168], %611 {strides = array<i32>} : memref<8x2x1xf32, #tpu.memory_space<vmem>>, vector<1x2x1xf32>,
    %c8_i32 = arith.constant 8 : i32
    return
  }
}

</mosaic_0001>

<llo_original>
// kernel: tpu_custom_call.1
$region0: #{tpu_custom_call.1}
  #allocation0 [shape = 'u32[]', space=smem, size = 0x4, offset = 0x4, fixed_abs, tag = 'smem constant byte address 0x4 - core index']
  #allocation1 [shape = 'u32[144,128]{1,0:T(1,128)}', space=vmem, size = 0x12000, scoped, tag = 'internal scratch']
  #allocation2 [shape = 'f32[1,1]{1,0:T(1,128)S(1)}', space=vmem, size = 0x200, scoped, tag = 'scoped memory for tpu_custom_call.1']
  %s0 = inlined_call_operand.vmem [shape: f32[8,2,1], index: 0, kind: input, shape index: {}]
  %s1 = inlined_call_operand.vmem [shape: f32[1,512], index: 1, kind: input, shape index: {}]
  %s2 = inlined_call_operand.hbm [shape: f32[128,512], index: 2, kind: input, shape index: {}]
  %s3 = inlined_call_operand.vmem [shape: f32[1,512], index: 3, kind: input, shape index: {}]
  %s4 = inlined_call_operand.hbm [shape: f32[128,512], index: 4, kind: input, shape index: {}]
  %s5 = inlined_call_operand.hbm [shape: f32[128,512], index: 5, kind: input, shape index: {}]
  %s6 = inlined_call_operand.vmem [shape: f32[1,512], index: 6, kind: input, shape index: {}]
  %s7 = inlined_call_operand.vmem [shape: f32[1,128], index: 7, kind: input, shape index: {}]
  %s8 = inlined_call_operand.<no memory space> [shape: f32[1,1], index: 8, kind: input, shape index: {}]
  %s9 = inlined_call_operand.vmem [shape: f32[8,2,1], index: 9, kind: output, shape index: {}]
  %s10 = sld [smem:[#allocation0]]
  $region58: #{tpu_custom_call.1} parent=0
    _
  %s12 = ssub.s32 1, %s10
  %s13 = scalar_select 0, %s12, %s10
  %v14 = vstv %s8
  %15 = vst [vmem:[#allocation2] sm:$0x1] %v14
  $region1: #{tpu_custom_call.1} parent=0
    #allocation3 [shape = 'u8[262144]{0}', space=vmem, size = 0x40000, scoped, tag = 'input window, operand 2, single buffered']
    #allocation4 [shape = 's32[1]{0}', space=sflag, size = 0x4, scoped, tag = 'scoped memory for tpu_custom_call.1']
    #allocation5 [shape = 'u8[262144]{0}', space=vmem, size = 0x40000, scoped, tag = 'input window, operand 4, single buffered']
    #allocation6 [shape = 's32[1]{0}', space=sflag, size = 0x4, scoped, tag = 'scoped memory for tpu_custom_call.1']
    #allocation7 [shape = 'u8[262144]{0}', space=vmem, size = 0x40000, scoped, tag = 'input window, operand 5, single buffered']
    %16 = vsyncpa [#allocation4], 0
    %17 = vsyncpa [#allocation6], 0
    // Predicated region
    $region2: #{tpu_custom_call.1} parent=1 // pred_check
      _
    $region3: #{tpu_custom_call.1} parent=1 // pred_check_branch
      %19 = sbr.rel (0) target = $region5
    $region4: #{tpu_custom_call.1} parent=1 // pred_region
      _
    $region5: #{tpu_custom_call.1} parent=1 // pred_fallthru
      _
    // Predicated region
    $region6: #{tpu_custom_call.1} parent=1 // pred_check
      _
    $region7: #{tpu_custom_call.1} parent=1 // pred_check_branch
      %21 = sbr.rel (0) target = $region9
    $region8: #{tpu_custom_call.1} parent=1 // pred_region
      _
    $region9: #{tpu_custom_call.1} parent=1 // pred_fallthru
      _
    // Predicated region
    $region10: #{tpu_custom_call.1} parent=1 // pred_check
      _
    $region11: #{tpu_custom_call.1} parent=1 // pred_check_branch
      %23 = sbr.rel (0) target = $region13
    $region12: #{tpu_custom_call.1} parent=1 // pred_region
      %s25 = ssub.s32 8192, 8192
      %26 = vsyncadd [#allocation4], %s25
      %s27 = sshll.u32 [#allocation3], 4
      %s28 = int_to_ptr.vmem [resolvable:$true] %s27
      %33 = dma.hbm_to_vmem [thread:$0]  %s2, 8192, %s28, [#allocation4], 512, 512, 32
    $region13: #{tpu_custom_call.1} parent=1 // pred_fallthru
      _
    // Predicated region
    $region14: #{tpu_custom_call.1} parent=1 // pred_check
      _
    $region15: #{tpu_custom_call.1} parent=1 // pred_check_branch
      %35 = sbr.rel (0) target = $region17
    $region16: #{tpu_custom_call.1} parent=1 // pred_region
      _
    $region17: #{tpu_custom_call.1} parent=1 // pred_fallthru
      _
    // Predicated region
    $region18: #{tpu_custom_call.1} parent=1 // pred_check
      _
    $region19: #{tpu_custom_call.1} parent=1 // pred_check_branch
      %37 = sbr.rel (0) target = $region21
    $region20: #{tpu_custom_call.1} parent=1 // pred_region
      %s39 = ssub.s32 8192, 8192
      %40 = vsyncadd [#allocation6], %s39
      %s41 = sshll.u32 [#allocation5], 4
      %s42 = int_to_ptr.vmem [resolvable:$true] %s41
      %47 = dma.hbm_to_vmem [thread:$0]  %s4, 8192, %s42, [#allocation6], 512, 512, 32
    $region21: #{tpu_custom_call.1} parent=1 // pred_fallthru
      _
    // Predicated region
    $region22: #{tpu_custom_call.1} parent=1 // pred_check
      _
    $region23: #{tpu_custom_call.1} parent=1 // pred_check_branch
      %49 = sbr.rel (0) target = $region25
    $region24: #{tpu_custom_call.1} parent=1 // pred_region
      %s51 = ssub.s32 8192, 8192
      %52 = vsyncadd [#allocation6], %s51
      %s53 = sshll.u32 [#allocation7], 4
      %s54 = int_to_ptr.vmem [resolvable:$true] %s53
      %59 = dma.hbm_to_vmem [thread:$0]  %s5, 8192, %s54, [#allocation6], 512, 512, 32
    $region25: #{tpu_custom_call.1} parent=1 // pred_fallthru
      _
    // Predicated region
    $region26: #{tpu_custom_call.1} parent=1 // pred_check
      _
    $region27: #{tpu_custom_call.1} parent=1 // pred_check_branch
      %61 = sbr.rel (0) target = $region29
    $region28: #{tpu_custom_call.1} parent=1 // pred_region
      _
    $region29: #{tpu_custom_call.1} parent=1 // pred_fallthru
      _
    // Predicated region
    $region30: #{tpu_custom_call.1} parent=1 // pred_check
      _
    $region31: #{tpu_custom_call.1} parent=1 // pred_check_branch
      %63 = sbr.rel (0) target = $region33
    $region32: #{tpu_custom_call.1} parent=1 // pred_region
      _
    $region33: #{tpu_custom_call.1} parent=1 // pred_fallthru
      _
    // Predicated region
    $region34: #{tpu_custom_call.1} parent=1 // pred_check
      _
    $region35: #{tpu_custom_call.1} parent=1 // pred_check_branch
      %65 = sbr.rel (0) target = $region37
    $region36: #{tpu_custom_call.1} parent=1 // pred_region
      _
    $region37: #{tpu_custom_call.1} parent=1 // pred_fallthru
      _
    // Predicated region
    $region38: #{tpu_custom_call.1} parent=1 // pred_check
      _
    $region39: #{tpu_custom_call.1} parent=1 // pred_check_branch
      %67 = sbr.rel (0) target = $region41
    $region40: #{tpu_custom_call.1} parent=1 // pred_region
      %68 = dma.done [#allocation4], 8192
    $region41: #{tpu_custom_call.1} parent=1 // pred_fallthru
      _
    // Predicated region
    $region42: #{tpu_custom_call.1} parent=1 // pred_check
      _
    $region43: #{tpu_custom_call.1} parent=1 // pred_check_branch
      %70 = sbr.rel (0) target = $region45
    $region44: #{tpu_custom_call.1} parent=1 // pred_region
      %71 = dma.done [#allocation6], 8192
    $region45: #{tpu_custom_call.1} parent=1 // pred_fallthru
      _
    // Predicated region
    $region46: #{tpu_custom_call.1} parent=1 // pred_check
      _
    $region47: #{tpu_custom_call.1} parent=1 // pred_check_branch
      %73 = sbr.rel (0) target = $region49
    $region48: #{tpu_custom_call.1} parent=1 // pred_region
      %74 = dma.done [#allocation6], 8192
    $region49: #{tpu_custom_call.1} parent=1 // pred_fallthru
      _
    %v75 = vld [vmem:[%s1] sm:$0xf]
    %v76 = vld [vmem:[%s3] sm:$0xf]
    %v78 = vlaneseq
    %v79 = vshrl.u32 %v78, 7
    %v80 = vsub.s32 0, %v79
    %v81 = vrot.slane %v76, %v80
    %v82 = vlaneseq
    %v83 = vshrl.u32 %v82, 7
    %v84 = vsub.s32 1, %v83
    %v85 = vrot.slane %v76, %v84
    %v86 = vlaneseq
    %v87 = vshrl.u32 %v86, 7
    %v88 = vsub.s32 2, %v87
    %v89 = vrot.slane %v76, %v88
    %v90 = vlaneseq
    %v91 = vshrl.u32 %v90, 7
    %v92 = vsub.s32 3, %v91
    %v93 = vrot.slane %v76, %v92
    %v98 = vld [vmem:[%s6] sm:$0xf]
    %v100 = vlaneseq
    %v101 = vshrl.u32 %v100, 7
    %v102 = vsub.s32 0, %v101
    %v103 = vrot.slane %v98, %v102
    %v104 = vlaneseq
    %v105 = vshrl.u32 %v104, 7
    %v106 = vsub.s32 1, %v105
    %v107 = vrot.slane %v98, %v106
    %v108 = vlaneseq
    %v109 = vshrl.u32 %v108, 7
    %v110 = vsub.s32 2, %v109
    %v111 = vrot.slane %v98, %v110
    %v112 = vlaneseq
    %v113 = vshrl.u32 %v112, 7
    %v114 = vsub.s32 3, %v113
    %v115 = vrot.slane %v98, %v114
    %v120 = vld [vmem:[%s7] sm:$0x1]
    %v121 = vld [vmem:[#allocation2] sm:$0x1]
    %v123 = vlaneseq
    %v124 = vshrl.u32 %v123, 7
    %v125 = vsub.s32 0, %v124
    %v126 = vrot.slane %v121, %v125
    %v128 = vld [vmem:[%s0] sm:$0x3]
    %130 = vset.pattern.permute.xlu0 0
    %131 = vperm.xlu0 %130, %v128
    %v132 = vpop.permute.xlu0 %131
    %v135 = vlaneseq
    %v136 = vshrl.u32 %v135, 7
    %v137 = vsub.s32 0, %v136
    %v138 = vrot.slane %v75, %v137
    %v139 = vlaneseq
    %v140 = vshrl.u32 %v139, 7
    %v141 = vsub.s32 1, %v140
    %v142 = vrot.slane %v75, %v141
    %v143 = vlaneseq
    %v144 = vshrl.u32 %v143, 7
    %v145 = vsub.s32 2, %v144
    %v146 = vrot.slane %v75, %v145
    %v147 = vlaneseq
    %v148 = vshrl.u32 %v147, 7
    %v149 = vsub.s32 3, %v148
    %v150 = vrot.slane %v75, %v149
    %v155 = vmul.f32 %v132, %v138
    %v156 = vmul.f32 %v132, %v142
    %v157 = vmul.f32 %v132, %v146
    %v158 = vmul.f32 %v132, %v150
    %v159 = vld [vmem:[#allocation3] sm:$0xff]
    %v160 = vld [vmem:[#allocation3 + $0x8] sm:$0xff]
    %v161 = vld [vmem:[#allocation3 + $0x10] sm:$0xff]
    %v162 = vld [vmem:[#allocation3 + $0x18] sm:$0xff]
    %v163 = vld [vmem:[#allocation3 + $0x20] sm:$0xff]
    %v164 = vld [vmem:[#allocation3 + $0x28] sm:$0xff]
    %v165 = vld [vmem:[#allocation3 + $0x30] sm:$0xff]
    %v166 = vld [vmem:[#allocation3 + $0x38] sm:$0xff]
    %v167 = vld [vmem:[#allocation3 + $0x40] sm:$0xff]
    %v168 = vld [vmem:[#allocation3 + $0x48] sm:$0xff]
    %v169 = vld [vmem:[#allocation3 + $0x50] sm:$0xff]
    %v170 = vld [vmem:[#allocation3 + $0x58] sm:$0xff]
    %v171 = vld [vmem:[#allocation3 + $0x60] sm:$0xff]
    %v172 = vld [vmem:[#allocation3 + $0x68] sm:$0xff]
    %v173 = vld [vmem:[#allocation3 + $0x70] sm:$0xff]
    %v174 = vld [vmem:[#allocation3 + $0x78] sm:$0xff]
    %v175 = vld [vmem:[#allocation3 + $0x80] sm:$0xff]
    %v176 = vld [vmem:[#allocation3 + $0x88] sm:$0xff]
    %v177 = vld [vmem:[#allocation3 + $0x90] sm:$0xff]
    %v178 = vld [vmem:[#allocation3 + $0x98] sm:$0xff]
    %v179 = vld [vmem:[#allocation3 + $0xa0] sm:$0xff]
    %v180 = vld [vmem:[#allocation3 + $0xa8] sm:$0xff]
    %v181 = vld [vmem:[#allocation3 + $0xb0] sm:$0xff]
    %v182 = vld [vmem:[#allocation3 + $0xb8] sm:$0xff]
    %v183 = vld [vmem:[#allocation3 + $0xc0] sm:$0xff]
    %v184 = vld [vmem:[#allocation3 + $0xc8] sm:$0xff]
    %v185 = vld [vmem:[#allocation3 + $0xd0] sm:$0xff]
    %v186 = vld [vmem:[#allocation3 + $0xd8] sm:$0xff]
    %v187 = vld [vmem:[#allocation3 + $0xe0] sm:$0xff]
    %v188 = vld [vmem:[#allocation3 + $0xe8] sm:$0xff]
    %v189 = vld [vmem:[#allocation3 + $0xf0] sm:$0xff]
    %v190 = vld [vmem:[#allocation3 + $0xf8] sm:$0xff]
    %v191 = vld [vmem:[#allocation3 + $0x100] sm:$0xff]
    %v192 = vld [vmem:[#allocation3 + $0x108] sm:$0xff]
    %v193 = vld [vmem:[#allocation3 + $0x110] sm:$0xff]
    %v194 = vld [vmem:[#allocation3 + $0x118] sm:$0xff]
    %v195 = vld [vmem:[#allocation3 + $0x120] sm:$0xff]
    %v196 = vld [vmem:[#allocation3 + $0x128] sm:$0xff]
    %v197 = vld [vmem:[#allocation3 + $0x130] sm:$0xff]
    %v198 = vld [vmem:[#allocation3 + $0x138] sm:$0xff]
    %v199 = vld [vmem:[#allocation3 + $0x140] sm:$0xff]
    %v200 = vld [vmem:[#allocation3 + $0x148] sm:$0xff]
    %v201 = vld [vmem:[#allocation3 + $0x150] sm:$0xff]
    %v202 = vld [vmem:[#allocation3 + $0x158] sm:$0xff]
    %v203 = vld [vmem:[#allocation3 + $0x160] sm:$0xff]
    %v204 = vld [vmem:[#allocation3 + $0x168] sm:$0xff]
    %v205 = vld [vmem:[#allocation3 + $0x170] sm:$0xff]
    %v206 = vld [vmem:[#allocation3 + $0x178] sm:$0xff]
    %v207 = vld [vmem:[#allocation3 + $0x180] sm:$0xff]
    %v208 = vld [vmem:[#allocation3 + $0x188] sm:$0xff]
    %v209 = vld [vmem:[#allocation3 + $0x190] sm:$0xff]
    %v210 = vld [vmem:[#allocation3 + $0x198] sm:$0xff]
    %v211 = vld [vmem:[#allocation3 + $0x1a0] sm:$0xff]
    %v212 = vld [vmem:[#allocation3 + $0x1a8] sm:$0xff]
    %v213 = vld [vmem:[#allocation3 + $0x1b0] sm:$0xff]
    %v214 = vld [vmem:[#allocation3 + $0x1b8] sm:$0xff]
    %v215 = vld [vmem:[#allocation3 + $0x1c0] sm:$0xff]
    %v216 = vld [vmem:[#allocation3 + $0x1c8] sm:$0xff]
    %v217 = vld [vmem:[#allocation3 + $0x1d0] sm:$0xff]
    %v218 = vld [vmem:[#allocation3 + $0x1d8] sm:$0xff]
    %v219 = vld [vmem:[#allocation3 + $0x1e0] sm:$0xff]
    %v220 = vld [vmem:[#allocation3 + $0x1e8] sm:$0xff]
    %v221 = vld [vmem:[#allocation3 + $0x1f0] sm:$0xff]
    %v222 = vld [vmem:[#allocation3 + $0x1f8] sm:$0xff]
    %223 = vmatprep.subr.mxu0 %v160
    %224 = vmatpush1.msra.mxu0 %v159
    %225 = vmatprep.subr.mxu0 %v164
    %226 = vmatpush1.msra.mxu0 %v163
    %227 = vmatprep.subr.mxu0 %v168
    %228 = vmatpush1.msra.mxu0 %v167
    %229 = vmatprep.subr.mxu0 %v172
    %230 = vmatpush1.msra.mxu0 %v171
    %231 = vmatprep.subr.mxu0 %v176
    %232 = vmatpush1.msra.mxu0 %v175
    %233 = vmatprep.subr.mxu0 %v180
    %234 = vmatpush1.msra.mxu0 %v179
    %235 = vmatprep.subr.mxu0 %v184
    %236 = vmatpush1.msra.mxu0 %v183
    %237 = vmatprep.subr.mxu0 %v188
    %238 = vmatpush1.msra.mxu0 %v187
    %239 = vmatprep.subr.mxu0 %v192
    %240 = vmatpush1.msra.mxu0 %v191
    %241 = vmatprep.subr.mxu0 %v196
    %242 = vmatpush1.msra.mxu0 %v195
    %243 = vmatprep.subr.mxu0 %v200
    %244 = vmatpush1.msra.mxu0 %v199
    %245 = vmatprep.subr.mxu0 %v204
    %246 = vmatpush1.msra.mxu0 %v203
    %247 = vmatprep.subr.mxu0 %v208
    %248 = vmatpush1.msra.mxu0 %v207
    %249 = vmatprep.subr.mxu0 %v212
    %250 = vmatpush1.msra.mxu0 %v211
    %251 = vmatprep.subr.mxu0 %v216
    %252 = vmatpush1.msra.mxu0 %v215
    %253 = vmatprep.subr.mxu0 %v220
    %254 = vmatpush1.msra.mxu0 %v219
    %255 = vmatprep.subr.mxu0 0.0
    %256 = vmatpush1.msra.mxu0 0.0
    %257 = vmatprep.subr.mxu0 0.0
    %258 = vmatpush1.msra.mxu0 0.0
    %259 = vmatprep.subr.mxu0 0.0
    %260 = vmatpush1.msra.mxu0 0.0
    %261 = vmatprep.subr.mxu0 0.0
    %262 = vmatpush1.msra.mxu0 0.0
    %263 = vmatprep.subr.mxu0 0.0
    %264 = vmatpush1.msra.mxu0 0.0
    %265 = vmatprep.subr.mxu0 0.0
    %266 = vmatpush1.msra.mxu0 0.0
    %267 = vmatprep.subr.mxu0 0.0
    %268 = vmatpush1.msra.mxu0 0.0
    %269 = vmatprep.subr.mxu0 0.0
    %270 = vmatpush1.msra.mxu0 0.0
    %271 = vmatprep.subr.mxu0 0.0
    %272 = vmatpush1.msra.mxu0 0.0
    %273 = vmatprep.subr.mxu0 0.0
    %274 = vmatpush1.msra.mxu0 0.0
    %275 = vmatprep.subr.mxu0 0.0
    %276 = vmatpush1.msra.mxu0 0.0
    %277 = vmatprep.subr.mxu0 0.0
    %278 = vmatpush1.msra.mxu0 0.0
    %279 = vmatprep.subr.mxu0 0.0
    %280 = vmatpush1.msra.mxu0 0.0
    %281 = vmatprep.subr.mxu0 0.0
    %282 = vmatpush1.msra.mxu0 0.0
    %283 = vmatprep.subr.mxu0 0.0
    %284 = vmatpush1.msra.mxu0 0.0
    %285 = vmatprep.subr.mxu0 0.0
    %286 = vmatpush1.msra.mxu0 0.0
    %287 = vmatprep.mubr.f32.mxu0 0.0
    %288 = vmatmul.mubr.f32.gmra.mrb[0].mxu0 0.0
    %v289 = vpop.f32.mrb[0].mxu0
    %v290 = vadd.f32 0.0, %v289
    %v291 = vpop.f32.mrb[0].mxu0
    %v292 = vadd.f32 0.0, %v291
    %293 = vdwg.mxu0
    %294 = vmatprep.subr.mxu0 %v162
    %295 = vmatpush1.msra.mxu0 %v161
    %296 = vmatprep.subr.mxu0 %v166
    %297 = vmatpush1.msra.mxu0 %v165
    %298 = vmatprep.subr.mxu0 %v170
    %299 = vmatpush1.msra.mxu0 %v169
    %300 = vmatprep.subr.mxu0 %v174
    %301 = vmatpush1.msra.mxu0 %v173
    %302 = vmatprep.subr.mxu0 %v178
    %303 = vmatpush1.msra.mxu0 %v177
    %304 = vmatprep.subr.mxu0 %v182
    %305 = vmatpush1.msra.mxu0 %v181
    %306 = vmatprep.subr.mxu0 %v186
    %307 = vmatpush1.msra.mxu0 %v185
    %308 = vmatprep.subr.mxu0 %v190
    %309 = vmatpush1.msra.mxu0 %v189
    %310 = vmatprep.subr.mxu0 %v194
    %311 = vmatpush1.msra.mxu0 %v193
    %312 = vmatprep.subr.mxu0 %v198
    %313 = vmatpush1.msra.mxu0 %v197
    %314 = vmatprep.subr.mxu0 %v202
    %315 = vmatpush1.msra.mxu0 %v201
    %316 = vmatprep.subr.mxu0 %v206
    %317 = vmatpush1.msra.mxu0 %v205
    %318 = vmatprep.subr.mxu0 %v210
    %319 = vmatpush1.msra.mxu0 %v209
    %320 = vmatprep.subr.mxu0 %v214
    %321 = vmatpush1.msra.mxu0 %v213
    %322 = vmatprep.subr.mxu0 %v218
    %323 = vmatpush1.msra.mxu0 %v217
    %324 = vmatprep.subr.mxu0 %v222
    %325 = vmatpush1.msra.mxu0 %v221
    %326 = vmatprep.subr.mxu0 0.0
    %327 = vmatpush1.msra.mxu0 0.0
    %328 = vmatprep.subr.mxu0 0.0
    %329 = vmatpush1.msra.mxu0 0.0
    %330 = vmatprep.subr.mxu0 0.0
    %331 = vmatpush1.msra.mxu0 0.0
    %332 = vmatprep.subr.mxu0 0.0
    %333 = vmatpush1.msra.mxu0 0.0
    %334 = vmatprep.subr.mxu0 0.0
    %335 = vmatpush1.msra.mxu0 0.0
    %336 = vmatprep.subr.mxu0 0.0
    %337 = vmatpush1.msra.mxu0 0.0
    %338 = vmatprep.subr.mxu0 0.0
    %339 = vmatpush1.msra.mxu0 0.0
    %340 = vmatprep.subr.mxu0 0.0
    %341 = vmatpush1.msra.mxu0 0.0
    %342 = vmatprep.subr.mxu0 0.0
    %343 = vmatpush1.msra.mxu0 0.0
    %344 = vmatprep.subr.mxu0 0.0
    %345 = vmatpush1.msra.mxu0 0.0
    %346 = vmatprep.subr.mxu0 0.0
    %347 = vmatpush1.msra.mxu0 0.0
    %348 = vmatprep.subr.mxu0 0.0
    %349 = vmatpush1.msra.mxu0 0.0
    %350 = vmatprep.subr.mxu0 0.0
    %351 = vmatpush1.msra.mxu0 0.0
    %352 = vmatprep.subr.mxu0 0.0
    %353 = vmatpush1.msra.mxu0 0.0
    %354 = vmatprep.subr.mxu0 0.0
    %355 = vmatpush1.msra.mxu0 0.0
    %356 = vmatprep.subr.mxu0 0.0
    %357 = vmatpush1.msra.mxu0 0.0
    %358 = vmatprep.mubr.f32.mxu0 0.0
    %359 = vmatmul.mubr.f32.gmra.mrb[0].mxu0 0.0
    %v360 = vpop.f32.mrb[0].mxu0
    %v361 = vadd.f32 0.0, %v360
    %v362 = vpop.f32.mrb[0].mxu0
    %v363 = vadd.f32 0.0, %v362
    %364 = vdwg.mxu0
    %v365 = vadd.f32 %v155, %v290
    %v366 = vadd.f32 %v156, %v292
    %v367 = vadd.f32 %v157, %v361
    %v368 = vadd.f32 %v158, %v363
    %v369 = vadd.f32 %v365, %v81
    %v370 = vadd.f32 %v366, %v85
    %v371 = vadd.f32 %v367, %v89
    %v372 = vadd.f32 %v368, %v93
    %v373 = vxor.u32 %v369, 2147483648
    %v374 = vmul.f32 %v373, 1.442695
    %v375 = vpow.pop %v374
    %v376 = vadd.f32 %v375, 1.0
    %v377 = vrcp.pop %v376
    %v378 = vmul.f32 1.0, %v377
    %v379 = vxor.u32 %v370, 2147483648
    %v380 = vmul.f32 %v379, 1.442695
    %v381 = vpow.pop %v380
    %v382 = vadd.f32 %v381, 1.0
    %v383 = vrcp.pop %v382
    %v384 = vmul.f32 1.0, %v383
    %v385 = vtanh.pop %v371
    %v386 = vxor.u32 %v372, 2147483648
    %v387 = vmul.f32 %v386, 1.442695
    %v388 = vpow.pop %v387
    %v389 = vadd.f32 %v388, 1.0
    %v390 = vrcp.pop %v389
    %v391 = vmul.f32 1.0, %v390
    %v392 = vmul.f32 %v384, 0.0
    %v393 = vmul.f32 %v378, %v385
    %v394 = vadd.f32 %v392, %v393
    %v395 = vtanh.pop %v394
    %v396 = vmul.f32 %v391, %v395
    %v397 = vld [vmem:[#allocation5] sm:$0xff]
    %v398 = vld [vmem:[#allocation5 + $0x8] sm:$0xff]
    %v399 = vld [vmem:[#allocation5 + $0x10] sm:$0xff]
    %v400 = vld [vmem:[#allocation5 + $0x18] sm:$0xff]
    %v401 = vld [vmem:[#allocation5 + $0x20] sm:$0xff]
    %v402 = vld [vmem:[#allocation5 + $0x28] sm:$0xff]
    %v403 = vld [vmem:[#allocation5 + $0x30] sm:$0xff]
    %v404 = vld [vmem:[#allocation5 + $0x38] sm:$0xff]
    %v405 = vld [vmem:[#allocation5 + $0x40] sm:$0xff]
    %v406 = vld [vmem:[#allocation5 + $0x48] sm:$0xff]
    %v407 = vld [vmem:[#allocation5 + $0x50] sm:$0xff]
    %v408 = vld [vmem:[#allocation5 + $0x58] sm:$0xff]
    %v409 = vld [vmem:[#allocation5 + $0x60] sm:$0xff]
    %v410 = vld [vmem:[#allocation5 + $0x68] sm:$0xff]
    %v411 = vld [vmem:[#allocation5 + $0x70] sm:$0xff]
    %v412 = vld [vmem:[#allocation5 + $0x78] sm:$0xff]
    %v413 = vld [vmem:[#allocation5 + $0x80] sm:$0xff]
    %v414 = vld [vmem:[#allocation5 + $0x88] sm:$0xff]
    %v415 = vld [vmem:[#allocation5 + $0x90] sm:$0xff]
    %v416 = vld [vmem:[#allocation5 + $0x98] sm:$0xff]
    %v417 = vld [vmem:[#allocation5 + $0xa0] sm:$0xff]
    %v418 = vld [vmem:[#allocation5 + $0xa8] sm:$0xff]
    %v419 = vld [vmem:[#allocation5 + $0xb0] sm:$0xff]
    %v420 = vld [vmem:[#allocation5 + $0xb8] sm:$0xff]
    %v421 = vld [vmem:[#allocation5 + $0xc0] sm:$0xff]
    %v422 = vld [vmem:[#allocation5 + $0xc8] sm:$0xff]
    %v423 = vld [vmem:[#allocation5 + $0xd0] sm:$0xff]
    %v424 = vld [vmem:[#allocation5 + $0xd8] sm:$0xff]
    %v425 = vld [vmem:[#allocation5 + $0xe0] sm:$0xff]
    %v426 = vld [vmem:[#allocation5 + $0xe8] sm:$0xff]
    %v427 = vld [vmem:[#allocation5 + $0xf0] sm:$0xff]
    %v428 = vld [vmem:[#allocation5 + $0xf8] sm:$0xff]
    %v429 = vld [vmem:[#allocation5 + $0x100] sm:$0xff]
    %v430 = vld [vmem:[#allocation5 + $0x108] sm:$0xff]
    %v431 = vld [vmem:[#allocation5 + $0x110] sm:$0xff]
    %v432 = vld [vmem:[#allocation5 + $0x118] sm:$0xff]
    %v433 = vld [vmem:[#allocation5 + $0x120] sm:$0xff]
    %v434 = vld [vmem:[#allocation5 + $0x128] sm:$0xff]
    %v435 = vld [vmem:[#allocation5 + $0x130] sm:$0xff]
    %v436 = vld [vmem:[#allocation5 + $0x138] sm:$0xff]
    %v437 = vld [vmem:[#allocation5 + $0x140] sm:$0xff]
    %v438 = vld [vmem:[#allocation5 + $0x148] sm:$0xff]
    %v439 = vld [vmem:[#allocation5 + $0x150] sm:$0xff]
    %v440 = vld [vmem:[#allocation5 + $0x158] sm:$0xff]
    %v441 = vld [vmem:[#allocation5 + $0x160] sm:$0xff]
    %v442 = vld [vmem:[#allocation5 + $0x168] sm:$0xff]
    %v443 = vld [vmem:[#allocation5 + $0x170] sm:$0xff]
    %v444 = vld [vmem:[#allocation5 + $0x178] sm:$0xff]
    %v445 = vld [vmem:[#allocation5 + $0x180] sm:$0xff]
    %v446 = vld [vmem:[#allocation5 + $0x188] sm:$0xff]
    %v447 = vld [vmem:[#allocation5 + $0x190] sm:$0xff]
    %v448 = vld [vmem:[#allocation5 + $0x198] sm:$0xff]
    %v449 = vld [vmem:[#allocation5 + $0x1a0] sm:$0xff]
    %v450 = vld [vmem:[#allocation5 + $0x1a8] sm:$0xff]
    %v451 = vld [vmem:[#allocation5 + $0x1b0] sm:$0xff]
    %v452 = vld [vmem:[#allocation5 + $0x1b8] sm:$0xff]
    %v453 = vld [vmem:[#allocation5 + $0x1c0] sm:$0xff]
    %v454 = vld [vmem:[#allocation5 + $0x1c8] sm:$0xff]
    %v455 = vld [vmem:[#allocation5 + $0x1d0] sm:$0xff]
    %v456 = vld [vmem:[#allocation5 + $0x1d8] sm:$0xff]
    %v457 = vld [vmem:[#allocation5 + $0x1e0] sm:$0xff]
    %v458 = vld [vmem:[#allocation5 + $0x1e8] sm:$0xff]
    %v459 = vld [vmem:[#allocation5 + $0x1f0] sm:$0xff]
    %v460 = vld [vmem:[#allocation5 + $0x1f8] sm:$0xff]
    %v461 = vld [vmem:[#allocation7] sm:$0xff]
    %v462 = vld [vmem:[#allocation7 + $0x8] sm:$0xff]
    %v463 = vld [vmem:[#allocation7 + $0x10] sm:$0xff]
    %v464 = vld [vmem:[#allocation7 + $0x18] sm:$0xff]
    %v465 = vld [vmem:[#allocation7 + $0x20] sm:$0xff]
    %v466 = vld [vmem:[#allocation7 + $0x28] sm:$0xff]
    %v467 = vld [vmem:[#allocation7 + $0x30] sm:$0xff]
    %v468 = vld [vmem:[#allocation7 + $0x38] sm:$0xff]
    %v469 = vld [vmem:[#allocation7 + $0x40] sm:$0xff]
    %v470 = vld [vmem:[#allocation7 + $0x48] sm:$0xff]
    %v471 = vld [vmem:[#allocation7 + $0x50] sm:$0xff]
    %v472 = vld [vmem:[#allocation7 + $0x58] sm:$0xff]
    %v473 = vld [vmem:[#allocation7 + $0x60] sm:$0xff]
    %v474 = vld [vmem:[#allocation7 + $0x68] sm:$0xff]
    %v475 = vld [vmem:[#allocation7 + $0x70] sm:$0xff]
    %v476 = vld [vmem:[#allocation7 + $0x78] sm:$0xff]
    %v477 = vld [vmem:[#allocation7 + $0x80] sm:$0xff]
    %v478 = vld [vmem:[#allocation7 + $0x88] sm:$0xff]
    %v479 = vld [vmem:[#allocation7 + $0x90] sm:$0xff]
    %v480 = vld [vmem:[#allocation7 + $0x98] sm:$0xff]
    %v481 = vld [vmem:[#allocation7 + $0xa0] sm:$0xff]
    %v482 = vld [vmem:[#allocation7 + $0xa8] sm:$0xff]
    %v483 = vld [vmem:[#allocation7 + $0xb0] sm:$0xff]
    %v484 = vld [vmem:[#allocation7 + $0xb8] sm:$0xff]
    %v485 = vld [vmem:[#allocation7 + $0xc0] sm:$0xff]
    %v486 = vld [vmem:[#allocation7 + $0xc8] sm:$0xff]
    %v487 = vld [vmem:[#allocation7 + $0xd0] sm:$0xff]
    %v488 = vld [vmem:[#allocation7 + $0xd8] sm:$0xff]
    %v489 = vld [vmem:[#allocation7 + $0xe0] sm:$0xff]
    %v490 = vld [vmem:[#allocation7 + $0xe8] sm:$0xff]
    %v491 = vld [vmem:[#allocation7 + $0xf0] sm:$0xff]
    %v492 = vld [vmem:[#allocation7 + $0xf8] sm:$0xff]
    %v493 = vld [vmem:[#allocation7 + $0x100] sm:$0xff]
    %v494 = vld [vmem:[#allocation7 + $0x108] sm:$0xff]
    %v495 = vld [vmem:[#allocation7 + $0x110] sm:$0xff]
    %v496 = vld [vmem:[#allocation7 + $0x118] sm:$0xff]
    %v497 = vld [vmem:[#allocation7 + $0x120] sm:$0xff]
    %v498 = vld [vmem:[#allocation7 + $0x128] sm:$0xff]
    %v499 = vld [vmem:[#allocation7 + $0x130] sm:$0xff]
    %v500 = vld [vmem:[#allocation7 + $0x138] sm:$0xff]
    %v501 = vld [vmem:[#allocation7 + $0x140] sm:$0xff]
    %v502 = vld [vmem:[#allocation7 + $0x148] sm:$0xff]
    %v503 = vld [vmem:[#allocation7 + $0x150] sm:$0xff]
    %v504 = vld [vmem:[#allocation7 + $0x158] sm:$0xff]
    %v505 = vld [vmem:[#allocation7 + $0x160] sm:$0xff]
    %v506 = vld [vmem:[#allocation7 + $0x168] sm:$0xff]
    %v507 = vld [vmem:[#allocation7 + $0x170] sm:$0xff]
    %v508 = vld [vmem:[#allocation7 + $0x178] sm:$0xff]
    %v509 = vld [vmem:[#allocation7 + $0x180] sm:$0xff]
    %v510 = vld [vmem:[#allocation7 + $0x188] sm:$0xff]
    %v511 = vld [vmem:[#allocation7 + $0x190] sm:$0xff]
    %v512 = vld [vmem:[#allocation7 + $0x198] sm:$0xff]
    %v513 = vld [vmem:[#allocation7 + $0x1a0] sm:$0xff]
    %v514 = vld [vmem:[#allocation7 + $0x1a8] sm:$0xff]
    %v515 = vld [vmem:[#allocation7 + $0x1b0] sm:$0xff]
    %v516 = vld [vmem:[#allocation7 + $0x1b8] sm:$0xff]
    %v517 = vld [vmem:[#allocation7 + $0x1c0] sm:$0xff]
    %v518 = vld [vmem:[#allocation7 + $0x1c8] sm:$0xff]
    %v519 = vld [vmem:[#allocation7 + $0x1d0] sm:$0xff]
    %v520 = vld [vmem:[#allocation7 + $0x1d8] sm:$0xff]
    %v521 = vld [vmem:[#allocation7 + $0x1e0] sm:$0xff]
    %v522 = vld [vmem:[#allocation7 + $0x1e8] sm:$0xff]
    %v523 = vld [vmem:[#allocation7 + $0x1f0] sm:$0xff]
    %v524 = vld [vmem:[#allocation7 + $0x1f8] sm:$0xff]
    %525 = vmatprep.subr.mxu0 %v462
    %526 = vmatpush1.msra.mxu0 %v461
    %527 = vmatprep.subr.mxu0 %v466
    %528 = vmatpush1.msra.mxu0 %v465
    %529 = vmatprep.subr.mxu0 %v470
    %530 = vmatpush1.msra.mxu0 %v469
    %531 = vmatprep.subr.mxu0 %v474
    %532 = vmatpush1.msra.mxu0 %v473
    %533 = vmatprep.subr.mxu0 %v478
    %534 = vmatpush1.msra.mxu0 %v477
    %535 = vmatprep.subr.mxu0 %v482
    %536 = vmatpush1.msra.mxu0 %v481
    %537 = vmatprep.subr.mxu0 %v486
    %538 = vmatpush1.msra.mxu0 %v485
    %539 = vmatprep.subr.mxu0 %v490
    %540 = vmatpush1.msra.mxu0 %v489
    %541 = vmatprep.subr.mxu0 %v494
    %542 = vmatpush1.msra.mxu0 %v493
    %543 = vmatprep.subr.mxu0 %v498
    %544 = vmatpush1.msra.mxu0 %v497
    %545 = vmatprep.subr.mxu0 %v502
    %546 = vmatpush1.msra.mxu0 %v501
    %547 = vmatprep.subr.mxu0 %v506
    %548 = vmatpush1.msra.mxu0 %v505
    %549 = vmatprep.subr.mxu0 %v510
    %550 = vmatpush1.msra.mxu0 %v509
    %551 = vmatprep.subr.mxu0 %v514
    %552 = vmatpush1.msra.mxu0 %v513
    %553 = vmatprep.subr.mxu0 %v518
    %554 = vmatpush1.msra.mxu0 %v517
    %555 = vmatprep.subr.mxu0 %v522
    %556 = vmatpush1.msra.mxu0 %v521
    %557 = vmatprep.subr.mxu0 0.0
    %558 = vmatpush1.msra.mxu0 0.0
    %559 = vmatprep.subr.mxu0 0.0
    %560 = vmatpush1.msra.mxu0 0.0
    %561 = vmatprep.subr.mxu0 0.0
    %562 = vmatpush1.msra.mxu0 0.0
    %563 = vmatprep.subr.mxu0 0.0
    %564 = vmatpush1.msra.mxu0 0.0
    %565 = vmatprep.subr.mxu0 0.0
    %566 = vmatpush1.msra.mxu0 0.0
    %567 = vmatprep.subr.mxu0 0.0
    %568 = vmatpush1.msra.mxu0 0.0
    %569 = vmatprep.subr.mxu0 0.0
    %570 = vmatpush1.msra.mxu0 0.0
    %571 = vmatprep.subr.mxu0 0.0
    %572 = vmatpush1.msra.mxu0 0.0
    %573 = vmatprep.subr.mxu0 0.0
    %574 = vmatpush1.msra.mxu0 0.0
    %575 = vmatprep.subr.mxu0 0.0
    %576 = vmatpush1.msra.mxu0 0.0
    %577 = vmatprep.subr.mxu0 0.0
    %578 = vmatpush1.msra.mxu0 0.0
    %579 = vmatprep.subr.mxu0 0.0
    %580 = vmatpush1.msra.mxu0 0.0
    %581 = vmatprep.subr.mxu0 0.0
    %582 = vmatpush1.msra.mxu0 0.0
    %583 = vmatprep.subr.mxu0 0.0
    %584 = vmatpush1.msra.mxu0 0.0
    %585 = vmatprep.subr.mxu0 0.0
    %586 = vmatpush1.msra.mxu0 0.0
    %587 = vmatprep.subr.mxu0 0.0
    %588 = vmatpush1.msra.mxu0 0.0
    %589 = vmatprep.mubr.f32.mxu0 0.0
    %590 = vmatmul.mubr.f32.gmra.mrb[0].mxu0 0.0
    %v591 = vpop.f32.mrb[0].mxu0
    %v592 = vadd.f32 0.0, %v591
    %v593 = vpop.f32.mrb[0].mxu0
    %v594 = vadd.f32 0.0, %v593
    %595 = vdwg.mxu0
    %596 = vmatprep.subr.mxu0 %v464
    %597 = vmatpush1.msra.mxu0 %v463
    %598 = vmatprep.subr.mxu0 %v468
    %599 = vmatpush1.msra.mxu0 %v467
    %600 = vmatprep.subr.mxu0 %v472
    %601 = vmatpush1.msra.mxu0 %v471
    %602 = vmatprep.subr.mxu0 %v476
    %603 = vmatpush1.msra.mxu0 %v475
    %604 = vmatprep.subr.mxu0 %v480
    %605 = vmatpush1.msra.mxu0 %v479
    %606 = vmatprep.subr.mxu0 %v484
    %607 = vmatpush1.msra.mxu0 %v483
    %608 = vmatprep.subr.mxu0 %v488
    %609 = vmatpush1.msra.mxu0 %v487
    %610 = vmatprep.subr.mxu0 %v492
    %611 = vmatpush1.msra.mxu0 %v491
    %612 = vmatprep.subr.mxu0 %v496
    %613 = vmatpush1.msra.mxu0 %v495
    %614 = vmatprep.subr.mxu0 %v500
    %615 = vmatpush1.msra.mxu0 %v499
    %616 = vmatprep.subr.mxu0 %v504
    %617 = vmatpush1.msra.mxu0 %v503
    %618 = vmatprep.subr.mxu0 %v508
    %619 = vmatpush1.msra.mxu0 %v507
    %620 = vmatprep.subr.mxu0 %v512
    %621 = vmatpush1.msra.mxu0 %v511
    %622 = vmatprep.subr.mxu0 %v516
    %623 = vmatpush1.msra.mxu0 %v515
    %624 = vmatprep.subr.mxu0 %v520
    %625 = vmatpush1.msra.mxu0 %v519
    %626 = vmatprep.subr.mxu0 %v524
    %627 = vmatpush1.msra.mxu0 %v523
    %628 = vmatprep.subr.mxu0 0.0
    %629 = vmatpush1.msra.mxu0 0.0
    %630 = vmatprep.subr.mxu0 0.0
    %631 = vmatpush1.msra.mxu0 0.0
    %632 = vmatprep.subr.mxu0 0.0
    %633 = vmatpush1.msra.mxu0 0.0
    %634 = vmatprep.subr.mxu0 0.0
    %635 = vmatpush1.msra.mxu0 0.0
    %636 = vmatprep.subr.mxu0 0.0
    %637 = vmatpush1.msra.mxu0 0.0
    %638 = vmatprep.subr.mxu0 0.0
    %639 = vmatpush1.msra.mxu0 0.0
    %640 = vmatprep.subr.mxu0 0.0
    %641 = vmatpush1.msra.mxu0 0.0
    %642 = vmatprep.subr.mxu0 0.0
    %643 = vmatpush1.msra.mxu0 0.0
    %644 = vmatprep.subr.mxu0 0.0
    %645 = vmatpush1.msra.mxu0 0.0
    %646 = vmatprep.subr.mxu0 0.0
    %647 = vmatpush1.msra.mxu0 0.0
    %648 = vmatprep.subr.mxu0 0.0
    %649 = vmatpush1.msra.mxu0 0.0
    %650 = vmatprep.subr.mxu0 0.0
    %651 = vmatpush1.msra.mxu0 0.0
    %652 = vmatprep.subr.mxu0 0.0
    %653 = vmatpush1.msra.mxu0 0.0
    %654 = vmatprep.subr.mxu0 0.0
    %655 = vmatpush1.msra.mxu0 0.0
    %656 = vmatprep.subr.mxu0 0.0
    %657 = vmatpush1.msra.mxu0 0.0
    %658 = vmatprep.subr.mxu0 0.0
    %659 = vmatpush1.msra.mxu0 0.0
    %660 = vmatprep.mubr.f32.mxu0 0.0
    %661 = vmatmul.mubr.f32.gmra.mrb[0].mxu0 0.0
    %v662 = vpop.f32.mrb[0].mxu0
    %v663 = vadd.f32 0.0, %v662
    %v664 = vpop.f32.mrb[0].mxu0
    %v665 = vadd.f32 0.0, %v664
    %666 = vdwg.mxu0
    %667 = vmatprep.subr.mxu0 %v398
    %668 = vmatpush1.msra.mxu0 %v397
    %669 = vmatprep.subr.mxu0 %v402
    %670 = vmatpush1.msra.mxu0 %v401
    %671 = vmatprep.subr.mxu0 %v406
    %672 = vmatpush1.msra.mxu0 %v405
    %673 = vmatprep.subr.mxu0 %v410
    %674 = vmatpush1.msra.mxu0 %v409
    %675 = vmatprep.subr.mxu0 %v414
    %676 = vmatpush1.msra.mxu0 %v413
    %677 = vmatprep.subr.mxu0 %v418
    %678 = vmatpush1.msra.mxu0 %v417
    %679 = vmatprep.subr.mxu0 %v422
    %680 = vmatpush1.msra.mxu0 %v421
    %681 = vmatprep.subr.mxu0 %v426
    %682 = vmatpush1.msra.mxu0 %v425
    %683 = vmatprep.subr.mxu0 %v430
    %684 = vmatpush1.msra.mxu0 %v429
    %685 = vmatprep.subr.mxu0 %v434
    %686 = vmatpush1.msra.mxu0 %v433
    %687 = vmatprep.subr.mxu0 %v438
    %688 = vmatpush1.msra.mxu0 %v437
    %689 = vmatprep.subr.mxu0 %v442
    %690 = vmatpush1.msra.mxu0 %v441
    %691 = vmatprep.subr.mxu0 %v446
    %692 = vmatpush1.msra.mxu0 %v445
    %693 = vmatprep.subr.mxu0 %v450
    %694 = vmatpush1.msra.mxu0 %v449
    %695 = vmatprep.subr.mxu0 %v454
    %696 = vmatpush1.msra.mxu0 %v453
    %697 = vmatprep.subr.mxu0 %v458
    %698 = vmatpush1.msra.mxu0 %v457
    %699 = vmatprep.subr.mxu0 0.0
    %700 = vmatpush1.msra.mxu0 0.0
    %701 = vmatprep.subr.mxu0 0.0
    %702 = vmatpush1.msra.mxu0 0.0
    %703 = vmatprep.subr.mxu0 0.0
    %704 = vmatpush1.msra.mxu0 0.0
    %705 = vmatprep.subr.mxu0 0.0
    %706 = vmatpush1.msra.mxu0 0.0
    %707 = vmatprep.subr.mxu0 0.0
    %708 = vmatpush1.msra.mxu0 0.0
    %709 = vmatprep.subr.mxu0 0.0
    %710 = vmatpush1.msra.mxu0 0.0
    %711 = vmatprep.subr.mxu0 0.0
    %712 = vmatpush1.msra.mxu0 0.0
    %713 = vmatprep.subr.mxu0 0.0
    %714 = vmatpush1.msra.mxu0 0.0
    %715 = vmatprep.subr.mxu0 0.0
    %716 = vmatpush1.msra.mxu0 0.0
    %717 = vmatprep.subr.mxu0 0.0
    %718 = vmatpush1.msra.mxu0 0.0
    %719 = vmatprep.subr.mxu0 0.0
    %720 = vmatpush1.msra.mxu0 0.0
    %721 = vmatprep.subr.mxu0 0.0
    %722 = vmatpush1.msra.mxu0 0.0
    %723 = vmatprep.subr.mxu0 0.0
    %724 = vmatpush1.msra.mxu0 0.0
    %725 = vmatprep.subr.mxu0 0.0
    %726 = vmatpush1.msra.mxu0 0.0
    %727 = vmatprep.subr.mxu0 0.0
    %728 = vmatpush1.msra.mxu0 0.0
    %729 = vmatprep.subr.mxu0 0.0
    %730 = vmatpush1.msra.mxu0 0.0
    %731 = vmatprep.mubr.f32.mxu0 0.0
    %732 = vmatmul.mubr.f32.gmra.mrb[0].mxu0 %v396
    %v733 = vpop.f32.mrb[0].mxu0
    %v734 = vadd.f32 %v592, %v733
    %v735 = vpop.f32.mrb[0].mxu0
    %v736 = vadd.f32 %v594, %v735
    %737 = vdwg.mxu0
    %738 = vmatprep.subr.mxu0 %v400
    %739 = vmatpush1.msra.mxu0 %v399
    %740 = vmatprep.subr.mxu0 %v404
    %741 = vmatpush1.msra.mxu0 %v403
    %742 = vmatprep.subr.mxu0 %v408
    %743 = vmatpush1.msra.mxu0 %v407
    %744 = vmatprep.subr.mxu0 %v412
    %745 = vmatpush1.msra.mxu0 %v411
    %746 = vmatprep.subr.mxu0 %v416
    %747 = vmatpush1.msra.mxu0 %v415
    %748 = vmatprep.subr.mxu0 %v420
    %749 = vmatpush1.msra.mxu0 %v419
    %750 = vmatprep.subr.mxu0 %v424
    %751 = vmatpush1.msra.mxu0 %v423
    %752 = vmatprep.subr.mxu0 %v428
    %753 = vmatpush1.msra.mxu0 %v427
    %754 = vmatprep.subr.mxu0 %v432
    %755 = vmatpush1.msra.mxu0 %v431
    %756 = vmatprep.subr.mxu0 %v436
    %757 = vmatpush1.msra.mxu0 %v435
    %758 = vmatprep.subr.mxu0 %v440
    %759 = vmatpush1.msra.mxu0 %v439
    %760 = vmatprep.subr.mxu0 %v444
    %761 = vmatpush1.msra.mxu0 %v443
    %762 = vmatprep.subr.mxu0 %v448
    %763 = vmatpush1.msra.mxu0 %v447
    %764 = vmatprep.subr.mxu0 %v452
    %765 = vmatpush1.msra.mxu0 %v451
    %766 = vmatprep.subr.mxu0 %v456
    %767 = vmatpush1.msra.mxu0 %v455
    %768 = vmatprep.subr.mxu0 %v460
    %769 = vmatpush1.msra.mxu0 %v459
    %770 = vmatprep.subr.mxu0 0.0
    %771 = vmatpush1.msra.mxu0 0.0
    %772 = vmatprep.subr.mxu0 0.0
    %773 = vmatpush1.msra.mxu0 0.0
    %774 = vmatprep.subr.mxu0 0.0
    %775 = vmatpush1.msra.mxu0 0.0
    %776 = vmatprep.subr.mxu0 0.0
    %777 = vmatpush1.msra.mxu0 0.0
    %778 = vmatprep.subr.mxu0 0.0
    %779 = vmatpush1.msra.mxu0 0.0
    %780 = vmatprep.subr.mxu0 0.0
    %781 = vmatpush1.msra.mxu0 0.0
    %782 = vmatprep.subr.mxu0 0.0
    %783 = vmatpush1.msra.mxu0 0.0
    %784 = vmatprep.subr.mxu0 0.0
    %785 = vmatpush1.msra.mxu0 0.0
    %786 = vmatprep.subr.mxu0 0.0
    %787 = vmatpush1.msra.mxu0 0.0
    %788 = vmatprep.subr.mxu0 0.0
    %789 = vmatpush1.msra.mxu0 0.0
    %790 = vmatprep.subr.mxu0 0.0
    %791 = vmatpush1.msra.mxu0 0.0
    %792 = vmatprep.subr.mxu0 0.0
    %793 = vmatpush1.msra.mxu0 0.0
    %794 = vmatprep.subr.mxu0 0.0
    %795 = vmatpush1.msra.mxu0 0.0
    %796 = vmatprep.subr.mxu0 0.0
    %797 = vmatpush1.msra.mxu0 0.0
    %798 = vmatprep.subr.mxu0 0.0
    %799 = vmatpush1.msra.mxu0 0.0
    %800 = vmatprep.subr.mxu0 0.0
    %801 = vmatpush1.msra.mxu0 0.0
    %802 = vmatprep.mubr.f32.mxu0 0.0
    %803 = vmatmul.mubr.f32.gmra.mrb[0].mxu0 %v396
    %v804 = vpop.f32.mrb[0].mxu0
    %v805 = vadd.f32 %v663, %v804
    %v806 = vpop.f32.mrb[0].mxu0
    %v807 = vadd.f32 %v665, %v806
    %808 = vdwg.mxu0
    %v809 = vadd.f32 %v734, %v103
    %v810 = vadd.f32 %v736, %v107
    %v811 = vadd.f32 %v805, %v111
    %v812 = vadd.f32 %v807, %v115
    %v813 = vxor.u32 %v809, 2147483648
    %v814 = vmul.f32 %v813, 1.442695
    %v815 = vpow.pop %v814
    %v816 = vadd.f32 %v815, 1.0
    %v817 = vrcp.pop %v816
    %v818 = vmul.f32 1.0, %v817
    %v819 = vxor.u32 %v810, 2147483648
    %v820 = vmul.f32 %v819, 1.442695
    %v821 = vpow.pop %v820
    %v822 = vadd.f32 %v821, 1.0
    %v823 = vrcp.pop %v822
    %v824 = vmul.f32 1.0, %v823
    %v825 = vtanh.pop %v811
    %v826 = vxor.u32 %v812, 2147483648
    %v827 = vmul.f32 %v826, 1.442695
    %v828 = vpow.pop %v827
    %v829 = vadd.f32 %v828, 1.0
    %v830 = vrcp.pop %v829
    %v831 = vmul.f32 1.0, %v830
    %v832 = vmul.f32 %v824, 0.0
    %v833 = vmul.f32 %v818, %v825
    %v834 = vadd.f32 %v832, %v833
    %v835 = vtanh.pop %v834
    %v836 = vmul.f32 %v831, %v835
    %v838 = vlaneseq
    %v839 = vshrl.u32 %v838, 7
    %v840 = vsub.s32 0, %v839
    %v841 = vrot.slane %v120, %v840
    %v843 = vmul.f32 %v836, %v841
    %vm844 = vcmask 1041408
    %v845 = vsel %vm844, %v843, 0.0
    %846 = vadd.xlane.f32.xlu0 %v845
    %v847 = vpop.xlane.xlu0 %846
    %v848 = vadd.f32 %v847, %v126
    %vm849 = vcmask 1024
    %850 = vst.msk [vmem:[%s9] sm:$0x3] %vm849, %v848
    %s851 = scalar_lea.vmem %s0, 2
    %v852 = vld [vmem:[%s851] sm:$0x3]
    %854 = vset.pattern.permute.xlu0 0
    %855 = vperm.xlu0 %854, %v852
    %v856 = vpop.permute.xlu0 %855
    %v858 = vmul.f32 %v856, %v138
    %v859 = vmul.f32 %v856, %v142
    %v860 = vmul.f32 %v856, %v146
    %v861 = vmul.f32 %v856, %v150
    %v862 = vld [vmem:[#allocation3] sm:$0xff]
    %v863 = vld [vmem:[#allocation3 + $0x8] sm:$0xff]
    %v864 = vld [vmem:[#allocation3 + $0x10] sm:$0xff]
    %v865 = vld [vmem:[#allocation3 + $0x18] sm:$0xff]
    %v866 = vld [vmem:[#allocation3 + $0x20] sm:$0xff]
    %v867 = vld [vmem:[#allocation3 + $0x28] sm:$0xff]
    %v868 = vld [vmem:[#allocation3 + $0x30] sm:$0xff]
    %v869 = vld [vmem:[#allocation3 + $0x38] sm:$0xff]
    %v870 = vld [vmem:[#allocation3 + $0x40] sm:$0xff]
    %v871 = vld [vmem:[#allocation3 + $0x48] sm:$0xff]
    %v872 = vld [vmem:[#allocation3 + $0x50] sm:$0xff]
    %v873 = vld [vmem:[#allocation3 + $0x58] sm:$0xff]
    %v874 = vld [vmem:[#allocation3 + $0x60] sm:$0xff]
    %v875 = vld [vmem:[#allocation3 + $0x68] sm:$0xff]
    %v876 = vld [vmem:[#allocation3 + $0x70] sm:$0xff]
    %v877 = vld [vmem:[#allocation3 + $0x78] sm:$0xff]
    %v878 = vld [vmem:[#allocation3 + $0x80] sm:$0xff]
    %v879 = vld [vmem:[#allocation3 + $0x88] sm:$0xff]
    %v880 = vld [vmem:[#allocation3 + $0x90] sm:$0xff]
    %v881 = vld [vmem:[#allocation3 + $0x98] sm:$0xff]
    %v882 = vld [vmem:[#allocation3 + $0xa0] sm:$0xff]
    %v883 = vld [vmem:[#allocation3 + $0xa8] sm:$0xff]
    %v884 = vld [vmem:[#allocation3 + $0xb0] sm:$0xff]
    %v885 = vld [vmem:[#allocation3 + $0xb8] sm:$0xff]
    %v886 = vld [vmem:[#allocation3 + $0xc0] sm:$0xff]
    %v887 = vld [vmem:[#allocation3 + $0xc8] sm:$0xff]
    %v888 = vld [vmem:[#allocation3 + $0xd0] sm:$0xff]
    %v889 = vld [vmem:[#allocation3 + $0xd8] sm:$0xff]
    %v890 = vld [vmem:[#allocation3 + $0xe0] sm:$0xff]
    %v891 = vld [vmem:[#allocation3 + $0xe8] sm:$0xff]
    %v892 = vld [vmem:[#allocation3 + $0xf0] sm:$0xff]
    %v893 = vld [vmem:[#allocation3 + $0xf8] sm:$0xff]
    %v894 = vld [vmem:[#allocation3 + $0x100] sm:$0xff]
    %v895 = vld [vmem:[#allocation3 + $0x108] sm:$0xff]
    %v896 = vld [vmem:[#allocation3 + $0x110] sm:$0xff]
    %v897 = vld [vmem:[#allocation3 + $0x118] sm:$0xff]
    %v898 = vld [vmem:[#allocation3 + $0x120] sm:$0xff]
    %v899 = vld [vmem:[#allocation3 + $0x128] sm:$0xff]
    %v900 = vld [vmem:[#allocation3 + $0x130] sm:$0xff]
    %v901 = vld [vmem:[#allocation3 + $0x138] sm:$0xff]
    %v902 = vld [vmem:[#allocation3 + $0x140] sm:$0xff]
    %v903 = vld [vmem:[#allocation3 + $0x148] sm:$0xff]
    %v904 = vld [vmem:[#allocation3 + $0x150] sm:$0xff]
    %v905 = vld [vmem:[#allocation3 + $0x158] sm:$0xff]
    %v906 = vld [vmem:[#allocation3 + $0x160] sm:$0xff]
    %v907 = vld [vmem:[#allocation3 + $0x168] sm:$0xff]
    %v908 = vld [vmem:[#allocation3 + $0x170] sm:$0xff]
    %v909 = vld [vmem:[#allocation3 + $0x178] sm:$0xff]
    %v910 = vld [vmem:[#allocation3 + $0x180] sm:$0xff]
    %v911 = vld [vmem:[#allocation3 + $0x188] sm:$0xff]
    %v912 = vld [vmem:[#allocation3 + $0x190] sm:$0xff]
    %v913 = vld [vmem:[#allocation3 + $0x198] sm:$0xff]
    %v914 = vld [vmem:[#allocation3 + $0x1a0] sm:$0xff]
    %v915 = vld [vmem:[#allocation3 + $0x1a8] sm:$0xff]
    %v916 = vld [vmem:[#allocation3 + $0x1b0] sm:$0xff]
    %v917 = vld [vmem:[#allocation3 + $0x1b8] sm:$0xff]
    %v918 = vld [vmem:[#allocation3 + $0x1c0] sm:$0xff]
    %v919 = vld [vmem:[#allocation3 + $0x1c8] sm:$0xff]
    %v920 = vld [vmem:[#allocation3 + $0x1d0] sm:$0xff]
    %v921 = vld [vmem:[#allocation3 + $0x1d8] sm:$0xff]
    %v922 = vld [vmem:[#allocation3 + $0x1e0] sm:$0xff]
    %v923 = vld [vmem:[#allocation3 + $0x1e8] sm:$0xff]
    %v924 = vld [vmem:[#allocation3 + $0x1f0] sm:$0xff]
    %v925 = vld [vmem:[#allocation3 + $0x1f8] sm:$0xff]
    %926 = vmatprep.subr.mxu0 %v863
    %927 = vmatpush1.msra.mxu0 %v862
    %928 = vmatprep.subr.mxu0 %v867
    %929 = vmatpush1.msra.mxu0 %v866
    %930 = vmatprep.subr.mxu0 %v871
    %931 = vmatpush1.msra.mxu0 %v870
    %932 = vmatprep.subr.mxu0 %v875
    %933 = vmatpush1.msra.mxu0 %v874
    %934 = vmatprep.subr.mxu0 %v879
    %935 = vmatpush1.msra.mxu0 %v878
    %936 = vmatprep.subr.mxu0 %v883
    %937 = vmatpush1.msra.mxu0 %v882
    %938 = vmatprep.subr.mxu0 %v887
    %939 = vmatpush1.msra.mxu0 %v886
    %940 = vmatprep.subr.mxu0 %v891
    %941 = vmatpush1.msra.mxu0 %v890
    %942 = vmatprep.subr.mxu0 %v895
    %943 = vmatpush1.msra.mxu0 %v894
    %944 = vmatprep.subr.mxu0 %v899
    %945 = vmatpush1.msra.mxu0 %v898
    %946 = vmatprep.subr.mxu0 %v903
    %947 = vmatpush1.msra.mxu0 %v902
    %948 = vmatprep.subr.mxu0 %v907
    %949 = vmatpush1.msra.mxu0 %v906
    %950 = vmatprep.subr.mxu0 %v911
    %951 = vmatpush1.msra.mxu0 %v910
    %952 = vmatprep.subr.mxu0 %v915
    %953 = vmatpush1.msra.mxu0 %v914
    %954 = vmatprep.subr.mxu0 %v919
    %955 = vmatpush1.msra.mxu0 %v918
    %956 = vmatprep.subr.mxu0 %v923
    %957 = vmatpush1.msra.mxu0 %v922
    %958 = vmatprep.subr.mxu0 0.0
    %959 = vmatpush1.msra.mxu0 0.0
    %960 = vmatprep.subr.mxu0 0.0
    %961 = vmatpush1.msra.mxu0 0.0
    %962 = vmatprep.subr.mxu0 0.0
    %963 = vmatpush1.msra.mxu0 0.0
    %964 = vmatprep.subr.mxu0 0.0
    %965 = vmatpush1.msra.mxu0 0.0
    %966 = vmatprep.subr.mxu0 0.0
    %967 = vmatpush1.msra.mxu0 0.0
    %968 = vmatprep.subr.mxu0 0.0
    %969 = vmatpush1.msra.mxu0 0.0
    %970 = vmatprep.subr.mxu0 0.0
    %971 = vmatpush1.msra.mxu0 0.0
    %972 = vmatprep.subr.mxu0 0.0
    %973 = vmatpush1.msra.mxu0 0.0
    %974 = vmatprep.subr.mxu0 0.0
    %975 = vmatpush1.msra.mxu0 0.0
    %976 = vmatprep.subr.mxu0 0.0
    %977 = vmatpush1.msra.mxu0 0.0
    %978 = vmatprep.subr.mxu0 0.0
    %979 = vmatpush1.msra.mxu0 0.0
    %980 = vmatprep.subr.mxu0 0.0
    %981 = vmatpush1.msra.mxu0 0.0
    %982 = vmatprep.subr.mxu0 0.0
    %983 = vmatpush1.msra.mxu0 0.0
    %984 = vmatprep.subr.mxu0 0.0
    %985 = vmatpush1.msra.mxu0 0.0
    %986 = vmatprep.subr.mxu0 0.0
    %987 = vmatpush1.msra.mxu0 0.0
    %988 = vmatprep.subr.mxu0 0.0
    %989 = vmatpush1.msra.mxu0 0.0
    %990 = vmatprep.mubr.f32.mxu0 0.0
    %991 = vmatmul.mubr.f32.gmra.mrb[0].mxu0 %v396
    %v992 = vpop.f32.mrb[0].mxu0
    %v993 = vadd.f32 0.0, %v992
    %v994 = vpop.f32.mrb[0].mxu0
    %v995 = vadd.f32 0.0, %v994
    %996 = vdwg.mxu0
    %997 = vmatprep.subr.mxu0 %v865
    %998 = vmatpush1.msra.mxu0 %v864
    %999 = vmatprep.subr.mxu0 %v869
    %1000 = vmatpush1.msra.mxu0 %v868
    %1001 = vmatprep.subr.mxu0 %v873
    %1002 = vmatpush1.msra.mxu0 %v872
    %1003 = vmatprep.subr.mxu0 %v877
    %1004 = vmatpush1.msra.mxu0 %v876
    %1005 = vmatprep.subr.mxu0 %v881
    %1006 = vmatpush1.msra.mxu0 %v880
    %1007 = vmatprep.subr.mxu0 %v885
    %1008 = vmatpush1.msra.mxu0 %v884
    %1009 = vmatprep.subr.mxu0 %v889
    %1010 = vmatpush1.msra.mxu0 %v888
    %1011 = vmatprep.subr.mxu0 %v893
    %1012 = vmatpush1.msra.mxu0 %v892
    %1013 = vmatprep.subr.mxu0 %v897
    %1014 = vmatpush1.msra.mxu0 %v896
    %1015 = vmatprep.subr.mxu0 %v901
    %1016 = vmatpush1.msra.mxu0 %v900
    %1017 = vmatprep.subr.mxu0 %v905
    %1018 = vmatpush1.msra.mxu0 %v904
    %1019 = vmatprep.subr.mxu0 %v909
    %1020 = vmatpush1.msra.mxu0 %v908
    %1021 = vmatprep.subr.mxu0 %v913
    %1022 = vmatpush1.msra.mxu0 %v912
    %1023 = vmatprep.subr.mxu0 %v917
    %1024 = vmatpush1.msra.mxu0 %v916
    %1025 = vmatprep.subr.mxu0 %v921
    %1026 = vmatpush1.msra.mxu0 %v920
    %1027 = vmatprep.subr.mxu0 %v925
    %1028 = vmatpush1.msra.mxu0 %v924
    %1029 = vmatprep.subr.mxu0 0.0
    %1030 = vmatpush1.msra.mxu0 0.0
    %1031 = vmatprep.subr.mxu0 0.0
    %1032 = vmatpush1.msra.mxu0 0.0
    %1033 = vmatprep.subr.mxu0 0.0
    %1034 = vmatpush1.msra.mxu0 0.0
    %1035 = vmatprep.subr.mxu0 0.0
    %1036 = vmatpush1.msra.mxu0 0.0
    %1037 = vmatprep.subr.mxu0 0.0
    %1038 = vmatpush1.msra.mxu0 0.0
    %1039 = vmatprep.subr.mxu0 0.0
    %1040 = vmatpush1.msra.mxu0 0.0
    %1041 = vmatprep.subr.mxu0 0.0
    %1042 = vmatpush1.msra.mxu0 0.0
    %1043 = vmatprep.subr.mxu0 0.0
    %1044 = vmatpush1.msra.mxu0 0.0
    %1045 = vmatprep.subr.mxu0 0.0
    %1046 = vmatpush1.msra.mxu0 0.0
    %1047 = vmatprep.subr.mxu0 0.0
    %1048 = vmatpush1.msra.mxu0 0.0
    %1049 = vmatprep.subr.mxu0 0.0
    %1050 = vmatpush1.msra.mxu0 0.0
    %1051 = vmatprep.subr.mxu0 0.0
    %1052 = vmatpush1.msra.mxu0 0.0
    %1053 = vmatprep.subr.mxu0 0.0
    %1054 = vmatpush1.msra.mxu0 0.0
    %1055 = vmatprep.subr.mxu0 0.0
    %1056 = vmatpush1.msra.mxu0 0.0
    %1057 = vmatprep.subr.mxu0 0.0
    %1058 = vmatpush1.msra.mxu0 0.0
    %1059 = vmatprep.subr.mxu0 0.0
    %1060 = vmatpush1.msra.mxu0 0.0
    %1061 = vmatprep.mubr.f32.mxu0 0.0
    %1062 = vmatmul.mubr.f32.gmra.mrb[0].mxu0 %v396
    %v1063 = vpop.f32.mrb[0].mxu0
    %v1064 = vadd.f32 0.0, %v1063
    %v1065 = vpop.f32.mrb[0].mxu0
    %v1066 = vadd.f32 0.0, %v1065
    %1067 = vdwg.mxu0
    %v1068 = vadd.f32 %v858, %v993
    %v1069 = vadd.f32 %v859, %v995
    %v1070 = vadd.f32 %v860, %v1064
    %v1071 = vadd.f32 %v861, %v1066
    %v1072 = vadd.f32 %v1068, %v81
    %v1073 = vadd.f32 %v1069, %v85
    %v1074 = vadd.f32 %v1070, %v89
    %v1075 = vadd.f32 %v1071, %v93
    %v1076 = vxor.u32 %v1072, 2147483648
    %v1077 = vmul.f32 %v1076, 1.442695
    %v1078 = vpow.pop %v1077
    %v1079 = vadd.f32 %v1078, 1.0
    %v1080 = vrcp.pop %v1079
    %v1081 = vmul.f32 1.0, %v1080
    %v1082 = vxor.u32 %v1073, 2147483648
    %v1083 = vmul.f32 %v1082, 1.442695
    %v1084 = vpow.pop %v1083
    %v1085 = vadd.f32 %v1084, 1.0
    %v1086 = vrcp.pop %v1085
    %v1087 = vmul.f32 1.0, %v1086
    %v1088 = vtanh.pop %v1074
    %v1089 = vxor.u32 %v1075, 2147483648
    %v1090 = vmul.f32 %v1089, 1.442695
    %v1091 = vpow.pop %v1090
    %v1092 = vadd.f32 %v1091, 1.0
    %v1093 = vrcp.pop %v1092
    %v1094 = vmul.f32 1.0, %v1093
    %v1095 = vmul.f32 %v1087, %v394
    %v1096 = vmul.f32 %v1081, %v1088
    %v1097 = vadd.f32 %v1095, %v1096
    %v1098 = vtanh.pop %v1097
    %v1099 = vmul.f32 %v1094, %v1098
    %v1100 = vld [vmem:[#allocation5] sm:$0xff]
    %v1101 = vld [vmem:[#allocation5 + $0x8] sm:$0xff]
    %v1102 = vld [vmem:[#allocation5 + $0x10] sm:$0xff]
    %v1103 = vld [vmem:[#allocation5 + $0x18] sm:$0xff]
    %v1104 = vld [vmem:[#allocation5 + $0x20] sm:$0xff]
    %v1105 = vld [vmem:[#allocation5 + $0x28] sm:$0xff]
    %v1106 = vld [vmem:[#allocation5 + $0x30] sm:$0xff]
    %v1107 = vld [vmem:[#allocation5 + $0x38] sm:$0xff]
    %v1108 = vld [vmem:[#allocation5 + $0x40] sm:$0xff]
    %v1109 = vld [vmem:[#allocation5 + $0x48] sm:$0xff]
    %v1110 = vld [vmem:[#allocation5 + $0x50] sm:$0xff]
    %v1111 = vld [vmem:[#allocation5 + $0x58] sm:$0xff]
    %v1112 = vld [vmem:[#allocation5 + $0x60] sm:$0xff]
    %v1113 = vld [vmem:[#allocation5 + $0x68] sm:$0xff]
    %v1114 = vld [vmem:[#allocation5 + $0x70] sm:$0xff]
    %v1115 = vld [vmem:[#allocation5 + $0x78] sm:$0xff]
    %v1116 = vld [vmem:[#allocation5 + $0x80] sm:$0xff]
    %v1117 = vld [vmem:[#allocation5 + $0x88] sm:$0xff]
    %v1118 = vld [vmem:[#allocation5 + $0x90] sm:$0xff]
    %v1119 = vld [vmem:[#allocation5 + $0x98] sm:$0xff]
    %v1120 = vld [vmem:[#allocation5 + $0xa0] sm:$0xff]
    %v1121 = vld [vmem:[#allocation5 + $0xa8] sm:$0xff]
    %v1122 = vld [vmem:[#allocation5 + $0xb0] sm:$0xff]
    %v1123 = vld [vmem:[#allocation5 + $0xb8] sm:$0xff]
    %v1124 = vld [vmem:[#allocation5 + $0xc0] sm:$0xff]
    %v1125 = vld [vmem:[#allocation5 + $0xc8] sm:$0xff]
    %v1126 = vld [vmem:[#allocation5 + $0xd0] sm:$0xff]
    %v1127 = vld [vmem:[#allocation5 + $0xd8] sm:$0xff]
    %v1128 = vld [vmem:[#allocation5 + $0xe0] sm:$0xff]
    %v1129 = vld [vmem:[#allocation5 + $0xe8] sm:$0xff]
    %v1130 = vld [vmem:[#allocation5 + $0xf0] sm:$0xff]
    %v1131 = vld [vmem:[#allocation5 + $0xf8] sm:$0xff]
    %v1132 = vld [vmem:[#allocation5 + $0x100] sm:$0xff]
    %v1133 = vld [vmem:[#allocation5 + $0x108] sm:$0xff]
    %v1134 = vld [vmem:[#allocation5 + $0x110] sm:$0xff]
    %v1135 = vld [vmem:[#allocation5 + $0x118] sm:$0xff]
    %v1136 = vld [vmem:[#allocation5 + $0x120] sm:$0xff]
    %v1137 = vld [vmem:[#allocation5 + $0x128] sm:$0xff]
    %v1138 = vld [vmem:[#allocation5 + $0x130] sm:$0xff]
    %v1139 = vld [vmem:[#allocation5 + $0x138] sm:$0xff]
    %v1140 = vld [vmem:[#allocation5 + $0x140] sm:$0xff]
    %v1141 = vld [vmem:[#allocation5 + $0x148] sm:$0xff]
    %v1142 = vld [vmem:[#allocation5 + $0x150] sm:$0xff]
    %v1143 = vld [vmem:[#allocation5 + $0x158] sm:$0xff]
    %v1144 = vld [vmem:[#allocation5 + $0x160] sm:$0xff]
    %v1145 = vld [vmem:[#allocation5 + $0x168] sm:$0xff]
    %v1146 = vld [vmem:[#allocation5 + $0x170] sm:$0xff]
    %v1147 = vld [vmem:[#allocation5 + $0x178] sm:$0xff]
    %v1148 = vld [vmem:[#allocation5 + $0x180] sm:$0xff]
    %v1149 = vld [vmem:[#allocation5 + $0x188] sm:$0xff]
    %v1150 = vld [vmem:[#allocation5 + $0x190] sm:$0xff]
    %v1151 = vld [vmem:[#allocation5 + $0x198] sm:$0xff]
    %v1152 = vld [vmem:[#allocation5 + $0x1a0] sm:$0xff]
    %v1153 = vld [vmem:[#allocation5 + $0x1a8] sm:$0xff]
    %v1154 = vld [vmem:[#allocation5 + $0x1b0] sm:$0xff]
    %v1155 = vld [vmem:[#allocation5 + $0x1b8] sm:$0xff]
    %v1156 = vld [vmem:[#allocation5 + $0x1c0] sm:$0xff]
    %v1157 = vld [vmem:[#allocation5 + $0x1c8] sm:$0xff]
    %v1158 = vld [vmem:[#allocation5 + $0x1d0] sm:$0xff]
    %v1159 = vld [vmem:[#allocation5 + $0x1d8] sm:$0xff]
    %v1160 = vld [vmem:[#allocation5 + $0x1e0] sm:$0xff]
    %v1161 = vld [vmem:[#allocation5 + $0x1e8] sm:$0xff]
    %v1162 = vld [vmem:[#allocation5 + $0x1f0] sm:$0xff]
    %v1163 = vld [vmem:[#allocation5 + $0x1f8] sm:$0xff]
    %v1164 = vld [vmem:[#allocation7] sm:$0xff]
    %v1165 = vld [vmem:[#allocation7 + $0x8] sm:$0xff]
    %v1166 = vld [vmem:[#allocation7 + $0x10] sm:$0xff]
    %v1167 = vld [vmem:[#allocation7 + $0x18] sm:$0xff]
    %v1168 = vld [vmem:[#allocation7 + $0x20] sm:$0xff]
    %v1169 = vld [vmem:[#allocation7 + $0x28] sm:$0xff]
    %v1170 = vld [vmem:[#allocation7 + $0x30] sm:$0xff]
    %v1171 = vld [vmem:[#allocation7 + $0x38] sm:$0xff]
    %v1172 = vld [vmem:[#allocation7 + $0x40] sm:$0xff]
    %v1173 = vld [vmem:[#allocation7 + $0x48] sm:$0xff]
    %v1174 = vld [vmem:[#allocation7 + $0x50] sm:$0xff]
    %v1175 = vld [vmem:[#allocation7 + $0x58] sm:$0xff]
    %v1176 = vld [vmem:[#allocation7 + $0x60] sm:$0xff]
    %v1177 = vld [vmem:[#allocation7 + $0x68] sm:$0xff]
    %v1178 = vld [vmem:[#allocation7 + $0x70] sm:$0xff]
    %v1179 = vld [vmem:[#allocation7 + $0x78] sm:$0xff]
    %v1180 = vld [vmem:[#allocation7 + $0x80] sm:$0xff]
    %v1181 = vld [vmem:[#allocation7 + $0x88] sm:$0xff]
    %v1182 = vld [vmem:[#allocation7 + $0x90] sm:$0xff]
    %v1183 = vld [vmem:[#allocation7 + $0x98] sm:$0xff]
    %v1184 = vld [vmem:[#allocation7 + $0xa0] sm:$0xff]
    %v1185 = vld [vmem:[#allocation7 + $0xa8] sm:$0xff]
    %v1186 = vld [vmem:[#allocation7 + $0xb0] sm:$0xff]
    %v1187 = vld [vmem:[#allocation7 + $0xb8] sm:$0xff]
    %v1188 = vld [vmem:[#allocation7 + $0xc0] sm:$0xff]
    %v1189 = vld [vmem:[#allocation7 + $0xc8] sm:$0xff]
    %v1190 = vld [vmem:[#allocation7 + $0xd0] sm:$0xff]
    %v1191 = vld [vmem:[#allocation7 + $0xd8] sm:$0xff]
    %v1192 = vld [vmem:[#allocation7 + $0xe0] sm:$0xff]
    %v1193 = vld [vmem:[#allocation7 + $0xe8] sm:$0xff]
    %v1194 = vld [vmem:[#allocation7 + $0xf0] sm:$0xff]
    %v1195 = vld [vmem:[#allocation7 + $0xf8] sm:$0xff]
    %v1196 = vld [vmem:[#allocation7 + $0x100] sm:$0xff]
    %v1197 = vld [vmem:[#allocation7 + $0x108] sm:$0xff]
    %v1198 = vld [vmem:[#allocation7 + $0x110] sm:$0xff]
    %v1199 = vld [vmem:[#allocation7 + $0x118] sm:$0xff]
    %v1200 = vld [vmem:[#allocation7 + $0x120] sm:$0xff]
    %v1201 = vld [vmem:[#allocation7 + $0x128] sm:$0xff]
    %v1202 = vld [vmem:[#allocation7 + $0x130] sm:$0xff]
    %v1203 = vld [vmem:[#allocation7 + $0x138] sm:$0xff]
    %v1204 = vld [vmem:[#allocation7 + $0x140] sm:$0xff]
    %v1205 = vld [vmem:[#allocation7 + $0x148] sm:$0xff]
    %v1206 = vld [vmem:[#allocation7 + $0x150] sm:$0xff]
    %v1207 = vld [vmem:[#allocation7 + $0x158] sm:$0xff]
    %v1208 = vld [vmem:[#allocation7 + $0x160] sm:$0xff]
    %v1209 = vld [vmem:[#allocation7 + $0x168] sm:$0xff]
    %v1210 = vld [vmem:[#allocation7 + $0x170] sm:$0xff]
    %v1211 = vld [vmem:[#allocation7 + $0x178] sm:$0xff]
    %v1212 = vld [vmem:[#allocation7 + $0x180] sm:$0xff]
    %v1213 = vld [vmem:[#allocation7 + $0x188] sm:$0xff]
    %v1214 = vld [vmem:[#allocation7 + $0x190] sm:$0xff]
    %v1215 = vld [vmem:[#allocation7 + $0x198] sm:$0xff]
    %v1216 = vld [vmem:[#allocation7 + $0x1a0] sm:$0xff]
    %v1217 = vld [vmem:[#allocation7 + $0x1a8] sm:$0xff]
    %v1218 = vld [vmem:[#allocation7 + $0x1b0] sm:$0xff]
    %v1219 = vld [vmem:[#allocation7 + $0x1b8] sm:$0xff]
    %v1220 = vld [vmem:[#allocation7 + $0x1c0] sm:$0xff]
    %v1221 = vld [vmem:[#allocation7 + $0x1c8] sm:$0xff]
    %v1222 = vld [vmem:[#allocation7 + $0x1d0] sm:$0xff]
    %v1223 = vld [vmem:[#allocation7 + $0x1d8] sm:$0xff]
    %v1224 = vld [vmem:[#allocation7 + $0x1e0] sm:$0xff]
    %v1225 = vld [vmem:[#allocation7 + $0x1e8] sm:$0xff]
    %v1226 = vld [vmem:[#allocation7 + $0x1f0] sm:$0xff]
    %v1227 = vld [vmem:[#allocation7 + $0x1f8] sm:$0xff]
    %1228 = vmatprep.subr.mxu0 %v1165
    %1229 = vmatpush1.msra.mxu0 %v1164
    %1230 = vmatprep.subr.mxu0 %v1169
    %1231 = vmatpush1.msra.mxu0 %v1168
    %1232 = vmatprep.subr.mxu0 %v1173
    %1233 = vmatpush1.msra.mxu0 %v1172
    %1234 = vmatprep.subr.mxu0 %v1177
    %1235 = vmatpush1.msra.mxu0 %v1176
    %1236 = vmatprep.subr.mxu0 %v1181
    %1237 = vmatpush1.msra.mxu0 %v1180
    %1238 = vmatprep.subr.mxu0 %v1185
    %1239 = vmatpush1.msra.mxu0 %v1184
    %1240 = vmatprep.subr.mxu0 %v1189
    %1241 = vmatpush1.msra.mxu0 %v1188
    %1242 = vmatprep.subr.mxu0 %v1193
    %1243 = vmatpush1.msra.mxu0 %v1192
    %1244 = vmatprep.subr.mxu0 %v1197
    %1245 = vmatpush1.msra.mxu0 %v1196
    %1246 = vmatprep.subr.mxu0 %v1201
    %1247 = vmatpush1.msra.mxu0 %v1200
    %1248 = vmatprep.subr.mxu0 %v1205
    %1249 = vmatpush1.msra.mxu0 %v1204
    %1250 = vmatprep.subr.mxu0 %v1209
    %1251 = vmatpush1.msra.mxu0 %v1208
    %1252 = vmatprep.subr.mxu0 %v1213
    %1253 = vmatpush1.msra.mxu0 %v1212
    %1254 = vmatprep.subr.mxu0 %v1217
    %1255 = vmatpush1.msra.mxu0 %v1216
    %1256 = vmatprep.subr.mxu0 %v1221
    %1257 = vmatpush1.msra.mxu0 %v1220
    %1258 = vmatprep.subr.mxu0 %v1225
    %1259 = vmatpush1.msra.mxu0 %v1224
    %1260 = vmatprep.subr.mxu0 0.0
    %1261 = vmatpush1.msra.mxu0 0.0
    %1262 = vmatprep.subr.mxu0 0.0
    %1263 = vmatpush1.msra.mxu0 0.0
    %1264 = vmatprep.subr.mxu0 0.0
    %1265 = vmatpush1.msra.mxu0 0.0
    %1266 = vmatprep.subr.mxu0 0.0
    %1267 = vmatpush1.msra.mxu0 0.0
    %1268 = vmatprep.subr.mxu0 0.0
    %1269 = vmatpush1.msra.mxu0 0.0
    %1270 = vmatprep.subr.mxu0 0.0
    %1271 = vmatpush1.msra.mxu0 0.0
    %1272 = vmatprep.subr.mxu0 0.0
    %1273 = vmatpush1.msra.mxu0 0.0
    %1274 = vmatprep.subr.mxu0 0.0
    %1275 = vmatpush1.msra.mxu0 0.0
    %1276 = vmatprep.subr.mxu0 0.0
    %1277 = vmatpush1.msra.mxu0 0.0
    %1278 = vmatprep.subr.mxu0 0.0
    %1279 = vmatpush1.msra.mxu0 0.0
    %1280 = vmatprep.subr.mxu0 0.0
    %1281 = vmatpush1.msra.mxu0 0.0
    %1282 = vmatprep.subr.mxu0 0.0
    %1283 = vmatpush1.msra.mxu0 0.0
    %1284 = vmatprep.subr.mxu0 0.0
    %1285 = vmatpush1.msra.mxu0 0.0
    %1286 = vmatprep.subr.mxu0 0.0
    %1287 = vmatpush1.msra.mxu0 0.0
    %1288 = vmatprep.subr.mxu0 0.0
    %1289 = vmatpush1.msra.mxu0 0.0
    %1290 = vmatprep.subr.mxu0 0.0
    %1291 = vmatpush1.msra.mxu0 0.0
    %1292 = vmatprep.mubr.f32.mxu0 0.0
    %1293 = vmatmul.mubr.f32.gmra.mrb[0].mxu0 %v836
    %v1294 = vpop.f32.mrb[0].mxu0
    %v1295 = vadd.f32 0.0, %v1294
    %v1296 = vpop.f32.mrb[0].mxu0
    %v1297 = vadd.f32 0.0, %v1296
    %1298 = vdwg.mxu0
    %1299 = vmatprep.subr.mxu0 %v1167
    %1300 = vmatpush1.msra.mxu0 %v1166
    %1301 = vmatprep.subr.mxu0 %v1171
    %1302 = vmatpush1.msra.mxu0 %v1170
    %1303 = vmatprep.subr.mxu0 %v1175
    %1304 = vmatpush1.msra.mxu0 %v1174
    %1305 = vmatprep.subr.mxu0 %v1179
    %1306 = vmatpush1.msra.mxu0 %v1178
    %1307 = vmatprep.subr.mxu0 %v1183
    %1308 = vmatpush1.msra.mxu0 %v1182
    %1309 = vmatprep.subr.mxu0 %v1187
    %1310 = vmatpush1.msra.mxu0 %v1186
    %1311 = vmatprep.subr.mxu0 %v1191
    %1312 = vmatpush1.msra.mxu0 %v1190
    %1313 = vmatprep.subr.mxu0 %v1195
    %1314 = vmatpush1.msra.mxu0 %v1194
    %1315 = vmatprep.subr.mxu0 %v1199
    %1316 = vmatpush1.msra.mxu0 %v1198
    %1317 = vmatprep.subr.mxu0 %v1203
    %1318 = vmatpush1.msra.mxu0 %v1202
    %1319 = vmatprep.subr.mxu0 %v1207
    %1320 = vmatpush1.msra.mxu0 %v1206
    %1321 = vmatprep.subr.mxu0 %v1211
    %1322 = vmatpush1.msra.mxu0 %v1210
    %1323 = vmatprep.subr.mxu0 %v1215
    %1324 = vmatpush1.msra.mxu0 %v1214
    %1325 = vmatprep.subr.mxu0 %v1219
    %1326 = vmatpush1.msra.mxu0 %v1218
    %1327 = vmatprep.subr.mxu0 %v1223
    %1328 = vmatpush1.msra.mxu0 %v1222
    %1329 = vmatprep.subr.mxu0 %v1227
    %1330 = vmatpush1.msra.mxu0 %v1226
    %1331 = vmatprep.subr.mxu0 0.0
    %1332 = vmatpush1.msra.mxu0 0.0
    %1333 = vmatprep.subr.mxu0 0.0
    %1334 = vmatpush1.msra.mxu0 0.0
    %1335 = vmatprep.subr.mxu0 0.0
    %1336 = vmatpush1.msra.mxu0 0.0
    %1337 = vmatprep.subr.mxu0 0.0
    %1338 = vmatpush1.msra.mxu0 0.0
    %1339 = vmatprep.subr.mxu0 0.0
    %1340 = vmatpush1.msra.mxu0 0.0
    %1341 = vmatprep.subr.mxu0 0.0
    %1342 = vmatpush1.msra.mxu0 0.0
    %1343 = vmatprep.subr.mxu0 0.0
    %1344 = vmatpush1.msra.mxu0 0.0
    %1345 = vmatprep.subr.mxu0 0.0
    %1346 = vmatpush1.msra.mxu0 0.0
    %1347 = vmatprep.subr.mxu0 0.0
    %1348 = vmatpush1.msra.mxu0 0.0
    %1349 = vmatprep.subr.mxu0 0.0
    %1350 = vmatpush1.msra.mxu0 0.0
    %1351 = vmatprep.subr.mxu0 0.0
    %1352 = vmatpush1.msra.mxu0 0.0
    %1353 = vmatprep.subr.mxu0 0.0
    %1354 = vmatpush1.msra.mxu0 0.0
    %1355 = vmatprep.subr.mxu0 0.0
    %1356 = vmatpush1.msra.mxu0 0.0
    %1357 = vmatprep.subr.mxu0 0.0
    %1358 = vmatpush1.msra.mxu0 0.0
    %1359 = vmatprep.subr.mxu0 0.0
    %1360 = vmatpush1.msra.mxu0 0.0
    %1361 = vmatprep.subr.mxu0 0.0
    %1362 = vmatpush1.msra.mxu0 0.0
    %1363 = vmatprep.mubr.f32.mxu0 0.0
    %1364 = vmatmul.mubr.f32.gmra.mrb[0].mxu0 %v836
    %v1365 = vpop.f32.mrb[0].mxu0
    %v1366 = vadd.f32 0.0, %v1365
    %v1367 = vpop.f32.mrb[0].mxu0
    %v1368 = vadd.f32 0.0, %v1367
    %1369 = vdwg.mxu0
    %1370 = vmatprep.subr.mxu0 %v1101
    %1371 = vmatpush1.msra.mxu0 %v1100
    %1372 = vmatprep.subr.mxu0 %v1105
    %1373 = vmatpush1.msra.mxu0 %v1104
    %1374 = vmatprep.subr.mxu0 %v1109
    %1375 = vmatpush1.msra.mxu0 %v1108
    %1376 = vmatprep.subr.mxu0 %v1113
    %1377 = vmatpush1.msra.mxu0 %v1112
    %1378 = vmatprep.subr.mxu0 %v1117
    %1379 = vmatpush1.msra.mxu0 %v1116
    %1380 = vmatprep.subr.mxu0 %v1121
    %1381 = vmatpush1.msra.mxu0 %v1120
    %1382 = vmatprep.subr.mxu0 %v1125
    %1383 = vmatpush1.msra.mxu0 %v1124
    %1384 = vmatprep.subr.mxu0 %v1129
    %1385 = vmatpush1.msra.mxu0 %v1128
    %1386 = vmatprep.subr.mxu0 %v1133
    %1387 = vmatpush1.msra.mxu0 %v1132
    %1388 = vmatprep.subr.mxu0 %v1137
    %1389 = vmatpush1.msra.mxu0 %v1136
    %1390 = vmatprep.subr.mxu0 %v1141
    %1391 = vmatpush1.msra.mxu0 %v1140
    %1392 = vmatprep.subr.mxu0 %v1145
    %1393 = vmatpush1.msra.mxu0 %v1144
    %1394 = vmatprep.subr.mxu0 %v1149
    %1395 = vmatpush1.msra.mxu0 %v1148
    %1396 = vmatprep.subr.mxu0 %v1153
    %1397 = vmatpush1.msra.mxu0 %v1152
    %1398 = vmatprep.subr.mxu0 %v1157
    %1399 = vmatpush1.msra.mxu0 %v1156
    %1400 = vmatprep.subr.mxu0 %v1161
    %1401 = vmatpush1.msra.mxu0 %v1160
    %1402 = vmatprep.subr.mxu0 0.0
    %1403 = vmatpush1.msra.mxu0 0.0
    %1404 = vmatprep.subr.mxu0 0.0
    %1405 = vmatpush1.msra.mxu0 0.0
    %1406 = vmatprep.subr.mxu0 0.0
    %1407 = vmatpush1.msra.mxu0 0.0
    %1408 = vmatprep.subr.mxu0 0.0
    %1409 = vmatpush1.msra.mxu0 0.0
    %1410 = vmatprep.subr.mxu0 0.0
    %1411 = vmatpush1.msra.mxu0 0.0
    %1412 = vmatprep.subr.mxu0 0.0
    %1413 = vmatpush1.msra.mxu0 0.0
    %1414 = vmatprep.subr.mxu0 0.0
    %1415 = vmatpush1.msra.mxu0 0.0
    %1416 = vmatprep.subr.mxu0 0.0
    %1417 = vmatpush1.msra.mxu0 0.0
    %1418 = vmatprep.subr.mxu0 0.0
    %1419 = vmatpush1.msra.mxu0 0.0
    %1420 = vmatprep.subr.mxu0 0.0
    %1421 = vmatpush1.msra.mxu0 0.0
    %1422 = vmatprep.subr.mxu0 0.0
    %1423 = vmatpush1.msra.mxu0 0.0
    %1424 = vmatprep.subr.mxu0 0.0
    %1425 = vmatpush1.msra.mxu0 0.0
    %1426 = vmatprep.subr.mxu0 0.0
    %1427 = vmatpush1.msra.mxu0 0.0
    %1428 = vmatprep.subr.mxu0 0.0
    %1429 = vmatpush1.msra.mxu0 0.0
    %1430 = vmatprep.subr.mxu0 0.0
    %1431 = vmatpush1.msra.mxu0 0.0
    %1432 = vmatprep.subr.mxu0 0.0
    %1433 = vmatpush1.msra.mxu0 0.0
    %1434 = vmatprep.mubr.f32.mxu0 0.0
    %1435 = vmatmul.mubr.f32.gmra.mrb[0].mxu0 %v1099
    %v1436 = vpop.f32.mrb[0].mxu0
    %v1437 = vadd.f32 %v1295, %v1436
    %v1438 = vpop.f32.mrb[0].mxu0
    %v1439 = vadd.f32 %v1297, %v1438
    %1440 = vdwg.mxu0
    %1441 = vmatprep.subr.mxu0 %v1103
    %1442 = vmatpush1.msra.mxu0 %v1102
    %1443 = vmatprep.subr.mxu0 %v1107
    %1444 = vmatpush1.msra.mxu0 %v1106
    %1445 = vmatprep.subr.mxu0 %v1111
    %1446 = vmatpush1.msra.mxu0 %v1110
    %1447 = vmatprep.subr.mxu0 %v1115
    %1448 = vmatpush1.msra.mxu0 %v1114
    %1449 = vmatprep.subr.mxu0 %v1119
    %1450 = vmatpush1.msra.mxu0 %v1118
    %1451 = vmatprep.subr.mxu0 %v1123
    %1452 = vmatpush1.msra.mxu0 %v1122
    %1453 = vmatprep.subr.mxu0 %v1127
    %1454 = vmatpush1.msra.mxu0 %v1126
    %1455 = vmatprep.subr.mxu0 %v1131
    %1456 = vmatpush1.msra.mxu0 %v1130
    %1457 = vmatprep.subr.mxu0 %v1135
    %1458 = vmatpush1.msra.mxu0 %v1134
    %1459 = vmatprep.subr.mxu0 %v1139
    %1460 = vmatpush1.msra.mxu0 %v1138
    %1461 = vmatprep.subr.mxu0 %v1143
    %1462 = vmatpush1.msra.mxu0 %v1142
    %1463 = vmatprep.subr.mxu0 %v1147
    %1464 = vmatpush1.msra.mxu0 %v1146
    %1465 = vmatprep.subr.mxu0 %v1151
    %1466 = vmatpush1.msra.mxu0 %v1150
    %1467 = vmatprep.subr.mxu0 %v1155
    %1468 = vmatpush1.msra.mxu0 %v1154
    %1469 = vmatprep.subr.mxu0 %v1159
    %1470 = vmatpush1.msra.mxu0 %v1158
    %1471 = vmatprep.subr.mxu0 %v1163
    %1472 = vmatpush1.msra.mxu0 %v1162
    %1473 = vmatprep.subr.mxu0 0.0
    %1474 = vmatpush1.msra.mxu0 0.0
    %1475 = vmatprep.subr.mxu0 0.0
    %1476 = vmatpush1.msra.mxu0 0.0
    %1477 = vmatprep.subr.mxu0 0.0
    %1478 = vmatpush1.msra.mxu0 0.0
    %1479 = vmatprep.subr.mxu0 0.0
    %1480 = vmatpush1.msra.mxu0 0.0
    %1481 = vmatprep.subr.mxu0 0.0
    %1482 = vmatpush1.msra.mxu0 0.0
    %1483 = vmatprep.subr.mxu0 0.0
    %1484 = vmatpush1.msra.mxu0 0.0
    %1485 = vmatprep.subr.mxu0 0.0
    %1486 = vmatpush1.msra.mxu0 0.0
    %1487 = vmatprep.subr.mxu0 0.0
    %1488 = vmatpush1.msra.mxu0 0.0
    %1489 = vmatprep.subr.mxu0 0.0
    %1490 = vmatpush1.msra.mxu0 0.0
    %1491 = vmatprep.subr.mxu0 0.0
    %1492 = vmatpush1.msra.mxu0 0.0
    %1493 = vmatprep.subr.mxu0 0.0
    %1494 = vmatpush1.msra.mxu0 0.0
    %1495 = vmatprep.subr.mxu0 0.0
    %1496 = vmatpush1.msra.mxu0 0.0
    %1497 = vmatprep.subr.mxu0 0.0
    %1498 = vmatpush1.msra.mxu0 0.0
    %1499 = vmatprep.subr.mxu0 0.0
    %1500 = vmatpush1.msra.mxu0 0.0
    %1501 = vmatprep.subr.mxu0 0.0
    %1502 = vmatpush1.msra.mxu0 0.0
    %1503 = vmatprep.subr.mxu0 0.0
    %1504 = vmatpush1.msra.mxu0 0.0
    %1505 = vmatprep.mubr.f32.mxu0 0.0
    %1506 = vmatmul.mubr.f32.gmra.mrb[0].mxu0 %v1099
    %v1507 = vpop.f32.mrb[0].mxu0
    %v1508 = vadd.f32 %v1366, %v1507
    %v1509 = vpop.f32.mrb[0].mxu0
    %v1510 = vadd.f32 %v1368, %v1509
    %1511 = vdwg.mxu0
    %v1512 = vadd.f32 %v1437, %v103
    %v1513 = vadd.f32 %v1439, %v107
    %v1514 = vadd.f32 %v1508, %v111
    %v1515 = vadd.f32 %v1510, %v115
    %v1516 = vxor.u32 %v1512, 2147483648
    %v1517 = vmul.f32 %v1516, 1.442695
    %v1518 = vpow.pop %v1517
    %v1519 = vadd.f32 %v1518, 1.0
    %v1520 = vrcp.pop %v1519
    %v1521 = vmul.f32 1.0, %v1520
    %v1522 = vxor.u32 %v1513, 2147483648
    %v1523 = vmul.f32 %v1522, 1.442695
    %v1524 = vpow.pop %v1523
    %v1525 = vadd.f32 %v1524, 1.0
    %v1526 = vrcp.pop %v1525
    %v1527 = vmul.f32 1.0, %v1526
    %v1528 = vtanh.pop %v1514
    %v1529 = vxor.u32 %v1515, 2147483648
    %v1530 = vmul.f32 %v1529, 1.442695
    %v1531 = vpow.pop %v1530
    %v1532 = vadd.f32 %v1531, 1.0
    %v1533 = vrcp.pop %v1532
    %v1534 = vmul.f32 1.0, %v1533
    %v1535 = vmul.f32 %v1527, %v834
    %v1536 = vmul.f32 %v1521, %v1528
    %v1537 = vadd.f32 %v1535, %v1536
    %v1538 = vtanh.pop %v1537
    %v1539 = vmul.f32 %v1534, %v1538
    %v1540 = vmul.f32 %v1539, %v841
    %v1541 = vsel %vm844, %v1540, 0.0
    %1542 = vadd.xlane.f32.xlu0 %v1541
    %v1543 = vpop.xlane.xlu0 %1542
    %v1544 = vadd.f32 %v1543, %v126
    %s1545 = scalar_lea.vmem %s9, 2
    %1546 = vst.msk [vmem:[%s1545] sm:$0x3] %vm849, %v1544
    %s1547 = scalar_lea.vmem %s0, 4
    %v1548 = vld [vmem:[%s1547] sm:$0x3]
    %1550 = vset.pattern.permute.xlu0 0
    %1551 = vperm.xlu0 %1550, %v1548
    %v1552 = vpop.permute.xlu0 %1551
    %v1554 = vmul.f32 %v1552, %v138
    %v1555 = vmul.f32 %v1552, %v142
    %v1556 = vmul.f32 %v1552, %v146
    %v1557 = vmul.f32 %v1552, %v150
    %v1558 = vld [vmem:[#allocation3] sm:$0xff]
    %v1559 = vld [vmem:[#allocation3 + $0x8] sm:$0xff]
    %v1560 = vld [vmem:[#allocation3 + $0x10] sm:$0xff]
    %v1561 = vld [vmem:[#allocation3 + $0x18] sm:$0xff]
    %v1562 = vld [vmem:[#allocation3 + $0x20] sm:$0xff]
    %v1563 = vld [vmem:[#allocation3 + $0x28] sm:$0xff]
    %v1564 = vld [vmem:[#allocation3 + $0x30] sm:$0xff]
    %v1565 = vld [vmem:[#allocation3 + $0x38] sm:$0xff]
    %v1566 = vld [vmem:[#allocation3 + $0x40] sm:$0xff]
    %v1567 = vld [vmem:[#allocation3 + $0x48] sm:$0xff]
    %v1568 = vld [vmem:[#allocation3 + $0x50] sm:$0xff]
    %v1569 = vld [vmem:[#allocation3 + $0x58] sm:$0xff]
    %v1570 = vld [vmem:[#allocation3 + $0x60] sm:$0xff]
    %v1571 = vld [vmem:[#allocation3 + $0x68] sm:$0xff]
    %v1572 = vld [vmem:[#allocation3 + $0x70] sm:$0xff]
    %v1573 = vld [vmem:[#allocation3 + $0x78] sm:$0xff]
    %v1574 = vld [vmem:[#allocation3 + $0x80] sm:$0xff]
    %v1575 = vld [vmem:[#allocation3 + $0x88] sm:$0xff]
    %v1576 = vld [vmem:[#allocation3 + $0x90] sm:$0xff]
    %v1577 = vld [vmem:[#allocation3 + $0x98] sm:$0xff]
    %v1578 = vld [vmem:[#allocation3 + $0xa0] sm:$0xff]
    %v1579 = vld [vmem:[#allocation3 + $0xa8] sm:$0xff]
    %v1580 = vld [vmem:[#allocation3 + $0xb0] sm:$0xff]
    %v1581 = vld [vmem:[#allocation3 + $0xb8] sm:$0xff]
    %v1582 = vld [vmem:[#allocation3 + $0xc0] sm:$0xff]
    %v1583 = vld [vmem:[#allocation3 + $0xc8] sm:$0xff]
    %v1584 = vld [vmem:[#allocation3 + $0xd0] sm:$0xff]
    %v1585 = vld [vmem:[#allocation3 + $0xd8] sm:$0xff]
    %v1586 = vld [vmem:[#allocation3 + $0xe0] sm:$0xff]
    %v1587 = vld [vmem:[#allocation3 + $0xe8] sm:$0xff]
    %v1588 = vld [vmem:[#allocation3 + $0xf0] sm:$0xff]
    %v1589 = vld [vmem:[#allocation3 + $0xf8] sm:$0xff]
    %v1590 = vld [vmem:[#allocation3 + $0x100] sm:$0xff]
    %v1591 = vld [vmem:[#allocation3 + $0x108] sm:$0xff]
    %v1592 = vld [vmem:[#allocation3 + $0x110] sm:$0xff]
    %v1593 = vld [vmem:[#allocation3 + $0x118] sm:$0xff]
    %v1594 = vld [vmem:[#allocation3 + $0x120] sm:$0xff]
    %v1595 = vld [vmem:[#allocation3 + $0x128] sm:$0xff]
    %v1596 = vld [vmem:[#allocation3 + $0x130] sm:$0xff]
    %v1597 = vld [vmem:[#allocation3 + $0x138] sm:$0xff]
    %v1598 = vld [vmem:[#allocation3 + $0x140] sm:$0xff]
    %v1599 = vld [vmem:[#allocation3 + $0x148] sm:$0xff]
    %v1600 = vld [vmem:[#allocation3 + $0x150] sm:$0xff]
    %v1601 = vld [vmem:[#allocation3 + $0x158] sm:$0xff]
    %v1602 = vld [vmem:[#allocation3 + $0x160] sm:$0xff]
    %v1603 = vld [vmem:[#allocation3 + $0x168] sm:$0xff]
    %v1604 = vld [vmem:[#allocation3 + $0x170] sm:$0xff]
    %v1605 = vld [vmem:[#allocation3 + $0x178] sm:$0xff]
    %v1606 = vld [vmem:[#allocation3 + $0x180] sm:$0xff]
    %v1607 = vld [vmem:[#allocation3 + $0x188] sm:$0xff]
    %v1608 = vld [vmem:[#allocation3 + $0x190] sm:$0xff]
    %v1609 = vld [vmem:[#allocation3 + $0x198] sm:$0xff]
    %v1610 = vld [vmem:[#allocation3 + $0x1a0] sm:$0xff]
    %v1611 = vld [vmem:[#allocation3 + $0x1a8] sm:$0xff]
    %v1612 = vld [vmem:[#allocation3 + $0x1b0] sm:$0xff]
    %v1613 = vld [vmem:[#allocation3 + $0x1b8] sm:$0xff]
    %v1614 = vld [vmem:[#allocation3 + $0x1c0] sm:$0xff]
    %v1615 = vld [vmem:[#allocation3 + $0x1c8] sm:$0xff]
    %v1616 = vld [vmem:[#allocation3 + $0x1d0] sm:$0xff]
    %v1617 = vld [vmem:[#allocation3 + $0x1d8] sm:$0xff]
    %v1618 = vld [vmem:[#allocation3 + $0x1e0] sm:$0xff]
    %v1619 = vld [vmem:[#allocation3 + $0x1e8] sm:$0xff]
    %v1620 = vld [vmem:[#allocation3 + $0x1f0] sm:$0xff]
    %v1621 = vld [vmem:[#allocation3 + $0x1f8] sm:$0xff]
    %1622 = vmatprep.subr.mxu0 %v1559
    %1623 = vmatpush1.msra.mxu0 %v1558
    %1624 = vmatprep.subr.mxu0 %v1563
    %1625 = vmatpush1.msra.mxu0 %v1562
    %1626 = vmatprep.subr.mxu0 %v1567
    %1627 = vmatpush1.msra.mxu0 %v1566
    %1628 = vmatprep.subr.mxu0 %v1571
    %1629 = vmatpush1.msra.mxu0 %v1570
    %1630 = vmatprep.subr.mxu0 %v1575
    %1631 = vmatpush1.msra.mxu0 %v1574
    %1632 = vmatprep.subr.mxu0 %v1579
    %1633 = vmatpush1.msra.mxu0 %v1578
    %1634 = vmatprep.subr.mxu0 %v1583
    %1635 = vmatpush1.msra.mxu0 %v1582
    %1636 = vmatprep.subr.mxu0 %v1587
    %1637 = vmatpush1.msra.mxu0 %v1586
    %1638 = vmatprep.subr.mxu0 %v1591
    %1639 = vmatpush1.msra.mxu0 %v1590
    %1640 = vmatprep.subr.mxu0 %v1595
    %1641 = vmatpush1.msra.mxu0 %v1594
    %1642 = vmatprep.subr.mxu0 %v1599
    %1643 = vmatpush1.msra.mxu0 %v1598
    %1644 = vmatprep.subr.mxu0 %v1603
    %1645 = vmatpush1.msra.mxu0 %v1602
    %1646 = vmatprep.subr.mxu0 %v1607
    %1647 = vmatpush1.msra.mxu0 %v1606
    %1648 = vmatprep.subr.mxu0 %v1611
    %1649 = vmatpush1.msra.mxu0 %v1610
    %1650 = vmatprep.subr.mxu0 %v1615
    %1651 = vmatpush1.msra.mxu0 %v1614
    %1652 = vmatprep.subr.mxu0 %v1619
    %1653 = vmatpush1.msra.mxu0 %v1618
    %1654 = vmatprep.subr.mxu0 0.0
    %1655 = vmatpush1.msra.mxu0 0.0
    %1656 = vmatprep.subr.mxu0 0.0
    %1657 = vmatpush1.msra.mxu0 0.0
    %1658 = vmatprep.subr.mxu0 0.0
    %1659 = vmatpush1.msra.mxu0 0.0
    %1660 = vmatprep.subr.mxu0 0.0
    %1661 = vmatpush1.msra.mxu0 0.0
    %1662 = vmatprep.subr.mxu0 0.0
    %1663 = vmatpush1.msra.mxu0 0.0
    %1664 = vmatprep.subr.mxu0 0.0
    %1665 = vmatpush1.msra.mxu0 0.0
    %1666 = vmatprep.subr.mxu0 0.0
    %1667 = vmatpush1.msra.mxu0 0.0
    %1668 = vmatprep.subr.mxu0 0.0
    %1669 = vmatpush1.msra.mxu0 0.0
    %1670 = vmatprep.subr.mxu0 0.0
    %1671 = vmatpush1.msra.mxu0 0.0
    %1672 = vmatprep.subr.mxu0 0.0
    %1673 = vmatpush1.msra.mxu0 0.0
    %1674 = vmatprep.subr.mxu0 0.0
    %1675 = vmatpush1.msra.mxu0 0.0
    %1676 = vmatprep.subr.mxu0 0.0
    %1677 = vmatpush1.msra.mxu0 0.0
    %1678 = vmatprep.subr.mxu0 0.0
    %1679 = vmatpush1.msra.mxu0 0.0
    %1680 = vmatprep.subr.mxu0 0.0
    %1681 = vmatpush1.msra.mxu0 0.0
    %1682 = vmatprep.subr.mxu0 0.0
    %1683 = vmatpush1.msra.mxu0 0.0
    %1684 = vmatprep.subr.mxu0 0.0
    %1685 = vmatpush1.msra.mxu0 0.0
    %1686 = vmatprep.mubr.f32.mxu0 0.0
    %1687 = vmatmul.mubr.f32.gmra.mrb[0].mxu0 %v1099
    %v1688 = vpop.f32.mrb[0].mxu0
    %v1689 = vadd.f32 0.0, %v1688
    %v1690 = vpop.f32.mrb[0].mxu0
    %v1691 = vadd.f32 0.0, %v1690
    %1692 = vdwg.mxu0
    %1693 = vmatprep.subr.mxu0 %v1561
    %1694 = vmatpush1.msra.mxu0 %v1560
    %1695 = vmatprep.subr.mxu0 %v1565
    %1696 = vmatpush1.msra.mxu0 %v1564
    %1697 = vmatprep.subr.mxu0 %v1569
    %1698 = vmatpush1.msra.mxu0 %v1568
    %1699 = vmatprep.subr.mxu0 %v1573
    %1700 = vmatpush1.msra.mxu0 %v1572
    %1701 = vmatprep.subr.mxu0 %v1577
    %1702 = vmatpush1.msra.mxu0 %v1576
    %1703 = vmatprep.subr.mxu0 %v1581
    %1704 = vmatpush1.msra.mxu0 %v1580
    %1705 = vmatprep.subr.mxu0 %v1585
    %1706 = vmatpush1.msra.mxu0 %v1584
    %1707 = vmatprep.subr.mxu0 %v1589
    %1708 = vmatpush1.msra.mxu0 %v1588
    %1709 = vmatprep.subr.mxu0 %v1593
    %1710 = vmatpush1.msra.mxu0 %v1592
    %1711 = vmatprep.subr.mxu0 %v1597
    %1712 = vmatpush1.msra.mxu0 %v1596
    %1713 = vmatprep.subr.mxu0 %v1601
    %1714 = vmatpush1.msra.mxu0 %v1600
    %1715 = vmatprep.subr.mxu0 %v1605
    %1716 = vmatpush1.msra.mxu0 %v1604
    %1717 = vmatprep.subr.mxu0 %v1609
    %1718 = vmatpush1.msra.mxu0 %v1608
    %1719 = vmatprep.subr.mxu0 %v1613
    %1720 = vmatpush1.msra.mxu0 %v1612
    %1721 = vmatprep.subr.mxu0 %v1617
    %1722 = vmatpush1.msra.mxu0 %v1616
    %1723 = vmatprep.subr.mxu0 %v1621
    %1724 = vmatpush1.msra.mxu0 %v1620
    %1725 = vmatprep.subr.mxu0 0.0
    %1726 = vmatpush1.msra.mxu0 0.0
    %1727 = vmatprep.subr.mxu0 0.0
    %1728 = vmatpush1.msra.mxu0 0.0
    %1729 = vmatprep.subr.mxu0 0.0
    %1730 = vmatpush1.msra.mxu0 0.0
    %1731 = vmatprep.subr.mxu0 0.0
    %1732 = vmatpush1.msra.mxu0 0.0
    %1733 = vmatprep.subr.mxu0 0.0
    %1734 = vmatpush1.msra.mxu0 0.0
    %1735 = vmatprep.subr.mxu0 0.0
    %1736 = vmatpush1.msra.mxu0 0.0
    %1737 = vmatprep.subr.mxu0 0.0
    %1738 = vmatpush1.msra.mxu0 0.0
    %1739 = vmatprep.subr.mxu0 0.0
    %1740 = vmatpush1.msra.mxu0 0.0
    %1741 = vmatprep.subr.mxu0 0.0
    %1742 = vmatpush1.msra.mxu0 0.0
    %1743 = vmatprep.subr.mxu0 0.0
    %1744 = vmatpush1.msra.mxu0 0.0
    %1745 = vmatprep.subr.mxu0 0.0
    %1746 = vmatpush1.msra.mxu0 0.0
    %1747 = vmatprep.subr.mxu0 0.0
    %1748 = vmatpush1.msra.mxu0 0.0
    %1749 = vmatprep.subr.mxu0 0.0
    %1750 = vmatpush1.msra.mxu0 0.0
    %1751 = vmatprep.subr.mxu0 0.0
    %1752 = vmatpush1.msra.mxu0 0.0
    %1753 = vmatprep.subr.mxu0 0.0
    %1754 = vmatpush1.msra.mxu0 0.0
    %1755 = vmatprep.subr.mxu0 0.0
    %1756 = vmatpush1.msra.mxu0 0.0
    %1757 = vmatprep.mubr.f32.mxu0 0.0
    %1758 = vmatmul.mubr.f32.gmra.mrb[0].mxu0 %v1099
    %v1759 = vpop.f32.mrb[0].mxu0
    %v1760 = vadd.f32 0.0, %v1759
    %v1761 = vpop.f32.mrb[0].mxu0
    %v1762 = vadd.f32 0.0, %v1761
    %1763 = vdwg.mxu0
    %v1764 = vadd.f32 %v1554, %v1689
    %v1765 = vadd.f32 %v1555, %v1691
    %v1766 = vadd.f32 %v1556, %v1760
    %v1767 = vadd.f32 %v1557, %v1762
    %v1768 = vadd.f32 %v1764, %v81
    %v1769 = vadd.f32 %v1765, %v85
    %v1770 = vadd.f32 %v1766, %v89
    %v1771 = vadd.f32 %v1767, %v93
    %v1772 = vxor.u32 %v1768, 2147483648
    %v1773 = vmul.f32 %v1772, 1.442695
    %v1774 = vpow.pop %v1773
    %v1775 = vadd.f32 %v1774, 1.0
    %v1776 = vrcp.pop %v1775
    %v1777 = vmul.f32 1.0, %v1776
    %v1778 = vxor.u32 %v1769, 2147483648
    %v1779 = vmul.f32 %v1778, 1.442695
    %v1780 = vpow.pop %v1779
    %v1781 = vadd.f32 %v1780, 1.0
    %v1782 = vrcp.pop %v1781
    %v1783 = vmul.f32 1.0, %v1782
    %v1784 = vtanh.pop %v1770
    %v1785 = vxor.u32 %v1771, 2147483648
    %v1786 = vmul.f32 %v1785, 1.442695
    %v1787 = vpow.pop %v1786
    %v1788 = vadd.f32 %v1787, 1.0
    %v1789 = vrcp.pop %v1788
    %v1790 = vmul.f32 1.0, %v1789
    %v1791 = vmul.f32 %v1783, %v1097
    %v1792 = vmul.f32 %v1777, %v1784
    %v1793 = vadd.f32 %v1791, %v1792
    %v1794 = vtanh.pop %v1793
    %v1795 = vmul.f32 %v1790, %v1794
    %v1796 = vld [vmem:[#allocation5] sm:$0xff]
    %v1797 = vld [vmem:[#allocation5 + $0x8] sm:$0xff]
    %v1798 = vld [vmem:[#allocation5 + $0x10] sm:$0xff]
    %v1799 = vld [vmem:[#allocation5 + $0x18] sm:$0xff]
    %v1800 = vld [vmem:[#allocation5 + $0x20] sm:$0xff]
    %v1801 = vld [vmem:[#allocation5 + $0x28] sm:$0xff]
    %v1802 = vld [vmem:[#allocation5 + $0x30] sm:$0xff]
    %v1803 = vld [vmem:[#allocation5 + $0x38] sm:$0xff]
    %v1804 = vld [vmem:[#allocation5 + $0x40] sm:$0xff]
    %v1805 = vld [vmem:[#allocation5 + $0x48] sm:$0xff]
    %v1806 = vld [vmem:[#allocation5 + $0x50] sm:$0xff]
    %v1807 = vld [vmem:[#allocation5 + $0x58] sm:$0xff]
    %v1808 = vld [vmem:[#allocation5 + $0x60] sm:$0xff]
    %v1809 = vld [vmem:[#allocation5 + $0x68] sm:$0xff]
    %v1810 = vld [vmem:[#allocation5 + $0x70] sm:$0xff]
    %v1811 = vld [vmem:[#allocation5 + $0x78] sm:$0xff]
    %v1812 = vld [vmem:[#allocation5 + $0x80] sm:$0xff]
    %v1813 = vld [vmem:[#allocation5 + $0x88] sm:$0xff]
    %v1814 = vld [vmem:[#allocation5 + $0x90] sm:$0xff]
    %v1815 = vld [vmem:[#allocation5 + $0x98] sm:$0xff]
    %v1816 = vld [vmem:[#allocation5 + $0xa0] sm:$0xff]
    %v1817 = vld [vmem:[#allocation5 + $0xa8] sm:$0xff]
    %v1818 = vld [vmem:[#allocation5 + $0xb0] sm:$0xff]
    %v1819 = vld [vmem:[#allocation5 + $0xb8] sm:$0xff]
    %v1820 = vld [vmem:[#allocation5 + $0xc0] sm:$0xff]
    %v1821 = vld [vmem:[#allocation5 + $0xc8] sm:$0xff]
    %v1822 = vld [vmem:[#allocation5 + $0xd0] sm:$0xff]
    %v1823 = vld [vmem:[#allocation5 + $0xd8] sm:$0xff]
    %v1824 = vld [vmem:[#allocation5 + $0xe0] sm:$0xff]
    %v1825 = vld [vmem:[#allocation5 + $0xe8] sm:$0xff]
    %v1826 = vld [vmem:[#allocation5 + $0xf0] sm:$0xff]
    %v1827 = vld [vmem:[#allocation5 + $0xf8] sm:$0xff]
    %v1828 = vld [vmem:[#allocation5 + $0x100] sm:$0xff]
    %v1829 = vld [vmem:[#allocation5 + $0x108] sm:$0xff]
    %v1830 = vld [vmem:[#allocation5 + $0x110] sm:$0xff]
    %v1831 = vld [vmem:[#allocation5 + $0x118] sm:$0xff]
    %v1832 = vld [vmem:[#allocation5 + $0x120] sm:$0xff]
    %v1833 = vld [vmem:[#allocation5 + $0x128] sm:$0xff]
    %v1834 = vld [vmem:[#allocation5 + $0x130] sm:$0xff]
    %v1835 = vld [vmem:[#allocation5 + $0x138] sm:$0xff]
    %v1836 = vld [vmem:[#allocation5 + $0x140] sm:$0xff]
    %v1837 = vld [vmem:[#allocation5 + $0x148] sm:$0xff]
    %v1838 = vld [vmem:[#allocation5 + $0x150] sm:$0xff]
    %v1839 = vld [vmem:[#allocation5 + $0x158] sm:$0xff]
    %v1840 = vld [vmem:[#allocation5 + $0x160] sm:$0xff]
    %v1841 = vld [vmem:[#allocation5 + $0x168] sm:$0xff]
    %v1842 = vld [vmem:[#allocation5 + $0x170] sm:$0xff]
    %v1843 = vld [vmem:[#allocation5 + $0x178] sm:$0xff]
    %v1844 = vld [vmem:[#allocation5 + $0x180] sm:$0xff]
    %v1845 = vld [vmem:[#allocation5 + $0x188] sm:$0xff]
    %v1846 = vld [vmem:[#allocation5 + $0x190] sm:$0xff]
    %v1847 = vld [vmem:[#allocation5 + $0x198] sm:$0xff]
    %v1848 = vld [vmem:[#allocation5 + $0x1a0] sm:$0xff]
    %v1849 = vld [vmem:[#allocation5 + $0x1a8] sm:$0xff]
    %v1850 = vld [vmem:[#allocation5 + $0x1b0] sm:$0xff]
    %v1851 = vld [vmem:[#allocation5 + $0x1b8] sm:$0xff]
    %v1852 = vld [vmem:[#allocation5 + $0x1c0] sm:$0xff]
    %v1853 = vld [vmem:[#allocation5 + $0x1c8] sm:$0xff]
    %v1854 = vld [vmem:[#allocation5 + $0x1d0] sm:$0xff]
    %v1855 = vld [vmem:[#allocation5 + $0x1d8] sm:$0xff]
    %v1856 = vld [vmem:[#allocation5 + $0x1e0] sm:$0xff]
    %v1857 = vld [vmem:[#allocation5 + $0x1e8] sm:$0xff]
    %v1858 = vld [vmem:[#allocation5 + $0x1f0] sm:$0xff]
    %v1859 = vld [vmem:[#allocation5 + $0x1f8] sm:$0xff]
    %v1860 = vld [vmem:[#allocation7] sm:$0xff]
    %v1861 = vld [vmem:[#allocation7 + $0x8] sm:$0xff]
    %v1862 = vld [vmem:[#allocation7 + $0x10] sm:$0xff]
    %v1863 = vld [vmem:[#allocation7 + $0x18] sm:$0xff]
    %v1864 = vld [vmem:[#allocation7 + $0x20] sm:$0xff]
    %v1865 = vld [vmem:[#allocation7 + $0x28] sm:$0xff]
    %v1866 = vld [vmem:[#allocation7 + $0x30] sm:$0xff]
    %v1867 = vld [vmem:[#allocation7 + $0x38] sm:$0xff]
    %v1868 = vld [vmem:[#allocation7 + $0x40] sm:$0xff]
    %v1869 = vld [vmem:[#allocation7 + $0x48] sm:$0xff]
    %v1870 = vld [vmem:[#allocation7 + $0x50] sm:$0xff]
    %v1871 = vld [vmem:[#allocation7 + $0x58] sm:$0xff]
    %v1872 = vld [vmem:[#allocation7 + $0x60] sm:$0xff]
    %v1873 = vld [vmem:[#allocation7 + $0x68] sm:$0xff]
    %v1874 = vld [vmem:[#allocation7 + $0x70] sm:$0xff]
    %v1875 = vld [vmem:[#allocation7 + $0x78] sm:$0xff]
    %v1876 = vld [vmem:[#allocation7 + $0x80] sm:$0xff]
    %v1877 = vld [vmem:[#allocation7 + $0x88] sm:$0xff]
    %v1878 = vld [vmem:[#allocation7 + $0x90] sm:$0xff]
    %v1879 = vld [vmem:[#allocation7 + $0x98] sm:$0xff]
    %v1880 = vld [vmem:[#allocation7 + $0xa0] sm:$0xff]
    %v1881 = vld [vmem:[#allocation7 + $0xa8] sm:$0xff]
    %v1882 = vld [vmem:[#allocation7 + $0xb0] sm:$0xff]
    %v1883 = vld [vmem:[#allocation7 + $0xb8] sm:$0xff]
    %v1884 = vld [vmem:[#allocation7 + $0xc0] sm:$0xff]
    %v1885 = vld [vmem:[#allocation7 + $0xc8] sm:$0xff]
    %v1886 = vld [vmem:[#allocation7 + $0xd0] sm:$0xff]
    %v1887 = vld [vmem:[#allocation7 + $0xd8] sm:$0xff]
    %v1888 = vld [vmem:[#allocation7 + $0xe0] sm:$0xff]
    %v1889 = vld [vmem:[#allocation7 + $0xe8] sm:$0xff]
    %v1890 = vld [vmem:[#allocation7 + $0xf0] sm:$0xff]
    %v1891 = vld [vmem:[#allocation7 + $0xf8] sm:$0xff]
    %v1892 = vld [vmem:[#allocation7 + $0x100] sm:$0xff]
    %v1893 = vld [vmem:[#allocation7 + $0x108] sm:$0xff]
    %v1894 = vld [vmem:[#allocation7 + $0x110] sm:$0xff]
    %v1895 = vld [vmem:[#allocation7 + $0x118] sm:$0xff]
    %v1896 = vld [vmem:[#allocation7 + $0x120] sm:$0xff]
    %v1897 = vld [vmem:[#allocation7 + $0x128] sm:$0xff]
    %v1898 = vld [vmem:[#allocation7 + $0x130] sm:$0xff]
    %v1899 = vld [vmem:[#allocation7 + $0x138] sm:$0xff]
    %v1900 = vld [vmem:[#allocation7 + $0x140] sm:$0xff]
    %v1901 = vld [vmem:[#allocation7 + $0x148] sm:$0xff]
    %v1902 = vld [vmem:[#allocation7 + $0x150] sm:$0xff]
    %v1903 = vld [vmem:[#allocation7 + $0x158] sm:$0xff]
    %v1904 = vld [vmem:[#allocation7 + $0x160] sm:$0xff]
    %v1905 = vld [vmem:[#allocation7 + $0x168] sm:$0xff]
    %v1906 = vld [vmem:[#allocation7 + $0x170] sm:$0xff]
    %v1907 = vld [vmem:[#allocation7 + $0x178] sm:$0xff]
    %v1908 = vld [vmem:[#allocation7 + $0x180] sm:$0xff]
    %v1909 = vld [vmem:[#allocation7 + $0x188] sm:$0xff]
    %v1910 = vld [vmem:[#allocation7 + $0x190] sm:$0xff]
    %v1911 = vld [vmem:[#allocation7 + $0x198] sm:$0xff]
    %v1912 = vld [vmem:[#allocation7 + $0x1a0] sm:$0xff]
    %v1913 = vld [vmem:[#allocation7 + $0x1a8] sm:$0xff]
    %v1914 = vld [vmem:[#allocation7 + $0x1b0] sm:$0xff]
    %v1915 = vld [vmem:[#allocation7 + $0x1b8] sm:$0xff]
    %v1916 = vld [vmem:[#allocation7 + $0x1c0] sm:$0xff]
    %v1917 = vld [vmem:[#allocation7 + $0x1c8] sm:$0xff]
    %v1918 = vld [vmem:[#allocation7 + $0x1d0] sm:$0xff]
    %v1919 = vld [vmem:[#allocation7 + $0x1d8] sm:$0xff]
    %v1920 = vld [vmem:[#allocation7 + $0x1e0] sm:$0xff]
    %v1921 = vld [vmem:[#allocation7 + $0x1e8] sm:$0xff]
    %v1922 = vld [vmem:[#allocation7 + $0x1f0] sm:$0xff]
    %v1923 = vld [vmem:[#allocation7 + $0x1f8] sm:$0xff]
    %1924 = vmatprep.subr.mxu0 %v1861
    %1925 = vmatpush1.msra.mxu0 %v1860
    %1926 = vmatprep.subr.mxu0 %v1865
    %1927 = vmatpush1.msra.mxu0 %v1864
    %1928 = vmatprep.subr.mxu0 %v1869
    %1929 = vmatpush1.msra.mxu0 %v1868
    %1930 = vmatprep.subr.mxu0 %v1873
    %1931 = vmatpush1.msra.mxu0 %v1872
    %1932 = vmatprep.subr.mxu0 %v1877
    %1933 = vmatpush1.msra.mxu0 %v1876
    %1934 = vmatprep.subr.mxu0 %v1881
    %1935 = vmatpush1.msra.mxu0 %v1880
    %1936 = vmatprep.subr.mxu0 %v1885
    %1937 = vmatpush1.msra.mxu0 %v1884
    %1938 = vmatprep.subr.mxu0 %v1889
    %1939 = vmatpush1.msra.mxu0 %v1888
    %1940 = vmatprep.subr.mxu0 %v1893
    %1941 = vmatpush1.msra.mxu0 %v1892
    %1942 = vmatprep.subr.mxu0 %v1897
    %1943 = vmatpush1.msra.mxu0 %v1896
    %1944 = vmatprep.subr.mxu0 %v1901
    %1945 = vmatpush1.msra.mxu0 %v1900
    %1946 = vmatprep.subr.mxu0 %v1905
    %1947 = vmatpush1.msra.mxu0 %v1904
    %1948 = vmatprep.subr.mxu0 %v1909
    %1949 = vmatpush1.msra.mxu0 %v1908
    %1950 = vmatprep.subr.mxu0 %v1913
    %1951 = vmatpush1.msra.mxu0 %v1912
    %1952 = vmatprep.subr.mxu0 %v1917
    %1953 = vmatpush1.msra.mxu0 %v1916
    %1954 = vmatprep.subr.mxu0 %v1921
    %1955 = vmatpush1.msra.mxu0 %v1920
    %1956 = vmatprep.subr.mxu0 0.0
    %1957 = vmatpush1.msra.mxu0 0.0
    %1958 = vmatprep.subr.mxu0 0.0
    %1959 = vmatpush1.msra.mxu0 0.0
    %1960 = vmatprep.subr.mxu0 0.0
    %1961 = vmatpush1.msra.mxu0 0.0
    %1962 = vmatprep.subr.mxu0 0.0
    %1963 = vmatpush1.msra.mxu0 0.0
    %1964 = vmatprep.subr.mxu0 0.0
    %1965 = vmatpush1.msra.mxu0 0.0
    %1966 = vmatprep.subr.mxu0 0.0
    %1967 = vmatpush1.msra.mxu0 0.0
    %1968 = vmatprep.subr.mxu0 0.0
    %1969 = vmatpush1.msra.mxu0 0.0
    %1970 = vmatprep.subr.mxu0 0.0
    %1971 = vmatpush1.msra.mxu0 0.0
    %1972 = vmatprep.subr.mxu0 0.0
    %1973 = vmatpush1.msra.mxu0 0.0
    %1974 = vmatprep.subr.mxu0 0.0
    %1975 = vmatpush1.msra.mxu0 0.0
    %1976 = vmatprep.subr.mxu0 0.0
    %1977 = vmatpush1.msra.mxu0 0.0
    %1978 = vmatprep.subr.mxu0 0.0
    %1979 = vmatpush1.msra.mxu0 0.0
    %1980 = vmatprep.subr.mxu0 0.0
    %1981 = vmatpush1.msra.mxu0 0.0
    %1982 = vmatprep.subr.mxu0 0.0
    %1983 = vmatpush1.msra.mxu0 0.0
    %1984 = vmatprep.subr.mxu0 0.0
    %1985 = vmatpush1.msra.mxu0 0.0
    %1986 = vmatprep.subr.mxu0 0.0
    %1987 = vmatpush1.msra.mxu0 0.0
    %1988 = vmatprep.mubr.f32.mxu0 0.0
    %1989 = vmatmul.mubr.f32.gmra.mrb[0].mxu0 %v1539
    %v1990 = vpop.f32.mrb[0].mxu0
    %v1991 = vadd.f32 0.0, %v1990
    %v1992 = vpop.f32.mrb[0].mxu0
    %v1993 = vadd.f32 0.0, %v1992
    %1994 = vdwg.mxu0
    %1995 = vmatprep.subr.mxu0 %v1863
    %1996 = vmatpush1.msra.mxu0 %v1862
    %1997 = vmatprep.subr.mxu0 %v1867
    %1998 = vmatpush1.msra.mxu0 %v1866
    %1999 = vmatprep.subr.mxu0 %v1871
    %2000 = vmatpush1.msra.mxu0 %v1870
    %2001 = vmatprep.subr.mxu0 %v1875
    %2002 = vmatpush1.msra.mxu0 %v1874
    %2003 = vmatprep.subr.mxu0 %v1879
    %2004 = vmatpush1.msra.mxu0 %v1878
    %2005 = vmatprep.subr.mxu0 %v1883
    %2006 = vmatpush1.msra.mxu0 %v1882
    %2007 = vmatprep.subr.mxu0 %v1887
    %2008 = vmatpush1.msra.mxu0 %v1886
    %2009 = vmatprep.subr.mxu0 %v1891
    %2010 = vmatpush1.msra.mxu0 %v1890
    %2011 = vmatprep.subr.mxu0 %v1895
    %2012 = vmatpush1.msra.mxu0 %v1894
    %2013 = vmatprep.subr.mxu0 %v1899
    %2014 = vmatpush1.msra.mxu0 %v1898
    %2015 = vmatprep.subr.mxu0 %v1903
    %2016 = vmatpush1.msra.mxu0 %v1902
    %2017 = vmatprep.subr.mxu0 %v1907
    %2018 = vmatpush1.msra.mxu0 %v1906
    %2019 = vmatprep.subr.mxu0 %v1911
    %2020 = vmatpush1.msra.mxu0 %v1910
    %2021 = vmatprep.subr.mxu0 %v1915
    %2022 = vmatpush1.msra.mxu0 %v1914
    %2023 = vmatprep.subr.mxu0 %v1919
    %2024 = vmatpush1.msra.mxu0 %v1918
    %2025 = vmatprep.subr.mxu0 %v1923
    %2026 = vmatpush1.msra.mxu0 %v1922
    %2027 = vmatprep.subr.mxu0 0.0
    %2028 = vmatpush1.msra.mxu0 0.0
    %2029 = vmatprep.subr.mxu0 0.0
    %2030 = vmatpush1.msra.mxu0 0.0
    %2031 = vmatprep.subr.mxu0 0.0
    %2032 = vmatpush1.msra.mxu0 0.0
    %2033 = vmatprep.subr.mxu0 0.0
    %2034 = vmatpush1.msra.mxu0 0.0
    %2035 = vmatprep.subr.mxu0 0.0
    %2036 = vmatpush1.msra.mxu0 0.0
    %2037 = vmatprep.subr.mxu0 0.0
    %2038 = vmatpush1.msra.mxu0 0.0
    %2039 = vmatprep.subr.mxu0 0.0
    %2040 = vmatpush1.msra.mxu0 0.0
    %2041 = vmatprep.subr.mxu0 0.0
    %2042 = vmatpush1.msra.mxu0 0.0
    %2043 = vmatprep.subr.mxu0 0.0
    %2044 = vmatpush1.msra.mxu0 0.0
    %2045 = vmatprep.subr.mxu0 0.0
    %2046 = vmatpush1.msra.mxu0 0.0
    %2047 = vmatprep.subr.mxu0 0.0
    %2048 = vmatpush1.msra.mxu0 0.0
    %2049 = vmatprep.subr.mxu0 0.0
    %2050 = vmatpush1.msra.mxu0 0.0
    %2051 = vmatprep.subr.mxu0 0.0
    %2052 = vmatpush1.msra.mxu0 0.0
    %2053 = vmatprep.subr.mxu0 0.0
    %2054 = vmatpush1.msra.mxu0 0.0
    %2055 = vmatprep.subr.mxu0 0.0
    %2056 = vmatpush1.msra.mxu0 0.0
    %2057 = vmatprep.subr.mxu0 0.0
    %2058 = vmatpush1.msra.mxu0 0.0
    %2059 = vmatprep.mubr.f32.mxu0 0.0
    %2060 = vmatmul.mubr.f32.gmra.mrb[0].mxu0 %v1539
    %v2061 = vpop.f32.mrb[0].mxu0
    %v2062 = vadd.f32 0.0, %v2061
    %v2063 = vpop.f32.mrb[0].mxu0
    %v2064 = vadd.f32 0.0, %v2063
    %2065 = vdwg.mxu0
    %2066 = vmatprep.subr.mxu0 %v1797
    %2067 = vmatpush1.msra.mxu0 %v1796
    %2068 = vmatprep.subr.mxu0 %v1801
    %2069 = vmatpush1.msra.mxu0 %v1800
    %2070 = vmatprep.subr.mxu0 %v1805
    %2071 = vmatpush1.msra.mxu0 %v1804
    %2072 = vmatprep.subr.mxu0 %v1809
    %2073 = vmatpush1.msra.mxu0 %v1808
    %2074 = vmatprep.subr.mxu0 %v1813
    %2075 = vmatpush1.msra.mxu0 %v1812
    %2076 = vmatprep.subr.mxu0 %v1817
    %2077 = vmatpush1.msra.mxu0 %v1816
    %2078 = vmatprep.subr.mxu0 %v1821
    %2079 = vmatpush1.msra.mxu0 %v1820
    %2080 = vmatprep.subr.mxu0 %v1825
    %2081 = vmatpush1.msra.mxu0 %v1824
    %2082 = vmatprep.subr.mxu0 %v1829
    %2083 = vmatpush1.msra.mxu0 %v1828
    %2084 = vmatprep.subr.mxu0 %v1833
    %2085 = vmatpush1.msra.mxu0 %v1832
    %2086 = vmatprep.subr.mxu0 %v1837
    %2087 = vmatpush1.msra.mxu0 %v1836
    %2088 = vmatprep.subr.mxu0 %v1841
    %2089 = vmatpush1.msra.mxu0 %v1840
    %2090 = vmatprep.subr.mxu0 %v1845
    %2091 = vmatpush1.msra.mxu0 %v1844
    %2092 = vmatprep.subr.mxu0 %v1849
    %2093 = vmatpush1.msra.mxu0 %v1848
    %2094 = vmatprep.subr.mxu0 %v1853
    %2095 = vmatpush1.msra.mxu0 %v1852
    %2096 = vmatprep.subr.mxu0 %v1857
    %2097 = vmatpush1.msra.mxu0 %v1856
    %2098 = vmatprep.subr.mxu0 0.0
    %2099 = vmatpush1.msra.mxu0 0.0
    %2100 = vmatprep.subr.mxu0 0.0
    %2101 = vmatpush1.msra.mxu0 0.0
    %2102 = vmatprep.subr.mxu0 0.0
    %2103 = vmatpush1.msra.mxu0 0.0
    %2104 = vmatprep.subr.mxu0 0.0
    %2105 = vmatpush1.msra.mxu0 0.0
    %2106 = vmatprep.subr.mxu0 0.0
    %2107 = vmatpush1.msra.mxu0 0.0
    %2108 = vmatprep.subr.mxu0 0.0
    %2109 = vmatpush1.msra.mxu0 0.0
    %2110 = vmatprep.subr.mxu0 0.0
    %2111 = vmatpush1.msra.mxu0 0.0
    %2112 = vmatprep.subr.mxu0 0.0
    %2113 = vmatpush1.msra.mxu0 0.0
    %2114 = vmatprep.subr.mxu0 0.0
    %2115 = vmatpush1.msra.mxu0 0.0
    %2116 = vmatprep.subr.mxu0 0.0
    %2117 = vmatpush1.msra.mxu0 0.0
    %2118 = vmatprep.subr.mxu0 0.0
    %2119 = vmatpush1.msra.mxu0 0.0
    %2120 = vmatprep.subr.mxu0 0.0
    %2121 = vmatpush1.msra.mxu0 0.0
    %2122 = vmatprep.subr.mxu0 0.0
    %2123 = vmatpush1.msra.mxu0 0.0
    %2124 = vmatprep.subr.mxu0 0.0
    %2125 = vmatpush1.msra.mxu0 0.0
    %2126 = vmatprep.subr.mxu0 0.0
    %2127 = vmatpush1.msra.mxu0 0.0
    %2128 = vmatprep.subr.mxu0 0.0
    %2129 = vmatpush1.msra.mxu0 0.0
    %2130 = vmatprep.mubr.f32.mxu0 0.0
    %2131 = vmatmul.mubr.f32.gmra.mrb[0].mxu0 %v1795
    %v2132 = vpop.f32.mrb[0].mxu0
    %v2133 = vadd.f32 %v1991, %v2132
    %v2134 = vpop.f32.mrb[0].mxu0
    %v2135 = vadd.f32 %v1993, %v2134
    %2136 = vdwg.mxu0
    %2137 = vmatprep.subr.mxu0 %v1799
    %2138 = vmatpush1.msra.mxu0 %v1798
    %2139 = vmatprep.subr.mxu0 %v1803
    %2140 = vmatpush1.msra.mxu0 %v1802
    %2141 = vmatprep.subr.mxu0 %v1807
    %2142 = vmatpush1.msra.mxu0 %v1806
    %2143 = vmatprep.subr.mxu0 %v1811
    %2144 = vmatpush1.msra.mxu0 %v1810
    %2145 = vmatprep.subr.mxu0 %v1815
    %2146 = vmatpush1.msra.mxu0 %v1814
    %2147 = vmatprep.subr.mxu0 %v1819
    %2148 = vmatpush1.msra.mxu0 %v1818
    %2149 = vmatprep.subr.mxu0 %v1823
    %2150 = vmatpush1.msra.mxu0 %v1822
    %2151 = vmatprep.subr.mxu0 %v1827
    %2152 = vmatpush1.msra.mxu0 %v1826
    %2153 = vmatprep.subr.mxu0 %v1831
    %2154 = vmatpush1.msra.mxu0 %v1830
    %2155 = vmatprep.subr.mxu0 %v1835
    %2156 = vmatpush1.msra.mxu0 %v1834
    %2157 = vmatprep.subr.mxu0 %v1839
    %2158 = vmatpush1.msra.mxu0 %v1838
    %2159 = vmatprep.subr.mxu0 %v1843
    %2160 = vmatpush1.msra.mxu0 %v1842
    %2161 = vmatprep.subr.mxu0 %v1847
    %2162 = vmatpush1.msra.mxu0 %v1846
    %2163 = vmatprep.subr.mxu0 %v1851
    %2164 = vmatpush1.msra.mxu0 %v1850
    %2165 = vmatprep.subr.mxu0 %v1855
    %2166 = vmatpush1.msra.mxu0 %v1854
    %2167 = vmatprep.subr.mxu0 %v1859
    %2168 = vmatpush1.msra.mxu0 %v1858
    %2169 = vmatprep.subr.mxu0 0.0
    %2170 = vmatpush1.msra.mxu0 0.0
    %2171 = vmatprep.subr.mxu0 0.0
    %2172 = vmatpush1.msra.mxu0 0.0
    %2173 = vmatprep.subr.mxu0 0.0
    %2174 = vmatpush1.msra.mxu0 0.0
    %2175 = vmatprep.subr.mxu0 0.0
    %2176 = vmatpush1.msra.mxu0 0.0
    %2177 = vmatprep.subr.mxu0 0.0
    %2178 = vmatpush1.msra.mxu0 0.0
    %2179 = vmatprep.subr.mxu0 0.0
    %2180 = vmatpush1.msra.mxu0 0.0
    %2181 = vmatprep.subr.mxu0 0.0
    %2182 = vmatpush1.msra.mxu0 0.0
    %2183 = vmatprep.subr.mxu0 0.0
    %2184 = vmatpush1.msra.mxu0 0.0
    %2185 = vmatprep.subr.mxu0 0.0
    %2186 = vmatpush1.msra.mxu0 0.0
    %2187 = vmatprep.subr.mxu0 0.0
    %2188 = vmatpush1.msra.mxu0 0.0
    %2189 = vmatprep.subr.mxu0 0.0
    %2190 = vmatpush1.msra.mxu0 0.0
    %2191 = vmatprep.subr.mxu0 0.0
    %2192 = vmatpush1.msra.mxu0 0.0
    %2193 = vmatprep.subr.mxu0 0.0
    %2194 = vmatpush1.msra.mxu0 0.0
    %2195 = vmatprep.subr.mxu0 0.0
    %2196 = vmatpush1.msra.mxu0 0.0
    %2197 = vmatprep.subr.mxu0 0.0
    %2198 = vmatpush1.msra.mxu0 0.0
    %2199 = vmatprep.subr.mxu0 0.0
    %2200 = vmatpush1.msra.mxu0 0.0
    %2201 = vmatprep.mubr.f32.mxu0 0.0
    %2202 = vmatmul.mubr.f32.gmra.mrb[0].mxu0 %v1795
    %v2203 = vpop.f32.mrb[0].mxu0
    %v2204 = vadd.f32 %v2062, %v2203
    %v2205 = vpop.f32.mrb[0].mxu0
    %v2206 = vadd.f32 %v2064, %v2205
    %2207 = vdwg.mxu0
    %v2208 = vadd.f32 %v2133, %v103
    %v2209 = vadd.f32 %v2135, %v107
    %v2210 = vadd.f32 %v2204, %v111
    %v2211 = vadd.f32 %v2206, %v115
    %v2212 = vxor.u32 %v2208, 2147483648
    %v2213 = vmul.f32 %v2212, 1.442695
    %v2214 = vpow.pop %v2213
    %v2215 = vadd.f32 %v2214, 1.0
    %v2216 = vrcp.pop %v2215
    %v2217 = vmul.f32 1.0, %v2216
    %v2218 = vxor.u32 %v2209, 2147483648
    %v2219 = vmul.f32 %v2218, 1.442695
    %v2220 = vpow.pop %v2219
    %v2221 = vadd.f32 %v2220, 1.0
    %v2222 = vrcp.pop %v2221
    %v2223 = vmul.f32 1.0, %v2222
    %v2224 = vtanh.pop %v2210
    %v2225 = vxor.u32 %v2211, 2147483648
    %v2226 = vmul.f32 %v2225, 1.442695
    %v2227 = vpow.pop %v2226
    %v2228 = vadd.f32 %v2227, 1.0
    %v2229 = vrcp.pop %v2228
    %v2230 = vmul.f32 1.0, %v2229
    %v2231 = vmul.f32 %v2223, %v1537
    %v2232 = vmul.f32 %v2217, %v2224
    %v2233 = vadd.f32 %v2231, %v2232
    %v2234 = vtanh.pop %v2233
    %v2235 = vmul.f32 %v2230, %v2234
    %v2236 = vmul.f32 %v2235, %v841
    %v2237 = vsel %vm844, %v2236, 0.0
    %2238 = vadd.xlane.f32.xlu0 %v2237
    %v2239 = vpop.xlane.xlu0 %2238
    %v2240 = vadd.f32 %v2239, %v126
    %s2241 = scalar_lea.vmem %s9, 4
    %2242 = vst.msk [vmem:[%s2241] sm:$0x3] %vm849, %v2240
    %s2243 = scalar_lea.vmem %s0, 6
    %v2244 = vld [vmem:[%s2243] sm:$0x3]
    %2246 = vset.pattern.permute.xlu0 0
    %2247 = vperm.xlu0 %2246, %v2244
    %v2248 = vpop.permute.xlu0 %2247
    %v2250 = vmul.f32 %v2248, %v138
    %v2251 = vmul.f32 %v2248, %v142
    %v2252 = vmul.f32 %v2248, %v146
    %v2253 = vmul.f32 %v2248, %v150
    %v2254 = vld [vmem:[#allocation3] sm:$0xff]
    %v2255 = vld [vmem:[#allocation3 + $0x8] sm:$0xff]
    %v2256 = vld [vmem:[#allocation3 + $0x10] sm:$0xff]
    %v2257 = vld [vmem:[#allocation3 + $0x18] sm:$0xff]
    %v2258 = vld [vmem:[#allocation3 + $0x20] sm:$0xff]
    %v2259 = vld [vmem:[#allocation3 + $0x28] sm:$0xff]
    %v2260 = vld [vmem:[#allocation3 + $0x30] sm:$0xff]
    %v2261 = vld [vmem:[#allocation3 + $0x38] sm:$0xff]
    %v2262 = vld [vmem:[#allocation3 + $0x40] sm:$0xff]
    %v2263 = vld [vmem:[#allocation3 + $0x48] sm:$0xff]
    %v2264 = vld [vmem:[#allocation3 + $0x50] sm:$0xff]
    %v2265 = vld [vmem:[#allocation3 + $0x58] sm:$0xff]
    %v2266 = vld [vmem:[#allocation3 + $0x60] sm:$0xff]
    %v2267 = vld [vmem:[#allocation3 + $0x68] sm:$0xff]
    %v2268 = vld [vmem:[#allocation3 + $0x70] sm:$0xff]
    %v2269 = vld [vmem:[#allocation3 + $0x78] sm:$0xff]
    %v2270 = vld [vmem:[#allocation3 + $0x80] sm:$0xff]
    %v2271 = vld [vmem:[#allocation3 + $0x88] sm:$0xff]
    %v2272 = vld [vmem:[#allocation3 + $0x90] sm:$0xff]
    %v2273 = vld [vmem:[#allocation3 + $0x98] sm:$0xff]
    %v2274 = vld [vmem:[#allocation3 + $0xa0] sm:$0xff]
    %v2275 = vld [vmem:[#allocation3 + $0xa8] sm:$0xff]
    %v2276 = vld [vmem:[#allocation3 + $0xb0] sm:$0xff]
    %v2277 = vld [vmem:[#allocation3 + $0xb8] sm:$0xff]
    %v2278 = vld [vmem:[#allocation3 + $0xc0] sm:$0xff]
    %v2279 = vld [vmem:[#allocation3 + $0xc8] sm:$0xff]
    %v2280 = vld [vmem:[#allocation3 + $0xd0] sm:$0xff]
    %v2281 = vld [vmem:[#allocation3 + $0xd8] sm:$0xff]
    %v2282 = vld [vmem:[#allocation3 + $0xe0] sm:$0xff]
    %v2283 = vld [vmem:[#allocation3 + $0xe8] sm:$0xff]
    %v2284 = vld [vmem:[#allocation3 + $0xf0] sm:$0xff]
    %v2285 = vld [vmem:[#allocation3 + $0xf8] sm:$0xff]
    %v2286 = vld [vmem:[#allocation3 + $0x100] sm:$0xff]
    %v2287 = vld [vmem:[#allocation3 + $0x108] sm:$0xff]
    %v2288 = vld [vmem:[#allocation3 + $0x110] sm:$0xff]
    %v2289 = vld [vmem:[#allocation3 + $0x118] sm:$0xff]
    %v2290 = vld [vmem:[#allocation3 + $0x120] sm:$0xff]
    %v2291 = vld [vmem:[#allocation3 + $0x128] sm:$0xff]
    %v2292 = vld [vmem:[#allocation3 + $0x130] sm:$0xff]
    %v2293 = vld [vmem:[#allocation3 + $0x138] sm:$0xff]
    %v2294 = vld [vmem:[#allocation3 + $0x140] sm:$0xff]
    %v2295 = vld [vmem:[#allocation3 + $0x148] sm:$0xff]
    %v2296 = vld [vmem:[#allocation3 + $0x150] sm:$0xff]
    %v2297 = vld [vmem:[#allocation3 + $0x158] sm:$0xff]
    %v2298 = vld [vmem:[#allocation3 + $0x160] sm:$0xff]
    %v2299 = vld [vmem:[#allocation3 + $0x168] sm:$0xff]
    %v2300 = vld [vmem:[#allocation3 + $0x170] sm:$0xff]
    %v2301 = vld [vmem:[#allocation3 + $0x178] sm:$0xff]
    %v2302 = vld [vmem:[#allocation3 + $0x180] sm:$0xff]
    %v2303 = vld [vmem:[#allocation3 + $0x188] sm:$0xff]
    %v2304 = vld [vmem:[#allocation3 + $0x190] sm:$0xff]
    %v2305 = vld [vmem:[#allocation3 + $0x198] sm:$0xff]
    %v2306 = vld [vmem:[#allocation3 + $0x1a0] sm:$0xff]
    %v2307 = vld [vmem:[#allocation3 + $0x1a8] sm:$0xff]
    %v2308 = vld [vmem:[#allocation3 + $0x1b0] sm:$0xff]
    %v2309 = vld [vmem:[#allocation3 + $0x1b8] sm:$0xff]
    %v2310 = vld [vmem:[#allocation3 + $0x1c0] sm:$0xff]
    %v2311 = vld [vmem:[#allocation3 + $0x1c8] sm:$0xff]
    %v2312 = vld [vmem:[#allocation3 + $0x1d0] sm:$0xff]
    %v2313 = vld [vmem:[#allocation3 + $0x1d8] sm:$0xff]
    %v2314 = vld [vmem:[#allocation3 + $0x1e0] sm:$0xff]
    %v2315 = vld [vmem:[#allocation3 + $0x1e8] sm:$0xff]
    %v2316 = vld [vmem:[#allocation3 + $0x1f0] sm:$0xff]
    %v2317 = vld [vmem:[#allocation3 + $0x1f8] sm:$0xff]
    %2318 = vmatprep.subr.mxu0 %v2255
    %2319 = vmatpush1.msra.mxu0 %v2254
    %2320 = vmatprep.subr.mxu0 %v2259
    %2321 = vmatpush1.msra.mxu0 %v2258
    %2322 = vmatprep.subr.mxu0 %v2263
    %2323 = vmatpush1.msra.mxu0 %v2262
    %2324 = vmatprep.subr.mxu0 %v2267
    %2325 = vmatpush1.msra.mxu0 %v2266
    %2326 = vmatprep.subr.mxu0 %v2271
    %2327 = vmatpush1.msra.mxu0 %v2270
    %2328 = vmatprep.subr.mxu0 %v2275
    %2329 = vmatpush1.msra.mxu0 %v2274
    %2330 = vmatprep.subr.mxu0 %v2279
    %2331 = vmatpush1.msra.mxu0 %v2278
    %2332 = vmatprep.subr.mxu0 %v2283
    %2333 = vmatpush1.msra.mxu0 %v2282
    %2334 = vmatprep.subr.mxu0 %v2287
    %2335 = vmatpush1.msra.mxu0 %v2286
    %2336 = vmatprep.subr.mxu0 %v2291
    %2337 = vmatpush1.msra.mxu0 %v2290
    %2338 = vmatprep.subr.mxu0 %v2295
    %2339 = vmatpush1.msra.mxu0 %v2294
    %2340 = vmatprep.subr.mxu0 %v2299
    %2341 = vmatpush1.msra.mxu0 %v2298
    %2342 = vmatprep.subr.mxu0 %v2303
    %2343 = vmatpush1.msra.mxu0 %v2302
    %2344 = vmatprep.subr.mxu0 %v2307
    %2345 = vmatpush1.msra.mxu0 %v2306
    %2346 = vmatprep.subr.mxu0 %v2311
    %2347 = vmatpush1.msra.mxu0 %v2310
    %2348 = vmatprep.subr.mxu0 %v2315
    %2349 = vmatpush1.msra.mxu0 %v2314
    %2350 = vmatprep.subr.mxu0 0.0
    %2351 = vmatpush1.msra.mxu0 0.0
    %2352 = vmatprep.subr.mxu0 0.0
    %2353 = vmatpush1.msra.mxu0 0.0
    %2354 = vmatprep.subr.mxu0 0.0
    %2355 = vmatpush1.msra.mxu0 0.0
    %2356 = vmatprep.subr.mxu0 0.0
    %2357 = vmatpush1.msra.mxu0 0.0
    %2358 = vmatprep.subr.mxu0 0.0
    %2359 = vmatpush1.msra.mxu0 0.0
    %2360 = vmatprep.subr.mxu0 0.0
    %2361 = vmatpush1.msra.mxu0 0.0
    %2362 = vmatprep.subr.mxu0 0.0
    %2363 = vmatpush1.msra.mxu0 0.0
    %2364 = vmatprep.subr.mxu0 0.0
    %2365 = vmatpush1.msra.mxu0 0.0
    %2366 = vmatprep.subr.mxu0 0.0
    %2367 = vmatpush1.msra.mxu0 0.0
    %2368 = vmatprep.subr.mxu0 0.0
    %2369 = vmatpush1.msra.mxu0 0.0
    %2370 = vmatprep.subr.mxu0 0.0
    %2371 = vmatpush1.msra.mxu0 0.0
    %2372 = vmatprep.subr.mxu0 0.0
    %2373 = vmatpush1.msra.mxu0 0.0
    %2374 = vmatprep.subr.mxu0 0.0
    %2375 = vmatpush1.msra.mxu0 0.0
    %2376 = vmatprep.subr.mxu0 0.0
    %2377 = vmatpush1.msra.mxu0 0.0
    %2378 = vmatprep.subr.mxu0 0.0
    %2379 = vmatpush1.msra.mxu0 0.0
    %2380 = vmatprep.subr.mxu0 0.0
    %2381 = vmatpush1.msra.mxu0 0.0
    %2382 = vmatprep.mubr.f32.mxu0 0.0
    %2383 = vmatmul.mubr.f32.gmra.mrb[0].mxu0 %v1795
    %v2384 = vpop.f32.mrb[0].mxu0
    %v2385 = vadd.f32 0.0, %v2384
    %v2386 = vpop.f32.mrb[0].mxu0
    %v2387 = vadd.f32 0.0, %v2386
    %2388 = vdwg.mxu0
    %2389 = vmatprep.subr.mxu0 %v2257
    %2390 = vmatpush1.msra.mxu0 %v2256
    %2391 = vmatprep.subr.mxu0 %v2261
    %2392 = vmatpush1.msra.mxu0 %v2260
    %2393 = vmatprep.subr.mxu0 %v2265
    %2394 = vmatpush1.msra.mxu0 %v2264
    %2395 = vmatprep.subr.mxu0 %v2269
    %2396 = vmatpush1.msra.mxu0 %v2268
    %2397 = vmatprep.subr.mxu0 %v2273
    %2398 = vmatpush1.msra.mxu0 %v2272
    %2399 = vmatprep.subr.mxu0 %v2277
    %2400 = vmatpush1.msra.mxu0 %v2276
    %2401 = vmatprep.subr.mxu0 %v2281
    %2402 = vmatpush1.msra.mxu0 %v2280
    %2403 = vmatprep.subr.mxu0 %v2285
    %2404 = vmatpush1.msra.mxu0 %v2284
    %2405 = vmatprep.subr.mxu0 %v2289
    %2406 = vmatpush1.msra.mxu0 %v2288
    %2407 = vmatprep.subr.mxu0 %v2293
    %2408 = vmatpush1.msra.mxu0 %v2292
    %2409 = vmatprep.subr.mxu0 %v2297
    %2410 = vmatpush1.msra.mxu0 %v2296
    %2411 = vmatprep.subr.mxu0 %v2301
    %2412 = vmatpush1.msra.mxu0 %v2300
    %2413 = vmatprep.subr.mxu0 %v2305
    %2414 = vmatpush1.msra.mxu0 %v2304
    %2415 = vmatprep.subr.mxu0 %v2309
    %2416 = vmatpush1.msra.mxu0 %v2308
    %2417 = vmatprep.subr.mxu0 %v2313
    %2418 = vmatpush1.msra.mxu0 %v2312
    %2419 = vmatprep.subr.mxu0 %v2317
    %2420 = vmatpush1.msra.mxu0 %v2316
    %2421 = vmatprep.subr.mxu0 0.0
    %2422 = vmatpush1.msra.mxu0 0.0
    %2423 = vmatprep.subr.mxu0 0.0
    %2424 = vmatpush1.msra.mxu0 0.0
    %2425 = vmatprep.subr.mxu0 0.0
    %2426 = vmatpush1.msra.mxu0 0.0
    %2427 = vmatprep.subr.mxu0 0.0
    %2428 = vmatpush1.msra.mxu0 0.0
    %2429 = vmatprep.subr.mxu0 0.0
    %2430 = vmatpush1.msra.mxu0 0.0
    %2431 = vmatprep.subr.mxu0 0.0
    %2432 = vmatpush1.msra.mxu0 0.0
    %2433 = vmatprep.subr.mxu0 0.0
    %2434 = vmatpush1.msra.mxu0 0.0
    %2435 = vmatprep.subr.mxu0 0.0
    %2436 = vmatpush1.msra.mxu0 0.0
    %2437 = vmatprep.subr.mxu0 0.0
    %2438 = vmatpush1.msra.mxu0 0.0
    %2439 = vmatprep.subr.mxu0 0.0
    %2440 = vmatpush1.msra.mxu0 0.0
    %2441 = vmatprep.subr.mxu0 0.0
    %2442 = vmatpush1.msra.mxu0 0.0
    %2443 = vmatprep.subr.mxu0 0.0
    %2444 = vmatpush1.msra.mxu0 0.0
    %2445 = vmatprep.subr.mxu0 0.0
    %2446 = vmatpush1.msra.mxu0 0.0
    %2447 = vmatprep.subr.mxu0 0.0
    %2448 = vmatpush1.msra.mxu0 0.0
    %2449 = vmatprep.subr.mxu0 0.0
    %2450 = vmatpush1.msra.mxu0 0.0
    %2451 = vmatprep.subr.mxu0 0.0
    %2452 = vmatpush1.msra.mxu0 0.0
    %2453 = vmatprep.mubr.f32.mxu0 0.0
    %2454 = vmatmul.mubr.f32.gmra.mrb[0].mxu0 %v1795
    %v2455 = vpop.f32.mrb[0].mxu0
    %v2456 = vadd.f32 0.0, %v2455
    %v2457 = vpop.f32.mrb[0].mxu0
    %v2458 = vadd.f32 0.0, %v2457
    %2459 = vdwg.mxu0
    %v2460 = vadd.f32 %v2250, %v2385
    %v2461 = vadd.f32 %v2251, %v2387
    %v2462 = vadd.f32 %v2252, %v2456
    %v2463 = vadd.f32 %v2253, %v2458
    %v2464 = vadd.f32 %v2460, %v81
    %v2465 = vadd.f32 %v2461, %v85
    %v2466 = vadd.f32 %v2462, %v89
    %v2467 = vadd.f32 %v2463, %v93
    %v2468 = vxor.u32 %v2464, 2147483648
    %v2469 = vmul.f32 %v2468, 1.442695
    %v2470 = vpow.pop %v2469
    %v2471 = vadd.f32 %v2470, 1.0
    %v2472 = vrcp.pop %v2471
    %v2473 = vmul.f32 1.0, %v2472
    %v2474 = vxor.u32 %v2465, 2147483648
    %v2475 = vmul.f32 %v2474, 1.442695
    %v2476 = vpow.pop %v2475
    %v2477 = vadd.f32 %v2476, 1.0
    %v2478 = vrcp.pop %v2477
    %v2479 = vmul.f32 1.0, %v2478
    %v2480 = vtanh.pop %v2466
    %v2481 = vxor.u32 %v2467, 2147483648
    %v2482 = vmul.f32 %v2481, 1.442695
    %v2483 = vpow.pop %v2482
    %v2484 = vadd.f32 %v2483, 1.0
    %v2485 = vrcp.pop %v2484
    %v2486 = vmul.f32 1.0, %v2485
    %v2487 = vmul.f32 %v2479, %v1793
    %v2488 = vmul.f32 %v2473, %v2480
    %v2489 = vadd.f32 %v2487, %v2488
    %v2490 = vtanh.pop %v2489
    %v2491 = vmul.f32 %v2486, %v2490
    %v2492 = vld [vmem:[#allocation5] sm:$0xff]
    %v2493 = vld [vmem:[#allocation5 + $0x8] sm:$0xff]
    %v2494 = vld [vmem:[#allocation5 + $0x10] sm:$0xff]
    %v2495 = vld [vmem:[#allocation5 + $0x18] sm:$0xff]
    %v2496 = vld [vmem:[#allocation5 + $0x20] sm:$0xff]
    %v2497 = vld [vmem:[#allocation5 + $0x28] sm:$0xff]
    %v2498 = vld [vmem:[#allocation5 + $0x30] sm:$0xff]
    %v2499 = vld [vmem:[#allocation5 + $0x38] sm:$0xff]
    %v2500 = vld [vmem:[#allocation5 + $0x40] sm:$0xff]
    %v2501 = vld [vmem:[#allocation5 + $0x48] sm:$0xff]
    %v2502 = vld [vmem:[#allocation5 + $0x50] sm:$0xff]
    %v2503 = vld [vmem:[#allocation5 + $0x58] sm:$0xff]
    %v2504 = vld [vmem:[#allocation5 + $0x60] sm:$0xff]
    %v2505 = vld [vmem:[#allocation5 + $0x68] sm:$0xff]
    %v2506 = vld [vmem:[#allocation5 + $0x70] sm:$0xff]
    %v2507 = vld [vmem:[#allocation5 + $0x78] sm:$0xff]
    %v2508 = vld [vmem:[#allocation5 + $0x80] sm:$0xff]
    %v2509 = vld [vmem:[#allocation5 + $0x88] sm:$0xff]
    %v2510 = vld [vmem:[#allocation5 + $0x90] sm:$0xff]
    %v2511 = vld [vmem:[#allocation5 + $0x98] sm:$0xff]
    %v2512 = vld [vmem:[#allocation5 + $0xa0] sm:$0xff]
    %v2513 = vld [vmem:[#allocation5 + $0xa8] sm:$0xff]
    %v2514 = vld [vmem:[#allocation5 + $0xb0] sm:$0xff]
    %v2515 = vld [vmem:[#allocation5 + $0xb8] sm:$0xff]
    %v2516 = vld [vmem:[#allocation5 + $0xc0] sm:$0xff]
    %v2517 = vld [vmem:[#allocation5 + $0xc8] sm:$0xff]
    %v2518 = vld [vmem:[#allocation5 + $0xd0] sm:$0xff]
    %v2519 = vld [vmem:[#allocation5 + $0xd8] sm:$0xff]
    %v2520 = vld [vmem:[#allocation5 + $0xe0] sm:$0xff]
    %v2521 = vld [vmem:[#allocation5 + $0xe8] sm:$0xff]
    %v2522 = vld [vmem:[#allocation5 + $0xf0] sm:$0xff]
    %v2523 = vld [vmem:[#allocation5 + $0xf8] sm:$0xff]
    %v2524 = vld [vmem:[#allocation5 + $0x100] sm:$0xff]
    %v2525 = vld [vmem:[#allocation5 + $0x108] sm:$0xff]
    %v2526 = vld [vmem:[#allocation5 + $0x110] sm:$0xff]
    %v2527 = vld [vmem:[#allocation5 + $0x118] sm:$0xff]
    %v2528 = vld [vmem:[#allocation5 + $0x120] sm:$0xff]
    %v2529 = vld [vmem:[#allocation5 + $0x128] sm:$0xff]
    %v2530 = vld [vmem:[#allocation5 + $0x130] sm:$0xff]
    %v2531 = vld [vmem:[#allocation5 + $0x138] sm:$0xff]
    %v2532 = vld [vmem:[#allocation5 + $0x140] sm:$0xff]
    %v2533 = vld [vmem:[#allocation5 + $0x148] sm:$0xff]
    %v2534 = vld [vmem:[#allocation5 + $0x150] sm:$0xff]
    %v2535 = vld [vmem:[#allocation5 + $0x158] sm:$0xff]
    %v2536 = vld [vmem:[#allocation5 + $0x160] sm:$0xff]
    %v2537 = vld [vmem:[#allocation5 + $0x168] sm:$0xff]
    %v2538 = vld [vmem:[#allocation5 + $0x170] sm:$0xff]
    %v2539 = vld [vmem:[#allocation5 + $0x178] sm:$0xff]
    %v2540 = vld [vmem:[#allocation5 + $0x180] sm:$0xff]
    %v2541 = vld [vmem:[#allocation5 + $0x188] sm:$0xff]
    %v2542 = vld [vmem:[#allocation5 + $0x190] sm:$0xff]
    %v2543 = vld [vmem:[#allocation5 + $0x198] sm:$0xff]
    %v2544 = vld [vmem:[#allocation5 + $0x1a0] sm:$0xff]
    %v2545 = vld [vmem:[#allocation5 + $0x1a8] sm:$0xff]
    %v2546 = vld [vmem:[#allocation5 + $0x1b0] sm:$0xff]
    %v2547 = vld [vmem:[#allocation5 + $0x1b8] sm:$0xff]
    %v2548 = vld [vmem:[#allocation5 + $0x1c0] sm:$0xff]
    %v2549 = vld [vmem:[#allocation5 + $0x1c8] sm:$0xff]
    %v2550 = vld [vmem:[#allocation5 + $0x1d0] sm:$0xff]
    %v2551 = vld [vmem:[#allocation5 + $0x1d8] sm:$0xff]
    %v2552 = vld [vmem:[#allocation5 + $0x1e0] sm:$0xff]
    %v2553 = vld [vmem:[#allocation5 + $0x1e8] sm:$0xff]
    %v2554 = vld [vmem:[#allocation5 + $0x1f0] sm:$0xff]
    %v2555 = vld [vmem:[#allocation5 + $0x1f8] sm:$0xff]
    %v2556 = vld [vmem:[#allocation7] sm:$0xff]
    %v2557 = vld [vmem:[#allocation7 + $0x8] sm:$0xff]
    %v2558 = vld [vmem:[#allocation7 + $0x10] sm:$0xff]
    %v2559 = vld [vmem:[#allocation7 + $0x18] sm:$0xff]
    %v2560 = vld [vmem:[#allocation7 + $0x20] sm:$0xff]
    %v2561 = vld [vmem:[#allocation7 + $0x28] sm:$0xff]
    %v2562 = vld [vmem:[#allocation7 + $0x30] sm:$0xff]
    %v2563 = vld [vmem:[#allocation7 + $0x38] sm:$0xff]
    %v2564 = vld [vmem:[#allocation7 + $0x40] sm:$0xff]
    %v2565 = vld [vmem:[#allocation7 + $0x48] sm:$0xff]
    %v2566 = vld [vmem:[#allocation7 + $0x50] sm:$0xff]
    %v2567 = vld [vmem:[#allocation7 + $0x58] sm:$0xff]
    %v2568 = vld [vmem:[#allocation7 + $0x60] sm:$0xff]
    %v2569 = vld [vmem:[#allocation7 + $0x68] sm:$0xff]
    %v2570 = vld [vmem:[#allocation7 + $0x70] sm:$0xff]
    %v2571 = vld [vmem:[#allocation7 + $0x78] sm:$0xff]
    %v2572 = vld [vmem:[#allocation7 + $0x80] sm:$0xff]
    %v2573 = vld [vmem:[#allocation7 + $0x88] sm:$0xff]
    %v2574 = vld [vmem:[#allocation7 + $0x90] sm:$0xff]
    %v2575 = vld [vmem:[#allocation7 + $0x98] sm:$0xff]
    %v2576 = vld [vmem:[#allocation7 + $0xa0] sm:$0xff]
    %v2577 = vld [vmem:[#allocation7 + $0xa8] sm:$0xff]
    %v2578 = vld [vmem:[#allocation7 + $0xb0] sm:$0xff]
    %v2579 = vld [vmem:[#allocation7 + $0xb8] sm:$0xff]
    %v2580 = vld [vmem:[#allocation7 + $0xc0] sm:$0xff]
    %v2581 = vld [vmem:[#allocation7 + $0xc8] sm:$0xff]
    %v2582 = vld [vmem:[#allocation7 + $0xd0] sm:$0xff]
    %v2583 = vld [vmem:[#allocation7 + $0xd8] sm:$0xff]
    %v2584 = vld [vmem:[#allocation7 + $0xe0] sm:$0xff]
    %v2585 = vld [vmem:[#allocation7 + $0xe8] sm:$0xff]
    %v2586 = vld [vmem:[#allocation7 + $0xf0] sm:$0xff]
    %v2587 = vld [vmem:[#allocation7 + $0xf8] sm:$0xff]
    %v2588 = vld [vmem:[#allocation7 + $0x100] sm:$0xff]
    %v2589 = vld [vmem:[#allocation7 + $0x108] sm:$0xff]
    %v2590 = vld [vmem:[#allocation7 + $0x110] sm:$0xff]
    %v2591 = vld [vmem:[#allocation7 + $0x118] sm:$0xff]
    %v2592 = vld [vmem:[#allocation7 + $0x120] sm:$0xff]
    %v2593 = vld [vmem:[#allocation7 + $0x128] sm:$0xff]
    %v2594 = vld [vmem:[#allocation7 + $0x130] sm:$0xff]
    %v2595 = vld [vmem:[#allocation7 + $0x138] sm:$0xff]
    %v2596 = vld [vmem:[#allocation7 + $0x140] sm:$0xff]
    %v2597 = vld [vmem:[#allocation7 + $0x148] sm:$0xff]
    %v2598 = vld [vmem:[#allocation7 + $0x150] sm:$0xff]
    %v2599 = vld [vmem:[#allocation7 + $0x158] sm:$0xff]
    %v2600 = vld [vmem:[#allocation7 + $0x160] sm:$0xff]
    %v2601 = vld [vmem:[#allocation7 + $0x168] sm:$0xff]
    %v2602 = vld [vmem:[#allocation7 + $0x170] sm:$0xff]
    %v2603 = vld [vmem:[#allocation7 + $0x178] sm:$0xff]
    %v2604 = vld [vmem:[#allocation7 + $0x180] sm:$0xff]
    %v2605 = vld [vmem:[#allocation7 + $0x188] sm:$0xff]
    %v2606 = vld [vmem:[#allocation7 + $0x190] sm:$0xff]
    %v2607 = vld [vmem:[#allocation7 + $0x198] sm:$0xff]
    %v2608 = vld [vmem:[#allocation7 + $0x1a0] sm:$0xff]
    %v2609 = vld [vmem:[#allocation7 + $0x1a8] sm:$0xff]
    %v2610 = vld [vmem:[#allocation7 + $0x1b0] sm:$0xff]
    %v2611 = vld [vmem:[#allocation7 + $0x1b8] sm:$0xff]
    %v2612 = vld [vmem:[#allocation7 + $0x1c0] sm:$0xff]
    %v2613 = vld [vmem:[#allocation7 + $0x1c8] sm:$0xff]
    %v2614 = vld [vmem:[#allocation7 + $0x1d0] sm:$0xff]
    %v2615 = vld [vmem:[#allocation7 + $0x1d8] sm:$0xff]
    %v2616 = vld [vmem:[#allocation7 + $0x1e0] sm:$0xff]
    %v2617 = vld [vmem:[#allocation7 + $0x1e8] sm:$0xff]
    %v2618 = vld [vmem:[#allocation7 + $0x1f0] sm:$0xff]
    %v2619 = vld [vmem:[#allocation7 + $0x1f8] sm:$0xff]
    %2620 = vmatprep.subr.mxu0 %v2557
    %2621 = vmatpush1.msra.mxu0 %v2556
    %2622 = vmatprep.subr.mxu0 %v2561
    %2623 = vmatpush1.msra.mxu0 %v2560
    %2624 = vmatprep.subr.mxu0 %v2565
    %2625 = vmatpush1.msra.mxu0 %v2564
    %2626 = vmatprep.subr.mxu0 %v2569
    %2627 = vmatpush1.msra.mxu0 %v2568
    %2628 = vmatprep.subr.mxu0 %v2573
    %2629 = vmatpush1.msra.mxu0 %v2572
    %2630 = vmatprep.subr.mxu0 %v2577
    %2631 = vmatpush1.msra.mxu0 %v2576
    %2632 = vmatprep.subr.mxu0 %v2581
    %2633 = vmatpush1.msra.mxu0 %v2580
    %2634 = vmatprep.subr.mxu0 %v2585
    %2635 = vmatpush1.msra.mxu0 %v2584
    %2636 = vmatprep.subr.mxu0 %v2589
    %2637 = vmatpush1.msra.mxu0 %v2588
    %2638 = vmatprep.subr.mxu0 %v2593
    %2639 = vmatpush1.msra.mxu0 %v2592
    %2640 = vmatprep.subr.mxu0 %v2597
    %2641 = vmatpush1.msra.mxu0 %v2596
    %2642 = vmatprep.subr.mxu0 %v2601
    %2643 = vmatpush1.msra.mxu0 %v2600
    %2644 = vmatprep.subr.mxu0 %v2605
    %2645 = vmatpush1.msra.mxu0 %v2604
    %2646 = vmatprep.subr.mxu0 %v2609
    %2647 = vmatpush1.msra.mxu0 %v2608
    %2648 = vmatprep.subr.mxu0 %v2613
    %2649 = vmatpush1.msra.mxu0 %v2612
    %2650 = vmatprep.subr.mxu0 %v2617
    %2651 = vmatpush1.msra.mxu0 %v2616
    %2652 = vmatprep.subr.mxu0 0.0
    %2653 = vmatpush1.msra.mxu0 0.0
    %2654 = vmatprep.subr.mxu0 0.0
    %2655 = vmatpush1.msra.mxu0 0.0
    %2656 = vmatprep.subr.mxu0 0.0
    %2657 = vmatpush1.msra.mxu0 0.0
    %2658 = vmatprep.subr.mxu0 0.0
    %2659 = vmatpush1.msra.mxu0 0.0
    %2660 = vmatprep.subr.mxu0 0.0
    %2661 = vmatpush1.msra.mxu0 0.0
    %2662 = vmatprep.subr.mxu0 0.0
    %2663 = vmatpush1.msra.mxu0 0.0
    %2664 = vmatprep.subr.mxu0 0.0
    %2665 = vmatpush1.msra.mxu0 0.0
    %2666 = vmatprep.subr.mxu0 0.0
    %2667 = vmatpush1.msra.mxu0 0.0
    %2668 = vmatprep.subr.mxu0 0.0
    %2669 = vmatpush1.msra.mxu0 0.0
    %2670 = vmatprep.subr.mxu0 0.0
    %2671 = vmatpush1.msra.mxu0 0.0
    %2672 = vmatprep.subr.mxu0 0.0
    %2673 = vmatpush1.msra.mxu0 0.0
    %2674 = vmatprep.subr.mxu0 0.0
    %2675 = vmatpush1.msra.mxu0 0.0
    %2676 = vmatprep.subr.mxu0 0.0
    %2677 = vmatpush1.msra.mxu0 0.0
    %2678 = vmatprep.subr.mxu0 0.0
    %2679 = vmatpush1.msra.mxu0 0.0
    %2680 = vmatprep.subr.mxu0 0.0
    %2681 = vmatpush1.msra.mxu0 0.0
    %2682 = vmatprep.subr.mxu0 0.0
    %2683 = vmatpush1.msra.mxu0 0.0
    %2684 = vmatprep.mubr.f32.mxu0 0.0
    %2685 = vmatmul.mubr.f32.gmra.mrb[0].mxu0 %v2235
    %v2686 = vpop.f32.mrb[0].mxu0
    %v2687 = vadd.f32 0.0, %v2686
    %v2688 = vpop.f32.mrb[0].mxu0
    %v2689 = vadd.f32 0.0, %v2688
    %2690 = vdwg.mxu0
    %2691 = vmatprep.subr.mxu0 %v2559
    %2692 = vmatpush1.msra.mxu0 %v2558
    %2693 = vmatprep.subr.mxu0 %v2563
    %2694 = vmatpush1.msra.mxu0 %v2562
    %2695 = vmatprep.subr.mxu0 %v2567
    %2696 = vmatpush1.msra.mxu0 %v2566
    %2697 = vmatprep.subr.mxu0 %v2571
    %2698 = vmatpush1.msra.mxu0 %v2570
    %2699 = vmatprep.subr.mxu0 %v2575
    %2700 = vmatpush1.msra.mxu0 %v2574
    %2701 = vmatprep.subr.mxu0 %v2579
    %2702 = vmatpush1.msra.mxu0 %v2578
    %2703 = vmatprep.subr.mxu0 %v2583
    %2704 = vmatpush1.msra.mxu0 %v2582
    %2705 = vmatprep.subr.mxu0 %v2587
    %2706 = vmatpush1.msra.mxu0 %v2586
    %2707 = vmatprep.subr.mxu0 %v2591
    %2708 = vmatpush1.msra.mxu0 %v2590
    %2709 = vmatprep.subr.mxu0 %v2595
    %2710 = vmatpush1.msra.mxu0 %v2594
    %2711 = vmatprep.subr.mxu0 %v2599
    %2712 = vmatpush1.msra.mxu0 %v2598
    %2713 = vmatprep.subr.mxu0 %v2603
    %2714 = vmatpush1.msra.mxu0 %v2602
    %2715 = vmatprep.subr.mxu0 %v2607
    %2716 = vmatpush1.msra.mxu0 %v2606
    %2717 = vmatprep.subr.mxu0 %v2611
    %2718 = vmatpush1.msra.mxu0 %v2610
    %2719 = vmatprep.subr.mxu0 %v2615
    %2720 = vmatpush1.msra.mxu0 %v2614
    %2721 = vmatprep.subr.mxu0 %v2619
    %2722 = vmatpush1.msra.mxu0 %v2618
    %2723 = vmatprep.subr.mxu0 0.0
    %2724 = vmatpush1.msra.mxu0 0.0
    %2725 = vmatprep.subr.mxu0 0.0
    %2726 = vmatpush1.msra.mxu0 0.0
    %2727 = vmatprep.subr.mxu0 0.0
    %2728 = vmatpush1.msra.mxu0 0.0
    %2729 = vmatprep.subr.mxu0 0.0
    %2730 = vmatpush1.msra.mxu0 0.0
    %2731 = vmatprep.subr.mxu0 0.0
    %2732 = vmatpush1.msra.mxu0 0.0
    %2733 = vmatprep.subr.mxu0 0.0
    %2734 = vmatpush1.msra.mxu0 0.0
    %2735 = vmatprep.subr.mxu0 0.0
    %2736 = vmatpush1.msra.mxu0 0.0
    %2737 = vmatprep.subr.mxu0 0.0
    %2738 = vmatpush1.msra.mxu0 0.0
    %2739 = vmatprep.subr.mxu0 0.0
    %2740 = vmatpush1.msra.mxu0 0.0
    %2741 = vmatprep.subr.mxu0 0.0
    %2742 = vmatpush1.msra.mxu0 0.0
    %2743 = vmatprep.subr.mxu0 0.0
    %2744 = vmatpush1.msra.mxu0 0.0
    %2745 = vmatprep.subr.mxu0 0.0
    %2746 = vmatpush1.msra.mxu0 0.0
    %2747 = vmatprep.subr.mxu0 0.0
    %2748 = vmatpush1.msra.mxu0 0.0
    %2749 = vmatprep.subr.mxu0 0.0
    %2750 = vmatpush1.msra.mxu0 0.0
    %2751 = vmatprep.subr.mxu0 0.0
    %2752 = vmatpush1.msra.mxu0 0.0
    %2753 = vmatprep.subr.mxu0 0.0
    %2754 = vmatpush1.msra.mxu0 0.0
    %2755 = vmatprep.mubr.f32.mxu0 0.0
    %2756 = vmatmul.mubr.f32.gmra.mrb[0].mxu0 %v2235
    %v2757 = vpop.f32.mrb[0].mxu0
    %v2758 = vadd.f32 0.0, %v2757
    %v2759 = vpop.f32.mrb[0].mxu0
    %v2760 = vadd.f32 0.0, %v2759
    %2761 = vdwg.mxu0
    %2762 = vmatprep.subr.mxu0 %v2493
    %2763 = vmatpush1.msra.mxu0 %v2492
    %2764 = vmatprep.subr.mxu0 %v2497
    %2765 = vmatpush1.msra.mxu0 %v2496
    %2766 = vmatprep.subr.mxu0 %v2501
    %2767 = vmatpush1.msra.mxu0 %v2500
    %2768 = vmatprep.subr.mxu0 %v2505
    %2769 = vmatpush1.msra.mxu0 %v2504
    %2770 = vmatprep.subr.mxu0 %v2509
    %2771 = vmatpush1.msra.mxu0 %v2508
    %2772 = vmatprep.subr.mxu0 %v2513
    %2773 = vmatpush1.msra.mxu0 %v2512
    %2774 = vmatprep.subr.mxu0 %v2517
    %2775 = vmatpush1.msra.mxu0 %v2516
    %2776 = vmatprep.subr.mxu0 %v2521
    %2777 = vmatpush1.msra.mxu0 %v2520
    %2778 = vmatprep.subr.mxu0 %v2525
    %2779 = vmatpush1.msra.mxu0 %v2524
    %2780 = vmatprep.subr.mxu0 %v2529
    %2781 = vmatpush1.msra.mxu0 %v2528
    %2782 = vmatprep.subr.mxu0 %v2533
    %2783 = vmatpush1.msra.mxu0 %v2532
    %2784 = vmatprep.subr.mxu0 %v2537
    %2785 = vmatpush1.msra.mxu0 %v2536
    %2786 = vmatprep.subr.mxu0 %v2541
    %2787 = vmatpush1.msra.mxu0 %v2540
    %2788 = vmatprep.subr.mxu0 %v2545
    %2789 = vmatpush1.msra.mxu0 %v2544
    %2790 = vmatprep.subr.mxu0 %v2549
    %2791 = vmatpush1.msra.mxu0 %v2548
    %2792 = vmatprep.subr.mxu0 %v2553
    %2793 = vmatpush1.msra.mxu0 %v2552
    %2794 = vmatprep.subr.mxu0 0.0
    %2795 = vmatpush1.msra.mxu0 0.0
    %2796 = vmatprep.subr.mxu0 0.0
    %2797 = vmatpush1.msra.mxu0 0.0
    %2798 = vmatprep.subr.mxu0 0.0
    %2799 = vmatpush1.msra.mxu0 0.0
    %2800 = vmatprep.subr.mxu0 0.0
    %2801 = vmatpush1.msra.mxu0 0.0
    %2802 = vmatprep.subr.mxu0 0.0
    %2803 = vmatpush1.msra.mxu0 0.0
    %2804 = vmatprep.subr.mxu0 0.0
    %2805 = vmatpush1.msra.mxu0 0.0
    %2806 = vmatprep.subr.mxu0 0.0
    %2807 = vmatpush1.msra.mxu0 0.0
    %2808 = vmatprep.subr.mxu0 0.0
    %2809 = vmatpush1.msra.mxu0 0.0
    %2810 = vmatprep.subr.mxu0 0.0
    %2811 = vmatpush1.msra.mxu0 0.0
    %2812 = vmatprep.subr.mxu0 0.0
    %2813 = vmatpush1.msra.mxu0 0.0
    %2814 = vmatprep.subr.mxu0 0.0
    %2815 = vmatpush1.msra.mxu0 0.0
    %2816 = vmatprep.subr.mxu0 0.0
    %2817 = vmatpush1.msra.mxu0 0.0
    %2818 = vmatprep.subr.mxu0 0.0
    %2819 = vmatpush1.msra.mxu0 0.0
    %2820 = vmatprep.subr.mxu0 0.0
    %2821 = vmatpush1.msra.mxu0 0.0
    %2822 = vmatprep.subr.mxu0 0.0
    %2823 = vmatpush1.msra.mxu0 0.0
    %2824 = vmatprep.subr.mxu0 0.0
    %2825 = vmatpush1.msra.mxu0 0.0
    %2826 = vmatprep.mubr.f32.mxu0 0.0
    %2827 = vmatmul.mubr.f32.gmra.mrb[0].mxu0 %v2491
    %v2828 = vpop.f32.mrb[0].mxu0
    %v2829 = vadd.f32 %v2687, %v2828
    %v2830 = vpop.f32.mrb[0].mxu0
    %v2831 = vadd.f32 %v2689, %v2830
    %2832 = vdwg.mxu0
    %2833 = vmatprep.subr.mxu0 %v2495
    %2834 = vmatpush1.msra.mxu0 %v2494
    %2835 = vmatprep.subr.mxu0 %v2499
    %2836 = vmatpush1.msra.mxu0 %v2498
    %2837 = vmatprep.subr.mxu0 %v2503
    %2838 = vmatpush1.msra.mxu0 %v2502
    %2839 = vmatprep.subr.mxu0 %v2507
    %2840 = vmatpush1.msra.mxu0 %v2506
    %2841 = vmatprep.subr.mxu0 %v2511
    %2842 = vmatpush1.msra.mxu0 %v2510
    %2843 = vmatprep.subr.mxu0 %v2515
    %2844 = vmatpush1.msra.mxu0 %v2514
    %2845 = vmatprep.subr.mxu0 %v2519
    %2846 = vmatpush1.msra.mxu0 %v2518
    %2847 = vmatprep.subr.mxu0 %v2523
    %2848 = vmatpush1.msra.mxu0 %v2522
    %2849 = vmatprep.subr.mxu0 %v2527
    %2850 = vmatpush1.msra.mxu0 %v2526
    %2851 = vmatprep.subr.mxu0 %v2531
    %2852 = vmatpush1.msra.mxu0 %v2530
    %2853 = vmatprep.subr.mxu0 %v2535
    %2854 = vmatpush1.msra.mxu0 %v2534
    %2855 = vmatprep.subr.mxu0 %v2539
    %2856 = vmatpush1.msra.mxu0 %v2538
    %2857 = vmatprep.subr.mxu0 %v2543
    %2858 = vmatpush1.msra.mxu0 %v2542
    %2859 = vmatprep.subr.mxu0 %v2547
    %2860 = vmatpush1.msra.mxu0 %v2546
    %2861 = vmatprep.subr.mxu0 %v2551
    %2862 = vmatpush1.msra.mxu0 %v2550
    %2863 = vmatprep.subr.mxu0 %v2555
    %2864 = vmatpush1.msra.mxu0 %v2554
    %2865 = vmatprep.subr.mxu0 0.0
    %2866 = vmatpush1.msra.mxu0 0.0
    %2867 = vmatprep.subr.mxu0 0.0
    %2868 = vmatpush1.msra.mxu0 0.0
    %2869 = vmatprep.subr.mxu0 0.0
    %2870 = vmatpush1.msra.mxu0 0.0
    %2871 = vmatprep.subr.mxu0 0.0
    %2872 = vmatpush1.msra.mxu0 0.0
    %2873 = vmatprep.subr.mxu0 0.0
    %2874 = vmatpush1.msra.mxu0 0.0
    %2875 = vmatprep.subr.mxu0 0.0
    %2876 = vmatpush1.msra.mxu0 0.0
    %2877 = vmatprep.subr.mxu0 0.0
    %2878 = vmatpush1.msra.mxu0 0.0
    %2879 = vmatprep.subr.mxu0 0.0
    %2880 = vmatpush1.msra.mxu0 0.0
    %2881 = vmatprep.subr.mxu0 0.0
    %2882 = vmatpush1.msra.mxu0 0.0
    %2883 = vmatprep.subr.mxu0 0.0
    %2884 = vmatpush1.msra.mxu0 0.0
    %2885 = vmatprep.subr.mxu0 0.0
    %2886 = vmatpush1.msra.mxu0 0.0
    %2887 = vmatprep.subr.mxu0 0.0
    %2888 = vmatpush1.msra.mxu0 0.0
    %2889 = vmatprep.subr.mxu0 0.0
    %2890 = vmatpush1.msra.mxu0 0.0
    %2891 = vmatprep.subr.mxu0 0.0
    %2892 = vmatpush1.msra.mxu0 0.0
    %2893 = vmatprep.subr.mxu0 0.0
    %2894 = vmatpush1.msra.mxu0 0.0
    %2895 = vmatprep.subr.mxu0 0.0
    %2896 = vmatpush1.msra.mxu0 0.0
    %2897 = vmatprep.mubr.f32.mxu0 0.0
    %2898 = vmatmul.mubr.f32.gmra.mrb[0].mxu0 %v2491
    %v2899 = vpop.f32.mrb[0].mxu0
    %v2900 = vadd.f32 %v2758, %v2899
    %v2901 = vpop.f32.mrb[0].mxu0
    %v2902 = vadd.f32 %v2760, %v2901
    %2903 = vdwg.mxu0
    %v2904 = vadd.f32 %v2829, %v103
    %v2905 = vadd.f32 %v2831, %v107
    %v2906 = vadd.f32 %v2900, %v111
    %v2907 = vadd.f32 %v2902, %v115
    %v2908 = vxor.u32 %v2904, 2147483648
    %v2909 = vmul.f32 %v2908, 1.442695
    %v2910 = vpow.pop %v2909
    %v2911 = vadd.f32 %v2910, 1.0
    %v2912 = vrcp.pop %v2911
    %v2913 = vmul.f32 1.0, %v2912
    %v2914 = vxor.u32 %v2905, 2147483648
    %v2915 = vmul.f32 %v2914, 1.442695
    %v2916 = vpow.pop %v2915
    %v2917 = vadd.f32 %v2916, 1.0
    %v2918 = vrcp.pop %v2917
    %v2919 = vmul.f32 1.0, %v2918
    %v2920 = vtanh.pop %v2906
    %v2921 = vxor.u32 %v2907, 2147483648
    %v2922 = vmul.f32 %v2921, 1.442695
    %v2923 = vpow.pop %v2922
    %v2924 = vadd.f32 %v2923, 1.0
    %v2925 = vrcp.pop %v2924
    %v2926 = vmul.f32 1.0, %v2925
    %v2927 = vmul.f32 %v2919, %v2233
    %v2928 = vmul.f32 %v2913, %v2920
    %v2929 = vadd.f32 %v2927, %v2928
    %v2930 = vtanh.pop %v2929
    %v2931 = vmul.f32 %v2926, %v2930
    %v2932 = vmul.f32 %v2931, %v841
    %v2933 = vsel %vm844, %v2932, 0.0
    %2934 = vadd.xlane.f32.xlu0 %v2933
    %v2935 = vpop.xlane.xlu0 %2934
    %v2936 = vadd.f32 %v2935, %v126
    %s2937 = scalar_lea.vmem %s9, 6
    %2938 = vst.msk [vmem:[%s2937] sm:$0x3] %vm849, %v2936
    %s2939 = scalar_lea.vmem %s0, 8
    %v2940 = vld [vmem:[%s2939] sm:$0x3]
    %2942 = vset.pattern.permute.xlu0 0
    %2943 = vperm.xlu0 %2942, %v2940
    %v2944 = vpop.permute.xlu0 %2943
    %v2946 = vmul.f32 %v2944, %v138
    %v2947 = vmul.f32 %v2944, %v142
    %v2948 = vmul.f32 %v2944, %v146
    %v2949 = vmul.f32 %v2944, %v150
    %v2950 = vld [vmem:[#allocation3] sm:$0xff]
    %v2951 = vld [vmem:[#allocation3 + $0x8] sm:$0xff]
    %v2952 = vld [vmem:[#allocation3 + $0x10] sm:$0xff]
    %v2953 = vld [vmem:[#allocation3 + $0x18] sm:$0xff]
    %v2954 = vld [vmem:[#allocation3 + $0x20] sm:$0xff]
    %v2955 = vld [vmem:[#allocation3 + $0x28] sm:$0xff]
    %v2956 = vld [vmem:[#allocation3 + $0x30] sm:$0xff]
    %v2957 = vld [vmem:[#allocation3 + $0x38] sm:$0xff]
    %v2958 = vld [vmem:[#allocation3 + $0x40] sm:$0xff]
    %v2959 = vld [vmem:[#allocation3 + $0x48] sm:$0xff]
    %v2960 = vld [vmem:[#allocation3 + $0x50] sm:$0xff]
    %v2961 = vld [vmem:[#allocation3 + $0x58] sm:$0xff]
    %v2962 = vld [vmem:[#allocation3 + $0x60] sm:$0xff]
    %v2963 = vld [vmem:[#allocation3 + $0x68] sm:$0xff]
    %v2964 = vld [vmem:[#allocation3 + $0x70] sm:$0xff]
    %v2965 = vld [vmem:[#allocation3 + $0x78] sm:$0xff]
    %v2966 = vld [vmem:[#allocation3 + $0x80] sm:$0xff]
    %v2967 = vld [vmem:[#allocation3 + $0x88] sm:$0xff]
    %v2968 = vld [vmem:[#allocation3 + $0x90] sm:$0xff]
    %v2969 = vld [vmem:[#allocation3 + $0x98] sm:$0xff]
    %v2970 = vld [vmem:[#allocation3 + $0xa0] sm:$0xff]
    %v2971 = vld [vmem:[#allocation3 + $0xa8] sm:$0xff]
    %v2972 = vld [vmem:[#allocation3 + $0xb0] sm:$0xff]
    %v2973 = vld [vmem:[#allocation3 + $0xb8] sm:$0xff]
    %v2974 = vld [vmem:[#allocation3 + $0xc0] sm:$0xff]
    %v2975 = vld [vmem:[#allocation3 + $0xc8] sm:$0xff]
    %v2976 = vld [vmem:[#allocation3 + $0xd0] sm:$0xff]
    %v2977 = vld [vmem:[#allocation3 + $0xd8] sm:$0xff]
    %v2978 = vld [vmem:[#allocation3 + $0xe0] sm:$0xff]
    %v2979 = vld [vmem:[#allocation3 + $0xe8] sm:$0xff]
    %v2980 = vld [vmem:[#allocation3 + $0xf0] sm:$0xff]
    %v2981 = vld [vmem:[#allocation3 + $0xf8] sm:$0xff]
    %v2982 = vld [vmem:[#allocation3 + $0x100] sm:$0xff]
    %v2983 = vld [vmem:[#allocation3 + $0x108] sm:$0xff]
    %v2984 = vld [vmem:[#allocation3 + $0x110] sm:$0xff]
    %v2985 = vld [vmem:[#allocation3 + $0x118] sm:$0xff]
    %v2986 = vld [vmem:[#allocation3 + $0x120] sm:$0xff]
    %v2987 = vld [vmem:[#allocation3 + $0x128] sm:$0xff]
    %v2988 = vld [vmem:[#allocation3 + $0x130] sm:$0xff]
    %v2989 = vld [vmem:[#allocation3 + $0x138] sm:$0xff]
    %v2990 = vld [vmem:[#allocation3 + $0x140] sm:$0xff]
    %v2991 = vld [vmem:[#allocation3 + $0x148] sm:$0xff]
    %v2992 = vld [vmem:[#allocation3 + $0x150] sm:$0xff]
    %v2993 = vld [vmem:[#allocation3 + $0x158] sm:$0xff]
    %v2994 = vld [vmem:[#allocation3 + $0x160] sm:$0xff]
    %v2995 = vld [vmem:[#allocation3 + $0x168] sm:$0xff]
    %v2996 = vld [vmem:[#allocation3 + $0x170] sm:$0xff]
    %v2997 = vld [vmem:[#allocation3 + $0x178] sm:$0xff]
    %v2998 = vld [vmem:[#allocation3 + $0x180] sm:$0xff]
    %v2999 = vld [vmem:[#allocation3 + $0x188] sm:$0xff]
    %v3000 = vld [vmem:[#allocation3 + $0x190] sm:$0xff]
    %v3001 = vld [vmem:[#allocation3 + $0x198] sm:$0xff]
    %v3002 = vld [vmem:[#allocation3 + $0x1a0] sm:$0xff]
    %v3003 = vld [vmem:[#allocation3 + $0x1a8] sm:$0xff]
    %v3004 = vld [vmem:[#allocation3 + $0x1b0] sm:$0xff]
    %v3005 = vld [vmem:[#allocation3 + $0x1b8] sm:$0xff]
    %v3006 = vld [vmem:[#allocation3 + $0x1c0] sm:$0xff]
    %v3007 = vld [vmem:[#allocation3 + $0x1c8] sm:$0xff]
    %v3008 = vld [vmem:[#allocation3 + $0x1d0] sm:$0xff]
    %v3009 = vld [vmem:[#allocation3 + $0x1d8] sm:$0xff]
    %v3010 = vld [vmem:[#allocation3 + $0x1e0] sm:$0xff]
    %v3011 = vld [vmem:[#allocation3 + $0x1e8] sm:$0xff]
    %v3012 = vld [vmem:[#allocation3 + $0x1f0] sm:$0xff]
    %v3013 = vld [vmem:[#allocation3 + $0x1f8] sm:$0xff]
    %3014 = vmatprep.subr.mxu0 %v2951
    %3015 = vmatpush1.msra.mxu0 %v2950
    %3016 = vmatprep.subr.mxu0 %v2955
    %3017 = vmatpush1.msra.mxu0 %v2954
    %3018 = vmatprep.subr.mxu0 %v2959
    %3019 = vmatpush1.msra.mxu0 %v2958
    %3020 = vmatprep.subr.mxu0 %v2963
    %3021 = vmatpush1.msra.mxu0 %v2962
    %3022 = vmatprep.subr.mxu0 %v2967
    %3023 = vmatpush1.msra.mxu0 %v2966
    %3024 = vmatprep.subr.mxu0 %v2971
    %3025 = vmatpush1.msra.mxu0 %v2970
    %3026 = vmatprep.subr.mxu0 %v2975
    %3027 = vmatpush1.msra.mxu0 %v2974
    %3028 = vmatprep.subr.mxu0 %v2979
    %3029 = vmatpush1.msra.mxu0 %v2978
    %3030 = vmatprep.subr.mxu0 %v2983
    %3031 = vmatpush1.msra.mxu0 %v2982
    %3032 = vmatprep.subr.mxu0 %v2987
    %3033 = vmatpush1.msra.mxu0 %v2986
    %3034 = vmatprep.subr.mxu0 %v2991
    %3035 = vmatpush1.msra.mxu0 %v2990
    %3036 = vmatprep.subr.mxu0 %v2995
    %3037 = vmatpush1.msra.mxu0 %v2994
    %3038 = vmatprep.subr.mxu0 %v2999
    %3039 = vmatpush1.msra.mxu0 %v2998
    %3040 = vmatprep.subr.mxu0 %v3003
    %3041 = vmatpush1.msra.mxu0 %v3002
    %3042 = vmatprep.subr.mxu0 %v3007
    %3043 = vmatpush1.msra.mxu0 %v3006
    %3044 = vmatprep.subr.mxu0 %v3011
    %3045 = vmatpush1.msra.mxu0 %v3010
    %3046 = vmatprep.subr.mxu0 0.0
    %3047 = vmatpush1.msra.mxu0 0.0
    %3048 = vmatprep.subr.mxu0 0.0
    %3049 = vmatpush1.msra.mxu0 0.0
    %3050 = vmatprep.subr.mxu0 0.0
    %3051 = vmatpush1.msra.mxu0 0.0
    %3052 = vmatprep.subr.mxu0 0.0
    %3053 = vmatpush1.msra.mxu0 0.0
    %3054 = vmatprep.subr.mxu0 0.0
    %3055 = vmatpush1.msra.mxu0 0.0
    %3056 = vmatprep.subr.mxu0 0.0
    %3057 = vmatpush1.msra.mxu0 0.0
    %3058 = vmatprep.subr.mxu0 0.0
    %3059 = vmatpush1.msra.mxu0 0.0
    %3060 = vmatprep.subr.mxu0 0.0
    %3061 = vmatpush1.msra.mxu0 0.0
    %3062 = vmatprep.subr.mxu0 0.0
    %3063 = vmatpush1.msra.mxu0 0.0
    %3064 = vmatprep.subr.mxu0 0.0
    %3065 = vmatpush1.msra.mxu0 0.0
    %3066 = vmatprep.subr.mxu0 0.0
    %3067 = vmatpush1.msra.mxu0 0.0
    %3068 = vmatprep.subr.mxu0 0.0
    %3069 = vmatpush1.msra.mxu0 0.0
    %3070 = vmatprep.subr.mxu0 0.0
    %3071 = vmatpush1.msra.mxu0 0.0
    %3072 = vmatprep.subr.mxu0 0.0
    %3073 = vmatpush1.msra.mxu0 0.0
    %3074 = vmatprep.subr.mxu0 0.0
    %3075 = vmatpush1.msra.mxu0 0.0
    %3076 = vmatprep.subr.mxu0 0.0
    %3077 = vmatpush1.msra.mxu0 0.0
    %3078 = vmatprep.mubr.f32.mxu0 0.0
    %3079 = vmatmul.mubr.f32.gmra.mrb[0].mxu0 %v2491
    %v3080 = vpop.f32.mrb[0].mxu0
    %v3081 = vadd.f32 0.0, %v3080
    %v3082 = vpop.f32.mrb[0].mxu0
    %v3083 = vadd.f32 0.0, %v3082
    %3084 = vdwg.mxu0
    %3085 = vmatprep.subr.mxu0 %v2953
    %3086 = vmatpush1.msra.mxu0 %v2952
    %3087 = vmatprep.subr.mxu0 %v2957
    %3088 = vmatpush1.msra.mxu0 %v2956
    %3089 = vmatprep.subr.mxu0 %v2961
    %3090 = vmatpush1.msra.mxu0 %v2960
    %3091 = vmatprep.subr.mxu0 %v2965
    %3092 = vmatpush1.msra.mxu0 %v2964
    %3093 = vmatprep.subr.mxu0 %v2969
    %3094 = vmatpush1.msra.mxu0 %v2968
    %3095 = vmatprep.subr.mxu0 %v2973
    %3096 = vmatpush1.msra.mxu0 %v2972
    %3097 = vmatprep.subr.mxu0 %v2977
    %3098 = vmatpush1.msra.mxu0 %v2976
    %3099 = vmatprep.subr.mxu0 %v2981
    %3100 = vmatpush1.msra.mxu0 %v2980
    %3101 = vmatprep.subr.mxu0 %v2985
    %3102 = vmatpush1.msra.mxu0 %v2984
    %3103 = vmatprep.subr.mxu0 %v2989
    %3104 = vmatpush1.msra.mxu0 %v2988
    %3105 = vmatprep.subr.mxu0 %v2993
    %3106 = vmatpush1.msra.mxu0 %v2992
    %3107 = vmatprep.subr.mxu0 %v2997
    %3108 = vmatpush1.msra.mxu0 %v2996
    %3109 = vmatprep.subr.mxu0 %v3001
    %3110 = vmatpush1.msra.mxu0 %v3000
    %3111 = vmatprep.subr.mxu0 %v3005
    %3112 = vmatpush1.msra.mxu0 %v3004
    %3113 = vmatprep.subr.mxu0 %v3009
    %3114 = vmatpush1.msra.mxu0 %v3008
    %3115 = vmatprep.subr.mxu0 %v3013
    %3116 = vmatpush1.msra.mxu0 %v3012
    %3117 = vmatprep.subr.mxu0 0.0
    %3118 = vmatpush1.msra.mxu0 0.0
    %3119 = vmatprep.subr.mxu0 0.0
    %3120 = vmatpush1.msra.mxu0 0.0
    %3121 = vmatprep.subr.mxu0 0.0
    %3122 = vmatpush1.msra.mxu0 0.0
    %3123 = vmatprep.subr.mxu0 0.0
    %3124 = vmatpush1.msra.mxu0 0.0
    %3125 = vmatprep.subr.mxu0 0.0
    %3126 = vmatpush1.msra.mxu0 0.0
    %3127 = vmatprep.subr.mxu0 0.0
    %3128 = vmatpush1.msra.mxu0 0.0
    %3129 = vmatprep.subr.mxu0 0.0
    %3130 = vmatpush1.msra.mxu0 0.0
    %3131 = vmatprep.subr.mxu0 0.0
    %3132 = vmatpush1.msra.mxu0 0.0
    %3133 = vmatprep.subr.mxu0 0.0
    %3134 = vmatpush1.msra.mxu0 0.0
    %3135 = vmatprep.subr.mxu0 0.0
    %3136 = vmatpush1.msra.mxu0 0.0
    %3137 = vmatprep.subr.mxu0 0.0
    %3138 = vmatpush1.msra.mxu0 0.0
    %3139 = vmatprep.subr.mxu0 0.0
    %3140 = vmatpush1.msra.mxu0 0.0
    %3141 = vmatprep.subr.mxu0 0.0
    %3142 = vmatpush1.msra.mxu0 0.0
    %3143 = vmatprep.subr.mxu0 0.0
    %3144 = vmatpush1.msra.mxu0 0.0
    %3145 = vmatprep.subr.mxu0 0.0
    %3146 = vmatpush1.msra.mxu0 0.0
    %3147 = vmatprep.subr.mxu0 0.0
    %3148 = vmatpush1.msra.mxu0 0.0
    %3149 = vmatprep.mubr.f32.mxu0 0.0
    %3150 = vmatmul.mubr.f32.gmra.mrb[0].mxu0 %v2491
    %v3151 = vpop.f32.mrb[0].mxu0
    %v3152 = vadd.f32 0.0, %v3151
    %v3153 = vpop.f32.mrb[0].mxu0
    %v3154 = vadd.f32 0.0, %v3153
    %3155 = vdwg.mxu0
    %v3156 = vadd.f32 %v2946, %v3081
    %v3157 = vadd.f32 %v2947, %v3083
    %v3158 = vadd.f32 %v2948, %v3152
    %v3159 = vadd.f32 %v2949, %v3154
    %v3160 = vadd.f32 %v3156, %v81
    %v3161 = vadd.f32 %v3157, %v85
    %v3162 = vadd.f32 %v3158, %v89
    %v3163 = vadd.f32 %v3159, %v93
    %v3164 = vxor.u32 %v3160, 2147483648
    %v3165 = vmul.f32 %v3164, 1.442695
    %v3166 = vpow.pop %v3165
    %v3167 = vadd.f32 %v3166, 1.0
    %v3168 = vrcp.pop %v3167
    %v3169 = vmul.f32 1.0, %v3168
    %v3170 = vxor.u32 %v3161, 2147483648
    %v3171 = vmul.f32 %v3170, 1.442695
    %v3172 = vpow.pop %v3171
    %v3173 = vadd.f32 %v3172, 1.0
    %v3174 = vrcp.pop %v3173
    %v3175 = vmul.f32 1.0, %v3174
    %v3176 = vtanh.pop %v3162
    %v3177 = vxor.u32 %v3163, 2147483648
    %v3178 = vmul.f32 %v3177, 1.442695
    %v3179 = vpow.pop %v3178
    %v3180 = vadd.f32 %v3179, 1.0
    %v3181 = vrcp.pop %v3180
    %v3182 = vmul.f32 1.0, %v3181
    %v3183 = vmul.f32 %v3175, %v2489
    %v3184 = vmul.f32 %v3169, %v3176
    %v3185 = vadd.f32 %v3183, %v3184
    %v3186 = vtanh.pop %v3185
    %v3187 = vmul.f32 %v3182, %v3186
    %v3188 = vld [vmem:[#allocation5] sm:$0xff]
    %v3189 = vld [vmem:[#allocation5 + $0x8] sm:$0xff]
    %v3190 = vld [vmem:[#allocation5 + $0x10] sm:$0xff]
    %v3191 = vld [vmem:[#allocation5 + $0x18] sm:$0xff]
    %v3192 = vld [vmem:[#allocation5 + $0x20] sm:$0xff]
    %v3193 = vld [vmem:[#allocation5 + $0x28] sm:$0xff]
    %v3194 = vld [vmem:[#allocation5 + $0x30] sm:$0xff]
    %v3195 = vld [vmem:[#allocation5 + $0x38] sm:$0xff]
    %v3196 = vld [vmem:[#allocation5 + $0x40] sm:$0xff]
    %v3197 = vld [vmem:[#allocation5 + $0x48] sm:$0xff]
    %v3198 = vld [vmem:[#allocation5 + $0x50] sm:$0xff]
    %v3199 = vld [vmem:[#allocation5 + $0x58] sm:$0xff]
    %v3200 = vld [vmem:[#allocation5 + $0x60] sm:$0xff]
    %v3201 = vld [vmem:[#allocation5 + $0x68] sm:$0xff]
    %v3202 = vld [vmem:[#allocation5 + $0x70] sm:$0xff]
    %v3203 = vld [vmem:[#allocation5 + $0x78] sm:$0xff]
    %v3204 = vld [vmem:[#allocation5 + $0x80] sm:$0xff]
    %v3205 = vld [vmem:[#allocation5 + $0x88] sm:$0xff]
    %v3206 = vld [vmem:[#allocation5 + $0x90] sm:$0xff]
    %v3207 = vld [vmem:[#allocation5 + $0x98] sm:$0xff]
    %v3208 = vld [vmem:[#allocation5 + $0xa0] sm:$0xff]
    %v3209 = vld [vmem:[#allocation5 + $0xa8] sm:$0xff]
    %v3210 = vld [vmem:[#allocation5 + $0xb0] sm:$0xff]
    %v3211 = vld [vmem:[#allocation5 + $0xb8] sm:$0xff]
    %v3212 = vld [vmem:[#allocation5 + $0xc0] sm:$0xff]
    %v3213 = vld [vmem:[#allocation5 + $0xc8] sm:$0xff]
    %v3214 = vld [vmem:[#allocation5 + $0xd0] sm:$0xff]
    %v3215 = vld [vmem:[#allocation5 + $0xd8] sm:$0xff]
    %v3216 = vld [vmem:[#allocation5 + $0xe0] sm:$0xff]
    %v3217 = vld [vmem:[#allocation5 + $0xe8] sm:$0xff]
    %v3218 = vld [vmem:[#allocation5 + $0xf0] sm:$0xff]
    %v3219 = vld [vmem:[#allocation5 + $0xf8] sm:$0xff]
    %v3220 = vld [vmem:[#allocation5 + $0x100] sm:$0xff]
    %v3221 = vld [vmem:[#allocation5 + $0x108] sm:$0xff]
    %v3222 = vld [vmem:[#allocation5 + $0x110] sm:$0xff]
    %v3223 = vld [vmem:[#allocation5 + $0x118] sm:$0xff]
    %v3224 = vld [vmem:[#allocation5 + $0x120] sm:$0xff]
    %v3225 = vld [vmem:[#allocation5 + $0x128] sm:$0xff]
    %v3226 = vld [vmem:[#allocation5 + $0x130] sm:$0xff]
    %v3227 = vld [vmem:[#allocation5 + $0x138] sm:$0xff]
    %v3228 = vld [vmem:[#allocation5 + $0x140] sm:$0xff]
    %v3229 = vld [vmem:[#allocation5 + $0x148] sm:$0xff]
    %v3230 = vld [vmem:[#allocation5 + $0x150] sm:$0xff]
    %v3231 = vld [vmem:[#allocation5 + $0x158] sm:$0xff]
    %v3232 = vld [vmem:[#allocation5 + $0x160] sm:$0xff]
    %v3233 = vld [vmem:[#allocation5 + $0x168] sm:$0xff]
    %v3234 = vld [vmem:[#allocation5 + $0x170] sm:$0xff]
    %v3235 = vld [vmem:[#allocation5 + $0x178] sm:$0xff]
    %v3236 = vld [vmem:[#allocation5 + $0x180] sm:$0xff]
    %v3237 = vld [vmem:[#allocation5 + $0x188] sm:$0xff]
    %v3238 = vld [vmem:[#allocation5 + $0x190] sm:$0xff]
    %v3239 = vld [vmem:[#allocation5 + $0x198] sm:$0xff]
    %v3240 = vld [vmem:[#allocation5 + $0x1a0] sm:$0xff]
    %v3241 = vld [vmem:[#allocation5 + $0x1a8] sm:$0xff]
    %v3242 = vld [vmem:[#allocation5 + $0x1b0] sm:$0xff]
    %v3243 = vld [vmem:[#allocation5 + $0x1b8] sm:$0xff]
    %v3244 = vld [vmem:[#allocation5 + $0x1c0] sm:$0xff]
    %v3245 = vld [vmem:[#allocation5 + $0x1c8] sm:$0xff]
    %v3246 = vld [vmem:[#allocation5 + $0x1d0] sm:$0xff]
    %v3247 = vld [vmem:[#allocation5 + $0x1d8] sm:$0xff]
    %v3248 = vld [vmem:[#allocation5 + $0x1e0] sm:$0xff]
    %v3249 = vld [vmem:[#allocation5 + $0x1e8] sm:$0xff]
    %v3250 = vld [vmem:[#allocation5 + $0x1f0] sm:$0xff]
    %v3251 = vld [vmem:[#allocation5 + $0x1f8] sm:$0xff]
    %v3252 = vld [vmem:[#allocation7] sm:$0xff]
    %v3253 = vld [vmem:[#allocation7 + $0x8] sm:$0xff]
    %v3254 = vld [vmem:[#allocation7 + $0x10] sm:$0xff]
    %v3255 = vld [vmem:[#allocation7 + $0x18] sm:$0xff]
    %v3256 = vld [vmem:[#allocation7 + $0x20] sm:$0xff]
    %v3257 = vld [vmem:[#allocation7 + $0x28] sm:$0xff]
    %v3258 = vld [vmem:[#allocation7 + $0x30] sm:$0xff]
    %v3259 = vld [vmem:[#allocation7 + $0x38] sm:$0xff]
    %v3260 = vld [vmem:[#allocation7 + $0x40] sm:$0xff]
    %v3261 = vld [vmem:[#allocation7 + $0x48] sm:$0xff]
    %v3262 = vld [vmem:[#allocation7 + $0x50] sm:$0xff]
    %v3263 = vld [vmem:[#allocation7 + $0x58] sm:$0xff]
    %v3264 = vld [vmem:[#allocation7 + $0x60] sm:$0xff]
    %v3265 = vld [vmem:[#allocation7 + $0x68] sm:$0xff]
    %v3266 = vld [vmem:[#allocation7 + $0x70] sm:$0xff]
    %v3267 = vld [vmem:[#allocation7 + $0x78] sm:$0xff]
    %v3268 = vld [vmem:[#allocation7 + $0x80] sm:$0xff]
    %v3269 = vld [vmem:[#allocation7 + $0x88] sm:$0xff]
    %v3270 = vld [vmem:[#allocation7 + $0x90] sm:$0xff]
    %v3271 = vld [vmem:[#allocation7 + $0x98] sm:$0xff]
    %v3272 = vld [vmem:[#allocation7 + $0xa0] sm:$0xff]
    %v3273 = vld [vmem:[#allocation7 + $0xa8] sm:$0xff]
    %v3274 = vld [vmem:[#allocation7 + $0xb0] sm:$0xff]
    %v3275 = vld [vmem:[#allocation7 + $0xb8] sm:$0xff]
    %v3276 = vld [vmem:[#allocation7 + $0xc0] sm:$0xff]
    %v3277 = vld [vmem:[#allocation7 + $0xc8] sm:$0xff]
    %v3278 = vld [vmem:[#allocation7 + $0xd0] sm:$0xff]
    %v3279 = vld [vmem:[#allocation7 + $0xd8] sm:$0xff]
    %v3280 = vld [vmem:[#allocation7 + $0xe0] sm:$0xff]
    %v3281 = vld [vmem:[#allocation7 + $0xe8] sm:$0xff]
    %v3282 = vld [vmem:[#allocation7 + $0xf0] sm:$0xff]
    %v3283 = vld [vmem:[#allocation7 + $0xf8] sm:$0xff]
    %v3284 = vld [vmem:[#allocation7 + $0x100] sm:$0xff]
    %v3285 = vld [vmem:[#allocation7 + $0x108] sm:$0xff]
    %v3286 = vld [vmem:[#allocation7 + $0x110] sm:$0xff]
    %v3287 = vld [vmem:[#allocation7 + $0x118] sm:$0xff]
    %v3288 = vld [vmem:[#allocation7 + $0x120] sm:$0xff]
    %v3289 = vld [vmem:[#allocation7 + $0x128] sm:$0xff]
    %v3290 = vld [vmem:[#allocation7 + $0x130] sm:$0xff]
    %v3291 = vld [vmem:[#allocation7 + $0x138] sm:$0xff]
    %v3292 = vld [vmem:[#allocation7 + $0x140] sm:$0xff]
    %v3293 = vld [vmem:[#allocation7 + $0x148] sm:$0xff]
    %v3294 = vld [vmem:[#allocation7 + $0x150] sm:$0xff]
    %v3295 = vld [vmem:[#allocation7 + $0x158] sm:$0xff]
    %v3296 = vld [vmem:[#allocation7 + $0x160] sm:$0xff]
    %v3297 = vld [vmem:[#allocation7 + $0x168] sm:$0xff]
    %v3298 = vld [vmem:[#allocation7 + $0x170] sm:$0xff]
    %v3299 = vld [vmem:[#allocation7 + $0x178] sm:$0xff]
    %v3300 = vld [vmem:[#allocation7 + $0x180] sm:$0xff]
    %v3301 = vld [vmem:[#allocation7 + $0x188] sm:$0xff]
    %v3302 = vld [vmem:[#allocation7 + $0x190] sm:$0xff]
    %v3303 = vld [vmem:[#allocation7 + $0x198] sm:$0xff]
    %v3304 = vld [vmem:[#allocation7 + $0x1a0] sm:$0xff]
    %v3305 = vld [vmem:[#allocation7 + $0x1a8] sm:$0xff]
    %v3306 = vld [vmem:[#allocation7 + $0x1b0] sm:$0xff]
    %v3307 = vld [vmem:[#allocation7 + $0x1b8] sm:$0xff]
    %v3308 = vld [vmem:[#allocation7 + $0x1c0] sm:$0xff]
    %v3309 = vld [vmem:[#allocation7 + $0x1c8] sm:$0xff]
    %v3310 = vld [vmem:[#allocation7 + $0x1d0] sm:$0xff]
    %v3311 = vld [vmem:[#allocation7 + $0x1d8] sm:$0xff]
    %v3312 = vld [vmem:[#allocation7 + $0x1e0] sm:$0xff]
    %v3313 = vld [vmem:[#allocation7 + $0x1e8] sm:$0xff]
    %v3314 = vld [vmem:[#allocation7 + $0x1f0] sm:$0xff]
    %v3315 = vld [vmem:[#allocation7 + $0x1f8] sm:$0xff]
    %3316 = vmatprep.subr.mxu0 %v3253
    %3317 = vmatpush1.msra.mxu0 %v3252
    %3318 = vmatprep.subr.mxu0 %v3257
    %3319 = vmatpush1.msra.mxu0 %v3256
    %3320 = vmatprep.subr.mxu0 %v3261
    %3321 = vmatpush1.msra.mxu0 %v3260
    %3322 = vmatprep.subr.mxu0 %v3265
    %3323 = vmatpush1.msra.mxu0 %v3264
    %3324 = vmatprep.subr.mxu0 %v3269
    %3325 = vmatpush1.msra.mxu0 %v3268
    %3326 = vmatprep.subr.mxu0 %v3273
    %3327 = vmatpush1.msra.mxu0 %v3272
    %3328 = vmatprep.subr.mxu0 %v3277
    %3329 = vmatpush1.msra.mxu0 %v3276
    %3330 = vmatprep.subr.mxu0 %v3281
    %3331 = vmatpush1.msra.mxu0 %v3280
    %3332 = vmatprep.subr.mxu0 %v3285
    %3333 = vmatpush1.msra.mxu0 %v3284
    %3334 = vmatprep.subr.mxu0 %v3289
    %3335 = vmatpush1.msra.mxu0 %v3288
    %3336 = vmatprep.subr.mxu0 %v3293
    %3337 = vmatpush1.msra.mxu0 %v3292
    %3338 = vmatprep.subr.mxu0 %v3297
    %3339 = vmatpush1.msra.mxu0 %v3296
    %3340 = vmatprep.subr.mxu0 %v3301
    %3341 = vmatpush1.msra.mxu0 %v3300
    %3342 = vmatprep.subr.mxu0 %v3305
    %3343 = vmatpush1.msra.mxu0 %v3304
    %3344 = vmatprep.subr.mxu0 %v3309
    %3345 = vmatpush1.msra.mxu0 %v3308
    %3346 = vmatprep.subr.mxu0 %v3313
    %3347 = vmatpush1.msra.mxu0 %v3312
    %3348 = vmatprep.subr.mxu0 0.0
    %3349 = vmatpush1.msra.mxu0 0.0
    %3350 = vmatprep.subr.mxu0 0.0
    %3351 = vmatpush1.msra.mxu0 0.0
    %3352 = vmatprep.subr.mxu0 0.0
    %3353 = vmatpush1.msra.mxu0 0.0
    %3354 = vmatprep.subr.mxu0 0.0
    %3355 = vmatpush1.msra.mxu0 0.0
    %3356 = vmatprep.subr.mxu0 0.0
    %3357 = vmatpush1.msra.mxu0 0.0
    %3358 = vmatprep.subr.mxu0 0.0
    %3359 = vmatpush1.msra.mxu0 0.0
    %3360 = vmatprep.subr.mxu0 0.0
    %3361 = vmatpush1.msra.mxu0 0.0
    %3362 = vmatprep.subr.mxu0 0.0
    %3363 = vmatpush1.msra.mxu0 0.0
    %3364 = vmatprep.subr.mxu0 0.0
    %3365 = vmatpush1.msra.mxu0 0.0
    %3366 = vmatprep.subr.mxu0 0.0
    %3367 = vmatpush1.msra.mxu0 0.0
    %3368 = vmatprep.subr.mxu0 0.0
    %3369 = vmatpush1.msra.mxu0 0.0
    %3370 = vmatprep.subr.mxu0 0.0
    %3371 = vmatpush1.msra.mxu0 0.0
    %3372 = vmatprep.subr.mxu0 0.0
    %3373 = vmatpush1.msra.mxu0 0.0
    %3374 = vmatprep.subr.mxu0 0.0
    %3375 = vmatpush1.msra.mxu0 0.0
    %3376 = vmatprep.subr.mxu0 0.0
    %3377 = vmatpush1.msra.mxu0 0.0
    %3378 = vmatprep.subr.mxu0 0.0
    %3379 = vmatpush1.msra.mxu0 0.0
    %3380 = vmatprep.mubr.f32.mxu0 0.0
    %3381 = vmatmul.mubr.f32.gmra.mrb[0].mxu0 %v2931
    %v3382 = vpop.f32.mrb[0].mxu0
    %v3383 = vadd.f32 0.0, %v3382
    %v3384 = vpop.f32.mrb[0].mxu0
    %v3385 = vadd.f32 0.0, %v3384
    %3386 = vdwg.mxu0
    %3387 = vmatprep.subr.mxu0 %v3255
    %3388 = vmatpush1.msra.mxu0 %v3254
    %3389 = vmatprep.subr.mxu0 %v3259
    %3390 = vmatpush1.msra.mxu0 %v3258
    %3391 = vmatprep.subr.mxu0 %v3263
    %3392 = vmatpush1.msra.mxu0 %v3262
    %3393 = vmatprep.subr.mxu0 %v3267
    %3394 = vmatpush1.msra.mxu0 %v3266
    %3395 = vmatprep.subr.mxu0 %v3271
    %3396 = vmatpush1.msra.mxu0 %v3270
    %3397 = vmatprep.subr.mxu0 %v3275
    %3398 = vmatpush1.msra.mxu0 %v3274
    %3399 = vmatprep.subr.mxu0 %v3279
    %3400 = vmatpush1.msra.mxu0 %v3278
    %3401 = vmatprep.subr.mxu0 %v3283
    %3402 = vmatpush1.msra.mxu0 %v3282
    %3403 = vmatprep.subr.mxu0 %v3287
    %3404 = vmatpush1.msra.mxu0 %v3286
    %3405 = vmatprep.subr.mxu0 %v3291
    %3406 = vmatpush1.msra.mxu0 %v3290
    %3407 = vmatprep.subr.mxu0 %v3295
    %3408 = vmatpush1.msra.mxu0 %v3294
    %3409 = vmatprep.subr.mxu0 %v3299
    %3410 = vmatpush1.msra.mxu0 %v3298
    %3411 = vmatprep.subr.mxu0 %v3303
    %3412 = vmatpush1.msra.mxu0 %v3302
    %3413 = vmatprep.subr.mxu0 %v3307
    %3414 = vmatpush1.msra.mxu0 %v3306
    %3415 = vmatprep.subr.mxu0 %v3311
    %3416 = vmatpush1.msra.mxu0 %v3310
    %3417 = vmatprep.subr.mxu0 %v3315
    %3418 = vmatpush1.msra.mxu0 %v3314
    %3419 = vmatprep.subr.mxu0 0.0
    %3420 = vmatpush1.msra.mxu0 0.0
    %3421 = vmatprep.subr.mxu0 0.0
    %3422 = vmatpush1.msra.mxu0 0.0
    %3423 = vmatprep.subr.mxu0 0.0
    %3424 = vmatpush1.msra.mxu0 0.0
    %3425 = vmatprep.subr.mxu0 0.0
    %3426 = vmatpush1.msra.mxu0 0.0
    %3427 = vmatprep.subr.mxu0 0.0
    %3428 = vmatpush1.msra.mxu0 0.0
    %3429 = vmatprep.subr.mxu0 0.0
    %3430 = vmatpush1.msra.mxu0 0.0
    %3431 = vmatprep.subr.mxu0 0.0
    %3432 = vmatpush1.msra.mxu0 0.0
    %3433 = vmatprep.subr.mxu0 0.0
    %3434 = vmatpush1.msra.mxu0 0.0
    %3435 = vmatprep.subr.mxu0 0.0
    %3436 = vmatpush1.msra.mxu0 0.0
    %3437 = vmatprep.subr.mxu0 0.0
    %3438 = vmatpush1.msra.mxu0 0.0
    %3439 = vmatprep.subr.mxu0 0.0
    %3440 = vmatpush1.msra.mxu0 0.0
    %3441 = vmatprep.subr.mxu0 0.0
    %3442 = vmatpush1.msra.mxu0 0.0
    %3443 = vmatprep.subr.mxu0 0.0
    %3444 = vmatpush1.msra.mxu0 0.0
    %3445 = vmatprep.subr.mxu0 0.0
    %3446 = vmatpush1.msra.mxu0 0.0
    %3447 = vmatprep.subr.mxu0 0.0
    %3448 = vmatpush1.msra.mxu0 0.0
    %3449 = vmatprep.subr.mxu0 0.0
    %3450 = vmatpush1.msra.mxu0 0.0
    %3451 = vmatprep.mubr.f32.mxu0 0.0
    %3452 = vmatmul.mubr.f32.gmra.mrb[0].mxu0 %v2931
    %v3453 = vpop.f32.mrb[0].mxu0
    %v3454 = vadd.f32 0.0, %v3453
    %v3455 = vpop.f32.mrb[0].mxu0
    %v3456 = vadd.f32 0.0, %v3455
    %3457 = vdwg.mxu0
    %3458 = vmatprep.subr.mxu0 %v3189
    %3459 = vmatpush1.msra.mxu0 %v3188
    %3460 = vmatprep.subr.mxu0 %v3193
    %3461 = vmatpush1.msra.mxu0 %v3192
    %3462 = vmatprep.subr.mxu0 %v3197
    %3463 = vmatpush1.msra.mxu0 %v3196
    %3464 = vmatprep.subr.mxu0 %v3201
    %3465 = vmatpush1.msra.mxu0 %v3200
    %3466 = vmatprep.subr.mxu0 %v3205
    %3467 = vmatpush1.msra.mxu0 %v3204
    %3468 = vmatprep.subr.mxu0 %v3209
    %3469 = vmatpush1.msra.mxu0 %v3208
    %3470 = vmatprep.subr.mxu0 %v3213
    %3471 = vmatpush1.msra.mxu0 %v3212
    %3472 = vmatprep.subr.mxu0 %v3217
    %3473 = vmatpush1.msra.mxu0 %v3216
    %3474 = vmatprep.subr.mxu0 %v3221
    %3475 = vmatpush1.msra.mxu0 %v3220
    %3476 = vmatprep.subr.mxu0 %v3225
    %3477 = vmatpush1.msra.mxu0 %v3224
    %3478 = vmatprep.subr.mxu0 %v3229
    %3479 = vmatpush1.msra.mxu0 %v3228
    %3480 = vmatprep.subr.mxu0 %v3233
    %3481 = vmatpush1.msra.mxu0 %v3232
    %3482 = vmatprep.subr.mxu0 %v3237
    %3483 = vmatpush1.msra.mxu0 %v3236
    %3484 = vmatprep.subr.mxu0 %v3241
    %3485 = vmatpush1.msra.mxu0 %v3240
    %3486 = vmatprep.subr.mxu0 %v3245
    %3487 = vmatpush1.msra.mxu0 %v3244
    %3488 = vmatprep.subr.mxu0 %v3249
    %3489 = vmatpush1.msra.mxu0 %v3248
    %3490 = vmatprep.subr.mxu0 0.0
    %3491 = vmatpush1.msra.mxu0 0.0
    %3492 = vmatprep.subr.mxu0 0.0
    %3493 = vmatpush1.msra.mxu0 0.0
    %3494 = vmatprep.subr.mxu0 0.0
    %3495 = vmatpush1.msra.mxu0 0.0
    %3496 = vmatprep.subr.mxu0 0.0
    %3497 = vmatpush1.msra.mxu0 0.0
    %3498 = vmatprep.subr.mxu0 0.0
    %3499 = vmatpush1.msra.mxu0 0.0
    %3500 = vmatprep.subr.mxu0 0.0
    %3501 = vmatpush1.msra.mxu0 0.0
    %3502 = vmatprep.subr.mxu0 0.0
    %3503 = vmatpush1.msra.mxu0 0.0
    %3504 = vmatprep.subr.mxu0 0.0
    %3505 = vmatpush1.msra.mxu0 0.0
    %3506 = vmatprep.subr.mxu0 0.0
    %3507 = vmatpush1.msra.mxu0 0.0
    %3508 = vmatprep.subr.mxu0 0.0
    %3509 = vmatpush1.msra.mxu0 0.0
    %3510 = vmatprep.subr.mxu0 0.0
    %3511 = vmatpush1.msra.mxu0 0.0
    %3512 = vmatprep.subr.mxu0 0.0
    %3513 = vmatpush1.msra.mxu0 0.0
    %3514 = vmatprep.subr.mxu0 0.0
    %3515 = vmatpush1.msra.mxu0 0.0
    %3516 = vmatprep.subr.mxu0 0.0
    %3517 = vmatpush1.msra.mxu0 0.0
    %3518 = vmatprep.subr.mxu0 0.0
    %3519 = vmatpush1.msra.mxu0 0.0
    %3520 = vmatprep.subr.mxu0 0.0
    %3521 = vmatpush1.msra.mxu0 0.0
    %3522 = vmatprep.mubr.f32.mxu0 0.0
    %3523 = vmatmul.mubr.f32.gmra.mrb[0].mxu0 %v3187
    %v3524 = vpop.f32.mrb[0].mxu0
    %v3525 = vadd.f32 %v3383, %v3524
    %v3526 = vpop.f32.mrb[0].mxu0
    %v3527 = vadd.f32 %v3385, %v3526
    %3528 = vdwg.mxu0
    %3529 = vmatprep.subr.mxu0 %v3191
    %3530 = vmatpush1.msra.mxu0 %v3190
    %3531 = vmatprep.subr.mxu0 %v3195
    %3532 = vmatpush1.msra.mxu0 %v3194
    %3533 = vmatprep.subr.mxu0 %v3199
    %3534 = vmatpush1.msra.mxu0 %v3198
    %3535 = vmatprep.subr.mxu0 %v3203
    %3536 = vmatpush1.msra.mxu0 %v3202
    %3537 = vmatprep.subr.mxu0 %v3207
    %3538 = vmatpush1.msra.mxu0 %v3206
    %3539 = vmatprep.subr.mxu0 %v3211
    %3540 = vmatpush1.msra.mxu0 %v3210
    %3541 = vmatprep.subr.mxu0 %v3215
    %3542 = vmatpush1.msra.mxu0 %v3214
    %3543 = vmatprep.subr.mxu0 %v3219
    %3544 = vmatpush1.msra.mxu0 %v3218
    %3545 = vmatprep.subr.mxu0 %v3223
    %3546 = vmatpush1.msra.mxu0 %v3222
    %3547 = vmatprep.subr.mxu0 %v3227
    %3548 = vmatpush1.msra.mxu0 %v3226
    %3549 = vmatprep.subr.mxu0 %v3231
    %3550 = vmatpush1.msra.mxu0 %v3230
    %3551 = vmatprep.subr.mxu0 %v3235
    %3552 = vmatpush1.msra.mxu0 %v3234
    %3553 = vmatprep.subr.mxu0 %v3239
    %3554 = vmatpush1.msra.mxu0 %v3238
    %3555 = vmatprep.subr.mxu0 %v3243
    %3556 = vmatpush1.msra.mxu0 %v3242
    %3557 = vmatprep.subr.mxu0 %v3247
    %3558 = vmatpush1.msra.mxu0 %v3246
    %3559 = vmatprep.subr.mxu0 %v3251
    %3560 = vmatpush1.msra.mxu0 %v3250
    %3561 = vmatprep.subr.mxu0 0.0
    %3562 = vmatpush1.msra.mxu0 0.0
    %3563 = vmatprep.subr.mxu0 0.0
    %3564 = vmatpush1.msra.mxu0 0.0
    %3565 = vmatprep.subr.mxu0 0.0
    %3566 = vmatpush1.msra.mxu0 0.0
    %3567 = vmatprep.subr.mxu0 0.0
    %3568 = vmatpush1.msra.mxu0 0.0
    %3569 = vmatprep.subr.mxu0 0.0
    %3570 = vmatpush1.msra.mxu0 0.0
    %3571 = vmatprep.subr.mxu0 0.0
    %3572 = vmatpush1.msra.mxu0 0.0
    %3573 = vmatprep.subr.mxu0 0.0
    %3574 = vmatpush1.msra.mxu0 0.0
    %3575 = vmatprep.subr.mxu0 0.0
    %3576 = vmatpush1.msra.mxu0 0.0
    %3577 = vmatprep.subr.mxu0 0.0
    %3578 = vmatpush1.msra.mxu0 0.0
    %3579 = vmatprep.subr.mxu0 0.0
    %3580 = vmatpush1.msra.mxu0 0.0
    %3581 = vmatprep.subr.mxu0 0.0
    %3582 = vmatpush1.msra.mxu0 0.0
    %3583 = vmatprep.subr.mxu0 0.0
    %3584 = vmatpush1.msra.mxu0 0.0
    %3585 = vmatprep.subr.mxu0 0.0
    %3586 = vmatpush1.msra.mxu0 0.0
    %3587 = vmatprep.subr.mxu0 0.0
    %3588 = vmatpush1.msra.mxu0 0.0
    %3589 = vmatprep.subr.mxu0 0.0
    %3590 = vmatpush1.msra.mxu0 0.0
    %3591 = vmatprep.subr.mxu0 0.0
    %3592 = vmatpush1.msra.mxu0 0.0
    %3593 = vmatprep.mubr.f32.mxu0 0.0
    %3594 = vmatmul.mubr.f32.gmra.mrb[0].mxu0 %v3187
    %v3595 = vpop.f32.mrb[0].mxu0
    %v3596 = vadd.f32 %v3454, %v3595
    %v3597 = vpop.f32.mrb[0].mxu0
    %v3598 = vadd.f32 %v3456, %v3597
    %3599 = vdwg.mxu0
    %v3600 = vadd.f32 %v3525, %v103
    %v3601 = vadd.f32 %v3527, %v107
    %v3602 = vadd.f32 %v3596, %v111
    %v3603 = vadd.f32 %v3598, %v115
    %v3604 = vxor.u32 %v3600, 2147483648
    %v3605 = vmul.f32 %v3604, 1.442695
    %v3606 = vpow.pop %v3605
    %v3607 = vadd.f32 %v3606, 1.0
    %v3608 = vrcp.pop %v3607
    %v3609 = vmul.f32 1.0, %v3608
    %v3610 = vxor.u32 %v3601, 2147483648
    %v3611 = vmul.f32 %v3610, 1.442695
    %v3612 = vpow.pop %v3611
    %v3613 = vadd.f32 %v3612, 1.0
    %v3614 = vrcp.pop %v3613
    %v3615 = vmul.f32 1.0, %v3614
    %v3616 = vtanh.pop %v3602
    %v3617 = vxor.u32 %v3603, 2147483648
    %v3618 = vmul.f32 %v3617, 1.442695
    %v3619 = vpow.pop %v3618
    %v3620 = vadd.f32 %v3619, 1.0
    %v3621 = vrcp.pop %v3620
    %v3622 = vmul.f32 1.0, %v3621
    %v3623 = vmul.f32 %v3615, %v2929
    %v3624 = vmul.f32 %v3609, %v3616
    %v3625 = vadd.f32 %v3623, %v3624
    %v3626 = vtanh.pop %v3625
    %v3627 = vmul.f32 %v3622, %v3626
    %v3628 = vmul.f32 %v3627, %v841
    %v3629 = vsel %vm844, %v3628, 0.0
    %3630 = vadd.xlane.f32.xlu0 %v3629
    %v3631 = vpop.xlane.xlu0 %3630
    %v3632 = vadd.f32 %v3631, %v126
    %s3633 = scalar_lea.vmem %s9, 8
    %3634 = vst.msk [vmem:[%s3633] sm:$0x3] %vm849, %v3632
    %s3635 = scalar_lea.vmem %s0, 10
    %v3636 = vld [vmem:[%s3635] sm:$0x3]
    %3638 = vset.pattern.permute.xlu0 0
    %3639 = vperm.xlu0 %3638, %v3636
    %v3640 = vpop.permute.xlu0 %3639
    %v3642 = vmul.f32 %v3640, %v138
    %v3643 = vmul.f32 %v3640, %v142
    %v3644 = vmul.f32 %v3640, %v146
    %v3645 = vmul.f32 %v3640, %v150
    %v3646 = vld [vmem:[#allocation3] sm:$0xff]
    %v3647 = vld [vmem:[#allocation3 + $0x8] sm:$0xff]
    %v3648 = vld [vmem:[#allocation3 + $0x10] sm:$0xff]
    %v3649 = vld [vmem:[#allocation3 + $0x18] sm:$0xff]
    %v3650 = vld [vmem:[#allocation3 + $0x20] sm:$0xff]
    %v3651 = vld [vmem:[#allocation3 + $0x28] sm:$0xff]
    %v3652 = vld [vmem:[#allocation3 + $0x30] sm:$0xff]
    %v3653 = vld [vmem:[#allocation3 + $0x38] sm:$0xff]
    %v3654 = vld [vmem:[#allocation3 + $0x40] sm:$0xff]
    %v3655 = vld [vmem:[#allocation3 + $0x48] sm:$0xff]
    %v3656 = vld [vmem:[#allocation3 + $0x50] sm:$0xff]
    %v3657 = vld [vmem:[#allocation3 + $0x58] sm:$0xff]
    %v3658 = vld [vmem:[#allocation3 + $0x60] sm:$0xff]
    %v3659 = vld [vmem:[#allocation3 + $0x68] sm:$0xff]
    %v3660 = vld [vmem:[#allocation3 + $0x70] sm:$0xff]
    %v3661 = vld [vmem:[#allocation3 + $0x78] sm:$0xff]
    %v3662 = vld [vmem:[#allocation3 + $0x80] sm:$0xff]
    %v3663 = vld [vmem:[#allocation3 + $0x88] sm:$0xff]
    %v3664 = vld [vmem:[#allocation3 + $0x90] sm:$0xff]
    %v3665 = vld [vmem:[#allocation3 + $0x98] sm:$0xff]
    %v3666 = vld [vmem:[#allocation3 + $0xa0] sm:$0xff]
    %v3667 = vld [vmem:[#allocation3 + $0xa8] sm:$0xff]
    %v3668 = vld [vmem:[#allocation3 + $0xb0] sm:$0xff]
    %v3669 = vld [vmem:[#allocation3 + $0xb8] sm:$0xff]
    %v3670 = vld [vmem:[#allocation3 + $0xc0] sm:$0xff]
    %v3671 = vld [vmem:[#allocation3 + $0xc8] sm:$0xff]
    %v3672 = vld [vmem:[#allocation3 + $0xd0] sm:$0xff]
    %v3673 = vld [vmem:[#allocation3 + $0xd8] sm:$0xff]
    %v3674 = vld [vmem:[#allocation3 + $0xe0] sm:$0xff]
    %v3675 = vld [vmem:[#allocation3 + $0xe8] sm:$0xff]
    %v3676 = vld [vmem:[#allocation3 + $0xf0] sm:$0xff]
    %v3677 = vld [vmem:[#allocation3 + $0xf8] sm:$0xff]
    %v3678 = vld [vmem:[#allocation3 + $0x100] sm:$0xff]
    %v3679 = vld [vmem:[#allocation3 + $0x108] sm:$0xff]
    %v3680 = vld [vmem:[#allocation3 + $0x110] sm:$0xff]
    %v3681 = vld [vmem:[#allocation3 + $0x118] sm:$0xff]
    %v3682 = vld [vmem:[#allocation3 + $0x120] sm:$0xff]
    %v3683 = vld [vmem:[#allocation3 + $0x128] sm:$0xff]
    %v3684 = vld [vmem:[#allocation3 + $0x130] sm:$0xff]
    %v3685 = vld [vmem:[#allocation3 + $0x138] sm:$0xff]
    %v3686 = vld [vmem:[#allocation3 + $0x140] sm:$0xff]
    %v3687 = vld [vmem:[#allocation3 + $0x148] sm:$0xff]
    %v3688 = vld [vmem:[#allocation3 + $0x150] sm:$0xff]
    %v3689 = vld [vmem:[#allocation3 + $0x158] sm:$0xff]
    %v3690 = vld [vmem:[#allocation3 + $0x160] sm:$0xff]
    %v3691 = vld [vmem:[#allocation3 + $0x168] sm:$0xff]
    %v3692 = vld [vmem:[#allocation3 + $0x170] sm:$0xff]
    %v3693 = vld [vmem:[#allocation3 + $0x178] sm:$0xff]
    %v3694 = vld [vmem:[#allocation3 + $0x180] sm:$0xff]
    %v3695 = vld [vmem:[#allocation3 + $0x188] sm:$0xff]
    %v3696 = vld [vmem:[#allocation3 + $0x190] sm:$0xff]
    %v3697 = vld [vmem:[#allocation3 + $0x198] sm:$0xff]
    %v3698 = vld [vmem:[#allocation3 + $0x1a0] sm:$0xff]
    %v3699 = vld [vmem:[#allocation3 + $0x1a8] sm:$0xff]
    %v3700 = vld [vmem:[#allocation3 + $0x1b0] sm:$0xff]
    %v3701 = vld [vmem:[#allocation3 + $0x1b8] sm:$0xff]
    %v3702 = vld [vmem:[#allocation3 + $0x1c0] sm:$0xff]
    %v3703 = vld [vmem:[#allocation3 + $0x1c8] sm:$0xff]
    %v3704 = vld [vmem:[#allocation3 + $0x1d0] sm:$0xff]
    %v3705 = vld [vmem:[#allocation3 + $0x1d8] sm:$0xff]
    %v3706 = vld [vmem:[#allocation3 + $0x1e0] sm:$0xff]
    %v3707 = vld [vmem:[#allocation3 + $0x1e8] sm:$0xff]
    %v3708 = vld [vmem:[#allocation3 + $0x1f0] sm:$0xff]
    %v3709 = vld [vmem:[#allocation3 + $0x1f8] sm:$0xff]
    %3710 = vmatprep.subr.mxu0 %v3647
    %3711 = vmatpush1.msra.mxu0 %v3646
    %3712 = vmatprep.subr.mxu0 %v3651
    %3713 = vmatpush1.msra.mxu0 %v3650
    %3714 = vmatprep.subr.mxu0 %v3655
    %3715 = vmatpush1.msra.mxu0 %v3654
    %3716 = vmatprep.subr.mxu0 %v3659
    %3717 = vmatpush1.msra.mxu0 %v3658
    %3718 = vmatprep.subr.mxu0 %v3663
    %3719 = vmatpush1.msra.mxu0 %v3662
    %3720 = vmatprep.subr.mxu0 %v3667
    %3721 = vmatpush1.msra.mxu0 %v3666
    %3722 = vmatprep.subr.mxu0 %v3671
    %3723 = vmatpush1.msra.mxu0 %v3670
    %3724 = vmatprep.subr.mxu0 %v3675
    %3725 = vmatpush1.msra.mxu0 %v3674
    %3726 = vmatprep.subr.mxu0 %v3679
    %3727 = vmatpush1.msra.mxu0 %v3678
    %3728 = vmatprep.subr.mxu0 %v3683
    %3729 = vmatpush1.msra.mxu0 %v3682
    %3730 = vmatprep.subr.mxu0 %v3687
    %3731 = vmatpush1.msra.mxu0 %v3686
    %3732 = vmatprep.subr.mxu0 %v3691
    %3733 = vmatpush1.msra.mxu0 %v3690
    %3734 = vmatprep.subr.mxu0 %v3695
    %3735 = vmatpush1.msra.mxu0 %v3694
    %3736 = vmatprep.subr.mxu0 %v3699
    %3737 = vmatpush1.msra.mxu0 %v3698
    %3738 = vmatprep.subr.mxu0 %v3703
    %3739 = vmatpush1.msra.mxu0 %v3702
    %3740 = vmatprep.subr.mxu0 %v3707
    %3741 = vmatpush1.msra.mxu0 %v3706
    %3742 = vmatprep.subr.mxu0 0.0
    %3743 = vmatpush1.msra.mxu0 0.0
    %3744 = vmatprep.subr.mxu0 0.0
    %3745 = vmatpush1.msra.mxu0 0.0
    %3746 = vmatprep.subr.mxu0 0.0
    %3747 = vmatpush1.msra.mxu0 0.0
    %3748 = vmatprep.subr.mxu0 0.0
    %3749 = vmatpush1.msra.mxu0 0.0
    %3750 = vmatprep.subr.mxu0 0.0
    %3751 = vmatpush1.msra.mxu0 0.0
    %3752 = vmatprep.subr.mxu0 0.0
    %3753 = vmatpush1.msra.mxu0 0.0
    %3754 = vmatprep.subr.mxu0 0.0
    %3755 = vmatpush1.msra.mxu0 0.0
    %3756 = vmatprep.subr.mxu0 0.0
    %3757 = vmatpush1.msra.mxu0 0.0
    %3758 = vmatprep.subr.mxu0 0.0
    %3759 = vmatpush1.msra.mxu0 0.0
    %3760 = vmatprep.subr.mxu0 0.0
    %3761 = vmatpush1.msra.mxu0 0.0
    %3762 = vmatprep.subr.mxu0 0.0
    %3763 = vmatpush1.msra.mxu0 0.0
    %3764 = vmatprep.subr.mxu0 0.0
    %3765 = vmatpush1.msra.mxu0 0.0
    %3766 = vmatprep.subr.mxu0 0.0
    %3767 = vmatpush1.msra.mxu0 0.0
    %3768 = vmatprep.subr.mxu0 0.0
    %3769 = vmatpush1.msra.mxu0 0.0
    %3770 = vmatprep.subr.mxu0 0.0
    %3771 = vmatpush1.msra.mxu0 0.0
    %3772 = vmatprep.subr.mxu0 0.0
    %3773 = vmatpush1.msra.mxu0 0.0
    %3774 = vmatprep.mubr.f32.mxu0 0.0
    %3775 = vmatmul.mubr.f32.gmra.mrb[0].mxu0 %v3187
    %v3776 = vpop.f32.mrb[0].mxu0
    %v3777 = vadd.f32 0.0, %v3776
    %v3778 = vpop.f32.mrb[0].mxu0
    %v3779 = vadd.f32 0.0, %v3778
    %3780 = vdwg.mxu0
    %3781 = vmatprep.subr.mxu0 %v3649
    %3782 = vmatpush1.msra.mxu0 %v3648
    %3783 = vmatprep.subr.mxu0 %v3653
    %3784 = vmatpush1.msra.mxu0 %v3652
    %3785 = vmatprep.subr.mxu0 %v3657
    %3786 = vmatpush1.msra.mxu0 %v3656
    %3787 = vmatprep.subr.mxu0 %v3661
    %3788 = vmatpush1.msra.mxu0 %v3660
    %3789 = vmatprep.subr.mxu0 %v3665
    %3790 = vmatpush1.msra.mxu0 %v3664
    %3791 = vmatprep.subr.mxu0 %v3669
    %3792 = vmatpush1.msra.mxu0 %v3668
    %3793 = vmatprep.subr.mxu0 %v3673
    %3794 = vmatpush1.msra.mxu0 %v3672
    %3795 = vmatprep.subr.mxu0 %v3677
    %3796 = vmatpush1.msra.mxu0 %v3676
    %3797 = vmatprep.subr.mxu0 %v3681
    %3798 = vmatpush1.msra.mxu0 %v3680
    %3799 = vmatprep.subr.mxu0 %v3685
    %3800 = vmatpush1.msra.mxu0 %v3684
    %3801 = vmatprep.subr.mxu0 %v3689
    %3802 = vmatpush1.msra.mxu0 %v3688
    %3803 = vmatprep.subr.mxu0 %v3693
    %3804 = vmatpush1.msra.mxu0 %v3692
    %3805 = vmatprep.subr.mxu0 %v3697
    %3806 = vmatpush1.msra.mxu0 %v3696
    %3807 = vmatprep.subr.mxu0 %v3701
    %3808 = vmatpush1.msra.mxu0 %v3700
    %3809 = vmatprep.subr.mxu0 %v3705
    %3810 = vmatpush1.msra.mxu0 %v3704
    %3811 = vmatprep.subr.mxu0 %v3709
    %3812 = vmatpush1.msra.mxu0 %v3708
    %3813 = vmatprep.subr.mxu0 0.0
    %3814 = vmatpush1.msra.mxu0 0.0
    %3815 = vmatprep.subr.mxu0 0.0
    %3816 = vmatpush1.msra.mxu0 0.0
    %3817 = vmatprep.subr.mxu0 0.0
    %3818 = vmatpush1.msra.mxu0 0.0
    %3819 = vmatprep.subr.mxu0 0.0
    %3820 = vmatpush1.msra.mxu0 0.0
    %3821 = vmatprep.subr.mxu0 0.0
    %3822 = vmatpush1.msra.mxu0 0.0
    %3823 = vmatprep.subr.mxu0 0.0
    %3824 = vmatpush1.msra.mxu0 0.0
    %3825 = vmatprep.subr.mxu0 0.0
    %3826 = vmatpush1.msra.mxu0 0.0
    %3827 = vmatprep.subr.mxu0 0.0
    %3828 = vmatpush1.msra.mxu0 0.0
    %3829 = vmatprep.subr.mxu0 0.0
    %3830 = vmatpush1.msra.mxu0 0.0
    %3831 = vmatprep.subr.mxu0 0.0
    %3832 = vmatpush1.msra.mxu0 0.0
    %3833 = vmatprep.subr.mxu0 0.0
    %3834 = vmatpush1.msra.mxu0 0.0
    %3835 = vmatprep.subr.mxu0 0.0
    %3836 = vmatpush1.msra.mxu0 0.0
    %3837 = vmatprep.subr.mxu0 0.0
    %3838 = vmatpush1.msra.mxu0 0.0
    %3839 = vmatprep.subr.mxu0 0.0
    %3840 = vmatpush1.msra.mxu0 0.0
    %3841 = vmatprep.subr.mxu0 0.0
    %3842 = vmatpush1.msra.mxu0 0.0
    %3843 = vmatprep.subr.mxu0 0.0
    %3844 = vmatpush1.msra.mxu0 0.0
    %3845 = vmatprep.mubr.f32.mxu0 0.0
    %3846 = vmatmul.mubr.f32.gmra.mrb[0].mxu0 %v3187
    %v3847 = vpop.f32.mrb[0].mxu0
    %v3848 = vadd.f32 0.0, %v3847
    %v3849 = vpop.f32.mrb[0].mxu0
    %v3850 = vadd.f32 0.0, %v3849
    %3851 = vdwg.mxu0
    %v3852 = vadd.f32 %v3642, %v3777
    %v3853 = vadd.f32 %v3643, %v3779
    %v3854 = vadd.f32 %v3644, %v3848
    %v3855 = vadd.f32 %v3645, %v3850
    %v3856 = vadd.f32 %v3852, %v81
    %v3857 = vadd.f32 %v3853, %v85
    %v3858 = vadd.f32 %v3854, %v89
    %v3859 = vadd.f32 %v3855, %v93
    %v3860 = vxor.u32 %v3856, 2147483648
    %v3861 = vmul.f32 %v3860, 1.442695
    %v3862 = vpow.pop %v3861
    %v3863 = vadd.f32 %v3862, 1.0
    %v3864 = vrcp.pop %v3863
    %v3865 = vmul.f32 1.0, %v3864
    %v3866 = vxor.u32 %v3857, 2147483648
    %v3867 = vmul.f32 %v3866, 1.442695
    %v3868 = vpow.pop %v3867
    %v3869 = vadd.f32 %v3868, 1.0
    %v3870 = vrcp.pop %v3869
    %v3871 = vmul.f32 1.0, %v3870
    %v3872 = vtanh.pop %v3858
    %v3873 = vxor.u32 %v3859, 2147483648
    %v3874 = vmul.f32 %v3873, 1.442695
    %v3875 = vpow.pop %v3874
    %v3876 = vadd.f32 %v3875, 1.0
    %v3877 = vrcp.pop %v3876
    %v3878 = vmul.f32 1.0, %v3877
    %v3879 = vmul.f32 %v3871, %v3185
    %v3880 = vmul.f32 %v3865, %v3872
    %v3881 = vadd.f32 %v3879, %v3880
    %v3882 = vtanh.pop %v3881
    %v3883 = vmul.f32 %v3878, %v3882
    %v3884 = vld [vmem:[#allocation5] sm:$0xff]
    %v3885 = vld [vmem:[#allocation5 + $0x8] sm:$0xff]
    %v3886 = vld [vmem:[#allocation5 + $0x10] sm:$0xff]
    %v3887 = vld [vmem:[#allocation5 + $0x18] sm:$0xff]
    %v3888 = vld [vmem:[#allocation5 + $0x20] sm:$0xff]
    %v3889 = vld [vmem:[#allocation5 + $0x28] sm:$0xff]
    %v3890 = vld [vmem:[#allocation5 + $0x30] sm:$0xff]
    %v3891 = vld [vmem:[#allocation5 + $0x38] sm:$0xff]
    %v3892 = vld [vmem:[#allocation5 + $0x40] sm:$0xff]
    %v3893 = vld [vmem:[#allocation5 + $0x48] sm:$0xff]
    %v3894 = vld [vmem:[#allocation5 + $0x50] sm:$0xff]
    %v3895 = vld [vmem:[#allocation5 + $0x58] sm:$0xff]
    %v3896 = vld [vmem:[#allocation5 + $0x60] sm:$0xff]
    %v3897 = vld [vmem:[#allocation5 + $0x68] sm:$0xff]
    %v3898 = vld [vmem:[#allocation5 + $0x70] sm:$0xff]
    %v3899 = vld [vmem:[#allocation5 + $0x78] sm:$0xff]
    %v3900 = vld [vmem:[#allocation5 + $0x80] sm:$0xff]
    %v3901 = vld [vmem:[#allocation5 + $0x88] sm:$0xff]
    %v3902 = vld [vmem:[#allocation5 + $0x90] sm:$0xff]
    %v3903 = vld [vmem:[#allocation5 + $0x98] sm:$0xff]
    %v3904 = vld [vmem:[#allocation5 + $0xa0] sm:$0xff]
    %v3905 = vld [vmem:[#allocation5 + $0xa8] sm:$0xff]
    %v3906 = vld [vmem:[#allocation5 + $0xb0] sm:$0xff]
    %v3907 = vld [vmem:[#allocation5 + $0xb8] sm:$0xff]
    %v3908 = vld [vmem:[#allocation5 + $0xc0] sm:$0xff]
    %v3909 = vld [vmem:[#allocation5 + $0xc8] sm:$0xff]
    %v3910 = vld [vmem:[#allocation5 + $0xd0] sm:$0xff]
    %v3911 = vld [vmem:[#allocation5 + $0xd8] sm:$0xff]
    %v3912 = vld [vmem:[#allocation5 + $0xe0] sm:$0xff]
    %v3913 = vld [vmem:[#allocation5 + $0xe8] sm:$0xff]
    %v3914 = vld [vmem:[#allocation5 + $0xf0] sm:$0xff]
    %v3915 = vld [vmem:[#allocation5 + $0xf8] sm:$0xff]
    %v3916 = vld [vmem:[#allocation5 + $0x100] sm:$0xff]
    %v3917 = vld [vmem:[#allocation5 + $0x108] sm:$0xff]
    %v3918 = vld [vmem:[#allocation5 + $0x110] sm:$0xff]
    %v3919 = vld [vmem:[#allocation5 + $0x118] sm:$0xff]
    %v3920 = vld [vmem:[#allocation5 + $0x120] sm:$0xff]
    %v3921 = vld [vmem:[#allocation5 + $0x128] sm:$0xff]
    %v3922 = vld [vmem:[#allocation5 + $0x130] sm:$0xff]
    %v3923 = vld [vmem:[#allocation5 + $0x138] sm:$0xff]
    %v3924 = vld [vmem:[#allocation5 + $0x140] sm:$0xff]
    %v3925 = vld [vmem:[#allocation5 + $0x148] sm:$0xff]
    %v3926 = vld [vmem:[#allocation5 + $0x150] sm:$0xff]
    %v3927 = vld [vmem:[#allocation5 + $0x158] sm:$0xff]
    %v3928 = vld [vmem:[#allocation5 + $0x160] sm:$0xff]
    %v3929 = vld [vmem:[#allocation5 + $0x168] sm:$0xff]
    %v3930 = vld [vmem:[#allocation5 + $0x170] sm:$0xff]
    %v3931 = vld [vmem:[#allocation5 + $0x178] sm:$0xff]
    %v3932 = vld [vmem:[#allocation5 + $0x180] sm:$0xff]
    %v3933 = vld [vmem:[#allocation5 + $0x188] sm:$0xff]
    %v3934 = vld [vmem:[#allocation5 + $0x190] sm:$0xff]
    %v3935 = vld [vmem:[#allocation5 + $0x198] sm:$0xff]
    %v3936 = vld [vmem:[#allocation5 + $0x1a0] sm:$0xff]
    %v3937 = vld [vmem:[#allocation5 + $0x1a8] sm:$0xff]
    %v3938 = vld [vmem:[#allocation5 + $0x1b0] sm:$0xff]
    %v3939 = vld [vmem:[#allocation5 + $0x1b8] sm:$0xff]
    %v3940 = vld [vmem:[#allocation5 + $0x1c0] sm:$0xff]
    %v3941 = vld [vmem:[#allocation5 + $0x1c8] sm:$0xff]
    %v3942 = vld [vmem:[#allocation5 + $0x1d0] sm:$0xff]
    %v3943 = vld [vmem:[#allocation5 + $0x1d8] sm:$0xff]
    %v3944 = vld [vmem:[#allocation5 + $0x1e0] sm:$0xff]
    %v3945 = vld [vmem:[#allocation5 + $0x1e8] sm:$0xff]
    %v3946 = vld [vmem:[#allocation5 + $0x1f0] sm:$0xff]
    %v3947 = vld [vmem:[#allocation5 + $0x1f8] sm:$0xff]
    %v3948 = vld [vmem:[#allocation7] sm:$0xff]
    %v3949 = vld [vmem:[#allocation7 + $0x8] sm:$0xff]
    %v3950 = vld [vmem:[#allocation7 + $0x10] sm:$0xff]
    %v3951 = vld [vmem:[#allocation7 + $0x18] sm:$0xff]
    %v3952 = vld [vmem:[#allocation7 + $0x20] sm:$0xff]
    %v3953 = vld [vmem:[#allocation7 + $0x28] sm:$0xff]
    %v3954 = vld [vmem:[#allocation7 + $0x30] sm:$0xff]
    %v3955 = vld [vmem:[#allocation7 + $0x38] sm:$0xff]
    %v3956 = vld [vmem:[#allocation7 + $0x40] sm:$0xff]
    %v3957 = vld [vmem:[#allocation7 + $0x48] sm:$0xff]
    %v3958 = vld [vmem:[#allocation7 + $0x50] sm:$0xff]
    %v3959 = vld [vmem:[#allocation7 + $0x58] sm:$0xff]
    %v3960 = vld [vmem:[#allocation7 + $0x60] sm:$0xff]
    %v3961 = vld [vmem:[#allocation7 + $0x68] sm:$0xff]
    %v3962 = vld [vmem:[#allocation7 + $0x70] sm:$0xff]
    %v3963 = vld [vmem:[#allocation7 + $0x78] sm:$0xff]
    %v3964 = vld [vmem:[#allocation7 + $0x80] sm:$0xff]
    %v3965 = vld [vmem:[#allocation7 + $0x88] sm:$0xff]
    %v3966 = vld [vmem:[#allocation7 + $0x90] sm:$0xff]
    %v3967 = vld [vmem:[#allocation7 + $0x98] sm:$0xff]
    %v3968 = vld [vmem:[#allocation7 + $0xa0] sm:$0xff]
    %v3969 = vld [vmem:[#allocation7 + $0xa8] sm:$0xff]
    %v3970 = vld [vmem:[#allocation7 + $0xb0] sm:$0xff]
    %v3971 = vld [vmem:[#allocation7 + $0xb8] sm:$0xff]
    %v3972 = vld [vmem:[#allocation7 + $0xc0] sm:$0xff]
    %v3973 = vld [vmem:[#allocation7 + $0xc8] sm:$0xff]
    %v3974 = vld [vmem:[#allocation7 + $0xd0] sm:$0xff]
    %v3975 = vld [vmem:[#allocation7 + $0xd8] sm:$0xff]
    %v3976 = vld [vmem:[#allocation7 + $0xe0] sm:$0xff]
    %v3977 = vld [vmem:[#allocation7 + $0xe8] sm:$0xff]
    %v3978 = vld [vmem:[#allocation7 + $0xf0] sm:$0xff]
    %v3979 = vld [vmem:[#allocation7 + $0xf8] sm:$0xff]
    %v3980 = vld [vmem:[#allocation7 + $0x100] sm:$0xff]
    %v3981 = vld [vmem:[#allocation7 + $0x108] sm:$0xff]
    %v3982 = vld [vmem:[#allocation7 + $0x110] sm:$0xff]
    %v3983 = vld [vmem:[#allocation7 + $0x118] sm:$0xff]
    %v3984 = vld [vmem:[#allocation7 + $0x120] sm:$0xff]
    %v3985 = vld [vmem:[#allocation7 + $0x128] sm:$0xff]
    %v3986 = vld [vmem:[#allocation7 + $0x130] sm:$0xff]
    %v3987 = vld [vmem:[#allocation7 + $0x138] sm:$0xff]
    %v3988 = vld [vmem:[#allocation7 + $0x140] sm:$0xff]
    %v3989 = vld [vmem:[#allocation7 + $0x148] sm:$0xff]
    %v3990 = vld [vmem:[#allocation7 + $0x150] sm:$0xff]
    %v3991 = vld [vmem:[#allocation7 + $0x158] sm:$0xff]
    %v3992 = vld [vmem:[#allocation7 + $0x160] sm:$0xff]
    %v3993 = vld [vmem:[#allocation7 + $0x168] sm:$0xff]
    %v3994 = vld [vmem:[#allocation7 + $0x170] sm:$0xff]
    %v3995 = vld [vmem:[#allocation7 + $0x178] sm:$0xff]
    %v3996 = vld [vmem:[#allocation7 + $0x180] sm:$0xff]
    %v3997 = vld [vmem:[#allocation7 + $0x188] sm:$0xff]
    %v3998 = vld [vmem:[#allocation7 + $0x190] sm:$0xff]
    %v3999 = vld [vmem:[#allocation7 + $0x198] sm:$0xff]
    %v4000 = vld [vmem:[#allocation7 + $0x1a0] sm:$0xff]
    %v4001 = vld [vmem:[#allocation7 + $0x1a8] sm:$0xff]
    %v4002 = vld [vmem:[#allocation7 + $0x1b0] sm:$0xff]
    %v4003 = vld [vmem:[#allocation7 + $0x1b8] sm:$0xff]
    %v4004 = vld [vmem:[#allocation7 + $0x1c0] sm:$0xff]
    %v4005 = vld [vmem:[#allocation7 + $0x1c8] sm:$0xff]
    %v4006 = vld [vmem:[#allocation7 + $0x1d0] sm:$0xff]
    %v4007 = vld [vmem:[#allocation7 + $0x1d8] sm:$0xff]
    %v4008 = vld [vmem:[#allocation7 + $0x1e0] sm:$0xff]
    %v4009 = vld [vmem:[#allocation7 + $0x1e8] sm:$0xff]
    %v4010 = vld [vmem:[#allocation7 + $0x1f0] sm:$0xff]
    %v4011 = vld [vmem:[#allocation7 + $0x1f8] sm:$0xff]
    %4012 = vmatprep.subr.mxu0 %v3949
    %4013 = vmatpush1.msra.mxu0 %v3948
    %4014 = vmatprep.subr.mxu0 %v3953
    %4015 = vmatpush1.msra.mxu0 %v3952
    %4016 = vmatprep.subr.mxu0 %v3957
    %4017 = vmatpush1.msra.mxu0 %v3956
    %4018 = vmatprep.subr.mxu0 %v3961
    %4019 = vmatpush1.msra.mxu0 %v3960
    %4020 = vmatprep.subr.mxu0 %v3965
    %4021 = vmatpush1.msra.mxu0 %v3964
    %4022 = vmatprep.subr.mxu0 %v3969
    %4023 = vmatpush1.msra.mxu0 %v3968
    %4024 = vmatprep.subr.mxu0 %v3973
    %4025 = vmatpush1.msra.mxu0 %v3972
    %4026 = vmatprep.subr.mxu0 %v3977
    %4027 = vmatpush1.msra.mxu0 %v3976
    %4028 = vmatprep.subr.mxu0 %v3981
    %4029 = vmatpush1.msra.mxu0 %v3980
    %4030 = vmatprep.subr.mxu0 %v3985
    %4031 = vmatpush1.msra.mxu0 %v3984
    %4032 = vmatprep.subr.mxu0 %v3989
    %4033 = vmatpush1.msra.mxu0 %v3988
    %4034 = vmatprep.subr.mxu0 %v3993
    %4035 = vmatpush1.msra.mxu0 %v3992
    %4036 = vmatprep.subr.mxu0 %v3997
    %4037 = vmatpush1.msra.mxu0 %v3996
    %4038 = vmatprep.subr.mxu0 %v4001
    %4039 = vmatpush1.msra.mxu0 %v4000
    %4040 = vmatprep.subr.mxu0 %v4005
    %4041 = vmatpush1.msra.mxu0 %v4004
    %4042 = vmatprep.subr.mxu0 %v4009
    %4043 = vmatpush1.msra.mxu0 %v4008
    %4044 = vmatprep.subr.mxu0 0.0
    %4045 = vmatpush1.msra.mxu0 0.0
    %4046 = vmatprep.subr.mxu0 0.0
    %4047 = vmatpush1.msra.mxu0 0.0
    %4048 = vmatprep.subr.mxu0 0.0
    %4049 = vmatpush1.msra.mxu0 0.0
    %4050 = vmatprep.subr.mxu0 0.0
    %4051 = vmatpush1.msra.mxu0 0.0
    %4052 = vmatprep.subr.mxu0 0.0
    %4053 = vmatpush1.msra.mxu0 0.0
    %4054 = vmatprep.subr.mxu0 0.0
    %4055 = vmatpush1.msra.mxu0 0.0
    %4056 = vmatprep.subr.mxu0 0.0
    %4057 = vmatpush1.msra.mxu0 0.0
    %4058 = vmatprep.subr.mxu0 0.0
    %4059 = vmatpush1.msra.mxu0 0.0
    %4060 = vmatprep.subr.mxu0 0.0
    %4061 = vmatpush1.msra.mxu0 0.0
    %4062 = vmatprep.subr.mxu0 0.0
    %4063 = vmatpush1.msra.mxu0 0.0
    %4064 = vmatprep.subr.mxu0 0.0
    %4065 = vmatpush1.msra.mxu0 0.0
    %4066 = vmatprep.subr.mxu0 0.0
    %4067 = vmatpush1.msra.mxu0 0.0
    %4068 = vmatprep.subr.mxu0 0.0
    %4069 = vmatpush1.msra.mxu0 0.0
    %4070 = vmatprep.subr.mxu0 0.0
    %4071 = vmatpush1.msra.mxu0 0.0
    %4072 = vmatprep.subr.mxu0 0.0
    %4073 = vmatpush1.msra.mxu0 0.0
    %4074 = vmatprep.subr.mxu0 0.0
    %4075 = vmatpush1.msra.mxu0 0.0
    %4076 = vmatprep.mubr.f32.mxu0 0.0
    %4077 = vmatmul.mubr.f32.gmra.mrb[0].mxu0 %v3627
    %v4078 = vpop.f32.mrb[0].mxu0
    %v4079 = vadd.f32 0.0, %v4078
    %v4080 = vpop.f32.mrb[0].mxu0
    %v4081 = vadd.f32 0.0, %v4080
    %4082 = vdwg.mxu0
    %4083 = vmatprep.subr.mxu0 %v3951
    %4084 = vmatpush1.msra.mxu0 %v3950
    %4085 = vmatprep.subr.mxu0 %v3955
    %4086 = vmatpush1.msra.mxu0 %v3954
    %4087 = vmatprep.subr.mxu0 %v3959
    %4088 = vmatpush1.msra.mxu0 %v3958
    %4089 = vmatprep.subr.mxu0 %v3963
    %4090 = vmatpush1.msra.mxu0 %v3962
    %4091 = vmatprep.subr.mxu0 %v3967
    %4092 = vmatpush1.msra.mxu0 %v3966
    %4093 = vmatprep.subr.mxu0 %v3971
    %4094 = vmatpush1.msra.mxu0 %v3970
    %4095 = vmatprep.subr.mxu0 %v3975
    %4096 = vmatpush1.msra.mxu0 %v3974
    %4097 = vmatprep.subr.mxu0 %v3979
    %4098 = vmatpush1.msra.mxu0 %v3978
    %4099 = vmatprep.subr.mxu0 %v3983
    %4100 = vmatpush1.msra.mxu0 %v3982
    %4101 = vmatprep.subr.mxu0 %v3987
    %4102 = vmatpush1.msra.mxu0 %v3986
    %4103 = vmatprep.subr.mxu0 %v3991
    %4104 = vmatpush1.msra.mxu0 %v3990
    %4105 = vmatprep.subr.mxu0 %v3995
    %4106 = vmatpush1.msra.mxu0 %v3994
    %4107 = vmatprep.subr.mxu0 %v3999
    %4108 = vmatpush1.msra.mxu0 %v3998
    %4109 = vmatprep.subr.mxu0 %v4003
    %4110 = vmatpush1.msra.mxu0 %v4002
    %4111 = vmatprep.subr.mxu0 %v4007
    %4112 = vmatpush1.msra.mxu0 %v4006
    %4113 = vmatprep.subr.mxu0 %v4011
    %4114 = vmatpush1.msra.mxu0 %v4010
    %4115 = vmatprep.subr.mxu0 0.0
    %4116 = vmatpush1.msra.mxu0 0.0
    %4117 = vmatprep.subr.mxu0 0.0
    %4118 = vmatpush1.msra.mxu0 0.0
    %4119 = vmatprep.subr.mxu0 0.0
    %4120 = vmatpush1.msra.mxu0 0.0
    %4121 = vmatprep.subr.mxu0 0.0
    %4122 = vmatpush1.msra.mxu0 0.0
    %4123 = vmatprep.subr.mxu0 0.0
    %4124 = vmatpush1.msra.mxu0 0.0
    %4125 = vmatprep.subr.mxu0 0.0
    %4126 = vmatpush1.msra.mxu0 0.0
    %4127 = vmatprep.subr.mxu0 0.0
    %4128 = vmatpush1.msra.mxu0 0.0
    %4129 = vmatprep.subr.mxu0 0.0
    %4130 = vmatpush1.msra.mxu0 0.0
    %4131 = vmatprep.subr.mxu0 0.0
    %4132 = vmatpush1.msra.mxu0 0.0
    %4133 = vmatprep.subr.mxu0 0.0
    %4134 = vmatpush1.msra.mxu0 0.0
    %4135 = vmatprep.subr.mxu0 0.0
    %4136 = vmatpush1.msra.mxu0 0.0
    %4137 = vmatprep.subr.mxu0 0.0
    %4138 = vmatpush1.msra.mxu0 0.0
    %4139 = vmatprep.subr.mxu0 0.0
    %4140 = vmatpush1.msra.mxu0 0.0
    %4141 = vmatprep.subr.mxu0 0.0
    %4142 = vmatpush1.msra.mxu0 0.0
    %4143 = vmatprep.subr.mxu0 0.0
    %4144 = vmatpush1.msra.mxu0 0.0
    %4145 = vmatprep.subr.mxu0 0.0
    %4146 = vmatpush1.msra.mxu0 0.0
    %4147 = vmatprep.mubr.f32.mxu0 0.0
    %4148 = vmatmul.mubr.f32.gmra.mrb[0].mxu0 %v3627
    %v4149 = vpop.f32.mrb[0].mxu0
    %v4150 = vadd.f32 0.0, %v4149
    %v4151 = vpop.f32.mrb[0].mxu0
    %v4152 = vadd.f32 0.0, %v4151
    %4153 = vdwg.mxu0
    %4154 = vmatprep.subr.mxu0 %v3885
    %4155 = vmatpush1.msra.mxu0 %v3884
    %4156 = vmatprep.subr.mxu0 %v3889
    %4157 = vmatpush1.msra.mxu0 %v3888
    %4158 = vmatprep.subr.mxu0 %v3893
    %4159 = vmatpush1.msra.mxu0 %v3892
    %4160 = vmatprep.subr.mxu0 %v3897
    %4161 = vmatpush1.msra.mxu0 %v3896
    %4162 = vmatprep.subr.mxu0 %v3901
    %4163 = vmatpush1.msra.mxu0 %v3900
    %4164 = vmatprep.subr.mxu0 %v3905
    %4165 = vmatpush1.msra.mxu0 %v3904
    %4166 = vmatprep.subr.mxu0 %v3909
    %4167 = vmatpush1.msra.mxu0 %v3908
    %4168 = vmatprep.subr.mxu0 %v3913
    %4169 = vmatpush1.msra.mxu0 %v3912
    %4170 = vmatprep.subr.mxu0 %v3917
    %4171 = vmatpush1.msra.mxu0 %v3916
    %4172 = vmatprep.subr.mxu0 %v3921
    %4173 = vmatpush1.msra.mxu0 %v3920
    %4174 = vmatprep.subr.mxu0 %v3925
    %4175 = vmatpush1.msra.mxu0 %v3924
    %4176 = vmatprep.subr.mxu0 %v3929
    %4177 = vmatpush1.msra.mxu0 %v3928
    %4178 = vmatprep.subr.mxu0 %v3933
    %4179 = vmatpush1.msra.mxu0 %v3932
    %4180 = vmatprep.subr.mxu0 %v3937
    %4181 = vmatpush1.msra.mxu0 %v3936
    %4182 = vmatprep.subr.mxu0 %v3941
    %4183 = vmatpush1.msra.mxu0 %v3940
    %4184 = vmatprep.subr.mxu0 %v3945
    %4185 = vmatpush1.msra.mxu0 %v3944
    %4186 = vmatprep.subr.mxu0 0.0
    %4187 = vmatpush1.msra.mxu0 0.0
    %4188 = vmatprep.subr.mxu0 0.0
    %4189 = vmatpush1.msra.mxu0 0.0
    %4190 = vmatprep.subr.mxu0 0.0
    %4191 = vmatpush1.msra.mxu0 0.0
    %4192 = vmatprep.subr.mxu0 0.0
    %4193 = vmatpush1.msra.mxu0 0.0
    %4194 = vmatprep.subr.mxu0 0.0
    %4195 = vmatpush1.msra.mxu0 0.0
    %4196 = vmatprep.subr.mxu0 0.0
    %4197 = vmatpush1.msra.mxu0 0.0
    %4198 = vmatprep.subr.mxu0 0.0
    %4199 = vmatpush1.msra.mxu0 0.0
    %4200 = vmatprep.subr.mxu0 0.0
    %4201 = vmatpush1.msra.mxu0 0.0
    %4202 = vmatprep.subr.mxu0 0.0
    %4203 = vmatpush1.msra.mxu0 0.0
    %4204 = vmatprep.subr.mxu0 0.0
    %4205 = vmatpush1.msra.mxu0 0.0
    %4206 = vmatprep.subr.mxu0 0.0
    %4207 = vmatpush1.msra.mxu0 0.0
    %4208 = vmatprep.subr.mxu0 0.0
    %4209 = vmatpush1.msra.mxu0 0.0
    %4210 = vmatprep.subr.mxu0 0.0
    %4211 = vmatpush1.msra.mxu0 0.0
    %4212 = vmatprep.subr.mxu0 0.0
    %4213 = vmatpush1.msra.mxu0 0.0
    %4214 = vmatprep.subr.mxu0 0.0
    %4215 = vmatpush1.msra.mxu0 0.0
    %4216 = vmatprep.subr.mxu0 0.0
    %4217 = vmatpush1.msra.mxu0 0.0
    %4218 = vmatprep.mubr.f32.mxu0 0.0
    %4219 = vmatmul.mubr.f32.gmra.mrb[0].mxu0 %v3883
    %v4220 = vpop.f32.mrb[0].mxu0
    %v4221 = vadd.f32 %v4079, %v4220
    %v4222 = vpop.f32.mrb[0].mxu0
    %v4223 = vadd.f32 %v4081, %v4222
    %4224 = vdwg.mxu0
    %4225 = vmatprep.subr.mxu0 %v3887
    %4226 = vmatpush1.msra.mxu0 %v3886
    %4227 = vmatprep.subr.mxu0 %v3891
    %4228 = vmatpush1.msra.mxu0 %v3890
    %4229 = vmatprep.subr.mxu0 %v3895
    %4230 = vmatpush1.msra.mxu0 %v3894
    %4231 = vmatprep.subr.mxu0 %v3899
    %4232 = vmatpush1.msra.mxu0 %v3898
    %4233 = vmatprep.subr.mxu0 %v3903
    %4234 = vmatpush1.msra.mxu0 %v3902
    %4235 = vmatprep.subr.mxu0 %v3907
    %4236 = vmatpush1.msra.mxu0 %v3906
    %4237 = vmatprep.subr.mxu0 %v3911
    %4238 = vmatpush1.msra.mxu0 %v3910
    %4239 = vmatprep.subr.mxu0 %v3915
    %4240 = vmatpush1.msra.mxu0 %v3914
    %4241 = vmatprep.subr.mxu0 %v3919
    %4242 = vmatpush1.msra.mxu0 %v3918
    %4243 = vmatprep.subr.mxu0 %v3923
    %4244 = vmatpush1.msra.mxu0 %v3922
    %4245 = vmatprep.subr.mxu0 %v3927
    %4246 = vmatpush1.msra.mxu0 %v3926
    %4247 = vmatprep.subr.mxu0 %v3931
    %4248 = vmatpush1.msra.mxu0 %v3930
    %4249 = vmatprep.subr.mxu0 %v3935
    %4250 = vmatpush1.msra.mxu0 %v3934
    %4251 = vmatprep.subr.mxu0 %v3939
    %4252 = vmatpush1.msra.mxu0 %v3938
    %4253 = vmatprep.subr.mxu0 %v3943
    %4254 = vmatpush1.msra.mxu0 %v3942
    %4255 = vmatprep.subr.mxu0 %v3947
    %4256 = vmatpush1.msra.mxu0 %v3946
    %4257 = vmatprep.subr.mxu0 0.0
    %4258 = vmatpush1.msra.mxu0 0.0
    %4259 = vmatprep.subr.mxu0 0.0
    %4260 = vmatpush1.msra.mxu0 0.0
    %4261 = vmatprep.subr.mxu0 0.0
    %4262 = vmatpush1.msra.mxu0 0.0
    %4263 = vmatprep.subr.mxu0 0.0
    %4264 = vmatpush1.msra.mxu0 0.0
    %4265 = vmatprep.subr.mxu0 0.0
    %4266 = vmatpush1.msra.mxu0 0.0
    %4267 = vmatprep.subr.mxu0 0.0
    %4268 = vmatpush1.msra.mxu0 0.0
    %4269 = vmatprep.subr.mxu0 0.0
    %4270 = vmatpush1.msra.mxu0 0.0
    %4271 = vmatprep.subr.mxu0 0.0
    %4272 = vmatpush1.msra.mxu0 0.0
    %4273 = vmatprep.subr.mxu0 0.0
    %4274 = vmatpush1.msra.mxu0 0.0
    %4275 = vmatprep.subr.mxu0 0.0
    %4276 = vmatpush1.msra.mxu0 0.0
    %4277 = vmatprep.subr.mxu0 0.0
    %4278 = vmatpush1.msra.mxu0 0.0
    %4279 = vmatprep.subr.mxu0 0.0
    %4280 = vmatpush1.msra.mxu0 0.0
    %4281 = vmatprep.subr.mxu0 0.0
    %4282 = vmatpush1.msra.mxu0 0.0
    %4283 = vmatprep.subr.mxu0 0.0
    %4284 = vmatpush1.msra.mxu0 0.0
    %4285 = vmatprep.subr.mxu0 0.0
    %4286 = vmatpush1.msra.mxu0 0.0
    %4287 = vmatprep.subr.mxu0 0.0
    %4288 = vmatpush1.msra.mxu0 0.0
    %4289 = vmatprep.mubr.f32.mxu0 0.0
    %4290 = vmatmul.mubr.f32.gmra.mrb[0].mxu0 %v3883
    %v4291 = vpop.f32.mrb[0].mxu0
    %v4292 = vadd.f32 %v4150, %v4291
    %v4293 = vpop.f32.mrb[0].mxu0
    %v4294 = vadd.f32 %v4152, %v4293
    %4295 = vdwg.mxu0
    %v4296 = vadd.f32 %v4221, %v103
    %v4297 = vadd.f32 %v4223, %v107
    %v4298 = vadd.f32 %v4292, %v111
    %v4299 = vadd.f32 %v4294, %v115
    %v4300 = vxor.u32 %v4296, 2147483648
    %v4301 = vmul.f32 %v4300, 1.442695
    %v4302 = vpow.pop %v4301
    %v4303 = vadd.f32 %v4302, 1.0
    %v4304 = vrcp.pop %v4303
    %v4305 = vmul.f32 1.0, %v4304
    %v4306 = vxor.u32 %v4297, 2147483648
    %v4307 = vmul.f32 %v4306, 1.442695
    %v4308 = vpow.pop %v4307
    %v4309 = vadd.f32 %v4308, 1.0
    %v4310 = vrcp.pop %v4309
    %v4311 = vmul.f32 1.0, %v4310
    %v4312 = vtanh.pop %v4298
    %v4313 = vxor.u32 %v4299, 2147483648
    %v4314 = vmul.f32 %v4313, 1.442695
    %v4315 = vpow.pop %v4314
    %v4316 = vadd.f32 %v4315, 1.0
    %v4317 = vrcp.pop %v4316
    %v4318 = vmul.f32 1.0, %v4317
    %v4319 = vmul.f32 %v4311, %v3625
    %v4320 = vmul.f32 %v4305, %v4312
    %v4321 = vadd.f32 %v4319, %v4320
    %v4322 = vtanh.pop %v4321
    %v4323 = vmul.f32 %v4318, %v4322
    %v4324 = vmul.f32 %v4323, %v841
    %v4325 = vsel %vm844, %v4324, 0.0
    %4326 = vadd.xlane.f32.xlu0 %v4325
    %v4327 = vpop.xlane.xlu0 %4326
    %v4328 = vadd.f32 %v4327, %v126
    %s4329 = scalar_lea.vmem %s9, 10
    %4330 = vst.msk [vmem:[%s4329] sm:$0x3] %vm849, %v4328
    %s4331 = scalar_lea.vmem %s0, 12
    %v4332 = vld [vmem:[%s4331] sm:$0x3]
    %4334 = vset.pattern.permute.xlu0 0
    %4335 = vperm.xlu0 %4334, %v4332
    %v4336 = vpop.permute.xlu0 %4335
    %v4338 = vmul.f32 %v4336, %v138
    %v4339 = vmul.f32 %v4336, %v142
    %v4340 = vmul.f32 %v4336, %v146
    %v4341 = vmul.f32 %v4336, %v150
    %v4342 = vld [vmem:[#allocation3] sm:$0xff]
    %v4343 = vld [vmem:[#allocation3 + $0x8] sm:$0xff]
    %v4344 = vld [vmem:[#allocation3 + $0x10] sm:$0xff]
    %v4345 = vld [vmem:[#allocation3 + $0x18] sm:$0xff]
    %v4346 = vld [vmem:[#allocation3 + $0x20] sm:$0xff]
    %v4347 = vld [vmem:[#allocation3 + $0x28] sm:$0xff]
    %v4348 = vld [vmem:[#allocation3 + $0x30] sm:$0xff]
    %v4349 = vld [vmem:[#allocation3 + $0x38] sm:$0xff]
    %v4350 = vld [vmem:[#allocation3 + $0x40] sm:$0xff]
    %v4351 = vld [vmem:[#allocation3 + $0x48] sm:$0xff]
    %v4352 = vld [vmem:[#allocation3 + $0x50] sm:$0xff]
    %v4353 = vld [vmem:[#allocation3 + $0x58] sm:$0xff]
    %v4354 = vld [vmem:[#allocation3 + $0x60] sm:$0xff]
    %v4355 = vld [vmem:[#allocation3 + $0x68] sm:$0xff]
    %v4356 = vld [vmem:[#allocation3 + $0x70] sm:$0xff]
    %v4357 = vld [vmem:[#allocation3 + $0x78] sm:$0xff]
    %v4358 = vld [vmem:[#allocation3 + $0x80] sm:$0xff]
    %v4359 = vld [vmem:[#allocation3 + $0x88] sm:$0xff]
    %v4360 = vld [vmem:[#allocation3 + $0x90] sm:$0xff]
    %v4361 = vld [vmem:[#allocation3 + $0x98] sm:$0xff]
    %v4362 = vld [vmem:[#allocation3 + $0xa0] sm:$0xff]
    %v4363 = vld [vmem:[#allocation3 + $0xa8] sm:$0xff]
    %v4364 = vld [vmem:[#allocation3 + $0xb0] sm:$0xff]
    %v4365 = vld [vmem:[#allocation3 + $0xb8] sm:$0xff]
    %v4366 = vld [vmem:[#allocation3 + $0xc0] sm:$0xff]
    %v4367 = vld [vmem:[#allocation3 + $0xc8] sm:$0xff]
    %v4368 = vld [vmem:[#allocation3 + $0xd0] sm:$0xff]
    %v4369 = vld [vmem:[#allocation3 + $0xd8] sm:$0xff]
    %v4370 = vld [vmem:[#allocation3 + $0xe0] sm:$0xff]
    %v4371 = vld [vmem:[#allocation3 + $0xe8] sm:$0xff]
    %v4372 = vld [vmem:[#allocation3 + $0xf0] sm:$0xff]
    %v4373 = vld [vmem:[#allocation3 + $0xf8] sm:$0xff]
    %v4374 = vld [vmem:[#allocation3 + $0x100] sm:$0xff]
    %v4375 = vld [vmem:[#allocation3 + $0x108] sm:$0xff]
    %v4376 = vld [vmem:[#allocation3 + $0x110] sm:$0xff]
    %v4377 = vld [vmem:[#allocation3 + $0x118] sm:$0xff]
    %v4378 = vld [vmem:[#allocation3 + $0x120] sm:$0xff]
    %v4379 = vld [vmem:[#allocation3 + $0x128] sm:$0xff]
    %v4380 = vld [vmem:[#allocation3 + $0x130] sm:$0xff]
    %v4381 = vld [vmem:[#allocation3 + $0x138] sm:$0xff]
    %v4382 = vld [vmem:[#allocation3 + $0x140] sm:$0xff]
    %v4383 = vld [vmem:[#allocation3 + $0x148] sm:$0xff]
    %v4384 = vld [vmem:[#allocation3 + $0x150] sm:$0xff]
    %v4385 = vld [vmem:[#allocation3 + $0x158] sm:$0xff]
    %v4386 = vld [vmem:[#allocation3 + $0x160] sm:$0xff]
    %v4387 = vld [vmem:[#allocation3 + $0x168] sm:$0xff]
    %v4388 = vld [vmem:[#allocation3 + $0x170] sm:$0xff]
    %v4389 = vld [vmem:[#allocation3 + $0x178] sm:$0xff]
    %v4390 = vld [vmem:[#allocation3 + $0x180] sm:$0xff]
    %v4391 = vld [vmem:[#allocation3 + $0x188] sm:$0xff]
    %v4392 = vld [vmem:[#allocation3 + $0x190] sm:$0xff]
    %v4393 = vld [vmem:[#allocation3 + $0x198] sm:$0xff]
    %v4394 = vld [vmem:[#allocation3 + $0x1a0] sm:$0xff]
    %v4395 = vld [vmem:[#allocation3 + $0x1a8] sm:$0xff]
    %v4396 = vld [vmem:[#allocation3 + $0x1b0] sm:$0xff]
    %v4397 = vld [vmem:[#allocation3 + $0x1b8] sm:$0xff]
    %v4398 = vld [vmem:[#allocation3 + $0x1c0] sm:$0xff]
    %v4399 = vld [vmem:[#allocation3 + $0x1c8] sm:$0xff]
    %v4400 = vld [vmem:[#allocation3 + $0x1d0] sm:$0xff]
    %v4401 = vld [vmem:[#allocation3 + $0x1d8] sm:$0xff]
    %v4402 = vld [vmem:[#allocation3 + $0x1e0] sm:$0xff]
    %v4403 = vld [vmem:[#allocation3 + $0x1e8] sm:$0xff]
    %v4404 = vld [vmem:[#allocation3 + $0x1f0] sm:$0xff]
    %v4405 = vld [vmem:[#allocation3 + $0x1f8] sm:$0xff]
    %4406 = vmatprep.subr.mxu0 %v4343
    %4407 = vmatpush1.msra.mxu0 %v4342
    %4408 = vmatprep.subr.mxu0 %v4347
    %4409 = vmatpush1.msra.mxu0 %v4346
    %4410 = vmatprep.subr.mxu0 %v4351
    %4411 = vmatpush1.msra.mxu0 %v4350
    %4412 = vmatprep.subr.mxu0 %v4355
    %4413 = vmatpush1.msra.mxu0 %v4354
    %4414 = vmatprep.subr.mxu0 %v4359
    %4415 = vmatpush1.msra.mxu0 %v4358
    %4416 = vmatprep.subr.mxu0 %v4363
    %4417 = vmatpush1.msra.mxu0 %v4362
    %4418 = vmatprep.subr.mxu0 %v4367
    %4419 = vmatpush1.msra.mxu0 %v4366
    %4420 = vmatprep.subr.mxu0 %v4371
    %4421 = vmatpush1.msra.mxu0 %v4370
    %4422 = vmatprep.subr.mxu0 %v4375
    %4423 = vmatpush1.msra.mxu0 %v4374
    %4424 = vmatprep.subr.mxu0 %v4379
    %4425 = vmatpush1.msra.mxu0 %v4378
    %4426 = vmatprep.subr.mxu0 %v4383
    %4427 = vmatpush1.msra.mxu0 %v4382
    %4428 = vmatprep.subr.mxu0 %v4387
    %4429 = vmatpush1.msra.mxu0 %v4386
    %4430 = vmatprep.subr.mxu0 %v4391
    %4431 = vmatpush1.msra.mxu0 %v4390
    %4432 = vmatprep.subr.mxu0 %v4395
    %4433 = vmatpush1.msra.mxu0 %v4394
    %4434 = vmatprep.subr.mxu0 %v4399
    %4435 = vmatpush1.msra.mxu0 %v4398
    %4436 = vmatprep.subr.mxu0 %v4403
    %4437 = vmatpush1.msra.mxu0 %v4402
    %4438 = vmatprep.subr.mxu0 0.0
    %4439 = vmatpush1.msra.mxu0 0.0
    %4440 = vmatprep.subr.mxu0 0.0
    %4441 = vmatpush1.msra.mxu0 0.0
    %4442 = vmatprep.subr.mxu0 0.0
    %4443 = vmatpush1.msra.mxu0 0.0
    %4444 = vmatprep.subr.mxu0 0.0
    %4445 = vmatpush1.msra.mxu0 0.0
    %4446 = vmatprep.subr.mxu0 0.0
    %4447 = vmatpush1.msra.mxu0 0.0
    %4448 = vmatprep.subr.mxu0 0.0
    %4449 = vmatpush1.msra.mxu0 0.0
    %4450 = vmatprep.subr.mxu0 0.0
    %4451 = vmatpush1.msra.mxu0 0.0
    %4452 = vmatprep.subr.mxu0 0.0
    %4453 = vmatpush1.msra.mxu0 0.0
    %4454 = vmatprep.subr.mxu0 0.0
    %4455 = vmatpush1.msra.mxu0 0.0
    %4456 = vmatprep.subr.mxu0 0.0
    %4457 = vmatpush1.msra.mxu0 0.0
    %4458 = vmatprep.subr.mxu0 0.0
    %4459 = vmatpush1.msra.mxu0 0.0
    %4460 = vmatprep.subr.mxu0 0.0
    %4461 = vmatpush1.msra.mxu0 0.0
    %4462 = vmatprep.subr.mxu0 0.0
    %4463 = vmatpush1.msra.mxu0 0.0
    %4464 = vmatprep.subr.mxu0 0.0
    %4465 = vmatpush1.msra.mxu0 0.0
    %4466 = vmatprep.subr.mxu0 0.0
    %4467 = vmatpush1.msra.mxu0 0.0
    %4468 = vmatprep.subr.mxu0 0.0
    %4469 = vmatpush1.msra.mxu0 0.0
    %4470 = vmatprep.mubr.f32.mxu0 0.0
    %4471 = vmatmul.mubr.f32.gmra.mrb[0].mxu0 %v3883
    %v4472 = vpop.f32.mrb[0].mxu0
    %v4473 = vadd.f32 0.0, %v4472
    %v4474 = vpop.f32.mrb[0].mxu0
    %v4475 = vadd.f32 0.0, %v4474
    %4476 = vdwg.mxu0
    %4477 = vmatprep.subr.mxu0 %v4345
    %4478 = vmatpush1.msra.mxu0 %v4344
    %4479 = vmatprep.subr.mxu0 %v4349
    %4480 = vmatpush1.msra.mxu0 %v4348
    %4481 = vmatprep.subr.mxu0 %v4353
    %4482 = vmatpush1.msra.mxu0 %v4352
    %4483 = vmatprep.subr.mxu0 %v4357
    %4484 = vmatpush1.msra.mxu0 %v4356
    %4485 = vmatprep.subr.mxu0 %v4361
    %4486 = vmatpush1.msra.mxu0 %v4360
    %4487 = vmatprep.subr.mxu0 %v4365
    %4488 = vmatpush1.msra.mxu0 %v4364
    %4489 = vmatprep.subr.mxu0 %v4369
    %4490 = vmatpush1.msra.mxu0 %v4368
    %4491 = vmatprep.subr.mxu0 %v4373
    %4492 = vmatpush1.msra.mxu0 %v4372
    %4493 = vmatprep.subr.mxu0 %v4377
    %4494 = vmatpush1.msra.mxu0 %v4376
    %4495 = vmatprep.subr.mxu0 %v4381
    %4496 = vmatpush1.msra.mxu0 %v4380
    %4497 = vmatprep.subr.mxu0 %v4385
    %4498 = vmatpush1.msra.mxu0 %v4384
    %4499 = vmatprep.subr.mxu0 %v4389
    %4500 = vmatpush1.msra.mxu0 %v4388
    %4501 = vmatprep.subr.mxu0 %v4393
    %4502 = vmatpush1.msra.mxu0 %v4392
    %4503 = vmatprep.subr.mxu0 %v4397
    %4504 = vmatpush1.msra.mxu0 %v4396
    %4505 = vmatprep.subr.mxu0 %v4401
    %4506 = vmatpush1.msra.mxu0 %v4400
    %4507 = vmatprep.subr.mxu0 %v4405
    %4508 = vmatpush1.msra.mxu0 %v4404
    %4509 = vmatprep.subr.mxu0 0.0
    %4510 = vmatpush1.msra.mxu0 0.0
    %4511 = vmatprep.subr.mxu0 0.0
    %4512 = vmatpush1.msra.mxu0 0.0
    %4513 = vmatprep.subr.mxu0 0.0
    %4514 = vmatpush1.msra.mxu0 0.0
    %4515 = vmatprep.subr.mxu0 0.0
    %4516 = vmatpush1.msra.mxu0 0.0
    %4517 = vmatprep.subr.mxu0 0.0
    %4518 = vmatpush1.msra.mxu0 0.0
    %4519 = vmatprep.subr.mxu0 0.0
    %4520 = vmatpush1.msra.mxu0 0.0
    %4521 = vmatprep.subr.mxu0 0.0
    %4522 = vmatpush1.msra.mxu0 0.0
    %4523 = vmatprep.subr.mxu0 0.0
    %4524 = vmatpush1.msra.mxu0 0.0
    %4525 = vmatprep.subr.mxu0 0.0
    %4526 = vmatpush1.msra.mxu0 0.0
    %4527 = vmatprep.subr.mxu0 0.0
    %4528 = vmatpush1.msra.mxu0 0.0
    %4529 = vmatprep.subr.mxu0 0.0
    %4530 = vmatpush1.msra.mxu0 0.0
    %4531 = vmatprep.subr.mxu0 0.0
    %4532 = vmatpush1.msra.mxu0 0.0
    %4533 = vmatprep.subr.mxu0 0.0
    %4534 = vmatpush1.msra.mxu0 0.0
    %4535 = vmatprep.subr.mxu0 0.0
    %4536 = vmatpush1.msra.mxu0 0.0
    %4537 = vmatprep.subr.mxu0 0.0
    %4538 = vmatpush1.msra.mxu0 0.0
    %4539 = vmatprep.subr.mxu0 0.0
    %4540 = vmatpush1.msra.mxu0 0.0
    %4541 = vmatprep.mubr.f32.mxu0 0.0
    %4542 = vmatmul.mubr.f32.gmra.mrb[0].mxu0 %v3883
    %v4543 = vpop.f32.mrb[0].mxu0
    %v4544 = vadd.f32 0.0, %v4543
    %v4545 = vpop.f32.mrb[0].mxu0
    %v4546 = vadd.f32 0.0, %v4545
    %4547 = vdwg.mxu0
    %v4548 = vadd.f32 %v4338, %v4473
    %v4549 = vadd.f32 %v4339, %v4475
    %v4550 = vadd.f32 %v4340, %v4544
    %v4551 = vadd.f32 %v4341, %v4546
    %v4552 = vadd.f32 %v4548, %v81
    %v4553 = vadd.f32 %v4549, %v85
    %v4554 = vadd.f32 %v4550, %v89
    %v4555 = vadd.f32 %v4551, %v93
    %v4556 = vxor.u32 %v4552, 2147483648
    %v4557 = vmul.f32 %v4556, 1.442695
    %v4558 = vpow.pop %v4557
    %v4559 = vadd.f32 %v4558, 1.0
    %v4560 = vrcp.pop %v4559
    %v4561 = vmul.f32 1.0, %v4560
    %v4562 = vxor.u32 %v4553, 2147483648
    %v4563 = vmul.f32 %v4562, 1.442695
    %v4564 = vpow.pop %v4563
    %v4565 = vadd.f32 %v4564, 1.0
    %v4566 = vrcp.pop %v4565
    %v4567 = vmul.f32 1.0, %v4566
    %v4568 = vtanh.pop %v4554
    %v4569 = vxor.u32 %v4555, 2147483648
    %v4570 = vmul.f32 %v4569, 1.442695
    %v4571 = vpow.pop %v4570
    %v4572 = vadd.f32 %v4571, 1.0
    %v4573 = vrcp.pop %v4572
    %v4574 = vmul.f32 1.0, %v4573
    %v4575 = vmul.f32 %v4567, %v3881
    %v4576 = vmul.f32 %v4561, %v4568
    %v4577 = vadd.f32 %v4575, %v4576
    %v4578 = vtanh.pop %v4577
    %v4579 = vmul.f32 %v4574, %v4578
    %v4580 = vld [vmem:[#allocation5] sm:$0xff]
    %v4581 = vld [vmem:[#allocation5 + $0x8] sm:$0xff]
    %v4582 = vld [vmem:[#allocation5 + $0x10] sm:$0xff]
    %v4583 = vld [vmem:[#allocation5 + $0x18] sm:$0xff]
    %v4584 = vld [vmem:[#allocation5 + $0x20] sm:$0xff]
    %v4585 = vld [vmem:[#allocation5 + $0x28] sm:$0xff]
    %v4586 = vld [vmem:[#allocation5 + $0x30] sm:$0xff]
    %v4587 = vld [vmem:[#allocation5 + $0x38] sm:$0xff]
    %v4588 = vld [vmem:[#allocation5 + $0x40] sm:$0xff]
    %v4589 = vld [vmem:[#allocation5 + $0x48] sm:$0xff]
    %v4590 = vld [vmem:[#allocation5 + $0x50] sm:$0xff]
    %v4591 = vld [vmem:[#allocation5 + $0x58] sm:$0xff]
    %v4592 = vld [vmem:[#allocation5 + $0x60] sm:$0xff]
    %v4593 = vld [vmem:[#allocation5 + $0x68] sm:$0xff]
    %v4594 = vld [vmem:[#allocation5 + $0x70] sm:$0xff]
    %v4595 = vld [vmem:[#allocation5 + $0x78] sm:$0xff]
    %v4596 = vld [vmem:[#allocation5 + $0x80] sm:$0xff]
    %v4597 = vld [vmem:[#allocation5 + $0x88] sm:$0xff]
    %v4598 = vld [vmem:[#allocation5 + $0x90] sm:$0xff]
    %v4599 = vld [vmem:[#allocation5 + $0x98] sm:$0xff]
    %v4600 = vld [vmem:[#allocation5 + $0xa0] sm:$0xff]
    %v4601 = vld [vmem:[#allocation5 + $0xa8] sm:$0xff]
    %v4602 = vld [vmem:[#allocation5 + $0xb0] sm:$0xff]
    %v4603 = vld [vmem:[#allocation5 + $0xb8] sm:$0xff]
    %v4604 = vld [vmem:[#allocation5 + $0xc0] sm:$0xff]
    %v4605 = vld [vmem:[#allocation5 + $0xc8] sm:$0xff]
    %v4606 = vld [vmem:[#allocation5 + $0xd0] sm:$0xff]
    %v4607 = vld [vmem:[#allocation5 + $0xd8] sm:$0xff]
    %v4608 = vld [vmem:[#allocation5 + $0xe0] sm:$0xff]
    %v4609 = vld [vmem:[#allocation5 + $0xe8] sm:$0xff]
    %v4610 = vld [vmem:[#allocation5 + $0xf0] sm:$0xff]
    %v4611 = vld [vmem:[#allocation5 + $0xf8] sm:$0xff]
    %v4612 = vld [vmem:[#allocation5 + $0x100] sm:$0xff]
    %v4613 = vld [vmem:[#allocation5 + $0x108] sm:$0xff]
    %v4614 = vld [vmem:[#allocation5 + $0x110] sm:$0xff]
    %v4615 = vld [vmem:[#allocation5 + $0x118] sm:$0xff]
    %v4616 = vld [vmem:[#allocation5 + $0x120] sm:$0xff]
    %v4617 = vld [vmem:[#allocation5 + $0x128] sm:$0xff]
    %v4618 = vld [vmem:[#allocation5 + $0x130] sm:$0xff]
    %v4619 = vld [vmem:[#allocation5 + $0x138] sm:$0xff]
    %v4620 = vld [vmem:[#allocation5 + $0x140] sm:$0xff]
    %v4621 = vld [vmem:[#allocation5 + $0x148] sm:$0xff]
    %v4622 = vld [vmem:[#allocation5 + $0x150] sm:$0xff]
    %v4623 = vld [vmem:[#allocation5 + $0x158] sm:$0xff]
    %v4624 = vld [vmem:[#allocation5 + $0x160] sm:$0xff]
    %v4625 = vld [vmem:[#allocation5 + $0x168] sm:$0xff]
    %v4626 = vld [vmem:[#allocation5 + $0x170] sm:$0xff]
    %v4627 = vld [vmem:[#allocation5 + $0x178] sm:$0xff]
    %v4628 = vld [vmem:[#allocation5 + $0x180] sm:$0xff]
    %v4629 = vld [vmem:[#allocation5 + $0x188] sm:$0xff]
    %v4630 = vld [vmem:[#allocation5 + $0x190] sm:$0xff]
    %v4631 = vld [vmem:[#allocation5 + $0x198] sm:$0xff]
    %v4632 = vld [vmem:[#allocation5 + $0x1a0] sm:$0xff]
    %v4633 = vld [vmem:[#allocation5 + $0x1a8] sm:$0xff]
    %v4634 = vld [vmem:[#allocation5 + $0x1b0] sm:$0xff]
    %v4635 = vld [vmem:[#allocation5 + $0x1b8] sm:$0xff]
    %v4636 = vld [vmem:[#allocation5 + $0x1c0] sm:$0xff]
    %v4637 = vld [vmem:[#allocation5 + $0x1c8] sm:$0xff]
    %v4638 = vld [vmem:[#allocation5 + $0x1d0] sm:$0xff]
    %v4639 = vld [vmem:[#allocation5 + $0x1d8] sm:$0xff]
    %v4640 = vld [vmem:[#allocation5 + $0x1e0] sm:$0xff]
    %v4641 = vld [vmem:[#allocation5 + $0x1e8] sm:$0xff]
    %v4642 = vld [vmem:[#allocation5 + $0x1f0] sm:$0xff]
    %v4643 = vld [vmem:[#allocation5 + $0x1f8] sm:$0xff]
    %v4644 = vld [vmem:[#allocation7] sm:$0xff]
    %v4645 = vld [vmem:[#allocation7 + $0x8] sm:$0xff]
    %v4646 = vld [vmem:[#allocation7 + $0x10] sm:$0xff]
    %v4647 = vld [vmem:[#allocation7 + $0x18] sm:$0xff]
    %v4648 = vld [vmem:[#allocation7 + $0x20] sm:$0xff]
    %v4649 = vld [vmem:[#allocation7 + $0x28] sm:$0xff]
    %v4650 = vld [vmem:[#allocation7 + $0x30] sm:$0xff]
    %v4651 = vld [vmem:[#allocation7 + $0x38] sm:$0xff]
    %v4652 = vld [vmem:[#allocation7 + $0x40] sm:$0xff]
    %v4653 = vld [vmem:[#allocation7 + $0x48] sm:$0xff]
    %v4654 = vld [vmem:[#allocation7 + $0x50] sm:$0xff]
    %v4655 = vld [vmem:[#allocation7 + $0x58] sm:$0xff]
    %v4656 = vld [vmem:[#allocation7 + $0x60] sm:$0xff]
    %v4657 = vld [vmem:[#allocation7 + $0x68] sm:$0xff]
    %v4658 = vld [vmem:[#allocation7 + $0x70] sm:$0xff]
    %v4659 = vld [vmem:[#allocation7 + $0x78] sm:$0xff]
    %v4660 = vld [vmem:[#allocation7 + $0x80] sm:$0xff]
    %v4661 = vld [vmem:[#allocation7 + $0x88] sm:$0xff]
    %v4662 = vld [vmem:[#allocation7 + $0x90] sm:$0xff]
    %v4663 = vld [vmem:[#allocation7 + $0x98] sm:$0xff]
    %v4664 = vld [vmem:[#allocation7 + $0xa0] sm:$0xff]
    %v4665 = vld [vmem:[#allocation7 + $0xa8] sm:$0xff]
    %v4666 = vld [vmem:[#allocation7 + $0xb0] sm:$0xff]
    %v4667 = vld [vmem:[#allocation7 + $0xb8] sm:$0xff]
    %v4668 = vld [vmem:[#allocation7 + $0xc0] sm:$0xff]
    %v4669 = vld [vmem:[#allocation7 + $0xc8] sm:$0xff]
    %v4670 = vld [vmem:[#allocation7 + $0xd0] sm:$0xff]
    %v4671 = vld [vmem:[#allocation7 + $0xd8] sm:$0xff]
    %v4672 = vld [vmem:[#allocation7 + $0xe0] sm:$0xff]
    %v4673 = vld [vmem:[#allocation7 + $0xe8] sm:$0xff]
    %v4674 = vld [vmem:[#allocation7 + $0xf0] sm:$0xff]
    %v4675 = vld [vmem:[#allocation7 + $0xf8] sm:$0xff]
    %v4676 = vld [vmem:[#allocation7 + $0x100] sm:$0xff]
    %v4677 = vld [vmem:[#allocation7 + $0x108] sm:$0xff]
    %v4678 = vld [vmem:[#allocation7 + $0x110] sm:$0xff]
    %v4679 = vld [vmem:[#allocation7 + $0x118] sm:$0xff]
    %v4680 = vld [vmem:[#allocation7 + $0x120] sm:$0xff]
    %v4681 = vld [vmem:[#allocation7 + $0x128] sm:$0xff]
    %v4682 = vld [vmem:[#allocation7 + $0x130] sm:$0xff]
    %v4683 = vld [vmem:[#allocation7 + $0x138] sm:$0xff]
    %v4684 = vld [vmem:[#allocation7 + $0x140] sm:$0xff]
    %v4685 = vld [vmem:[#allocation7 + $0x148] sm:$0xff]
    %v4686 = vld [vmem:[#allocation7 + $0x150] sm:$0xff]
    %v4687 = vld [vmem:[#allocation7 + $0x158] sm:$0xff]
    %v4688 = vld [vmem:[#allocation7 + $0x160] sm:$0xff]
    %v4689 = vld [vmem:[#allocation7 + $0x168] sm:$0xff]
    %v4690 = vld [vmem:[#allocation7 + $0x170] sm:$0xff]
    %v4691 = vld [vmem:[#allocation7 + $0x178] sm:$0xff]
    %v4692 = vld [vmem:[#allocation7 + $0x180] sm:$0xff]
    %v4693 = vld [vmem:[#allocation7 + $0x188] sm:$0xff]
    %v4694 = vld [vmem:[#allocation7 + $0x190] sm:$0xff]
    %v4695 = vld [vmem:[#allocation7 + $0x198] sm:$0xff]
    %v4696 = vld [vmem:[#allocation7 + $0x1a0] sm:$0xff]
    %v4697 = vld [vmem:[#allocation7 + $0x1a8] sm:$0xff]
    %v4698 = vld [vmem:[#allocation7 + $0x1b0] sm:$0xff]
    %v4699 = vld [vmem:[#allocation7 + $0x1b8] sm:$0xff]
    %v4700 = vld [vmem:[#allocation7 + $0x1c0] sm:$0xff]
    %v4701 = vld [vmem:[#allocation7 + $0x1c8] sm:$0xff]
    %v4702 = vld [vmem:[#allocation7 + $0x1d0] sm:$0xff]
    %v4703 = vld [vmem:[#allocation7 + $0x1d8] sm:$0xff]
    %v4704 = vld [vmem:[#allocation7 + $0x1e0] sm:$0xff]
    %v4705 = vld [vmem:[#allocation7 + $0x1e8] sm:$0xff]
    %v4706 = vld [vmem:[#allocation7 + $0x1f0] sm:$0xff]
    %v4707 = vld [vmem:[#allocation7 + $0x1f8] sm:$0xff]
    %4708 = vmatprep.subr.mxu0 %v4645
    %4709 = vmatpush1.msra.mxu0 %v4644
    %4710 = vmatprep.subr.mxu0 %v4649
    %4711 = vmatpush1.msra.mxu0 %v4648
    %4712 = vmatprep.subr.mxu0 %v4653
    %4713 = vmatpush1.msra.mxu0 %v4652
    %4714 = vmatprep.subr.mxu0 %v4657
    %4715 = vmatpush1.msra.mxu0 %v4656
    %4716 = vmatprep.subr.mxu0 %v4661
    %4717 = vmatpush1.msra.mxu0 %v4660
    %4718 = vmatprep.subr.mxu0 %v4665
    %4719 = vmatpush1.msra.mxu0 %v4664
    %4720 = vmatprep.subr.mxu0 %v4669
    %4721 = vmatpush1.msra.mxu0 %v4668
    %4722 = vmatprep.subr.mxu0 %v4673
    %4723 = vmatpush1.msra.mxu0 %v4672
    %4724 = vmatprep.subr.mxu0 %v4677
    %4725 = vmatpush1.msra.mxu0 %v4676
    %4726 = vmatprep.subr.mxu0 %v4681
    %4727 = vmatpush1.msra.mxu0 %v4680
    %4728 = vmatprep.subr.mxu0 %v4685
    %4729 = vmatpush1.msra.mxu0 %v4684
    %4730 = vmatprep.subr.mxu0 %v4689
    %4731 = vmatpush1.msra.mxu0 %v4688
    %4732 = vmatprep.subr.mxu0 %v4693
    %4733 = vmatpush1.msra.mxu0 %v4692
    %4734 = vmatprep.subr.mxu0 %v4697
    %4735 = vmatpush1.msra.mxu0 %v4696
    %4736 = vmatprep.subr.mxu0 %v4701
    %4737 = vmatpush1.msra.mxu0 %v4700
    %4738 = vmatprep.subr.mxu0 %v4705
    %4739 = vmatpush1.msra.mxu0 %v4704
    %4740 = vmatprep.subr.mxu0 0.0
    %4741 = vmatpush1.msra.mxu0 0.0
    %4742 = vmatprep.subr.mxu0 0.0
    %4743 = vmatpush1.msra.mxu0 0.0
    %4744 = vmatprep.subr.mxu0 0.0
    %4745 = vmatpush1.msra.mxu0 0.0
    %4746 = vmatprep.subr.mxu0 0.0
    %4747 = vmatpush1.msra.mxu0 0.0
    %4748 = vmatprep.subr.mxu0 0.0
    %4749 = vmatpush1.msra.mxu0 0.0
    %4750 = vmatprep.subr.mxu0 0.0
    %4751 = vmatpush1.msra.mxu0 0.0
    %4752 = vmatprep.subr.mxu0 0.0
    %4753 = vmatpush1.msra.mxu0 0.0
    %4754 = vmatprep.subr.mxu0 0.0
    %4755 = vmatpush1.msra.mxu0 0.0
    %4756 = vmatprep.subr.mxu0 0.0
    %4757 = vmatpush1.msra.mxu0 0.0
    %4758 = vmatprep.subr.mxu0 0.0
    %4759 = vmatpush1.msra.mxu0 0.0
    %4760 = vmatprep.subr.mxu0 0.0
    %4761 = vmatpush1.msra.mxu0 0.0
    %4762 = vmatprep.subr.mxu0 0.0
    %4763 = vmatpush1.msra.mxu0 0.0
    %4764 = vmatprep.subr.mxu0 0.0
    %4765 = vmatpush1.msra.mxu0 0.0
    %4766 = vmatprep.subr.mxu0 0.0
    %4767 = vmatpush1.msra.mxu0 0.0
    %4768 = vmatprep.subr.mxu0 0.0
    %4769 = vmatpush1.msra.mxu0 0.0
    %4770 = vmatprep.subr.mxu0 0.0
    %4771 = vmatpush1.msra.mxu0 0.0
    %4772 = vmatprep.mubr.f32.mxu0 0.0
    %4773 = vmatmul.mubr.f32.gmra.mrb[0].mxu0 %v4323
    %v4774 = vpop.f32.mrb[0].mxu0
    %v4775 = vadd.f32 0.0, %v4774
    %v4776 = vpop.f32.mrb[0].mxu0
    %v4777 = vadd.f32 0.0, %v4776
    %4778 = vdwg.mxu0
    %4779 = vmatprep.subr.mxu0 %v4647
    %4780 = vmatpush1.msra.mxu0 %v4646
    %4781 = vmatprep.subr.mxu0 %v4651
    %4782 = vmatpush1.msra.mxu0 %v4650
    %4783 = vmatprep.subr.mxu0 %v4655
    %4784 = vmatpush1.msra.mxu0 %v4654
    %4785 = vmatprep.subr.mxu0 %v4659
    %4786 = vmatpush1.msra.mxu0 %v4658
    %4787 = vmatprep.subr.mxu0 %v4663
    %4788 = vmatpush1.msra.mxu0 %v4662
    %4789 = vmatprep.subr.mxu0 %v4667
    %4790 = vmatpush1.msra.mxu0 %v4666
    %4791 = vmatprep.subr.mxu0 %v4671
    %4792 = vmatpush1.msra.mxu0 %v4670
    %4793 = vmatprep.subr.mxu0 %v4675
    %4794 = vmatpush1.msra.mxu0 %v4674
    %4795 = vmatprep.subr.mxu0 %v4679
    %4796 = vmatpush1.msra.mxu0 %v4678
    %4797 = vmatprep.subr.mxu0 %v4683
    %4798 = vmatpush1.msra.mxu0 %v4682
    %4799 = vmatprep.subr.mxu0 %v4687
    %4800 = vmatpush1.msra.mxu0 %v4686
    %4801 = vmatprep.subr.mxu0 %v4691
    %4802 = vmatpush1.msra.mxu0 %v4690
    %4803 = vmatprep.subr.mxu0 %v4695
    %4804 = vmatpush1.msra.mxu0 %v4694
    %4805 = vmatprep.subr.mxu0 %v4699
    %4806 = vmatpush1.msra.mxu0 %v4698
    %4807 = vmatprep.subr.mxu0 %v4703
    %4808 = vmatpush1.msra.mxu0 %v4702
    %4809 = vmatprep.subr.mxu0 %v4707
    %4810 = vmatpush1.msra.mxu0 %v4706
    %4811 = vmatprep.subr.mxu0 0.0
    %4812 = vmatpush1.msra.mxu0 0.0
    %4813 = vmatprep.subr.mxu0 0.0
    %4814 = vmatpush1.msra.mxu0 0.0
    %4815 = vmatprep.subr.mxu0 0.0
    %4816 = vmatpush1.msra.mxu0 0.0
    %4817 = vmatprep.subr.mxu0 0.0
    %4818 = vmatpush1.msra.mxu0 0.0
    %4819 = vmatprep.subr.mxu0 0.0
    %4820 = vmatpush1.msra.mxu0 0.0
    %4821 = vmatprep.subr.mxu0 0.0
    %4822 = vmatpush1.msra.mxu0 0.0
    %4823 = vmatprep.subr.mxu0 0.0
    %4824 = vmatpush1.msra.mxu0 0.0
    %4825 = vmatprep.subr.mxu0 0.0
    %4826 = vmatpush1.msra.mxu0 0.0
    %4827 = vmatprep.subr.mxu0 0.0
    %4828 = vmatpush1.msra.mxu0 0.0
    %4829 = vmatprep.subr.mxu0 0.0
    %4830 = vmatpush1.msra.mxu0 0.0
    %4831 = vmatprep.subr.mxu0 0.0
    %4832 = vmatpush1.msra.mxu0 0.0
    %4833 = vmatprep.subr.mxu0 0.0
    %4834 = vmatpush1.msra.mxu0 0.0
    %4835 = vmatprep.subr.mxu0 0.0
    %4836 = vmatpush1.msra.mxu0 0.0
    %4837 = vmatprep.subr.mxu0 0.0
    %4838 = vmatpush1.msra.mxu0 0.0
    %4839 = vmatprep.subr.mxu0 0.0
    %4840 = vmatpush1.msra.mxu0 0.0
    %4841 = vmatprep.subr.mxu0 0.0
    %4842 = vmatpush1.msra.mxu0 0.0
    %4843 = vmatprep.mubr.f32.mxu0 0.0
    %4844 = vmatmul.mubr.f32.gmra.mrb[0].mxu0 %v4323
    %v4845 = vpop.f32.mrb[0].mxu0
    %v4846 = vadd.f32 0.0, %v4845
    %v4847 = vpop.f32.mrb[0].mxu0
    %v4848 = vadd.f32 0.0, %v4847
    %4849 = vdwg.mxu0
    %4850 = vmatprep.subr.mxu0 %v4581
    %4851 = vmatpush1.msra.mxu0 %v4580
    %4852 = vmatprep.subr.mxu0 %v4585
    %4853 = vmatpush1.msra.mxu0 %v4584
    %4854 = vmatprep.subr.mxu0 %v4589
    %4855 = vmatpush1.msra.mxu0 %v4588
    %4856 = vmatprep.subr.mxu0 %v4593
    %4857 = vmatpush1.msra.mxu0 %v4592
    %4858 = vmatprep.subr.mxu0 %v4597
    %4859 = vmatpush1.msra.mxu0 %v4596
    %4860 = vmatprep.subr.mxu0 %v4601
    %4861 = vmatpush1.msra.mxu0 %v4600
    %4862 = vmatprep.subr.mxu0 %v4605
    %4863 = vmatpush1.msra.mxu0 %v4604
    %4864 = vmatprep.subr.mxu0 %v4609
    %4865 = vmatpush1.msra.mxu0 %v4608
    %4866 = vmatprep.subr.mxu0 %v4613
    %4867 = vmatpush1.msra.mxu0 %v4612
    %4868 = vmatprep.subr.mxu0 %v4617
    %4869 = vmatpush1.msra.mxu0 %v4616
    %4870 = vmatprep.subr.mxu0 %v4621
    %4871 = vmatpush1.msra.mxu0 %v4620
    %4872 = vmatprep.subr.mxu0 %v4625
    %4873 = vmatpush1.msra.mxu0 %v4624
    %4874 = vmatprep.subr.mxu0 %v4629
    %4875 = vmatpush1.msra.mxu0 %v4628
    %4876 = vmatprep.subr.mxu0 %v4633
    %4877 = vmatpush1.msra.mxu0 %v4632
    %4878 = vmatprep.subr.mxu0 %v4637
    %4879 = vmatpush1.msra.mxu0 %v4636
    %4880 = vmatprep.subr.mxu0 %v4641
    %4881 = vmatpush1.msra.mxu0 %v4640
    %4882 = vmatprep.subr.mxu0 0.0
    %4883 = vmatpush1.msra.mxu0 0.0
    %4884 = vmatprep.subr.mxu0 0.0
    %4885 = vmatpush1.msra.mxu0 0.0
    %4886 = vmatprep.subr.mxu0 0.0
    %4887 = vmatpush1.msra.mxu0 0.0
    %4888 = vmatprep.subr.mxu0 0.0
    %4889 = vmatpush1.msra.mxu0 0.0
    %4890 = vmatprep.subr.mxu0 0.0
    %4891 = vmatpush1.msra.mxu0 0.0
    %4892 = vmatprep.subr.mxu0 0.0
    %4893 = vmatpush1.msra.mxu0 0.0
    %4894 = vmatprep.subr.mxu0 0.0
    %4895 = vmatpush1.msra.mxu0 0.0
    %4896 = vmatprep.subr.mxu0 0.0
    %4897 = vmatpush1.msra.mxu0 0.0
    %4898 = vmatprep.subr.mxu0 0.0
    %4899 = vmatpush1.msra.mxu0 0.0
    %4900 = vmatprep.subr.mxu0 0.0
    %4901 = vmatpush1.msra.mxu0 0.0
    %4902 = vmatprep.subr.mxu0 0.0
    %4903 = vmatpush1.msra.mxu0 0.0
    %4904 = vmatprep.subr.mxu0 0.0
    %4905 = vmatpush1.msra.mxu0 0.0
    %4906 = vmatprep.subr.mxu0 0.0
    %4907 = vmatpush1.msra.mxu0 0.0
    %4908 = vmatprep.subr.mxu0 0.0
    %4909 = vmatpush1.msra.mxu0 0.0
    %4910 = vmatprep.subr.mxu0 0.0
    %4911 = vmatpush1.msra.mxu0 0.0
    %4912 = vmatprep.subr.mxu0 0.0
    %4913 = vmatpush1.msra.mxu0 0.0
    %4914 = vmatprep.mubr.f32.mxu0 0.0
    %4915 = vmatmul.mubr.f32.gmra.mrb[0].mxu0 %v4579
    %v4916 = vpop.f32.mrb[0].mxu0
    %v4917 = vadd.f32 %v4775, %v4916
    %v4918 = vpop.f32.mrb[0].mxu0
    %v4919 = vadd.f32 %v4777, %v4918
    %4920 = vdwg.mxu0
    %4921 = vmatprep.subr.mxu0 %v4583
    %4922 = vmatpush1.msra.mxu0 %v4582
    %4923 = vmatprep.subr.mxu0 %v4587
    %4924 = vmatpush1.msra.mxu0 %v4586
    %4925 = vmatprep.subr.mxu0 %v4591
    %4926 = vmatpush1.msra.mxu0 %v4590
    %4927 = vmatprep.subr.mxu0 %v4595
    %4928 = vmatpush1.msra.mxu0 %v4594
    %4929 = vmatprep.subr.mxu0 %v4599
    %4930 = vmatpush1.msra.mxu0 %v4598
    %4931 = vmatprep.subr.mxu0 %v4603
    %4932 = vmatpush1.msra.mxu0 %v4602
    %4933 = vmatprep.subr.mxu0 %v4607
    %4934 = vmatpush1.msra.mxu0 %v4606
    %4935 = vmatprep.subr.mxu0 %v4611
    %4936 = vmatpush1.msra.mxu0 %v4610
    %4937 = vmatprep.subr.mxu0 %v4615
    %4938 = vmatpush1.msra.mxu0 %v4614
    %4939 = vmatprep.subr.mxu0 %v4619
    %4940 = vmatpush1.msra.mxu0 %v4618
    %4941 = vmatprep.subr.mxu0 %v4623
    %4942 = vmatpush1.msra.mxu0 %v4622
    %4943 = vmatprep.subr.mxu0 %v4627
    %4944 = vmatpush1.msra.mxu0 %v4626
    %4945 = vmatprep.subr.mxu0 %v4631
    %4946 = vmatpush1.msra.mxu0 %v4630
    %4947 = vmatprep.subr.mxu0 %v4635
    %4948 = vmatpush1.msra.mxu0 %v4634
    %4949 = vmatprep.subr.mxu0 %v4639
    %4950 = vmatpush1.msra.mxu0 %v4638
    %4951 = vmatprep.subr.mxu0 %v4643
    %4952 = vmatpush1.msra.mxu0 %v4642
    %4953 = vmatprep.subr.mxu0 0.0
    %4954 = vmatpush1.msra.mxu0 0.0
    %4955 = vmatprep.subr.mxu0 0.0
    %4956 = vmatpush1.msra.mxu0 0.0
    %4957 = vmatprep.subr.mxu0 0.0
    %4958 = vmatpush1.msra.mxu0 0.0
    %4959 = vmatprep.subr.mxu0 0.0
    %4960 = vmatpush1.msra.mxu0 0.0
    %4961 = vmatprep.subr.mxu0 0.0
    %4962 = vmatpush1.msra.mxu0 0.0
    %4963 = vmatprep.subr.mxu0 0.0
    %4964 = vmatpush1.msra.mxu0 0.0
    %4965 = vmatprep.subr.mxu0 0.0
    %4966 = vmatpush1.msra.mxu0 0.0
    %4967 = vmatprep.subr.mxu0 0.0
    %4968 = vmatpush1.msra.mxu0 0.0
    %4969 = vmatprep.subr.mxu0 0.0
    %4970 = vmatpush1.msra.mxu0 0.0
    %4971 = vmatprep.subr.mxu0 0.0
    %4972 = vmatpush1.msra.mxu0 0.0
    %4973 = vmatprep.subr.mxu0 0.0
    %4974 = vmatpush1.msra.mxu0 0.0
    %4975 = vmatprep.subr.mxu0 0.0
    %4976 = vmatpush1.msra.mxu0 0.0
    %4977 = vmatprep.subr.mxu0 0.0
    %4978 = vmatpush1.msra.mxu0 0.0
    %4979 = vmatprep.subr.mxu0 0.0
    %4980 = vmatpush1.msra.mxu0 0.0
    %4981 = vmatprep.subr.mxu0 0.0
    %4982 = vmatpush1.msra.mxu0 0.0
    %4983 = vmatprep.subr.mxu0 0.0
    %4984 = vmatpush1.msra.mxu0 0.0
    %4985 = vmatprep.mubr.f32.mxu0 0.0
    %4986 = vmatmul.mubr.f32.gmra.mrb[0].mxu0 %v4579
    %v4987 = vpop.f32.mrb[0].mxu0
    %v4988 = vadd.f32 %v4846, %v4987
    %v4989 = vpop.f32.mrb[0].mxu0
    %v4990 = vadd.f32 %v4848, %v4989
    %4991 = vdwg.mxu0
    %v4992 = vadd.f32 %v4917, %v103
    %v4993 = vadd.f32 %v4919, %v107
    %v4994 = vadd.f32 %v4988, %v111
    %v4995 = vadd.f32 %v4990, %v115
    %v4996 = vxor.u32 %v4992, 2147483648
    %v4997 = vmul.f32 %v4996, 1.442695
    %v4998 = vpow.pop %v4997
    %v4999 = vadd.f32 %v4998, 1.0
    %v5000 = vrcp.pop %v4999
    %v5001 = vmul.f32 1.0, %v5000
    %v5002 = vxor.u32 %v4993, 2147483648
    %v5003 = vmul.f32 %v5002, 1.442695
    %v5004 = vpow.pop %v5003
    %v5005 = vadd.f32 %v5004, 1.0
    %v5006 = vrcp.pop %v5005
    %v5007 = vmul.f32 1.0, %v5006
    %v5008 = vtanh.pop %v4994
    %v5009 = vxor.u32 %v4995, 2147483648
    %v5010 = vmul.f32 %v5009, 1.442695
    %v5011 = vpow.pop %v5010
    %v5012 = vadd.f32 %v5011, 1.0
    %v5013 = vrcp.pop %v5012
    %v5014 = vmul.f32 1.0, %v5013
    %v5015 = vmul.f32 %v5007, %v4321
    %v5016 = vmul.f32 %v5001, %v5008
    %v5017 = vadd.f32 %v5015, %v5016
    %v5018 = vtanh.pop %v5017
    %v5019 = vmul.f32 %v5014, %v5018
    %v5020 = vmul.f32 %v5019, %v841
    %v5021 = vsel %vm844, %v5020, 0.0
    %5022 = vadd.xlane.f32.xlu0 %v5021
    %v5023 = vpop.xlane.xlu0 %5022
    %v5024 = vadd.f32 %v5023, %v126
    %s5025 = scalar_lea.vmem %s9, 12
    %5026 = vst.msk [vmem:[%s5025] sm:$0x3] %vm849, %v5024
    %s5027 = scalar_lea.vmem %s0, 14
    %v5028 = vld [vmem:[%s5027] sm:$0x3]
    %5030 = vset.pattern.permute.xlu0 0
    %5031 = vperm.xlu0 %5030, %v5028
    %v5032 = vpop.permute.xlu0 %5031
    %v5034 = vmul.f32 %v5032, %v138
    %v5035 = vmul.f32 %v5032, %v142
    %v5036 = vmul.f32 %v5032, %v146
    %v5037 = vmul.f32 %v5032, %v150
    %v5038 = vld [vmem:[#allocation3] sm:$0xff]
    %v5039 = vld [vmem:[#allocation3 + $0x8] sm:$0xff]
    %v5040 = vld [vmem:[#allocation3 + $0x10] sm:$0xff]
    %v5041 = vld [vmem:[#allocation3 + $0x18] sm:$0xff]
    %v5042 = vld [vmem:[#allocation3 + $0x20] sm:$0xff]
    %v5043 = vld [vmem:[#allocation3 + $0x28] sm:$0xff]
    %v5044 = vld [vmem:[#allocation3 + $0x30] sm:$0xff]
    %v5045 = vld [vmem:[#allocation3 + $0x38] sm:$0xff]
    %v5046 = vld [vmem:[#allocation3 + $0x40] sm:$0xff]
    %v5047 = vld [vmem:[#allocation3 + $0x48] sm:$0xff]
    %v5048 = vld [vmem:[#allocation3 + $0x50] sm:$0xff]
    %v5049 = vld [vmem:[#allocation3 + $0x58] sm:$0xff]
    %v5050 = vld [vmem:[#allocation3 + $0x60] sm:$0xff]
    %v5051 = vld [vmem:[#allocation3 + $0x68] sm:$0xff]
    %v5052 = vld [vmem:[#allocation3 + $0x70] sm:$0xff]
    %v5053 = vld [vmem:[#allocation3 + $0x78] sm:$0xff]
    %v5054 = vld [vmem:[#allocation3 + $0x80] sm:$0xff]
    %v5055 = vld [vmem:[#allocation3 + $0x88] sm:$0xff]
    %v5056 = vld [vmem:[#allocation3 + $0x90] sm:$0xff]
    %v5057 = vld [vmem:[#allocation3 + $0x98] sm:$0xff]
    %v5058 = vld [vmem:[#allocation3 + $0xa0] sm:$0xff]
    %v5059 = vld [vmem:[#allocation3 + $0xa8] sm:$0xff]
    %v5060 = vld [vmem:[#allocation3 + $0xb0] sm:$0xff]
    %v5061 = vld [vmem:[#allocation3 + $0xb8] sm:$0xff]
    %v5062 = vld [vmem:[#allocation3 + $0xc0] sm:$0xff]
    %v5063 = vld [vmem:[#allocation3 + $0xc8] sm:$0xff]
    %v5064 = vld [vmem:[#allocation3 + $0xd0] sm:$0xff]
    %v5065 = vld [vmem:[#allocation3 + $0xd8] sm:$0xff]
    %v5066 = vld [vmem:[#allocation3 + $0xe0] sm:$0xff]
    %v5067 = vld [vmem:[#allocation3 + $0xe8] sm:$0xff]
    %v5068 = vld [vmem:[#allocation3 + $0xf0] sm:$0xff]
    %v5069 = vld [vmem:[#allocation3 + $0xf8] sm:$0xff]
    %v5070 = vld [vmem:[#allocation3 + $0x100] sm:$0xff]
    %v5071 = vld [vmem:[#allocation3 + $0x108] sm:$0xff]
    %v5072 = vld [vmem:[#allocation3 + $0x110] sm:$0xff]
    %v5073 = vld [vmem:[#allocation3 + $0x118] sm:$0xff]
    %v5074 = vld [vmem:[#allocation3 + $0x120] sm:$0xff]
    %v5075 = vld [vmem:[#allocation3 + $0x128] sm:$0xff]
    %v5076 = vld [vmem:[#allocation3 + $0x130] sm:$0xff]
    %v5077 = vld [vmem:[#allocation3 + $0x138] sm:$0xff]
    %v5078 = vld [vmem:[#allocation3 + $0x140] sm:$0xff]
    %v5079 = vld [vmem:[#allocation3 + $0x148] sm:$0xff]
    %v5080 = vld [vmem:[#allocation3 + $0x150] sm:$0xff]
    %v5081 = vld [vmem:[#allocation3 + $0x158] sm:$0xff]
    %v5082 = vld [vmem:[#allocation3 + $0x160] sm:$0xff]
    %v5083 = vld [vmem:[#allocation3 + $0x168] sm:$0xff]
    %v5084 = vld [vmem:[#allocation3 + $0x170] sm:$0xff]
    %v5085 = vld [vmem:[#allocation3 + $0x178] sm:$0xff]
    %v5086 = vld [vmem:[#allocation3 + $0x180] sm:$0xff]
    %v5087 = vld [vmem:[#allocation3 + $0x188] sm:$0xff]
    %v5088 = vld [vmem:[#allocation3 + $0x190] sm:$0xff]
    %v5089 = vld [vmem:[#allocation3 + $0x198] sm:$0xff]
    %v5090 = vld [vmem:[#allocation3 + $0x1a0] sm:$0xff]
    %v5091 = vld [vmem:[#allocation3 + $0x1a8] sm:$0xff]
    %v5092 = vld [vmem:[#allocation3 + $0x1b0] sm:$0xff]
    %v5093 = vld [vmem:[#allocation3 + $0x1b8] sm:$0xff]
    %v5094 = vld [vmem:[#allocation3 + $0x1c0] sm:$0xff]
    %v5095 = vld [vmem:[#allocation3 + $0x1c8] sm:$0xff]
    %v5096 = vld [vmem:[#allocation3 + $0x1d0] sm:$0xff]
    %v5097 = vld [vmem:[#allocation3 + $0x1d8] sm:$0xff]
    %v5098 = vld [vmem:[#allocation3 + $0x1e0] sm:$0xff]
    %v5099 = vld [vmem:[#allocation3 + $0x1e8] sm:$0xff]
    %v5100 = vld [vmem:[#allocation3 + $0x1f0] sm:$0xff]
    %v5101 = vld [vmem:[#allocation3 + $0x1f8] sm:$0xff]
    %5102 = vmatprep.subr.mxu0 %v5039
    %5103 = vmatpush1.msra.mxu0 %v5038
    %5104 = vmatprep.subr.mxu0 %v5043
    %5105 = vmatpush1.msra.mxu0 %v5042
    %5106 = vmatprep.subr.mxu0 %v5047
    %5107 = vmatpush1.msra.mxu0 %v5046
    %5108 = vmatprep.subr.mxu0 %v5051
    %5109 = vmatpush1.msra.mxu0 %v5050
    %5110 = vmatprep.subr.mxu0 %v5055
    %5111 = vmatpush1.msra.mxu0 %v5054
    %5112 = vmatprep.subr.mxu0 %v5059
    %5113 = vmatpush1.msra.mxu0 %v5058
    %5114 = vmatprep.subr.mxu0 %v5063
    %5115 = vmatpush1.msra.mxu0 %v5062
    %5116 = vmatprep.subr.mxu0 %v5067
    %5117 = vmatpush1.msra.mxu0 %v5066
    %5118 = vmatprep.subr.mxu0 %v5071
    %5119 = vmatpush1.msra.mxu0 %v5070
    %5120 = vmatprep.subr.mxu0 %v5075
    %5121 = vmatpush1.msra.mxu0 %v5074
    %5122 = vmatprep.subr.mxu0 %v5079
    %5123 = vmatpush1.msra.mxu0 %v5078
    %5124 = vmatprep.subr.mxu0 %v5083
    %5125 = vmatpush1.msra.mxu0 %v5082
    %5126 = vmatprep.subr.mxu0 %v5087
    %5127 = vmatpush1.msra.mxu0 %v5086
    %5128 = vmatprep.subr.mxu0 %v5091
    %5129 = vmatpush1.msra.mxu0 %v5090
    %5130 = vmatprep.subr.mxu0 %v5095
    %5131 = vmatpush1.msra.mxu0 %v5094
    %5132 = vmatprep.subr.mxu0 %v5099
    %5133 = vmatpush1.msra.mxu0 %v5098
    %5134 = vmatprep.subr.mxu0 0.0
    %5135 = vmatpush1.msra.mxu0 0.0
    %5136 = vmatprep.subr.mxu0 0.0
    %5137 = vmatpush1.msra.mxu0 0.0
    %5138 = vmatprep.subr.mxu0 0.0
    %5139 = vmatpush1.msra.mxu0 0.0
    %5140 = vmatprep.subr.mxu0 0.0
    %5141 = vmatpush1.msra.mxu0 0.0
    %5142 = vmatprep.subr.mxu0 0.0
    %5143 = vmatpush1.msra.mxu0 0.0
    %5144 = vmatprep.subr.mxu0 0.0
    %5145 = vmatpush1.msra.mxu0 0.0
    %5146 = vmatprep.subr.mxu0 0.0
    %5147 = vmatpush1.msra.mxu0 0.0
    %5148 = vmatprep.subr.mxu0 0.0
    %5149 = vmatpush1.msra.mxu0 0.0
    %5150 = vmatprep.subr.mxu0 0.0
    %5151 = vmatpush1.msra.mxu0 0.0
    %5152 = vmatprep.subr.mxu0 0.0
    %5153 = vmatpush1.msra.mxu0 0.0
    %5154 = vmatprep.subr.mxu0 0.0
    %5155 = vmatpush1.msra.mxu0 0.0
    %5156 = vmatprep.subr.mxu0 0.0
    %5157 = vmatpush1.msra.mxu0 0.0
    %5158 = vmatprep.subr.mxu0 0.0
    %5159 = vmatpush1.msra.mxu0 0.0
    %5160 = vmatprep.subr.mxu0 0.0
    %5161 = vmatpush1.msra.mxu0 0.0
    %5162 = vmatprep.subr.mxu0 0.0
    %5163 = vmatpush1.msra.mxu0 0.0
    %5164 = vmatprep.subr.mxu0 0.0
    %5165 = vmatpush1.msra.mxu0 0.0
    %5166 = vmatprep.mubr.f32.mxu0 0.0
    %5167 = vmatmul.mubr.f32.gmra.mrb[0].mxu0 %v4579
    %v5168 = vpop.f32.mrb[0].mxu0
    %v5169 = vadd.f32 0.0, %v5168
    %v5170 = vpop.f32.mrb[0].mxu0
    %v5171 = vadd.f32 0.0, %v5170
    %5172 = vdwg.mxu0
    %5173 = vmatprep.subr.mxu0 %v5041
    %5174 = vmatpush1.msra.mxu0 %v5040
    %5175 = vmatprep.subr.mxu0 %v5045
    %5176 = vmatpush1.msra.mxu0 %v5044
    %5177 = vmatprep.subr.mxu0 %v5049
    %5178 = vmatpush1.msra.mxu0 %v5048
    %5179 = vmatprep.subr.mxu0 %v5053
    %5180 = vmatpush1.msra.mxu0 %v5052
    %5181 = vmatprep.subr.mxu0 %v5057
    %5182 = vmatpush1.msra.mxu0 %v5056
    %5183 = vmatprep.subr.mxu0 %v5061
    %5184 = vmatpush1.msra.mxu0 %v5060
    %5185 = vmatprep.subr.mxu0 %v5065
    %5186 = vmatpush1.msra.mxu0 %v5064
    %5187 = vmatprep.subr.mxu0 %v5069
    %5188 = vmatpush1.msra.mxu0 %v5068
    %5189 = vmatprep.subr.mxu0 %v5073
    %5190 = vmatpush1.msra.mxu0 %v5072
    %5191 = vmatprep.subr.mxu0 %v5077
    %5192 = vmatpush1.msra.mxu0 %v5076
    %5193 = vmatprep.subr.mxu0 %v5081
    %5194 = vmatpush1.msra.mxu0 %v5080
    %5195 = vmatprep.subr.mxu0 %v5085
    %5196 = vmatpush1.msra.mxu0 %v5084
    %5197 = vmatprep.subr.mxu0 %v5089
    %5198 = vmatpush1.msra.mxu0 %v5088
    %5199 = vmatprep.subr.mxu0 %v5093
    %5200 = vmatpush1.msra.mxu0 %v5092
    %5201 = vmatprep.subr.mxu0 %v5097
    %5202 = vmatpush1.msra.mxu0 %v5096
    %5203 = vmatprep.subr.mxu0 %v5101
    %5204 = vmatpush1.msra.mxu0 %v5100
    %5205 = vmatprep.subr.mxu0 0.0
    %5206 = vmatpush1.msra.mxu0 0.0
    %5207 = vmatprep.subr.mxu0 0.0
    %5208 = vmatpush1.msra.mxu0 0.0
    %5209 = vmatprep.subr.mxu0 0.0
    %5210 = vmatpush1.msra.mxu0 0.0
    %5211 = vmatprep.subr.mxu0 0.0
    %5212 = vmatpush1.msra.mxu0 0.0
    %5213 = vmatprep.subr.mxu0 0.0
    %5214 = vmatpush1.msra.mxu0 0.0
    %5215 = vmatprep.subr.mxu0 0.0
    %5216 = vmatpush1.msra.mxu0 0.0
    %5217 = vmatprep.subr.mxu0 0.0
    %5218 = vmatpush1.msra.mxu0 0.0
    %5219 = vmatprep.subr.mxu0 0.0
    %5220 = vmatpush1.msra.mxu0 0.0
    %5221 = vmatprep.subr.mxu0 0.0
    %5222 = vmatpush1.msra.mxu0 0.0
    %5223 = vmatprep.subr.mxu0 0.0
    %5224 = vmatpush1.msra.mxu0 0.0
    %5225 = vmatprep.subr.mxu0 0.0
    %5226 = vmatpush1.msra.mxu0 0.0
    %5227 = vmatprep.subr.mxu0 0.0
    %5228 = vmatpush1.msra.mxu0 0.0
    %5229 = vmatprep.subr.mxu0 0.0
    %5230 = vmatpush1.msra.mxu0 0.0
    %5231 = vmatprep.subr.mxu0 0.0
    %5232 = vmatpush1.msra.mxu0 0.0
    %5233 = vmatprep.subr.mxu0 0.0
    %5234 = vmatpush1.msra.mxu0 0.0
    %5235 = vmatprep.subr.mxu0 0.0
    %5236 = vmatpush1.msra.mxu0 0.0
    %5237 = vmatprep.mubr.f32.mxu0 0.0
    %5238 = vmatmul.mubr.f32.gmra.mrb[0].mxu0 %v4579
    %v5239 = vpop.f32.mrb[0].mxu0
    %v5240 = vadd.f32 0.0, %v5239
    %v5241 = vpop.f32.mrb[0].mxu0
    %v5242 = vadd.f32 0.0, %v5241
    %5243 = vdwg.mxu0
    %v5244 = vadd.f32 %v5034, %v5169
    %v5245 = vadd.f32 %v5035, %v5171
    %v5246 = vadd.f32 %v5036, %v5240
    %v5247 = vadd.f32 %v5037, %v5242
    %v5248 = vadd.f32 %v5244, %v81
    %v5249 = vadd.f32 %v5245, %v85
    %v5250 = vadd.f32 %v5246, %v89
    %v5251 = vadd.f32 %v5247, %v93
    %v5252 = vxor.u32 %v5248, 2147483648
    %v5253 = vmul.f32 %v5252, 1.442695
    %v5254 = vpow.pop %v5253
    %v5255 = vadd.f32 %v5254, 1.0
    %v5256 = vrcp.pop %v5255
    %v5257 = vmul.f32 1.0, %v5256
    %v5258 = vxor.u32 %v5249, 2147483648
    %v5259 = vmul.f32 %v5258, 1.442695
    %v5260 = vpow.pop %v5259
    %v5261 = vadd.f32 %v5260, 1.0
    %v5262 = vrcp.pop %v5261
    %v5263 = vmul.f32 1.0, %v5262
    %v5264 = vtanh.pop %v5250
    %v5265 = vxor.u32 %v5251, 2147483648
    %v5266 = vmul.f32 %v5265, 1.442695
    %v5267 = vpow.pop %v5266
    %v5268 = vadd.f32 %v5267, 1.0
    %v5269 = vrcp.pop %v5268
    %v5270 = vmul.f32 1.0, %v5269
    %v5271 = vmul.f32 %v5263, %v4577
    %v5272 = vmul.f32 %v5257, %v5264
    %v5273 = vadd.f32 %v5271, %v5272
    %v5274 = vtanh.pop %v5273
    %v5275 = vmul.f32 %v5270, %v5274
    %v5276 = vld [vmem:[#allocation5] sm:$0xff]
    %v5277 = vld [vmem:[#allocation5 + $0x8] sm:$0xff]
    %v5278 = vld [vmem:[#allocation5 + $0x10] sm:$0xff]
    %v5279 = vld [vmem:[#allocation5 + $0x18] sm:$0xff]
    %v5280 = vld [vmem:[#allocation5 + $0x20] sm:$0xff]
    %v5281 = vld [vmem:[#allocation5 + $0x28] sm:$0xff]
    %v5282 = vld [vmem:[#allocation5 + $0x30] sm:$0xff]
    %v5283 = vld [vmem:[#allocation5 + $0x38] sm:$0xff]
    %v5284 = vld [vmem:[#allocation5 + $0x40] sm:$0xff]
    %v5285 = vld [vmem:[#allocation5 + $0x48] sm:$0xff]
    %v5286 = vld [vmem:[#allocation5 + $0x50] sm:$0xff]
    %v5287 = vld [vmem:[#allocation5 + $0x58] sm:$0xff]
    %v5288 = vld [vmem:[#allocation5 + $0x60] sm:$0xff]
    %v5289 = vld [vmem:[#allocation5 + $0x68] sm:$0xff]
    %v5290 = vld [vmem:[#allocation5 + $0x70] sm:$0xff]
    %v5291 = vld [vmem:[#allocation5 + $0x78] sm:$0xff]
    %v5292 = vld [vmem:[#allocation5 + $0x80] sm:$0xff]
    %v5293 = vld [vmem:[#allocation5 + $0x88] sm:$0xff]
    %v5294 = vld [vmem:[#allocation5 + $0x90] sm:$0xff]
    %v5295 = vld [vmem:[#allocation5 + $0x98] sm:$0xff]
    %v5296 = vld [vmem:[#allocation5 + $0xa0] sm:$0xff]
    %v5297 = vld [vmem:[#allocation5 + $0xa8] sm:$0xff]
    %v5298 = vld [vmem:[#allocation5 + $0xb0] sm:$0xff]
    %v5299 = vld [vmem:[#allocation5 + $0xb8] sm:$0xff]
    %v5300 = vld [vmem:[#allocation5 + $0xc0] sm:$0xff]
    %v5301 = vld [vmem:[#allocation5 + $0xc8] sm:$0xff]
    %v5302 = vld [vmem:[#allocation5 + $0xd0] sm:$0xff]
    %v5303 = vld [vmem:[#allocation5 + $0xd8] sm:$0xff]
    %v5304 = vld [vmem:[#allocation5 + $0xe0] sm:$0xff]
    %v5305 = vld [vmem:[#allocation5 + $0xe8] sm:$0xff]
    %v5306 = vld [vmem:[#allocation5 + $0xf0] sm:$0xff]
    %v5307 = vld [vmem:[#allocation5 + $0xf8] sm:$0xff]
    %v5308 = vld [vmem:[#allocation5 + $0x100] sm:$0xff]
    %v5309 = vld [vmem:[#allocation5 + $0x108] sm:$0xff]
    %v5310 = vld [vmem:[#allocation5 + $0x110] sm:$0xff]
    %v5311 = vld [vmem:[#allocation5 + $0x118] sm:$0xff]
    %v5312 = vld [vmem:[#allocation5 + $0x120] sm:$0xff]
    %v5313 = vld [vmem:[#allocation5 + $0x128] sm:$0xff]
    %v5314 = vld [vmem:[#allocation5 + $0x130] sm:$0xff]
    %v5315 = vld [vmem:[#allocation5 + $0x138] sm:$0xff]
    %v5316 = vld [vmem:[#allocation5 + $0x140] sm:$0xff]
    %v5317 = vld [vmem:[#allocation5 + $0x148] sm:$0xff]
    %v5318 = vld [vmem:[#allocation5 + $0x150] sm:$0xff]
    %v5319 = vld [vmem:[#allocation5 + $0x158] sm:$0xff]
    %v5320 = vld [vmem:[#allocation5 + $0x160] sm:$0xff]
    %v5321 = vld [vmem:[#allocation5 + $0x168] sm:$0xff]
    %v5322 = vld [vmem:[#allocation5 + $0x170] sm:$0xff]
    %v5323 = vld [vmem:[#allocation5 + $0x178] sm:$0xff]
    %v5324 = vld [vmem:[#allocation5 + $0x180] sm:$0xff]
    %v5325 = vld [vmem:[#allocation5 + $0x188] sm:$0xff]
    %v5326 = vld [vmem:[#allocation5 + $0x190] sm:$0xff]
    %v5327 = vld [vmem:[#allocation5 + $0x198] sm:$0xff]
    %v5328 = vld [vmem:[#allocation5 + $0x1a0] sm:$0xff]
    %v5329 = vld [vmem:[#allocation5 + $0x1a8] sm:$0xff]
    %v5330 = vld [vmem:[#allocation5 + $0x1b0] sm:$0xff]
    %v5331 = vld [vmem:[#allocation5 + $0x1b8] sm:$0xff]
    %v5332 = vld [vmem:[#allocation5 + $0x1c0] sm:$0xff]
    %v5333 = vld [vmem:[#allocation5 + $0x1c8] sm:$0xff]
    %v5334 = vld [vmem:[#allocation5 + $0x1d0] sm:$0xff]
    %v5335 = vld [vmem:[#allocation5 + $0x1d8] sm:$0xff]
    %v5336 = vld [vmem:[#allocation5 + $0x1e0] sm:$0xff]
    %v5337 = vld [vmem:[#allocation5 + $0x1e8] sm:$0xff]
    %v5338 = vld [vmem:[#allocation5 + $0x1f0] sm:$0xff]
    %v5339 = vld [vmem:[#allocation5 + $0x1f8] sm:$0xff]
    %v5340 = vld [vmem:[#allocation7] sm:$0xff]
    %v5341 = vld [vmem:[#allocation7 + $0x8] sm:$0xff]
    %v5342 = vld [vmem:[#allocation7 + $0x10] sm:$0xff]
    %v5343 = vld [vmem:[#allocation7 + $0x18] sm:$0xff]
    %v5344 = vld [vmem:[#allocation7 + $0x20] sm:$0xff]
    %v5345 = vld [vmem:[#allocation7 + $0x28] sm:$0xff]
    %v5346 = vld [vmem:[#allocation7 + $0x30] sm:$0xff]
    %v5347 = vld [vmem:[#allocation7 + $0x38] sm:$0xff]
    %v5348 = vld [vmem:[#allocation7 + $0x40] sm:$0xff]
    %v5349 = vld [vmem:[#allocation7 + $0x48] sm:$0xff]
    %v5350 = vld [vmem:[#allocation7 + $0x50] sm:$0xff]
    %v5351 = vld [vmem:[#allocation7 + $0x58] sm:$0xff]
    %v5352 = vld [vmem:[#allocation7 + $0x60] sm:$0xff]
    %v5353 = vld [vmem:[#allocation7 + $0x68] sm:$0xff]
    %v5354 = vld [vmem:[#allocation7 + $0x70] sm:$0xff]
    %v5355 = vld [vmem:[#allocation7 + $0x78] sm:$0xff]
    %v5356 = vld [vmem:[#allocation7 + $0x80] sm:$0xff]
    %v5357 = vld [vmem:[#allocation7 + $0x88] sm:$0xff]
    %v5358 = vld [vmem:[#allocation7 + $0x90] sm:$0xff]
    %v5359 = vld [vmem:[#allocation7 + $0x98] sm:$0xff]
    %v5360 = vld [vmem:[#allocation7 + $0xa0] sm:$0xff]
    %v5361 = vld [vmem:[#allocation7 + $0xa8] sm:$0xff]
    %v5362 = vld [vmem:[#allocation7 + $0xb0] sm:$0xff]
    %v5363 = vld [vmem:[#allocation7 + $0xb8] sm:$0xff]
    %v5364 = vld [vmem:[#allocation7 + $0xc0] sm:$0xff]
    %v5365 = vld [vmem:[#allocation7 + $0xc8] sm:$0xff]
    %v5366 = vld [vmem:[#allocation7 + $0xd0] sm:$0xff]
    %v5367 = vld [vmem:[#allocation7 + $0xd8] sm:$0xff]
    %v5368 = vld [vmem:[#allocation7 + $0xe0] sm:$0xff]
    %v5369 = vld [vmem:[#allocation7 + $0xe8] sm:$0xff]
    %v5370 = vld [vmem:[#allocation7 + $0xf0] sm:$0xff]
    %v5371 = vld [vmem:[#allocation7 + $0xf8] sm:$0xff]
    %v5372 = vld [vmem:[#allocation7 + $0x100] sm:$0xff]
    %v5373 = vld [vmem:[#allocation7 + $0x108] sm:$0xff]
    %v5374 = vld [vmem:[#allocation7 + $0x110] sm:$0xff]
    %v5375 = vld [vmem:[#allocation7 + $0x118] sm:$0xff]
    %v5376 = vld [vmem:[#allocation7 + $0x120] sm:$0xff]
    %v5377 = vld [vmem:[#allocation7 + $0x128] sm:$0xff]
    %v5378 = vld [vmem:[#allocation7 + $0x130] sm:$0xff]
    %v5379 = vld [vmem:[#allocation7 + $0x138] sm:$0xff]
    %v5380 = vld [vmem:[#allocation7 + $0x140] sm:$0xff]
    %v5381 = vld [vmem:[#allocation7 + $0x148] sm:$0xff]
    %v5382 = vld [vmem:[#allocation7 + $0x150] sm:$0xff]
    %v5383 = vld [vmem:[#allocation7 + $0x158] sm:$0xff]
    %v5384 = vld [vmem:[#allocation7 + $0x160] sm:$0xff]
    %v5385 = vld [vmem:[#allocation7 + $0x168] sm:$0xff]
    %v5386 = vld [vmem:[#allocation7 + $0x170] sm:$0xff]
    %v5387 = vld [vmem:[#allocation7 + $0x178] sm:$0xff]
    %v5388 = vld [vmem:[#allocation7 + $0x180] sm:$0xff]
    %v5389 = vld [vmem:[#allocation7 + $0x188] sm:$0xff]
    %v5390 = vld [vmem:[#allocation7 + $0x190] sm:$0xff]
    %v5391 = vld [vmem:[#allocation7 + $0x198] sm:$0xff]
    %v5392 = vld [vmem:[#allocation7 + $0x1a0] sm:$0xff]
    %v5393 = vld [vmem:[#allocation7 + $0x1a8] sm:$0xff]
    %v5394 = vld [vmem:[#allocation7 + $0x1b0] sm:$0xff]
    %v5395 = vld [vmem:[#allocation7 + $0x1b8] sm:$0xff]
    %v5396 = vld [vmem:[#allocation7 + $0x1c0] sm:$0xff]
    %v5397 = vld [vmem:[#allocation7 + $0x1c8] sm:$0xff]
    %v5398 = vld [vmem:[#allocation7 + $0x1d0] sm:$0xff]
    %v5399 = vld [vmem:[#allocation7 + $0x1d8] sm:$0xff]
    %v5400 = vld [vmem:[#allocation7 + $0x1e0] sm:$0xff]
    %v5401 = vld [vmem:[#allocation7 + $0x1e8] sm:$0xff]
    %v5402 = vld [vmem:[#allocation7 + $0x1f0] sm:$0xff]
    %v5403 = vld [vmem:[#allocation7 + $0x1f8] sm:$0xff]
    %5404 = vmatprep.subr.mxu0 %v5341
    %5405 = vmatpush1.msra.mxu0 %v5340
    %5406 = vmatprep.subr.mxu0 %v5345
    %5407 = vmatpush1.msra.mxu0 %v5344
    %5408 = vmatprep.subr.mxu0 %v5349
    %5409 = vmatpush1.msra.mxu0 %v5348
    %5410 = vmatprep.subr.mxu0 %v5353
    %5411 = vmatpush1.msra.mxu0 %v5352
    %5412 = vmatprep.subr.mxu0 %v5357
    %5413 = vmatpush1.msra.mxu0 %v5356
    %5414 = vmatprep.subr.mxu0 %v5361
    %5415 = vmatpush1.msra.mxu0 %v5360
    %5416 = vmatprep.subr.mxu0 %v5365
    %5417 = vmatpush1.msra.mxu0 %v5364
    %5418 = vmatprep.subr.mxu0 %v5369
    %5419 = vmatpush1.msra.mxu0 %v5368
    %5420 = vmatprep.subr.mxu0 %v5373
    %5421 = vmatpush1.msra.mxu0 %v5372
    %5422 = vmatprep.subr.mxu0 %v5377
    %5423 = vmatpush1.msra.mxu0 %v5376
    %5424 = vmatprep.subr.mxu0 %v5381
    %5425 = vmatpush1.msra.mxu0 %v5380
    %5426 = vmatprep.subr.mxu0 %v5385
    %5427 = vmatpush1.msra.mxu0 %v5384
    %5428 = vmatprep.subr.mxu0 %v5389
    %5429 = vmatpush1.msra.mxu0 %v5388
    %5430 = vmatprep.subr.mxu0 %v5393
    %5431 = vmatpush1.msra.mxu0 %v5392
    %5432 = vmatprep.subr.mxu0 %v5397
    %5433 = vmatpush1.msra.mxu0 %v5396
    %5434 = vmatprep.subr.mxu0 %v5401
    %5435 = vmatpush1.msra.mxu0 %v5400
    %5436 = vmatprep.subr.mxu0 0.0
    %5437 = vmatpush1.msra.mxu0 0.0
    %5438 = vmatprep.subr.mxu0 0.0
    %5439 = vmatpush1.msra.mxu0 0.0
    %5440 = vmatprep.subr.mxu0 0.0
    %5441 = vmatpush1.msra.mxu0 0.0
    %5442 = vmatprep.subr.mxu0 0.0
    %5443 = vmatpush1.msra.mxu0 0.0
    %5444 = vmatprep.subr.mxu0 0.0
    %5445 = vmatpush1.msra.mxu0 0.0
    %5446 = vmatprep.subr.mxu0 0.0
    %5447 = vmatpush1.msra.mxu0 0.0
    %5448 = vmatprep.subr.mxu0 0.0
    %5449 = vmatpush1.msra.mxu0 0.0
    %5450 = vmatprep.subr.mxu0 0.0
    %5451 = vmatpush1.msra.mxu0 0.0
    %5452 = vmatprep.subr.mxu0 0.0
    %5453 = vmatpush1.msra.mxu0 0.0
    %5454 = vmatprep.subr.mxu0 0.0
    %5455 = vmatpush1.msra.mxu0 0.0
    %5456 = vmatprep.subr.mxu0 0.0
    %5457 = vmatpush1.msra.mxu0 0.0
    %5458 = vmatprep.subr.mxu0 0.0
    %5459 = vmatpush1.msra.mxu0 0.0
    %5460 = vmatprep.subr.mxu0 0.0
    %5461 = vmatpush1.msra.mxu0 0.0
    %5462 = vmatprep.subr.mxu0 0.0
    %5463 = vmatpush1.msra.mxu0 0.0
    %5464 = vmatprep.subr.mxu0 0.0
    %5465 = vmatpush1.msra.mxu0 0.0
    %5466 = vmatprep.subr.mxu0 0.0
    %5467 = vmatpush1.msra.mxu0 0.0
    %5468 = vmatprep.mubr.f32.mxu0 0.0
    %5469 = vmatmul.mubr.f32.gmra.mrb[0].mxu0 %v5019
    %v5470 = vpop.f32.mrb[0].mxu0
    %v5471 = vadd.f32 0.0, %v5470
    %v5472 = vpop.f32.mrb[0].mxu0
    %v5473 = vadd.f32 0.0, %v5472
    %5474 = vdwg.mxu0
    %5475 = vmatprep.subr.mxu0 %v5343
    %5476 = vmatpush1.msra.mxu0 %v5342
    %5477 = vmatprep.subr.mxu0 %v5347
    %5478 = vmatpush1.msra.mxu0 %v5346
    %5479 = vmatprep.subr.mxu0 %v5351
    %5480 = vmatpush1.msra.mxu0 %v5350
    %5481 = vmatprep.subr.mxu0 %v5355
    %5482 = vmatpush1.msra.mxu0 %v5354
    %5483 = vmatprep.subr.mxu0 %v5359
    %5484 = vmatpush1.msra.mxu0 %v5358
    %5485 = vmatprep.subr.mxu0 %v5363
    %5486 = vmatpush1.msra.mxu0 %v5362
    %5487 = vmatprep.subr.mxu0 %v5367
    %5488 = vmatpush1.msra.mxu0 %v5366
    %5489 = vmatprep.subr.mxu0 %v5371
    %5490 = vmatpush1.msra.mxu0 %v5370
    %5491 = vmatprep.subr.mxu0 %v5375
    %5492 = vmatpush1.msra.mxu0 %v5374
    %5493 = vmatprep.subr.mxu0 %v5379
    %5494 = vmatpush1.msra.mxu0 %v5378
    %5495 = vmatprep.subr.mxu0 %v5383
    %5496 = vmatpush1.msra.mxu0 %v5382
    %5497 = vmatprep.subr.mxu0 %v5387
    %5498 = vmatpush1.msra.mxu0 %v5386
    %5499 = vmatprep.subr.mxu0 %v5391
    %5500 = vmatpush1.msra.mxu0 %v5390
    %5501 = vmatprep.subr.mxu0 %v5395
    %5502 = vmatpush1.msra.mxu0 %v5394
    %5503 = vmatprep.subr.mxu0 %v5399
    %5504 = vmatpush1.msra.mxu0 %v5398
    %5505 = vmatprep.subr.mxu0 %v5403
    %5506 = vmatpush1.msra.mxu0 %v5402
    %5507 = vmatprep.subr.mxu0 0.0
    %5508 = vmatpush1.msra.mxu0 0.0
    %5509 = vmatprep.subr.mxu0 0.0
    %5510 = vmatpush1.msra.mxu0 0.0
    %5511 = vmatprep.subr.mxu0 0.0
    %5512 = vmatpush1.msra.mxu0 0.0
    %5513 = vmatprep.subr.mxu0 0.0
    %5514 = vmatpush1.msra.mxu0 0.0
    %5515 = vmatprep.subr.mxu0 0.0
    %5516 = vmatpush1.msra.mxu0 0.0
    %5517 = vmatprep.subr.mxu0 0.0
    %5518 = vmatpush1.msra.mxu0 0.0
    %5519 = vmatprep.subr.mxu0 0.0
    %5520 = vmatpush1.msra.mxu0 0.0
    %5521 = vmatprep.subr.mxu0 0.0
    %5522 = vmatpush1.msra.mxu0 0.0
    %5523 = vmatprep.subr.mxu0 0.0
    %5524 = vmatpush1.msra.mxu0 0.0
    %5525 = vmatprep.subr.mxu0 0.0
    %5526 = vmatpush1.msra.mxu0 0.0
    %5527 = vmatprep.subr.mxu0 0.0
    %5528 = vmatpush1.msra.mxu0 0.0
    %5529 = vmatprep.subr.mxu0 0.0
    %5530 = vmatpush1.msra.mxu0 0.0
    %5531 = vmatprep.subr.mxu0 0.0
    %5532 = vmatpush1.msra.mxu0 0.0
    %5533 = vmatprep.subr.mxu0 0.0
    %5534 = vmatpush1.msra.mxu0 0.0
    %5535 = vmatprep.subr.mxu0 0.0
    %5536 = vmatpush1.msra.mxu0 0.0
    %5537 = vmatprep.subr.mxu0 0.0
    %5538 = vmatpush1.msra.mxu0 0.0
    %5539 = vmatprep.mubr.f32.mxu0 0.0
    %5540 = vmatmul.mubr.f32.gmra.mrb[0].mxu0 %v5019
    %v5541 = vpop.f32.mrb[0].mxu0
    %v5542 = vadd.f32 0.0, %v5541
    %v5543 = vpop.f32.mrb[0].mxu0
    %v5544 = vadd.f32 0.0, %v5543
    %5545 = vdwg.mxu0
    %5546 = vmatprep.subr.mxu0 %v5277
    %5547 = vmatpush1.msra.mxu0 %v5276
    %5548 = vmatprep.subr.mxu0 %v5281
    %5549 = vmatpush1.msra.mxu0 %v5280
    %5550 = vmatprep.subr.mxu0 %v5285
    %5551 = vmatpush1.msra.mxu0 %v5284
    %5552 = vmatprep.subr.mxu0 %v5289
    %5553 = vmatpush1.msra.mxu0 %v5288
    %5554 = vmatprep.subr.mxu0 %v5293
    %5555 = vmatpush1.msra.mxu0 %v5292
    %5556 = vmatprep.subr.mxu0 %v5297
    %5557 = vmatpush1.msra.mxu0 %v5296
    %5558 = vmatprep.subr.mxu0 %v5301
    %5559 = vmatpush1.msra.mxu0 %v5300
    %5560 = vmatprep.subr.mxu0 %v5305
    %5561 = vmatpush1.msra.mxu0 %v5304
    %5562 = vmatprep.subr.mxu0 %v5309
    %5563 = vmatpush1.msra.mxu0 %v5308
    %5564 = vmatprep.subr.mxu0 %v5313
    %5565 = vmatpush1.msra.mxu0 %v5312
    %5566 = vmatprep.subr.mxu0 %v5317
    %5567 = vmatpush1.msra.mxu0 %v5316
    %5568 = vmatprep.subr.mxu0 %v5321
    %5569 = vmatpush1.msra.mxu0 %v5320
    %5570 = vmatprep.subr.mxu0 %v5325
    %5571 = vmatpush1.msra.mxu0 %v5324
    %5572 = vmatprep.subr.mxu0 %v5329
    %5573 = vmatpush1.msra.mxu0 %v5328
    %5574 = vmatprep.subr.mxu0 %v5333
    %5575 = vmatpush1.msra.mxu0 %v5332
    %5576 = vmatprep.subr.mxu0 %v5337
    %5577 = vmatpush1.msra.mxu0 %v5336
    %5578 = vmatprep.subr.mxu0 0.0
    %5579 = vmatpush1.msra.mxu0 0.0
    %5580 = vmatprep.subr.mxu0 0.0
    %5581 = vmatpush1.msra.mxu0 0.0
    %5582 = vmatprep.subr.mxu0 0.0
    %5583 = vmatpush1.msra.mxu0 0.0
    %5584 = vmatprep.subr.mxu0 0.0
    %5585 = vmatpush1.msra.mxu0 0.0
    %5586 = vmatprep.subr.mxu0 0.0
    %5587 = vmatpush1.msra.mxu0 0.0
    %5588 = vmatprep.subr.mxu0 0.0
    %5589 = vmatpush1.msra.mxu0 0.0
    %5590 = vmatprep.subr.mxu0 0.0
    %5591 = vmatpush1.msra.mxu0 0.0
    %5592 = vmatprep.subr.mxu0 0.0
    %5593 = vmatpush1.msra.mxu0 0.0
    %5594 = vmatprep.subr.mxu0 0.0
    %5595 = vmatpush1.msra.mxu0 0.0
    %5596 = vmatprep.subr.mxu0 0.0
    %5597 = vmatpush1.msra.mxu0 0.0
    %5598 = vmatprep.subr.mxu0 0.0
    %5599 = vmatpush1.msra.mxu0 0.0
    %5600 = vmatprep.subr.mxu0 0.0
    %5601 = vmatpush1.msra.mxu0 0.0
    %5602 = vmatprep.subr.mxu0 0.0
    %5603 = vmatpush1.msra.mxu0 0.0
    %5604 = vmatprep.subr.mxu0 0.0
    %5605 = vmatpush1.msra.mxu0 0.0
    %5606 = vmatprep.subr.mxu0 0.0
    %5607 = vmatpush1.msra.mxu0 0.0
    %5608 = vmatprep.subr.mxu0 0.0
    %5609 = vmatpush1.msra.mxu0 0.0
    %5610 = vmatprep.mubr.f32.mxu0 0.0
    %5611 = vmatmul.mubr.f32.gmra.mrb[0].mxu0 %v5275
    %v5612 = vpop.f32.mrb[0].mxu0
    %v5613 = vadd.f32 %v5471, %v5612
    %v5614 = vpop.f32.mrb[0].mxu0
    %v5615 = vadd.f32 %v5473, %v5614
    %5616 = vdwg.mxu0
    %5617 = vmatprep.subr.mxu0 %v5279
    %5618 = vmatpush1.msra.mxu0 %v5278
    %5619 = vmatprep.subr.mxu0 %v5283
    %5620 = vmatpush1.msra.mxu0 %v5282
    %5621 = vmatprep.subr.mxu0 %v5287
    %5622 = vmatpush1.msra.mxu0 %v5286
    %5623 = vmatprep.subr.mxu0 %v5291
    %5624 = vmatpush1.msra.mxu0 %v5290
    %5625 = vmatprep.subr.mxu0 %v5295
    %5626 = vmatpush1.msra.mxu0 %v5294
    %5627 = vmatprep.subr.mxu0 %v5299
    %5628 = vmatpush1.msra.mxu0 %v5298
    %5629 = vmatprep.subr.mxu0 %v5303
    %5630 = vmatpush1.msra.mxu0 %v5302
    %5631 = vmatprep.subr.mxu0 %v5307
    %5632 = vmatpush1.msra.mxu0 %v5306
    %5633 = vmatprep.subr.mxu0 %v5311
    %5634 = vmatpush1.msra.mxu0 %v5310
    %5635 = vmatprep.subr.mxu0 %v5315
    %5636 = vmatpush1.msra.mxu0 %v5314
    %5637 = vmatprep.subr.mxu0 %v5319
    %5638 = vmatpush1.msra.mxu0 %v5318
    %5639 = vmatprep.subr.mxu0 %v5323
    %5640 = vmatpush1.msra.mxu0 %v5322
    %5641 = vmatprep.subr.mxu0 %v5327
    %5642 = vmatpush1.msra.mxu0 %v5326
    %5643 = vmatprep.subr.mxu0 %v5331
    %5644 = vmatpush1.msra.mxu0 %v5330
    %5645 = vmatprep.subr.mxu0 %v5335
    %5646 = vmatpush1.msra.mxu0 %v5334
    %5647 = vmatprep.subr.mxu0 %v5339
    %5648 = vmatpush1.msra.mxu0 %v5338
    %5649 = vmatprep.subr.mxu0 0.0
    %5650 = vmatpush1.msra.mxu0 0.0
    %5651 = vmatprep.subr.mxu0 0.0
    %5652 = vmatpush1.msra.mxu0 0.0
    %5653 = vmatprep.subr.mxu0 0.0
    %5654 = vmatpush1.msra.mxu0 0.0
    %5655 = vmatprep.subr.mxu0 0.0
    %5656 = vmatpush1.msra.mxu0 0.0
    %5657 = vmatprep.subr.mxu0 0.0
    %5658 = vmatpush1.msra.mxu0 0.0
    %5659 = vmatprep.subr.mxu0 0.0
    %5660 = vmatpush1.msra.mxu0 0.0
    %5661 = vmatprep.subr.mxu0 0.0
    %5662 = vmatpush1.msra.mxu0 0.0
    %5663 = vmatprep.subr.mxu0 0.0
    %5664 = vmatpush1.msra.mxu0 0.0
    %5665 = vmatprep.subr.mxu0 0.0
    %5666 = vmatpush1.msra.mxu0 0.0
    %5667 = vmatprep.subr.mxu0 0.0
    %5668 = vmatpush1.msra.mxu0 0.0
    %5669 = vmatprep.subr.mxu0 0.0
    %5670 = vmatpush1.msra.mxu0 0.0
    %5671 = vmatprep.subr.mxu0 0.0
    %5672 = vmatpush1.msra.mxu0 0.0
    %5673 = vmatprep.subr.mxu0 0.0
    %5674 = vmatpush1.msra.mxu0 0.0
    %5675 = vmatprep.subr.mxu0 0.0
    %5676 = vmatpush1.msra.mxu0 0.0
    %5677 = vmatprep.subr.mxu0 0.0
    %5678 = vmatpush1.msra.mxu0 0.0
    %5679 = vmatprep.subr.mxu0 0.0
    %5680 = vmatpush1.msra.mxu0 0.0
    %5681 = vmatprep.mubr.f32.mxu0 0.0
    %5682 = vmatmul.mubr.f32.gmra.mrb[0].mxu0 %v5275
    %v5683 = vpop.f32.mrb[0].mxu0
    %v5684 = vadd.f32 %v5542, %v5683
    %v5685 = vpop.f32.mrb[0].mxu0
    %v5686 = vadd.f32 %v5544, %v5685
    %5687 = vdwg.mxu0
    %v5688 = vadd.f32 %v5613, %v103
    %v5689 = vadd.f32 %v5615, %v107
    %v5690 = vadd.f32 %v5684, %v111
    %v5691 = vadd.f32 %v5686, %v115
    %v5692 = vxor.u32 %v5688, 2147483648
    %v5693 = vmul.f32 %v5692, 1.442695
    %v5694 = vpow.pop %v5693
    %v5695 = vadd.f32 %v5694, 1.0
    %v5696 = vrcp.pop %v5695
    %v5697 = vmul.f32 1.0, %v5696
    %v5698 = vxor.u32 %v5689, 2147483648
    %v5699 = vmul.f32 %v5698, 1.442695
    %v5700 = vpow.pop %v5699
    %v5701 = vadd.f32 %v5700, 1.0
    %v5702 = vrcp.pop %v5701
    %v5703 = vmul.f32 1.0, %v5702
    %v5704 = vtanh.pop %v5690
    %v5705 = vxor.u32 %v5691, 2147483648
    %v5706 = vmul.f32 %v5705, 1.442695
    %v5707 = vpow.pop %v5706
    %v5708 = vadd.f32 %v5707, 1.0
    %v5709 = vrcp.pop %v5708
    %v5710 = vmul.f32 1.0, %v5709
    %v5711 = vmul.f32 %v5703, %v5017
    %v5712 = vmul.f32 %v5697, %v5704
    %v5713 = vadd.f32 %v5711, %v5712
    %v5714 = vtanh.pop %v5713
    %v5715 = vmul.f32 %v5710, %v5714
    %v5716 = vmul.f32 %v5715, %v841
    %v5717 = vsel %vm844, %v5716, 0.0
    %5718 = vadd.xlane.f32.xlu0 %v5717
    %v5719 = vpop.xlane.xlu0 %5718
    %v5720 = vadd.f32 %v5719, %v126
    %s5721 = scalar_lea.vmem %s9, 14
    %5722 = vst.msk [vmem:[%s5721] sm:$0x3] %vm849, %v5720
    // Predicated region
    $region50: #{tpu_custom_call.1} parent=1 // pred_check
      _
    $region51: #{tpu_custom_call.1} parent=1 // pred_check_branch
      %5724 = sbr.rel (0) target = $region53
    $region52: #{tpu_custom_call.1} parent=1 // pred_region
      _
    $region53: #{tpu_custom_call.1} parent=1 // pred_fallthru
      _
    // Predicated region
    $region54: #{tpu_custom_call.1} parent=1 // pred_check
      _
    $region55: #{tpu_custom_call.1} parent=1 // pred_check_branch
      %5726 = sbr.rel (0) target = $region57
    $region56: #{tpu_custom_call.1} parent=1 // pred_region
      _
    $region57: #{tpu_custom_call.1} parent=1 // pred_fallthru
      _
    %5727 = vsyncpa [#allocation4], 1
    %5728 = vsyncpa [#allocation6], 1

</llo_original>
